<compile_context>
chip_gen: v6e
topology: v6e:2x2x1
jax: 0.10.0
libtpu: 0.0.40
codegen_flags: <defaults>
</compile_context>

<pallas_src>
import jax
import jax.numpy as jnp
from jax.experimental import pallas as pl
from jax.experimental.pallas import tpu as pltpu


def _round_up(x, m):
    return (x + m - 1) // m * m


def _encoder_kernel(len_ref,      # (Bp, 1)    int32 : per-sentence lengths (0 for pad rows)
                    x_ref,        # (T*Bp, E)  bf16  : embedded tokens, time-major rows
                    wih_ref,      # (E, 8Hp)   bf16  : [W_ih_f^T | W_ih_b^T], gate-padded
                    bias_ref,     # (1, 8Hp)   f32   : [b_f | b_b] (= b_ih + b_hh), gate-padded
                    whh_f_ref,    # (Hp, 4Hp)  bf16  : forward  W_hh^T, padded
                    whh_b_ref,    # (Hp, 4Hp)  bf16  : backward W_hh^T, padded
                    wproj_ref,    # (4Hp, 2Hp) bf16  : block-diag [Wh^T ; Wc^T]
                    enc_ref,      # out (T, Bp, 2Hp) f32 : fwd -> [...,:Hp], bwd -> [...,Hp:]
                    dproj_ref,    # out (Bp, 2Hp)    f32 : [dec_init_hidden | dec_init_cell]
                    gx_sc):       # scratch (T*Bp, 8Hp) f32 : hoisted input projection
    T, Bp, _ = enc_ref.shape
    Hp = whh_f_ref.shape[0]
    G4 = 4 * Hp

    lengths = len_ref[...]                                        # (Bp, 1) int32

    # ---- hoisted input projection: one large MXU GEMM + a single bias broadcast ----
    gx_sc[...] = (jnp.dot(x_ref[...], wih_ref[...],
                          preferred_element_type=jnp.float32)
                  + bias_ref[...])                                # (T*Bp, 8Hp) f32

    def lstm_gates(g, c_prev):                                    # PyTorch gate order i, f, g, o
        i = jax.nn.sigmoid(g[:, 0 * Hp:1 * Hp])
        f = jax.nn.sigmoid(g[:, 1 * Hp:2 * Hp])
        gg = jnp.tanh(g[:, 2 * Hp:3 * Hp])
        o = jax.nn.sigmoid(g[:, 3 * Hp:4 * Hp])
        c_new = f * c_prev + i * gg
        h_new = o * jnp.tanh(c_new)
        return h_new, c_new

    zeros = jnp.zeros((Bp, Hp), jnp.float32)
    h_f, c_f = zeros, zeros
    h_b, c_b = zeros, zeros

    # ---- fused, fully-unrolled bidirectional recurrence (skip-update length masking) ----
    # TODO(synk): for long sequences, stream Gx / enc over a T-chunk grid (BlockSpec
    # double-buffering, carries in scratch) instead of full VMEM residency + static unroll.
    for s in range(T):
        t_f = s
        t_b = T - 1 - s

        # forward chain
        g = (gx_sc[t_f * Bp:(t_f + 1) * Bp, 0:G4]
             + jnp.dot(h_f.astype(jnp.bfloat16), whh_f_ref[...],
                       preferred_element_type=jnp.float32))
        hf_new, cf_new = lstm_gates(g, c_f)
        m = t_f < lengths                                         # (Bp, 1) bool
        h_f = jnp.where(m, hf_new, h_f)
        c_f = jnp.where(m, cf_new, c_f)
        enc_ref[t_f, :, 0:Hp] = jnp.where(m, hf_new, 0.0)         # padded steps -> exact 0

        # backward chain (independent of the forward chain within an iteration)
        g = (gx_sc[t_b * Bp:(t_b + 1) * Bp, G4:2 * G4]
             + jnp.dot(h_b.astype(jnp.bfloat16), whh_b_ref[...],
                       preferred_element_type=jnp.float32))
        hb_new, cb_new = lstm_gates(g, c_b)
        m = t_b < lengths
        h_b = jnp.where(m, hb_new, h_b)
        c_b = jnp.where(m, cb_new, c_b)
        enc_ref[t_b, :, Hp:2 * Hp] = jnp.where(m, hb_new, 0.0)

    # ---- fused final projections: [h_f|h_b|c_f|c_b] @ block-diag(Wh^T, Wc^T) ----
    z = jnp.concatenate([h_f, h_b, c_f, c_b], axis=1).astype(jnp.bfloat16)  # (Bp, 4Hp)
    dproj_ref[...] = jnp.dot(z, wproj_ref[...], preferred_element_type=jnp.float32)


# ---------------- kernel-ready parameter packing (padding / transpose / fusion) ----------------

def _prep_w_ih(w_ih, H, Hp):
    # PyTorch weight_ih: (4H, E), gate blocks [i,f,g,o]  ->  (E, 4Hp) with each gate block
    # zero-padded H -> Hp so gate slices land on 128-lane boundaries.
    E = w_ih.shape[1]
    w4 = jnp.pad(w_ih.reshape(4, H, E), ((0, 0), (0, Hp - H), (0, 0)))
    return jnp.transpose(w4.reshape(4 * Hp, E))                   # (E, 4Hp)


def _prep_w_hh(w_hh, H, Hp):
    # PyTorch weight_hh: (4H, H) -> (Hp, 4Hp), gate- and input-padded with zeros
    # (padded hidden entries stay exactly zero through the recurrence).
    w4 = jnp.pad(w_hh.reshape(4, H, H), ((0, 0), (0, Hp - H), (0, Hp - H)))
    return jnp.transpose(w4.reshape(4 * Hp, Hp))                  # (Hp, 4Hp)


def _prep_bias(b, H, Hp):
    return jnp.pad(b.reshape(4, H), ((0, 0), (0, Hp - H))).reshape(1, 4 * Hp)


def _prep_w_proj(w_h, w_c, H, Hp):
    # Linear(2H -> H, bias=False) weights (H, 2H) -> one block-diagonal (4Hp, 2Hp) weight
    # so both projections run as a single matmul on the stacked [h_f|h_b|c_f|c_b] state.
    def half(w):
        wt = jnp.zeros((2 * Hp, Hp), w.dtype)
        wt = wt.at[0:H, 0:H].set(jnp.transpose(w[:, 0:H]))               # forward-direction half
        wt = wt.at[Hp:Hp + H, 0:H].set(jnp.transpose(w[:, H:2 * H]))     # backward-direction half
        return wt

    w_proj = jnp.zeros((4 * Hp, 2 * Hp), jnp.float32)
    w_proj = w_proj.at[0:2 * Hp, 0:Hp].set(half(w_h))
    w_proj = w_proj.at[2 * Hp:4 * Hp, Hp:2 * Hp].set(half(w_c))
    return w_proj


# ---------------- wrapper ----------------

def encoder_forward(source_padded, source_length, params):
    """source_padded: (T, B) int32 token ids; source_length: (B,) int32 (descending).

    Returns (enc_hidden (B, T, 2H), (dec_init_hidden (B, H), dec_init_cell (B, H)))."""
    T, B = source_padded.shape
    H = params["w_hh_f"].shape[1]
    Hp = _round_up(H, 128)          # lane-dense hidden
    Bp = _round_up(B, 8)            # sublane-dense batch

    # Glue: embedding lookup (gather) stays in plain JAX; padding row is zeroed in init.
    X = jnp.take(params["embedding"], source_padded, axis=0)      # (T, B, E) f32
    if Bp != B:
        X = jnp.pad(X, ((0, 0), (0, Bp - B), (0, 0)))
    X = X.reshape(T * Bp, -1).astype(jnp.bfloat16)                # time-major rows, bf16 MXU input

    lengths = jnp.zeros((Bp, 1), jnp.int32)
    lengths = lengths.at[:B, 0].set(jnp.asarray(source_length, jnp.int32))

    bf16 = jnp.bfloat16
    wih = jnp.concatenate([_prep_w_ih(params["w_ih_f"], H, Hp),
                           _prep_w_ih(params["w_ih_b"], H, Hp)], axis=1).astype(bf16)
    bias = jnp.concatenate([_prep_bias(params["b_f"], H, Hp),
                            _prep_bias(params["b_b"], H, Hp)], axis=1).astype(jnp.float32)
    whh_f = _prep_w_hh(params["w_hh_f"], H, Hp).astype(bf16)
    whh_b = _prep_w_hh(params["w_hh_b"], H, Hp).astype(bf16)
    w_proj = _prep_w_proj(params["w_hproj"], params["w_cproj"], H, Hp).astype(bf16)

    vmem = pl.BlockSpec(memory_space=pltpu.MemorySpace.VMEM)
    enc, dproj = pl.pallas_call(
        _encoder_kernel,
        out_shape=(jax.ShapeDtypeStruct((T, Bp, 2 * Hp), jnp.float32),
                   jax.ShapeDtypeStruct((Bp, 2 * Hp), jnp.float32)),
        in_specs=[vmem] * 7,
        out_specs=(vmem, vmem),
        scratch_shapes=[pltpu.VMEM((T * Bp, 8 * Hp), jnp.float32)],
        compiler_params=pltpu.CompilerParams(vmem_limit_bytes=48 * 1024 * 1024),
    )(lengths, X, wih, bias, whh_f, whh_b, w_proj)

    # Glue: de-pad + permute (T,B,2H) -> (B,T,2H), matching torch.permute.
    enc = enc[:, :B, :]
    if Hp != H:
        enc = jnp.concatenate([enc[..., 0:H], enc[..., Hp:Hp + H]], axis=-1)
    enc_hidden = jnp.transpose(enc, (1, 0, 2))                    # (B, T, 2H)
    dec_init_hidden = dproj[:B, 0:H]
    dec_init_cell = dproj[:B, Hp:Hp + H]
    return enc_hidden, (dec_init_hidden, dec_init_cell)


# ---------------- pure-JAX f32 reference (PyTorch packed bidirectional LSTM semantics) ----------------

def encoder_reference(source_padded, source_length, params):
    T, B = source_padded.shape
    H = params["w_hh_f"].shape[1]
    X = jnp.take(params["embedding"], source_padded, axis=0)      # (T, B, E) f32
    lengths = jnp.asarray(source_length, jnp.int32)

    def run(w_ih, w_hh, b, reverse):
        h = jnp.zeros((B, H), jnp.float32)
        c = jnp.zeros((B, H), jnp.float32)
        outs = [None] * T
        order = range(T - 1, -1, -1) if reverse else range(T)
        for t in order:
            g = X[t] @ w_ih.T + h @ w_hh.T + b
            i = jax.nn.sigmoid(g[:, 0 * H:1 * H])
            f = jax.nn.sigmoid(g[:, 1 * H:2 * H])
            gg = jnp.tanh(g[:, 2 * H:3 * H])
            o = jax.nn.sigmoid(g[:, 3 * H:4 * H])
            c_new = f * c + i * gg
            h_new = o * jnp.tanh(c_new)
            m = (t < lengths)[:, None]
            h = jnp.where(m, h_new, h)
            c = jnp.where(m, c_new, c)
            outs[t] = jnp.where(m, h_new, 0.0)
        return jnp.stack(outs, axis=0), h, c

    out_f, hf, cf = run(params["w_ih_f"], params["w_hh_f"], params["b_f"], reverse=False)
    out_b, hb, cb = run(params["w_ih_b"], params["w_hh_b"], params["b_b"], reverse=True)
    enc = jnp.transpose(jnp.concatenate([out_f, out_b], axis=-1), (1, 0, 2))   # (B, T, 2H)
    dec_h = jnp.concatenate([hf, hb], axis=1) @ params["w_hproj"].T
    dec_c = jnp.concatenate([cf, cb], axis=1) @ params["w_cproj"].T
    return enc, (dec_h, dec_c)


def make_params(vocab_size, embed_size, hidden_size, pad_idx=0, seed=0):
    key = jax.random.PRNGKey(seed)
    ks = jax.random.split(key, 11)
    E, H = embed_size, hidden_size
    s = 0.1

    emb = s * jax.random.normal(ks[0], (vocab_size, E), jnp.float32)
    emb = emb.at[pad_idx].set(0.0)                     # padding_idx row is zero

    # PyTorch LSTM params: weight_ih (4H, E), weight_hh (4H, H), biases (4H,), gates [i,f,g,o]
    w_ih_f = s * jax.random.normal(ks[1], (4 * H, E), jnp.float32)
    w_hh_f = s * jax.random.normal(ks[2], (4 * H, H), jnp.float32)
    b_f = (s * jax.random.normal(ks[3], (4 * H,), jnp.float32)
           + s * jax.random.normal(ks[4], (4 * H,), jnp.float32))   # b_ih + b_hh
    w_ih_b = s * jax.random.normal(ks[5], (4 * H, E), jnp.float32)
    w_hh_b = s * jax.random.normal(ks[6], (4 * H, H), jnp.float32)
    b_b = (s * jax.random.normal(ks[7], (4 * H,), jnp.float32)
           + s * jax.random.normal(ks[8], (4 * H,), jnp.float32))

    # Linear(2H -> H, bias=False): weight (H, 2H)
    w_h = s * jax.random.normal(ks[9], (H, 2 * H), jnp.float32)
    w_c = s * jax.random.normal(ks[10], (H, 2 * H), jnp.float32)

    return {
        "embedding": emb,
        "w_ih_f": w_ih_f, "w_hh_f": w_hh_f, "b_f": b_f,
        "w_ih_b": w_ih_b, "w_hh_b": w_hh_b, "b_b": b_b,
        "w_hproj": w_h, "w_cproj": w_c,
    }


if __name__ == "__main__":
    T, B = 8, 2            # max sentence length, batch
    V, E, H = 20, 16, 32   # vocab, embed_size, hidden_size
    PAD = 0

    key = jax.random.PRNGKey(0)
    tok_key, _ = jax.random.split(key)
    source_length = jnp.array([8, 5], jnp.int32)        # descending, like pack_padded
    tokens = jax.random.randint(tok_key, (T, B), 1, V, jnp.int32)
    # positions past each sentence's length hold <pad>
    t_idx = jnp.arange(T)[:, None]
    source_padded = jnp.where(t_idx < source_length[None, :], tokens, PAD)

    params = make_params(V, E, H, pad_idx=PAD, seed=0)

    fwd = jax.jit(encoder_forward)
    enc_hidden, (dec_h, dec_c) = fwd(source_padded, source_length, params)
    jax.block_until_ready((enc_hidden, dec_h, dec_c))

    assert enc_hidden.shape == (B, T, 2 * H)
    assert dec_h.shape == (B, H) and dec_c.shape == (B, H)
    # pad_packed_sequence semantics: hidden states past each length must be exactly zero
    assert float(jnp.abs(enc_hidden[1, 5:]).max()) == 0.0

    # correctness vs. pure-JAX f32 reference (kernel uses bf16 MXU operands -> loose tol)
    enc_ref, (dec_h_ref, dec_c_ref) = encoder_reference(source_padded, source_length, params)
    assert float(jnp.abs(enc_hidden - enc_ref).max()) < 3e-2
    assert float(jnp.abs(dec_h - dec_h_ref).max()) < 3e-2
    assert float(jnp.abs(dec_c - dec_c_ref).max()) < 3e-2

    print("KERNEL_OK")
</pallas_src>

<mosaic_0001>
module attributes {stable_mosaic.version = 11 : i64} {
  func.func @_encoder_kernel(%arg0: memref<8x1xi32, #tpu.memory_space<vmem>>, %arg1: memref<64x16xbf16, #tpu.memory_space<vmem>>, %arg2: memref<16x1024xbf16, #tpu.memory_space<vmem>>, %arg3: memref<1x1024xf32, #tpu.memory_space<vmem>>, %arg4: memref<128x512xbf16, #tpu.memory_space<vmem>>, %arg5: memref<128x512xbf16, #tpu.memory_space<vmem>>, %arg6: memref<512x256xbf16, #tpu.memory_space<vmem>>, %arg7: memref<8x8x256xf32, #tpu.memory_space<vmem>>, %arg8: memref<8x256xf32, #tpu.memory_space<vmem>>, %arg9: memref<64x1024xf32, #tpu.memory_space<vmem>>) attributes {dimension_semantics = [], scalar_prefetch = 0 : i64, scratch_operands = 1 : i64, tpu.core_type = #tpu.core_type<tc>} {
    %c0 = arith.constant 0 : index
    %c0_0 = arith.constant 0 : index
    %0 = vector.load %arg0[%c0, %c0_0] : memref<8x1xi32, #tpu.memory_space<vmem>>, vector<8x1xi32>
    %c0_1 = arith.constant 0 : index
    %c0_2 = arith.constant 0 : index
    %1 = vector.load %arg1[%c0_1, %c0_2] : memref<64x16xbf16, #tpu.memory_space<vmem>>, vector<64x16xbf16>
    %c0_3 = arith.constant 0 : index
    %c0_4 = arith.constant 0 : index
    %2 = vector.load %arg2[%c0_3, %c0_4] : memref<16x1024xbf16, #tpu.memory_space<vmem>>, vector<16x1024xbf16>
    %cst = arith.constant dense<0.000000e+00> : vector<64x1024xf32>
    %3 = tpu.matmul %1, %2, %cst {dimension_numbers = #tpu.dot_dimension_numbers<[1], [0], [0], [1], [0, 0, 1, 1], [], []>} : vector<64x16xbf16>, vector<16x1024xbf16>, vector<64x1024xf32> -> vector<64x1024xf32>
    %c0_5 = arith.constant 0 : index
    %c0_6 = arith.constant 0 : index
    %4 = vector.load %arg3[%c0_5, %c0_6] : memref<1x1024xf32, #tpu.memory_space<vmem>>, vector<1x1024xf32>
    %5 = vector.broadcast %4 : vector<1x1024xf32> to vector<64x1024xf32>
    %6 = arith.addf %3, %5 : vector<64x1024xf32>
    %c0_7 = arith.constant 0 : index
    %c0_8 = arith.constant 0 : index
    %7 = vector.load %arg9[%c0_7, %c0_8] : memref<64x1024xf32, #tpu.memory_space<vmem>>, vector<64x1024xf32>
    tpu.vector_store %arg9[%c0_7, %c0_8], %6 {strides = array<i32>} : memref<64x1024xf32, #tpu.memory_space<vmem>>, vector<64x1024xf32>,
    %cst_9 = arith.constant 0.000000e+00 : f32
    %8 = vector.broadcast %cst_9 : f32 to vector<8x128xf32>
    %c0_10 = arith.constant 0 : index
    %c0_11 = arith.constant 0 : index
    %9 = vector.load %arg9[%c0_10, %c0_11] : memref<64x1024xf32, #tpu.memory_space<vmem>>, vector<8x512xf32>
    %10 = arith.truncf %8 : vector<8x128xf32> to vector<8x128xbf16>
    %c0_12 = arith.constant 0 : index
    %c0_13 = arith.constant 0 : index
    %11 = vector.load %arg4[%c0_12, %c0_13] : memref<128x512xbf16, #tpu.memory_space<vmem>>, vector<128x512xbf16>
    %cst_14 = arith.constant dense<0.000000e+00> : vector<8x512xf32>
    %12 = tpu.matmul %10, %11, %cst_14 {dimension_numbers = #tpu.dot_dimension_numbers<[1], [0], [0], [1], [0, 0, 1, 1], [], []>} : vector<8x128xbf16>, vector<128x512xbf16>, vector<8x512xf32> -> vector<8x512xf32>
    %13 = arith.addf %9, %12 : vector<8x512xf32>
    %14 = vector.extract_strided_slice %13 {offsets = [0, 0], sizes = [8, 128], strides = [1, 1]} : vector<8x512xf32> to vector<8x128xf32>
    %15 = arith.negf %14 : vector<8x128xf32>
    %16 = math.exp %15 : vector<8x128xf32>
    %cst_15 = arith.constant 1.000000e+00 : f32
    %17 = vector.broadcast %cst_15 : f32 to vector<8x128xf32>
    %18 = arith.addf %17, %16 : vector<8x128xf32>
    %19 = arith.divf %17, %18 : vector<8x128xf32>
    %20 = vector.extract_strided_slice %13 {offsets = [0, 128], sizes = [8, 128], strides = [1, 1]} : vector<8x512xf32> to vector<8x128xf32>
    %21 = arith.negf %20 : vector<8x128xf32>
    %22 = math.exp %21 : vector<8x128xf32>
    %cst_16 = arith.constant 1.000000e+00 : f32
    %23 = vector.broadcast %cst_16 : f32 to vector<8x128xf32>
    %24 = arith.addf %23, %22 : vector<8x128xf32>
    %25 = arith.divf %23, %24 : vector<8x128xf32>
    %26 = vector.extract_strided_slice %13 {offsets = [0, 256], sizes = [8, 128], strides = [1, 1]} : vector<8x512xf32> to vector<8x128xf32>
    %27 = math.tanh %26 : vector<8x128xf32>
    %28 = vector.extract_strided_slice %13 {offsets = [0, 384], sizes = [8, 128], strides = [1, 1]} : vector<8x512xf32> to vector<8x128xf32>
    %29 = arith.negf %28 : vector<8x128xf32>
    %30 = math.exp %29 : vector<8x128xf32>
    %cst_17 = arith.constant 1.000000e+00 : f32
    %31 = vector.broadcast %cst_17 : f32 to vector<8x128xf32>
    %32 = arith.addf %31, %30 : vector<8x128xf32>
    %33 = arith.divf %31, %32 : vector<8x128xf32>
    %34 = arith.mulf %25, %8 : vector<8x128xf32>
    %35 = arith.mulf %19, %27 : vector<8x128xf32>
    %36 = arith.addf %34, %35 : vector<8x128xf32>
    %37 = math.tanh %36 : vector<8x128xf32>
    %38 = arith.mulf %33, %37 : vector<8x128xf32>
    %c0_i32 = arith.constant 0 : i32
    %39 = vector.broadcast %c0_i32 : i32 to vector<8x1xi32>
    %40 = arith.cmpi sgt, %0, %39 : vector<8x1xi32>
    %41 = vector.shape_cast %40 : vector<8x1xi1> to vector<8x1xi1>
    %42 = vector.broadcast %41 : vector<8x1xi1> to vector<8x128xi1>
    %43 = arith.select %42, %38, %8 : vector<8x128xi1>, vector<8x128xf32>
    %44 = vector.shape_cast %40 : vector<8x1xi1> to vector<8x1xi1>
    %45 = vector.broadcast %44 : vector<8x1xi1> to vector<8x128xi1>
    %46 = arith.select %45, %36, %8 : vector<8x128xi1>, vector<8x128xf32>
    %cst_18 = arith.constant 0.000000e+00 : f32
    %47 = vector.shape_cast %40 : vector<8x1xi1> to vector<8x1xi1>
    %48 = vector.broadcast %47 : vector<8x1xi1> to vector<8x128xi1>
    %49 = vector.broadcast %cst_18 : f32 to vector<8x128xf32>
    %50 = arith.select %48, %38, %49 : vector<8x128xi1>, vector<8x128xf32>
    %c0_19 = arith.constant 0 : index
    %c0_20 = arith.constant 0 : index
    %c0_21 = arith.constant 0 : index
    %51 = vector.load %arg7[%c0_19, %c0_20, %c0_21] : memref<8x8x256xf32, #tpu.memory_space<vmem>>, vector<1x8x128xf32>
    %52 = vector.shape_cast %51 : vector<1x8x128xf32> to vector<8x128xf32>
    %53 = vector.shape_cast %50 : vector<8x128xf32> to vector<1x8x128xf32>
    tpu.vector_store %arg7[%c0_19, %c0_20, %c0_21], %53 {strides = array<i32>} : memref<8x8x256xf32, #tpu.memory_space<vmem>>, vector<1x8x128xf32>,
    %c56 = arith.constant 56 : index
    %c512 = arith.constant 512 : index
    %54 = vector.load %arg9[%c56, %c512] : memref<64x1024xf32, #tpu.memory_space<vmem>>, vector<8x512xf32>
    %55 = arith.truncf %8 : vector<8x128xf32> to vector<8x128xbf16>
    %c0_22 = arith.constant 0 : index
    %c0_23 = arith.constant 0 : index
    %56 = vector.load %arg5[%c0_22, %c0_23] : memref<128x512xbf16, #tpu.memory_space<vmem>>, vector<128x512xbf16>
    %cst_24 = arith.constant dense<0.000000e+00> : vector<8x512xf32>
    %57 = tpu.matmul %55, %56, %cst_24 {dimension_numbers = #tpu.dot_dimension_numbers<[1], [0], [0], [1], [0, 0, 1, 1], [], []>} : vector<8x128xbf16>, vector<128x512xbf16>, vector<8x512xf32> -> vector<8x512xf32>
    %58 = arith.addf %54, %57 : vector<8x512xf32>
    %59 = vector.extract_strided_slice %58 {offsets = [0, 0], sizes = [8, 128], strides = [1, 1]} : vector<8x512xf32> to vector<8x128xf32>
    %60 = arith.negf %59 : vector<8x128xf32>
    %61 = math.exp %60 : vector<8x128xf32>
    %cst_25 = arith.constant 1.000000e+00 : f32
    %62 = vector.broadcast %cst_25 : f32 to vector<8x128xf32>
    %63 = arith.addf %62, %61 : vector<8x128xf32>
    %64 = arith.divf %62, %63 : vector<8x128xf32>
    %65 = vector.extract_strided_slice %58 {offsets = [0, 128], sizes = [8, 128], strides = [1, 1]} : vector<8x512xf32> to vector<8x128xf32>
    %66 = arith.negf %65 : vector<8x128xf32>
    %67 = math.exp %66 : vector<8x128xf32>
    %cst_26 = arith.constant 1.000000e+00 : f32
    %68 = vector.broadcast %cst_26 : f32 to vector<8x128xf32>
    %69 = arith.addf %68, %67 : vector<8x128xf32>
    %70 = arith.divf %68, %69 : vector<8x128xf32>
    %71 = vector.extract_strided_slice %58 {offsets = [0, 256], sizes = [8, 128], strides = [1, 1]} : vector<8x512xf32> to vector<8x128xf32>
    %72 = math.tanh %71 : vector<8x128xf32>
    %73 = vector.extract_strided_slice %58 {offsets = [0, 384], sizes = [8, 128], strides = [1, 1]} : vector<8x512xf32> to vector<8x128xf32>
    %74 = arith.negf %73 : vector<8x128xf32>
    %75 = math.exp %74 : vector<8x128xf32>
    %cst_27 = arith.constant 1.000000e+00 : f32
    %76 = vector.broadcast %cst_27 : f32 to vector<8x128xf32>
    %77 = arith.addf %76, %75 : vector<8x128xf32>
    %78 = arith.divf %76, %77 : vector<8x128xf32>
    %79 = arith.mulf %70, %8 : vector<8x128xf32>
    %80 = arith.mulf %64, %72 : vector<8x128xf32>
    %81 = arith.addf %79, %80 : vector<8x128xf32>
    %82 = math.tanh %81 : vector<8x128xf32>
    %83 = arith.mulf %78, %82 : vector<8x128xf32>
    %c7_i32 = arith.constant 7 : i32
    %84 = vector.broadcast %c7_i32 : i32 to vector<8x1xi32>
    %85 = arith.cmpi sgt, %0, %84 : vector<8x1xi32>
    %86 = vector.shape_cast %85 : vector<8x1xi1> to vector<8x1xi1>
    %87 = vector.broadcast %86 : vector<8x1xi1> to vector<8x128xi1>
    %88 = arith.select %87, %83, %8 : vector<8x128xi1>, vector<8x128xf32>
    %89 = vector.shape_cast %85 : vector<8x1xi1> to vector<8x1xi1>
    %90 = vector.broadcast %89 : vector<8x1xi1> to vector<8x128xi1>
    %91 = arith.select %90, %81, %8 : vector<8x128xi1>, vector<8x128xf32>
    %cst_28 = arith.constant 0.000000e+00 : f32
    %92 = vector.shape_cast %85 : vector<8x1xi1> to vector<8x1xi1>
    %93 = vector.broadcast %92 : vector<8x1xi1> to vector<8x128xi1>
    %94 = vector.broadcast %cst_28 : f32 to vector<8x128xf32>
    %95 = arith.select %93, %83, %94 : vector<8x128xi1>, vector<8x128xf32>
    %c7 = arith.constant 7 : index
    %c0_29 = arith.constant 0 : index
    %c128 = arith.constant 128 : index
    %96 = vector.load %arg7[%c7, %c0_29, %c128] : memref<8x8x256xf32, #tpu.memory_space<vmem>>, vector<1x8x128xf32>
    %97 = vector.shape_cast %96 : vector<1x8x128xf32> to vector<8x128xf32>
    %98 = vector.shape_cast %95 : vector<8x128xf32> to vector<1x8x128xf32>
    tpu.vector_store %arg7[%c7, %c0_29, %c128], %98 {strides = array<i32>} : memref<8x8x256xf32, #tpu.memory_space<vmem>>, vector<1x8x128xf32>,
    %c8 = arith.constant 8 : index
    %c0_30 = arith.constant 0 : index
    %99 = vector.load %arg9[%c8, %c0_30] : memref<64x1024xf32, #tpu.memory_space<vmem>>, vector<8x512xf32>
    %100 = arith.truncf %43 : vector<8x128xf32> to vector<8x128xbf16>
    %c0_31 = arith.constant 0 : index
    %c0_32 = arith.constant 0 : index
    %101 = vector.load %arg4[%c0_31, %c0_32] : memref<128x512xbf16, #tpu.memory_space<vmem>>, vector<128x512xbf16>
    %cst_33 = arith.constant dense<0.000000e+00> : vector<8x512xf32>
    %102 = tpu.matmul %100, %101, %cst_33 {dimension_numbers = #tpu.dot_dimension_numbers<[1], [0], [0], [1], [0, 0, 1, 1], [], []>} : vector<8x128xbf16>, vector<128x512xbf16>, vector<8x512xf32> -> vector<8x512xf32>
    %103 = arith.addf %99, %102 : vector<8x512xf32>
    %104 = vector.extract_strided_slice %103 {offsets = [0, 0], sizes = [8, 128], strides = [1, 1]} : vector<8x512xf32> to vector<8x128xf32>
    %105 = arith.negf %104 : vector<8x128xf32>
    %106 = math.exp %105 : vector<8x128xf32>
    %cst_34 = arith.constant 1.000000e+00 : f32
    %107 = vector.broadcast %cst_34 : f32 to vector<8x128xf32>
    %108 = arith.addf %107, %106 : vector<8x128xf32>
    %109 = arith.divf %107, %108 : vector<8x128xf32>
    %110 = vector.extract_strided_slice %103 {offsets = [0, 128], sizes = [8, 128], strides = [1, 1]} : vector<8x512xf32> to vector<8x128xf32>
    %111 = arith.negf %110 : vector<8x128xf32>
    %112 = math.exp %111 : vector<8x128xf32>
    %cst_35 = arith.constant 1.000000e+00 : f32
    %113 = vector.broadcast %cst_35 : f32 to vector<8x128xf32>
    %114 = arith.addf %113, %112 : vector<8x128xf32>
    %115 = arith.divf %113, %114 : vector<8x128xf32>
    %116 = vector.extract_strided_slice %103 {offsets = [0, 256], sizes = [8, 128], strides = [1, 1]} : vector<8x512xf32> to vector<8x128xf32>
    %117 = math.tanh %116 : vector<8x128xf32>
    %118 = vector.extract_strided_slice %103 {offsets = [0, 384], sizes = [8, 128], strides = [1, 1]} : vector<8x512xf32> to vector<8x128xf32>
    %119 = arith.negf %118 : vector<8x128xf32>
    %120 = math.exp %119 : vector<8x128xf32>
    %cst_36 = arith.constant 1.000000e+00 : f32
    %121 = vector.broadcast %cst_36 : f32 to vector<8x128xf32>
    %122 = arith.addf %121, %120 : vector<8x128xf32>
    %123 = arith.divf %121, %122 : vector<8x128xf32>
    %124 = arith.mulf %115, %46 : vector<8x128xf32>
    %125 = arith.mulf %109, %117 : vector<8x128xf32>
    %126 = arith.addf %124, %125 : vector<8x128xf32>
    %127 = math.tanh %126 : vector<8x128xf32>
    %128 = arith.mulf %123, %127 : vector<8x128xf32>
    %c1_i32 = arith.constant 1 : i32
    %129 = vector.broadcast %c1_i32 : i32 to vector<8x1xi32>
    %130 = arith.cmpi sgt, %0, %129 : vector<8x1xi32>
    %131 = vector.shape_cast %130 : vector<8x1xi1> to vector<8x1xi1>
    %132 = vector.broadcast %131 : vector<8x1xi1> to vector<8x128xi1>
    %133 = arith.select %132, %128, %43 : vector<8x128xi1>, vector<8x128xf32>
    %134 = vector.shape_cast %130 : vector<8x1xi1> to vector<8x1xi1>
    %135 = vector.broadcast %134 : vector<8x1xi1> to vector<8x128xi1>
    %136 = arith.select %135, %126, %46 : vector<8x128xi1>, vector<8x128xf32>
    %cst_37 = arith.constant 0.000000e+00 : f32
    %137 = vector.shape_cast %130 : vector<8x1xi1> to vector<8x1xi1>
    %138 = vector.broadcast %137 : vector<8x1xi1> to vector<8x128xi1>
    %139 = vector.broadcast %cst_37 : f32 to vector<8x128xf32>
    %140 = arith.select %138, %128, %139 : vector<8x128xi1>, vector<8x128xf32>
    %c1 = arith.constant 1 : index
    %c0_38 = arith.constant 0 : index
    %c0_39 = arith.constant 0 : index
    %141 = vector.load %arg7[%c1, %c0_38, %c0_39] : memref<8x8x256xf32, #tpu.memory_space<vmem>>, vector<1x8x128xf32>
    %142 = vector.shape_cast %141 : vector<1x8x128xf32> to vector<8x128xf32>
    %143 = vector.shape_cast %140 : vector<8x128xf32> to vector<1x8x128xf32>
    tpu.vector_store %arg7[%c1, %c0_38, %c0_39], %143 {strides = array<i32>} : memref<8x8x256xf32, #tpu.memory_space<vmem>>, vector<1x8x128xf32>,
    %c48 = arith.constant 48 : index
    %c512_40 = arith.constant 512 : index
    %144 = vector.load %arg9[%c48, %c512_40] : memref<64x1024xf32, #tpu.memory_space<vmem>>, vector<8x512xf32>
    %145 = arith.truncf %88 : vector<8x128xf32> to vector<8x128xbf16>
    %c0_41 = arith.constant 0 : index
    %c0_42 = arith.constant 0 : index
    %146 = vector.load %arg5[%c0_41, %c0_42] : memref<128x512xbf16, #tpu.memory_space<vmem>>, vector<128x512xbf16>
    %cst_43 = arith.constant dense<0.000000e+00> : vector<8x512xf32>
    %147 = tpu.matmul %145, %146, %cst_43 {dimension_numbers = #tpu.dot_dimension_numbers<[1], [0], [0], [1], [0, 0, 1, 1], [], []>} : vector<8x128xbf16>, vector<128x512xbf16>, vector<8x512xf32> -> vector<8x512xf32>
    %148 = arith.addf %144, %147 : vector<8x512xf32>
    %149 = vector.extract_strided_slice %148 {offsets = [0, 0], sizes = [8, 128], strides = [1, 1]} : vector<8x512xf32> to vector<8x128xf32>
    %150 = arith.negf %149 : vector<8x128xf32>
    %151 = math.exp %150 : vector<8x128xf32>
    %cst_44 = arith.constant 1.000000e+00 : f32
    %152 = vector.broadcast %cst_44 : f32 to vector<8x128xf32>
    %153 = arith.addf %152, %151 : vector<8x128xf32>
    %154 = arith.divf %152, %153 : vector<8x128xf32>
    %155 = vector.extract_strided_slice %148 {offsets = [0, 128], sizes = [8, 128], strides = [1, 1]} : vector<8x512xf32> to vector<8x128xf32>
    %156 = arith.negf %155 : vector<8x128xf32>
    %157 = math.exp %156 : vector<8x128xf32>
    %cst_45 = arith.constant 1.000000e+00 : f32
    %158 = vector.broadcast %cst_45 : f32 to vector<8x128xf32>
    %159 = arith.addf %158, %157 : vector<8x128xf32>
    %160 = arith.divf %158, %159 : vector<8x128xf32>
    %161 = vector.extract_strided_slice %148 {offsets = [0, 256], sizes = [8, 128], strides = [1, 1]} : vector<8x512xf32> to vector<8x128xf32>
    %162 = math.tanh %161 : vector<8x128xf32>
    %163 = vector.extract_strided_slice %148 {offsets = [0, 384], sizes = [8, 128], strides = [1, 1]} : vector<8x512xf32> to vector<8x128xf32>
    %164 = arith.negf %163 : vector<8x128xf32>
    %165 = math.exp %164 : vector<8x128xf32>
    %cst_46 = arith.constant 1.000000e+00 : f32
    %166 = vector.broadcast %cst_46 : f32 to vector<8x128xf32>
    %167 = arith.addf %166, %165 : vector<8x128xf32>
    %168 = arith.divf %166, %167 : vector<8x128xf32>
    %169 = arith.mulf %160, %91 : vector<8x128xf32>
    %170 = arith.mulf %154, %162 : vector<8x128xf32>
    %171 = arith.addf %169, %170 : vector<8x128xf32>
    %172 = math.tanh %171 : vector<8x128xf32>
    %173 = arith.mulf %168, %172 : vector<8x128xf32>
    %c6_i32 = arith.constant 6 : i32
    %174 = vector.broadcast %c6_i32 : i32 to vector<8x1xi32>
    %175 = arith.cmpi sgt, %0, %174 : vector<8x1xi32>
    %176 = vector.shape_cast %175 : vector<8x1xi1> to vector<8x1xi1>
    %177 = vector.broadcast %176 : vector<8x1xi1> to vector<8x128xi1>
    %178 = arith.select %177, %173, %88 : vector<8x128xi1>, vector<8x128xf32>
    %179 = vector.shape_cast %175 : vector<8x1xi1> to vector<8x1xi1>
    %180 = vector.broadcast %179 : vector<8x1xi1> to vector<8x128xi1>
    %181 = arith.select %180, %171, %91 : vector<8x128xi1>, vector<8x128xf32>
    %cst_47 = arith.constant 0.000000e+00 : f32
    %182 = vector.shape_cast %175 : vector<8x1xi1> to vector<8x1xi1>
    %183 = vector.broadcast %182 : vector<8x1xi1> to vector<8x128xi1>
    %184 = vector.broadcast %cst_47 : f32 to vector<8x128xf32>
    %185 = arith.select %183, %173, %184 : vector<8x128xi1>, vector<8x128xf32>
    %c6 = arith.constant 6 : index
    %c0_48 = arith.constant 0 : index
    %c128_49 = arith.constant 128 : index
    %186 = vector.load %arg7[%c6, %c0_48, %c128_49] : memref<8x8x256xf32, #tpu.memory_space<vmem>>, vector<1x8x128xf32>
    %187 = vector.shape_cast %186 : vector<1x8x128xf32> to vector<8x128xf32>
    %188 = vector.shape_cast %185 : vector<8x128xf32> to vector<1x8x128xf32>
    tpu.vector_store %arg7[%c6, %c0_48, %c128_49], %188 {strides = array<i32>} : memref<8x8x256xf32, #tpu.memory_space<vmem>>, vector<1x8x128xf32>,
    %c16 = arith.constant 16 : index
    %c0_50 = arith.constant 0 : index
    %189 = vector.load %arg9[%c16, %c0_50] : memref<64x1024xf32, #tpu.memory_space<vmem>>, vector<8x512xf32>
    %190 = arith.truncf %133 : vector<8x128xf32> to vector<8x128xbf16>
    %c0_51 = arith.constant 0 : index
    %c0_52 = arith.constant 0 : index
    %191 = vector.load %arg4[%c0_51, %c0_52] : memref<128x512xbf16, #tpu.memory_space<vmem>>, vector<128x512xbf16>
    %cst_53 = arith.constant dense<0.000000e+00> : vector<8x512xf32>
    %192 = tpu.matmul %190, %191, %cst_53 {dimension_numbers = #tpu.dot_dimension_numbers<[1], [0], [0], [1], [0, 0, 1, 1], [], []>} : vector<8x128xbf16>, vector<128x512xbf16>, vector<8x512xf32> -> vector<8x512xf32>
    %193 = arith.addf %189, %192 : vector<8x512xf32>
    %194 = vector.extract_strided_slice %193 {offsets = [0, 0], sizes = [8, 128], strides = [1, 1]} : vector<8x512xf32> to vector<8x128xf32>
    %195 = arith.negf %194 : vector<8x128xf32>
    %196 = math.exp %195 : vector<8x128xf32>
    %cst_54 = arith.constant 1.000000e+00 : f32
    %197 = vector.broadcast %cst_54 : f32 to vector<8x128xf32>
    %198 = arith.addf %197, %196 : vector<8x128xf32>
    %199 = arith.divf %197, %198 : vector<8x128xf32>
    %200 = vector.extract_strided_slice %193 {offsets = [0, 128], sizes = [8, 128], strides = [1, 1]} : vector<8x512xf32> to vector<8x128xf32>
    %201 = arith.negf %200 : vector<8x128xf32>
    %202 = math.exp %201 : vector<8x128xf32>
    %cst_55 = arith.constant 1.000000e+00 : f32
    %203 = vector.broadcast %cst_55 : f32 to vector<8x128xf32>
    %204 = arith.addf %203, %202 : vector<8x128xf32>
    %205 = arith.divf %203, %204 : vector<8x128xf32>
    %206 = vector.extract_strided_slice %193 {offsets = [0, 256], sizes = [8, 128], strides = [1, 1]} : vector<8x512xf32> to vector<8x128xf32>
    %207 = math.tanh %206 : vector<8x128xf32>
    %208 = vector.extract_strided_slice %193 {offsets = [0, 384], sizes = [8, 128], strides = [1, 1]} : vector<8x512xf32> to vector<8x128xf32>
    %209 = arith.negf %208 : vector<8x128xf32>
    %210 = math.exp %209 : vector<8x128xf32>
    %cst_56 = arith.constant 1.000000e+00 : f32
    %211 = vector.broadcast %cst_56 : f32 to vector<8x128xf32>
    %212 = arith.addf %211, %210 : vector<8x128xf32>
    %213 = arith.divf %211, %212 : vector<8x128xf32>
    %214 = arith.mulf %205, %136 : vector<8x128xf32>
    %215 = arith.mulf %199, %207 : vector<8x128xf32>
    %216 = arith.addf %214, %215 : vector<8x128xf32>
    %217 = math.tanh %216 : vector<8x128xf32>
    %218 = arith.mulf %213, %217 : vector<8x128xf32>
    %c2_i32 = arith.constant 2 : i32
    %219 = vector.broadcast %c2_i32 : i32 to vector<8x1xi32>
    %220 = arith.cmpi sgt, %0, %219 : vector<8x1xi32>
    %221 = vector.shape_cast %220 : vector<8x1xi1> to vector<8x1xi1>
    %222 = vector.broadcast %221 : vector<8x1xi1> to vector<8x128xi1>
    %223 = arith.select %222, %218, %133 : vector<8x128xi1>, vector<8x128xf32>
    %224 = vector.shape_cast %220 : vector<8x1xi1> to vector<8x1xi1>
    %225 = vector.broadcast %224 : vector<8x1xi1> to vector<8x128xi1>
    %226 = arith.select %225, %216, %136 : vector<8x128xi1>, vector<8x128xf32>
    %cst_57 = arith.constant 0.000000e+00 : f32
    %227 = vector.shape_cast %220 : vector<8x1xi1> to vector<8x1xi1>
    %228 = vector.broadcast %227 : vector<8x1xi1> to vector<8x128xi1>
    %229 = vector.broadcast %cst_57 : f32 to vector<8x128xf32>
    %230 = arith.select %228, %218, %229 : vector<8x128xi1>, vector<8x128xf32>
    %c2 = arith.constant 2 : index
    %c0_58 = arith.constant 0 : index
    %c0_59 = arith.constant 0 : index
    %231 = vector.load %arg7[%c2, %c0_58, %c0_59] : memref<8x8x256xf32, #tpu.memory_space<vmem>>, vector<1x8x128xf32>
    %232 = vector.shape_cast %231 : vector<1x8x128xf32> to vector<8x128xf32>
    %233 = vector.shape_cast %230 : vector<8x128xf32> to vector<1x8x128xf32>
    tpu.vector_store %arg7[%c2, %c0_58, %c0_59], %233 {strides = array<i32>} : memref<8x8x256xf32, #tpu.memory_space<vmem>>, vector<1x8x128xf32>,
    %c40 = arith.constant 40 : index
    %c512_60 = arith.constant 512 : index
    %234 = vector.load %arg9[%c40, %c512_60] : memref<64x1024xf32, #tpu.memory_space<vmem>>, vector<8x512xf32>
    %235 = arith.truncf %178 : vector<8x128xf32> to vector<8x128xbf16>
    %c0_61 = arith.constant 0 : index
    %c0_62 = arith.constant 0 : index
    %236 = vector.load %arg5[%c0_61, %c0_62] : memref<128x512xbf16, #tpu.memory_space<vmem>>, vector<128x512xbf16>
    %cst_63 = arith.constant dense<0.000000e+00> : vector<8x512xf32>
    %237 = tpu.matmul %235, %236, %cst_63 {dimension_numbers = #tpu.dot_dimension_numbers<[1], [0], [0], [1], [0, 0, 1, 1], [], []>} : vector<8x128xbf16>, vector<128x512xbf16>, vector<8x512xf32> -> vector<8x512xf32>
    %238 = arith.addf %234, %237 : vector<8x512xf32>
    %239 = vector.extract_strided_slice %238 {offsets = [0, 0], sizes = [8, 128], strides = [1, 1]} : vector<8x512xf32> to vector<8x128xf32>
    %240 = arith.negf %239 : vector<8x128xf32>
    %241 = math.exp %240 : vector<8x128xf32>
    %cst_64 = arith.constant 1.000000e+00 : f32
    %242 = vector.broadcast %cst_64 : f32 to vector<8x128xf32>
    %243 = arith.addf %242, %241 : vector<8x128xf32>
    %244 = arith.divf %242, %243 : vector<8x128xf32>
    %245 = vector.extract_strided_slice %238 {offsets = [0, 128], sizes = [8, 128], strides = [1, 1]} : vector<8x512xf32> to vector<8x128xf32>
    %246 = arith.negf %245 : vector<8x128xf32>
    %247 = math.exp %246 : vector<8x128xf32>
    %cst_65 = arith.constant 1.000000e+00 : f32
    %248 = vector.broadcast %cst_65 : f32 to vector<8x128xf32>
    %249 = arith.addf %248, %247 : vector<8x128xf32>
    %250 = arith.divf %248, %249 : vector<8x128xf32>
    %251 = vector.extract_strided_slice %238 {offsets = [0, 256], sizes = [8, 128], strides = [1, 1]} : vector<8x512xf32> to vector<8x128xf32>
    %252 = math.tanh %251 : vector<8x128xf32>
    %253 = vector.extract_strided_slice %238 {offsets = [0, 384], sizes = [8, 128], strides = [1, 1]} : vector<8x512xf32> to vector<8x128xf32>
    %254 = arith.negf %253 : vector<8x128xf32>
    %255 = math.exp %254 : vector<8x128xf32>
    %cst_66 = arith.constant 1.000000e+00 : f32
    %256 = vector.broadcast %cst_66 : f32 to vector<8x128xf32>
    %257 = arith.addf %256, %255 : vector<8x128xf32>
    %258 = arith.divf %256, %257 : vector<8x128xf32>
    %259 = arith.mulf %250, %181 : vector<8x128xf32>
    %260 = arith.mulf %244, %252 : vector<8x128xf32>
    %261 = arith.addf %259, %260 : vector<8x128xf32>
    %262 = math.tanh %261 : vector<8x128xf32>
    %263 = arith.mulf %258, %262 : vector<8x128xf32>
    %c5_i32 = arith.constant 5 : i32
    %264 = vector.broadcast %c5_i32 : i32 to vector<8x1xi32>
    %265 = arith.cmpi sgt, %0, %264 : vector<8x1xi32>
    %266 = vector.shape_cast %265 : vector<8x1xi1> to vector<8x1xi1>
    %267 = vector.broadcast %266 : vector<8x1xi1> to vector<8x128xi1>
    %268 = arith.select %267, %263, %178 : vector<8x128xi1>, vector<8x128xf32>
    %269 = vector.shape_cast %265 : vector<8x1xi1> to vector<8x1xi1>
    %270 = vector.broadcast %269 : vector<8x1xi1> to vector<8x128xi1>
    %271 = arith.select %270, %261, %181 : vector<8x128xi1>, vector<8x128xf32>
    %cst_67 = arith.constant 0.000000e+00 : f32
    %272 = vector.shape_cast %265 : vector<8x1xi1> to vector<8x1xi1>
    %273 = vector.broadcast %272 : vector<8x1xi1> to vector<8x128xi1>
    %274 = vector.broadcast %cst_67 : f32 to vector<8x128xf32>
    %275 = arith.select %273, %263, %274 : vector<8x128xi1>, vector<8x128xf32>
    %c5 = arith.constant 5 : index
    %c0_68 = arith.constant 0 : index
    %c128_69 = arith.constant 128 : index
    %276 = vector.load %arg7[%c5, %c0_68, %c128_69] : memref<8x8x256xf32, #tpu.memory_space<vmem>>, vector<1x8x128xf32>
    %277 = vector.shape_cast %276 : vector<1x8x128xf32> to vector<8x128xf32>
    %278 = vector.shape_cast %275 : vector<8x128xf32> to vector<1x8x128xf32>
    tpu.vector_store %arg7[%c5, %c0_68, %c128_69], %278 {strides = array<i32>} : memref<8x8x256xf32, #tpu.memory_space<vmem>>, vector<1x8x128xf32>,
    %c24 = arith.constant 24 : index
    %c0_70 = arith.constant 0 : index
    %279 = vector.load %arg9[%c24, %c0_70] : memref<64x1024xf32, #tpu.memory_space<vmem>>, vector<8x512xf32>
    %280 = arith.truncf %223 : vector<8x128xf32> to vector<8x128xbf16>
    %c0_71 = arith.constant 0 : index
    %c0_72 = arith.constant 0 : index
    %281 = vector.load %arg4[%c0_71, %c0_72] : memref<128x512xbf16, #tpu.memory_space<vmem>>, vector<128x512xbf16>
    %cst_73 = arith.constant dense<0.000000e+00> : vector<8x512xf32>
    %282 = tpu.matmul %280, %281, %cst_73 {dimension_numbers = #tpu.dot_dimension_numbers<[1], [0], [0], [1], [0, 0, 1, 1], [], []>} : vector<8x128xbf16>, vector<128x512xbf16>, vector<8x512xf32> -> vector<8x512xf32>
    %283 = arith.addf %279, %282 : vector<8x512xf32>
    %284 = vector.extract_strided_slice %283 {offsets = [0, 0], sizes = [8, 128], strides = [1, 1]} : vector<8x512xf32> to vector<8x128xf32>
    %285 = arith.negf %284 : vector<8x128xf32>
    %286 = math.exp %285 : vector<8x128xf32>
    %cst_74 = arith.constant 1.000000e+00 : f32
    %287 = vector.broadcast %cst_74 : f32 to vector<8x128xf32>
    %288 = arith.addf %287, %286 : vector<8x128xf32>
    %289 = arith.divf %287, %288 : vector<8x128xf32>
    %290 = vector.extract_strided_slice %283 {offsets = [0, 128], sizes = [8, 128], strides = [1, 1]} : vector<8x512xf32> to vector<8x128xf32>
    %291 = arith.negf %290 : vector<8x128xf32>
    %292 = math.exp %291 : vector<8x128xf32>
    %cst_75 = arith.constant 1.000000e+00 : f32
    %293 = vector.broadcast %cst_75 : f32 to vector<8x128xf32>
    %294 = arith.addf %293, %292 : vector<8x128xf32>
    %295 = arith.divf %293, %294 : vector<8x128xf32>
    %296 = vector.extract_strided_slice %283 {offsets = [0, 256], sizes = [8, 128], strides = [1, 1]} : vector<8x512xf32> to vector<8x128xf32>
    %297 = math.tanh %296 : vector<8x128xf32>
    %298 = vector.extract_strided_slice %283 {offsets = [0, 384], sizes = [8, 128], strides = [1, 1]} : vector<8x512xf32> to vector<8x128xf32>
    %299 = arith.negf %298 : vector<8x128xf32>
    %300 = math.exp %299 : vector<8x128xf32>
    %cst_76 = arith.constant 1.000000e+00 : f32
    %301 = vector.broadcast %cst_76 : f32 to vector<8x128xf32>
    %302 = arith.addf %301, %300 : vector<8x128xf32>
    %303 = arith.divf %301, %302 : vector<8x128xf32>
    %304 = arith.mulf %295, %226 : vector<8x128xf32>
    %305 = arith.mulf %289, %297 : vector<8x128xf32>
    %306 = arith.addf %304, %305 : vector<8x128xf32>
    %307 = math.tanh %306 : vector<8x128xf32>
    %308 = arith.mulf %303, %307 : vector<8x128xf32>
    %c3_i32 = arith.constant 3 : i32
    %309 = vector.broadcast %c3_i32 : i32 to vector<8x1xi32>
    %310 = arith.cmpi sgt, %0, %309 : vector<8x1xi32>
    %311 = vector.shape_cast %310 : vector<8x1xi1> to vector<8x1xi1>
    %312 = vector.broadcast %311 : vector<8x1xi1> to vector<8x128xi1>
    %313 = arith.select %312, %308, %223 : vector<8x128xi1>, vector<8x128xf32>
    %314 = vector.shape_cast %310 : vector<8x1xi1> to vector<8x1xi1>
    %315 = vector.broadcast %314 : vector<8x1xi1> to vector<8x128xi1>
    %316 = arith.select %315, %306, %226 : vector<8x128xi1>, vector<8x128xf32>
    %cst_77 = arith.constant 0.000000e+00 : f32
    %317 = vector.shape_cast %310 : vector<8x1xi1> to vector<8x1xi1>
    %318 = vector.broadcast %317 : vector<8x1xi1> to vector<8x128xi1>
    %319 = vector.broadcast %cst_77 : f32 to vector<8x128xf32>
    %320 = arith.select %318, %308, %319 : vector<8x128xi1>, vector<8x128xf32>
    %c3 = arith.constant 3 : index
    %c0_78 = arith.constant 0 : index
    %c0_79 = arith.constant 0 : index
    %321 = vector.load %arg7[%c3, %c0_78, %c0_79] : memref<8x8x256xf32, #tpu.memory_space<vmem>>, vector<1x8x128xf32>
    %322 = vector.shape_cast %321 : vector<1x8x128xf32> to vector<8x128xf32>
    %323 = vector.shape_cast %320 : vector<8x128xf32> to vector<1x8x128xf32>
    tpu.vector_store %arg7[%c3, %c0_78, %c0_79], %323 {strides = array<i32>} : memref<8x8x256xf32, #tpu.memory_space<vmem>>, vector<1x8x128xf32>,
    %c32 = arith.constant 32 : index
    %c512_80 = arith.constant 512 : index
    %324 = vector.load %arg9[%c32, %c512_80] : memref<64x1024xf32, #tpu.memory_space<vmem>>, vector<8x512xf32>
    %325 = arith.truncf %268 : vector<8x128xf32> to vector<8x128xbf16>
    %c0_81 = arith.constant 0 : index
    %c0_82 = arith.constant 0 : index
    %326 = vector.load %arg5[%c0_81, %c0_82] : memref<128x512xbf16, #tpu.memory_space<vmem>>, vector<128x512xbf16>
    %cst_83 = arith.constant dense<0.000000e+00> : vector<8x512xf32>
    %327 = tpu.matmul %325, %326, %cst_83 {dimension_numbers = #tpu.dot_dimension_numbers<[1], [0], [0], [1], [0, 0, 1, 1], [], []>} : vector<8x128xbf16>, vector<128x512xbf16>, vector<8x512xf32> -> vector<8x512xf32>
    %328 = arith.addf %324, %327 : vector<8x512xf32>
    %329 = vector.extract_strided_slice %328 {offsets = [0, 0], sizes = [8, 128], strides = [1, 1]} : vector<8x512xf32> to vector<8x128xf32>
    %330 = arith.negf %329 : vector<8x128xf32>
    %331 = math.exp %330 : vector<8x128xf32>
    %cst_84 = arith.constant 1.000000e+00 : f32
    %332 = vector.broadcast %cst_84 : f32 to vector<8x128xf32>
    %333 = arith.addf %332, %331 : vector<8x128xf32>
    %334 = arith.divf %332, %333 : vector<8x128xf32>
    %335 = vector.extract_strided_slice %328 {offsets = [0, 128], sizes = [8, 128], strides = [1, 1]} : vector<8x512xf32> to vector<8x128xf32>
    %336 = arith.negf %335 : vector<8x128xf32>
    %337 = math.exp %336 : vector<8x128xf32>
    %cst_85 = arith.constant 1.000000e+00 : f32
    %338 = vector.broadcast %cst_85 : f32 to vector<8x128xf32>
    %339 = arith.addf %338, %337 : vector<8x128xf32>
    %340 = arith.divf %338, %339 : vector<8x128xf32>
    %341 = vector.extract_strided_slice %328 {offsets = [0, 256], sizes = [8, 128], strides = [1, 1]} : vector<8x512xf32> to vector<8x128xf32>
    %342 = math.tanh %341 : vector<8x128xf32>
    %343 = vector.extract_strided_slice %328 {offsets = [0, 384], sizes = [8, 128], strides = [1, 1]} : vector<8x512xf32> to vector<8x128xf32>
    %344 = arith.negf %343 : vector<8x128xf32>
    %345 = math.exp %344 : vector<8x128xf32>
    %cst_86 = arith.constant 1.000000e+00 : f32
    %346 = vector.broadcast %cst_86 : f32 to vector<8x128xf32>
    %347 = arith.addf %346, %345 : vector<8x128xf32>
    %348 = arith.divf %346, %347 : vector<8x128xf32>
    %349 = arith.mulf %340, %271 : vector<8x128xf32>
    %350 = arith.mulf %334, %342 : vector<8x128xf32>
    %351 = arith.addf %349, %350 : vector<8x128xf32>
    %352 = math.tanh %351 : vector<8x128xf32>
    %353 = arith.mulf %348, %352 : vector<8x128xf32>
    %c4_i32 = arith.constant 4 : i32
    %354 = vector.broadcast %c4_i32 : i32 to vector<8x1xi32>
    %355 = arith.cmpi sgt, %0, %354 : vector<8x1xi32>
    %356 = vector.shape_cast %355 : vector<8x1xi1> to vector<8x1xi1>
    %357 = vector.broadcast %356 : vector<8x1xi1> to vector<8x128xi1>
    %358 = arith.select %357, %353, %268 : vector<8x128xi1>, vector<8x128xf32>
    %359 = vector.shape_cast %355 : vector<8x1xi1> to vector<8x1xi1>
    %360 = vector.broadcast %359 : vector<8x1xi1> to vector<8x128xi1>
    %361 = arith.select %360, %351, %271 : vector<8x128xi1>, vector<8x128xf32>
    %cst_87 = arith.constant 0.000000e+00 : f32
    %362 = vector.shape_cast %355 : vector<8x1xi1> to vector<8x1xi1>
    %363 = vector.broadcast %362 : vector<8x1xi1> to vector<8x128xi1>
    %364 = vector.broadcast %cst_87 : f32 to vector<8x128xf32>
    %365 = arith.select %363, %353, %364 : vector<8x128xi1>, vector<8x128xf32>
    %c4 = arith.constant 4 : index
    %c0_88 = arith.constant 0 : index
    %c128_89 = arith.constant 128 : index
    %366 = vector.load %arg7[%c4, %c0_88, %c128_89] : memref<8x8x256xf32, #tpu.memory_space<vmem>>, vector<1x8x128xf32>
    %367 = vector.shape_cast %366 : vector<1x8x128xf32> to vector<8x128xf32>
    %368 = vector.shape_cast %365 : vector<8x128xf32> to vector<1x8x128xf32>
    tpu.vector_store %arg7[%c4, %c0_88, %c128_89], %368 {strides = array<i32>} : memref<8x8x256xf32, #tpu.memory_space<vmem>>, vector<1x8x128xf32>,
    %c32_90 = arith.constant 32 : index
    %c0_91 = arith.constant 0 : index
    %369 = vector.load %arg9[%c32_90, %c0_91] : memref<64x1024xf32, #tpu.memory_space<vmem>>, vector<8x512xf32>
    %370 = arith.truncf %313 : vector<8x128xf32> to vector<8x128xbf16>
    %c0_92 = arith.constant 0 : index
    %c0_93 = arith.constant 0 : index
    %371 = vector.load %arg4[%c0_92, %c0_93] : memref<128x512xbf16, #tpu.memory_space<vmem>>, vector<128x512xbf16>
    %cst_94 = arith.constant dense<0.000000e+00> : vector<8x512xf32>
    %372 = tpu.matmul %370, %371, %cst_94 {dimension_numbers = #tpu.dot_dimension_numbers<[1], [0], [0], [1], [0, 0, 1, 1], [], []>} : vector<8x128xbf16>, vector<128x512xbf16>, vector<8x512xf32> -> vector<8x512xf32>
    %373 = arith.addf %369, %372 : vector<8x512xf32>
    %374 = vector.extract_strided_slice %373 {offsets = [0, 0], sizes = [8, 128], strides = [1, 1]} : vector<8x512xf32> to vector<8x128xf32>
    %375 = arith.negf %374 : vector<8x128xf32>
    %376 = math.exp %375 : vector<8x128xf32>
    %cst_95 = arith.constant 1.000000e+00 : f32
    %377 = vector.broadcast %cst_95 : f32 to vector<8x128xf32>
    %378 = arith.addf %377, %376 : vector<8x128xf32>
    %379 = arith.divf %377, %378 : vector<8x128xf32>
    %380 = vector.extract_strided_slice %373 {offsets = [0, 128], sizes = [8, 128], strides = [1, 1]} : vector<8x512xf32> to vector<8x128xf32>
    %381 = arith.negf %380 : vector<8x128xf32>
    %382 = math.exp %381 : vector<8x128xf32>
    %cst_96 = arith.constant 1.000000e+00 : f32
    %383 = vector.broadcast %cst_96 : f32 to vector<8x128xf32>
    %384 = arith.addf %383, %382 : vector<8x128xf32>
    %385 = arith.divf %383, %384 : vector<8x128xf32>
    %386 = vector.extract_strided_slice %373 {offsets = [0, 256], sizes = [8, 128], strides = [1, 1]} : vector<8x512xf32> to vector<8x128xf32>
    %387 = math.tanh %386 : vector<8x128xf32>
    %388 = vector.extract_strided_slice %373 {offsets = [0, 384], sizes = [8, 128], strides = [1, 1]} : vector<8x512xf32> to vector<8x128xf32>
    %389 = arith.negf %388 : vector<8x128xf32>
    %390 = math.exp %389 : vector<8x128xf32>
    %cst_97 = arith.constant 1.000000e+00 : f32
    %391 = vector.broadcast %cst_97 : f32 to vector<8x128xf32>
    %392 = arith.addf %391, %390 : vector<8x128xf32>
    %393 = arith.divf %391, %392 : vector<8x128xf32>
    %394 = arith.mulf %385, %316 : vector<8x128xf32>
    %395 = arith.mulf %379, %387 : vector<8x128xf32>
    %396 = arith.addf %394, %395 : vector<8x128xf32>
    %397 = math.tanh %396 : vector<8x128xf32>
    %398 = arith.mulf %393, %397 : vector<8x128xf32>
    %c4_i32_98 = arith.constant 4 : i32
    %399 = vector.broadcast %c4_i32_98 : i32 to vector<8x1xi32>
    %400 = arith.cmpi sgt, %0, %399 : vector<8x1xi32>
    %401 = vector.shape_cast %400 : vector<8x1xi1> to vector<8x1xi1>
    %402 = vector.broadcast %401 : vector<8x1xi1> to vector<8x128xi1>
    %403 = arith.select %402, %398, %313 : vector<8x128xi1>, vector<8x128xf32>
    %404 = vector.shape_cast %400 : vector<8x1xi1> to vector<8x1xi1>
    %405 = vector.broadcast %404 : vector<8x1xi1> to vector<8x128xi1>
    %406 = arith.select %405, %396, %316 : vector<8x128xi1>, vector<8x128xf32>
    %cst_99 = arith.constant 0.000000e+00 : f32
    %407 = vector.shape_cast %400 : vector<8x1xi1> to vector<8x1xi1>
    %408 = vector.broadcast %407 : vector<8x1xi1> to vector<8x128xi1>
    %409 = vector.broadcast %cst_99 : f32 to vector<8x128xf32>
    %410 = arith.select %408, %398, %409 : vector<8x128xi1>, vector<8x128xf32>
    %c4_100 = arith.constant 4 : index
    %c0_101 = arith.constant 0 : index
    %c0_102 = arith.constant 0 : index
    %411 = vector.load %arg7[%c4_100, %c0_101, %c0_102] : memref<8x8x256xf32, #tpu.memory_space<vmem>>, vector<1x8x128xf32>
    %412 = vector.shape_cast %411 : vector<1x8x128xf32> to vector<8x128xf32>
    %413 = vector.shape_cast %410 : vector<8x128xf32> to vector<1x8x128xf32>
    tpu.vector_store %arg7[%c4_100, %c0_101, %c0_102], %413 {strides = array<i32>} : memref<8x8x256xf32, #tpu.memory_space<vmem>>, vector<1x8x128xf32>,
    %c24_103 = arith.constant 24 : index
    %c512_104 = arith.constant 512 : index
    %414 = vector.load %arg9[%c24_103, %c512_104] : memref<64x1024xf32, #tpu.memory_space<vmem>>, vector<8x512xf32>
    %415 = arith.truncf %358 : vector<8x128xf32> to vector<8x128xbf16>
    %c0_105 = arith.constant 0 : index
    %c0_106 = arith.constant 0 : index
    %416 = vector.load %arg5[%c0_105, %c0_106] : memref<128x512xbf16, #tpu.memory_space<vmem>>, vector<128x512xbf16>
    %cst_107 = arith.constant dense<0.000000e+00> : vector<8x512xf32>
    %417 = tpu.matmul %415, %416, %cst_107 {dimension_numbers = #tpu.dot_dimension_numbers<[1], [0], [0], [1], [0, 0, 1, 1], [], []>} : vector<8x128xbf16>, vector<128x512xbf16>, vector<8x512xf32> -> vector<8x512xf32>
    %418 = arith.addf %414, %417 : vector<8x512xf32>
    %419 = vector.extract_strided_slice %418 {offsets = [0, 0], sizes = [8, 128], strides = [1, 1]} : vector<8x512xf32> to vector<8x128xf32>
    %420 = arith.negf %419 : vector<8x128xf32>
    %421 = math.exp %420 : vector<8x128xf32>
    %cst_108 = arith.constant 1.000000e+00 : f32
    %422 = vector.broadcast %cst_108 : f32 to vector<8x128xf32>
    %423 = arith.addf %422, %421 : vector<8x128xf32>
    %424 = arith.divf %422, %423 : vector<8x128xf32>
    %425 = vector.extract_strided_slice %418 {offsets = [0, 128], sizes = [8, 128], strides = [1, 1]} : vector<8x512xf32> to vector<8x128xf32>
    %426 = arith.negf %425 : vector<8x128xf32>
    %427 = math.exp %426 : vector<8x128xf32>
    %cst_109 = arith.constant 1.000000e+00 : f32
    %428 = vector.broadcast %cst_109 : f32 to vector<8x128xf32>
    %429 = arith.addf %428, %427 : vector<8x128xf32>
    %430 = arith.divf %428, %429 : vector<8x128xf32>
    %431 = vector.extract_strided_slice %418 {offsets = [0, 256], sizes = [8, 128], strides = [1, 1]} : vector<8x512xf32> to vector<8x128xf32>
    %432 = math.tanh %431 : vector<8x128xf32>
    %433 = vector.extract_strided_slice %418 {offsets = [0, 384], sizes = [8, 128], strides = [1, 1]} : vector<8x512xf32> to vector<8x128xf32>
    %434 = arith.negf %433 : vector<8x128xf32>
    %435 = math.exp %434 : vector<8x128xf32>
    %cst_110 = arith.constant 1.000000e+00 : f32
    %436 = vector.broadcast %cst_110 : f32 to vector<8x128xf32>
    %437 = arith.addf %436, %435 : vector<8x128xf32>
    %438 = arith.divf %436, %437 : vector<8x128xf32>
    %439 = arith.mulf %430, %361 : vector<8x128xf32>
    %440 = arith.mulf %424, %432 : vector<8x128xf32>
    %441 = arith.addf %439, %440 : vector<8x128xf32>
    %442 = math.tanh %441 : vector<8x128xf32>
    %443 = arith.mulf %438, %442 : vector<8x128xf32>
    %c3_i32_111 = arith.constant 3 : i32
    %444 = vector.broadcast %c3_i32_111 : i32 to vector<8x1xi32>
    %445 = arith.cmpi sgt, %0, %444 : vector<8x1xi32>
    %446 = vector.shape_cast %445 : vector<8x1xi1> to vector<8x1xi1>
    %447 = vector.broadcast %446 : vector<8x1xi1> to vector<8x128xi1>
    %448 = arith.select %447, %443, %358 : vector<8x128xi1>, vector<8x128xf32>
    %449 = vector.shape_cast %445 : vector<8x1xi1> to vector<8x1xi1>
    %450 = vector.broadcast %449 : vector<8x1xi1> to vector<8x128xi1>
    %451 = arith.select %450, %441, %361 : vector<8x128xi1>, vector<8x128xf32>
    %cst_112 = arith.constant 0.000000e+00 : f32
    %452 = vector.shape_cast %445 : vector<8x1xi1> to vector<8x1xi1>
    %453 = vector.broadcast %452 : vector<8x1xi1> to vector<8x128xi1>
    %454 = vector.broadcast %cst_112 : f32 to vector<8x128xf32>
    %455 = arith.select %453, %443, %454 : vector<8x128xi1>, vector<8x128xf32>
    %c3_113 = arith.constant 3 : index
    %c0_114 = arith.constant 0 : index
    %c128_115 = arith.constant 128 : index
    %456 = vector.load %arg7[%c3_113, %c0_114, %c128_115] : memref<8x8x256xf32, #tpu.memory_space<vmem>>, vector<1x8x128xf32>
    %457 = vector.shape_cast %456 : vector<1x8x128xf32> to vector<8x128xf32>
    %458 = vector.shape_cast %455 : vector<8x128xf32> to vector<1x8x128xf32>
    tpu.vector_store %arg7[%c3_113, %c0_114, %c128_115], %458 {strides = array<i32>} : memref<8x8x256xf32, #tpu.memory_space<vmem>>, vector<1x8x128xf32>,
    %c40_116 = arith.constant 40 : index
    %c0_117 = arith.constant 0 : index
    %459 = vector.load %arg9[%c40_116, %c0_117] : memref<64x1024xf32, #tpu.memory_space<vmem>>, vector<8x512xf32>
    %460 = arith.truncf %403 : vector<8x128xf32> to vector<8x128xbf16>
    %c0_118 = arith.constant 0 : index
    %c0_119 = arith.constant 0 : index
    %461 = vector.load %arg4[%c0_118, %c0_119] : memref<128x512xbf16, #tpu.memory_space<vmem>>, vector<128x512xbf16>
    %cst_120 = arith.constant dense<0.000000e+00> : vector<8x512xf32>
    %462 = tpu.matmul %460, %461, %cst_120 {dimension_numbers = #tpu.dot_dimension_numbers<[1], [0], [0], [1], [0, 0, 1, 1], [], []>} : vector<8x128xbf16>, vector<128x512xbf16>, vector<8x512xf32> -> vector<8x512xf32>
    %463 = arith.addf %459, %462 : vector<8x512xf32>
    %464 = vector.extract_strided_slice %463 {offsets = [0, 0], sizes = [8, 128], strides = [1, 1]} : vector<8x512xf32> to vector<8x128xf32>
    %465 = arith.negf %464 : vector<8x128xf32>
    %466 = math.exp %465 : vector<8x128xf32>
    %cst_121 = arith.constant 1.000000e+00 : f32
    %467 = vector.broadcast %cst_121 : f32 to vector<8x128xf32>
    %468 = arith.addf %467, %466 : vector<8x128xf32>
    %469 = arith.divf %467, %468 : vector<8x128xf32>
    %470 = vector.extract_strided_slice %463 {offsets = [0, 128], sizes = [8, 128], strides = [1, 1]} : vector<8x512xf32> to vector<8x128xf32>
    %471 = arith.negf %470 : vector<8x128xf32>
    %472 = math.exp %471 : vector<8x128xf32>
    %cst_122 = arith.constant 1.000000e+00 : f32
    %473 = vector.broadcast %cst_122 : f32 to vector<8x128xf32>
    %474 = arith.addf %473, %472 : vector<8x128xf32>
    %475 = arith.divf %473, %474 : vector<8x128xf32>
    %476 = vector.extract_strided_slice %463 {offsets = [0, 256], sizes = [8, 128], strides = [1, 1]} : vector<8x512xf32> to vector<8x128xf32>
    %477 = math.tanh %476 : vector<8x128xf32>
    %478 = vector.extract_strided_slice %463 {offsets = [0, 384], sizes = [8, 128], strides = [1, 1]} : vector<8x512xf32> to vector<8x128xf32>
    %479 = arith.negf %478 : vector<8x128xf32>
    %480 = math.exp %479 : vector<8x128xf32>
    %cst_123 = arith.constant 1.000000e+00 : f32
    %481 = vector.broadcast %cst_123 : f32 to vector<8x128xf32>
    %482 = arith.addf %481, %480 : vector<8x128xf32>
    %483 = arith.divf %481, %482 : vector<8x128xf32>
    %484 = arith.mulf %475, %406 : vector<8x128xf32>
    %485 = arith.mulf %469, %477 : vector<8x128xf32>
    %486 = arith.addf %484, %485 : vector<8x128xf32>
    %487 = math.tanh %486 : vector<8x128xf32>
    %488 = arith.mulf %483, %487 : vector<8x128xf32>
    %c5_i32_124 = arith.constant 5 : i32
    %489 = vector.broadcast %c5_i32_124 : i32 to vector<8x1xi32>
    %490 = arith.cmpi sgt, %0, %489 : vector<8x1xi32>
    %491 = vector.shape_cast %490 : vector<8x1xi1> to vector<8x1xi1>
    %492 = vector.broadcast %491 : vector<8x1xi1> to vector<8x128xi1>
    %493 = arith.select %492, %488, %403 : vector<8x128xi1>, vector<8x128xf32>
    %494 = vector.shape_cast %490 : vector<8x1xi1> to vector<8x1xi1>
    %495 = vector.broadcast %494 : vector<8x1xi1> to vector<8x128xi1>
    %496 = arith.select %495, %486, %406 : vector<8x128xi1>, vector<8x128xf32>
    %cst_125 = arith.constant 0.000000e+00 : f32
    %497 = vector.shape_cast %490 : vector<8x1xi1> to vector<8x1xi1>
    %498 = vector.broadcast %497 : vector<8x1xi1> to vector<8x128xi1>
    %499 = vector.broadcast %cst_125 : f32 to vector<8x128xf32>
    %500 = arith.select %498, %488, %499 : vector<8x128xi1>, vector<8x128xf32>
    %c5_126 = arith.constant 5 : index
    %c0_127 = arith.constant 0 : index
    %c0_128 = arith.constant 0 : index
    %501 = vector.load %arg7[%c5_126, %c0_127, %c0_128] : memref<8x8x256xf32, #tpu.memory_space<vmem>>, vector<1x8x128xf32>
    %502 = vector.shape_cast %501 : vector<1x8x128xf32> to vector<8x128xf32>
    %503 = vector.shape_cast %500 : vector<8x128xf32> to vector<1x8x128xf32>
    tpu.vector_store %arg7[%c5_126, %c0_127, %c0_128], %503 {strides = array<i32>} : memref<8x8x256xf32, #tpu.memory_space<vmem>>, vector<1x8x128xf32>,
    %c16_129 = arith.constant 16 : index
    %c512_130 = arith.constant 512 : index
    %504 = vector.load %arg9[%c16_129, %c512_130] : memref<64x1024xf32, #tpu.memory_space<vmem>>, vector<8x512xf32>
    %505 = arith.truncf %448 : vector<8x128xf32> to vector<8x128xbf16>
    %c0_131 = arith.constant 0 : index
    %c0_132 = arith.constant 0 : index
    %506 = vector.load %arg5[%c0_131, %c0_132] : memref<128x512xbf16, #tpu.memory_space<vmem>>, vector<128x512xbf16>
    %cst_133 = arith.constant dense<0.000000e+00> : vector<8x512xf32>
    %507 = tpu.matmul %505, %506, %cst_133 {dimension_numbers = #tpu.dot_dimension_numbers<[1], [0], [0], [1], [0, 0, 1, 1], [], []>} : vector<8x128xbf16>, vector<128x512xbf16>, vector<8x512xf32> -> vector<8x512xf32>
    %508 = arith.addf %504, %507 : vector<8x512xf32>
    %509 = vector.extract_strided_slice %508 {offsets = [0, 0], sizes = [8, 128], strides = [1, 1]} : vector<8x512xf32> to vector<8x128xf32>
    %510 = arith.negf %509 : vector<8x128xf32>
    %511 = math.exp %510 : vector<8x128xf32>
    %cst_134 = arith.constant 1.000000e+00 : f32
    %512 = vector.broadcast %cst_134 : f32 to vector<8x128xf32>
    %513 = arith.addf %512, %511 : vector<8x128xf32>
    %514 = arith.divf %512, %513 : vector<8x128xf32>
    %515 = vector.extract_strided_slice %508 {offsets = [0, 128], sizes = [8, 128], strides = [1, 1]} : vector<8x512xf32> to vector<8x128xf32>
    %516 = arith.negf %515 : vector<8x128xf32>
    %517 = math.exp %516 : vector<8x128xf32>
    %cst_135 = arith.constant 1.000000e+00 : f32
    %518 = vector.broadcast %cst_135 : f32 to vector<8x128xf32>
    %519 = arith.addf %518, %517 : vector<8x128xf32>
    %520 = arith.divf %518, %519 : vector<8x128xf32>
    %521 = vector.extract_strided_slice %508 {offsets = [0, 256], sizes = [8, 128], strides = [1, 1]} : vector<8x512xf32> to vector<8x128xf32>
    %522 = math.tanh %521 : vector<8x128xf32>
    %523 = vector.extract_strided_slice %508 {offsets = [0, 384], sizes = [8, 128], strides = [1, 1]} : vector<8x512xf32> to vector<8x128xf32>
    %524 = arith.negf %523 : vector<8x128xf32>
    %525 = math.exp %524 : vector<8x128xf32>
    %cst_136 = arith.constant 1.000000e+00 : f32
    %526 = vector.broadcast %cst_136 : f32 to vector<8x128xf32>
    %527 = arith.addf %526, %525 : vector<8x128xf32>
    %528 = arith.divf %526, %527 : vector<8x128xf32>
    %529 = arith.mulf %520, %451 : vector<8x128xf32>
    %530 = arith.mulf %514, %522 : vector<8x128xf32>
    %531 = arith.addf %529, %530 : vector<8x128xf32>
    %532 = math.tanh %531 : vector<8x128xf32>
    %533 = arith.mulf %528, %532 : vector<8x128xf32>
    %c2_i32_137 = arith.constant 2 : i32
    %534 = vector.broadcast %c2_i32_137 : i32 to vector<8x1xi32>
    %535 = arith.cmpi sgt, %0, %534 : vector<8x1xi32>
    %536 = vector.shape_cast %535 : vector<8x1xi1> to vector<8x1xi1>
    %537 = vector.broadcast %536 : vector<8x1xi1> to vector<8x128xi1>
    %538 = arith.select %537, %533, %448 : vector<8x128xi1>, vector<8x128xf32>
    %539 = vector.shape_cast %535 : vector<8x1xi1> to vector<8x1xi1>
    %540 = vector.broadcast %539 : vector<8x1xi1> to vector<8x128xi1>
    %541 = arith.select %540, %531, %451 : vector<8x128xi1>, vector<8x128xf32>
    %cst_138 = arith.constant 0.000000e+00 : f32
    %542 = vector.shape_cast %535 : vector<8x1xi1> to vector<8x1xi1>
    %543 = vector.broadcast %542 : vector<8x1xi1> to vector<8x128xi1>
    %544 = vector.broadcast %cst_138 : f32 to vector<8x128xf32>
    %545 = arith.select %543, %533, %544 : vector<8x128xi1>, vector<8x128xf32>
    %c2_139 = arith.constant 2 : index
    %c0_140 = arith.constant 0 : index
    %c128_141 = arith.constant 128 : index
    %546 = vector.load %arg7[%c2_139, %c0_140, %c128_141] : memref<8x8x256xf32, #tpu.memory_space<vmem>>, vector<1x8x128xf32>
    %547 = vector.shape_cast %546 : vector<1x8x128xf32> to vector<8x128xf32>
    %548 = vector.shape_cast %545 : vector<8x128xf32> to vector<1x8x128xf32>
    tpu.vector_store %arg7[%c2_139, %c0_140, %c128_141], %548 {strides = array<i32>} : memref<8x8x256xf32, #tpu.memory_space<vmem>>, vector<1x8x128xf32>,
    %c48_142 = arith.constant 48 : index
    %c0_143 = arith.constant 0 : index
    %549 = vector.load %arg9[%c48_142, %c0_143] : memref<64x1024xf32, #tpu.memory_space<vmem>>, vector<8x512xf32>
    %550 = arith.truncf %493 : vector<8x128xf32> to vector<8x128xbf16>
    %c0_144 = arith.constant 0 : index
    %c0_145 = arith.constant 0 : index
    %551 = vector.load %arg4[%c0_144, %c0_145] : memref<128x512xbf16, #tpu.memory_space<vmem>>, vector<128x512xbf16>
    %cst_146 = arith.constant dense<0.000000e+00> : vector<8x512xf32>
    %552 = tpu.matmul %550, %551, %cst_146 {dimension_numbers = #tpu.dot_dimension_numbers<[1], [0], [0], [1], [0, 0, 1, 1], [], []>} : vector<8x128xbf16>, vector<128x512xbf16>, vector<8x512xf32> -> vector<8x512xf32>
    %553 = arith.addf %549, %552 : vector<8x512xf32>
    %554 = vector.extract_strided_slice %553 {offsets = [0, 0], sizes = [8, 128], strides = [1, 1]} : vector<8x512xf32> to vector<8x128xf32>
    %555 = arith.negf %554 : vector<8x128xf32>
    %556 = math.exp %555 : vector<8x128xf32>
    %cst_147 = arith.constant 1.000000e+00 : f32
    %557 = vector.broadcast %cst_147 : f32 to vector<8x128xf32>
    %558 = arith.addf %557, %556 : vector<8x128xf32>
    %559 = arith.divf %557, %558 : vector<8x128xf32>
    %560 = vector.extract_strided_slice %553 {offsets = [0, 128], sizes = [8, 128], strides = [1, 1]} : vector<8x512xf32> to vector<8x128xf32>
    %561 = arith.negf %560 : vector<8x128xf32>
    %562 = math.exp %561 : vector<8x128xf32>
    %cst_148 = arith.constant 1.000000e+00 : f32
    %563 = vector.broadcast %cst_148 : f32 to vector<8x128xf32>
    %564 = arith.addf %563, %562 : vector<8x128xf32>
    %565 = arith.divf %563, %564 : vector<8x128xf32>
    %566 = vector.extract_strided_slice %553 {offsets = [0, 256], sizes = [8, 128], strides = [1, 1]} : vector<8x512xf32> to vector<8x128xf32>
    %567 = math.tanh %566 : vector<8x128xf32>
    %568 = vector.extract_strided_slice %553 {offsets = [0, 384], sizes = [8, 128], strides = [1, 1]} : vector<8x512xf32> to vector<8x128xf32>
    %569 = arith.negf %568 : vector<8x128xf32>
    %570 = math.exp %569 : vector<8x128xf32>
    %cst_149 = arith.constant 1.000000e+00 : f32
    %571 = vector.broadcast %cst_149 : f32 to vector<8x128xf32>
    %572 = arith.addf %571, %570 : vector<8x128xf32>
    %573 = arith.divf %571, %572 : vector<8x128xf32>
    %574 = arith.mulf %565, %496 : vector<8x128xf32>
    %575 = arith.mulf %559, %567 : vector<8x128xf32>
    %576 = arith.addf %574, %575 : vector<8x128xf32>
    %577 = math.tanh %576 : vector<8x128xf32>
    %578 = arith.mulf %573, %577 : vector<8x128xf32>
    %c6_i32_150 = arith.constant 6 : i32
    %579 = vector.broadcast %c6_i32_150 : i32 to vector<8x1xi32>
    %580 = arith.cmpi sgt, %0, %579 : vector<8x1xi32>
    %581 = vector.shape_cast %580 : vector<8x1xi1> to vector<8x1xi1>
    %582 = vector.broadcast %581 : vector<8x1xi1> to vector<8x128xi1>
    %583 = arith.select %582, %578, %493 : vector<8x128xi1>, vector<8x128xf32>
    %584 = vector.shape_cast %580 : vector<8x1xi1> to vector<8x1xi1>
    %585 = vector.broadcast %584 : vector<8x1xi1> to vector<8x128xi1>
    %586 = arith.select %585, %576, %496 : vector<8x128xi1>, vector<8x128xf32>
    %cst_151 = arith.constant 0.000000e+00 : f32
    %587 = vector.shape_cast %580 : vector<8x1xi1> to vector<8x1xi1>
    %588 = vector.broadcast %587 : vector<8x1xi1> to vector<8x128xi1>
    %589 = vector.broadcast %cst_151 : f32 to vector<8x128xf32>
    %590 = arith.select %588, %578, %589 : vector<8x128xi1>, vector<8x128xf32>
    %c6_152 = arith.constant 6 : index
    %c0_153 = arith.constant 0 : index
    %c0_154 = arith.constant 0 : index
    %591 = vector.load %arg7[%c6_152, %c0_153, %c0_154] : memref<8x8x256xf32, #tpu.memory_space<vmem>>, vector<1x8x128xf32>
    %592 = vector.shape_cast %591 : vector<1x8x128xf32> to vector<8x128xf32>
    %593 = vector.shape_cast %590 : vector<8x128xf32> to vector<1x8x128xf32>
    tpu.vector_store %arg7[%c6_152, %c0_153, %c0_154], %593 {strides = array<i32>} : memref<8x8x256xf32, #tpu.memory_space<vmem>>, vector<1x8x128xf32>,
    %c8_155 = arith.constant 8 : index
    %c512_156 = arith.constant 512 : index
    %594 = vector.load %arg9[%c8_155, %c512_156] : memref<64x1024xf32, #tpu.memory_space<vmem>>, vector<8x512xf32>
    %595 = arith.truncf %538 : vector<8x128xf32> to vector<8x128xbf16>
    %c0_157 = arith.constant 0 : index
    %c0_158 = arith.constant 0 : index
    %596 = vector.load %arg5[%c0_157, %c0_158] : memref<128x512xbf16, #tpu.memory_space<vmem>>, vector<128x512xbf16>
    %cst_159 = arith.constant dense<0.000000e+00> : vector<8x512xf32>
    %597 = tpu.matmul %595, %596, %cst_159 {dimension_numbers = #tpu.dot_dimension_numbers<[1], [0], [0], [1], [0, 0, 1, 1], [], []>} : vector<8x128xbf16>, vector<128x512xbf16>, vector<8x512xf32> -> vector<8x512xf32>
    %598 = arith.addf %594, %597 : vector<8x512xf32>
    %599 = vector.extract_strided_slice %598 {offsets = [0, 0], sizes = [8, 128], strides = [1, 1]} : vector<8x512xf32> to vector<8x128xf32>
    %600 = arith.negf %599 : vector<8x128xf32>
    %601 = math.exp %600 : vector<8x128xf32>
    %cst_160 = arith.constant 1.000000e+00 : f32
    %602 = vector.broadcast %cst_160 : f32 to vector<8x128xf32>
    %603 = arith.addf %602, %601 : vector<8x128xf32>
    %604 = arith.divf %602, %603 : vector<8x128xf32>
    %605 = vector.extract_strided_slice %598 {offsets = [0, 128], sizes = [8, 128], strides = [1, 1]} : vector<8x512xf32> to vector<8x128xf32>
    %606 = arith.negf %605 : vector<8x128xf32>
    %607 = math.exp %606 : vector<8x128xf32>
    %cst_161 = arith.constant 1.000000e+00 : f32
    %608 = vector.broadcast %cst_161 : f32 to vector<8x128xf32>
    %609 = arith.addf %608, %607 : vector<8x128xf32>
    %610 = arith.divf %608, %609 : vector<8x128xf32>
    %611 = vector.extract_strided_slice %598 {offsets = [0, 256], sizes = [8, 128], strides = [1, 1]} : vector<8x512xf32> to vector<8x128xf32>
    %612 = math.tanh %611 : vector<8x128xf32>
    %613 = vector.extract_strided_slice %598 {offsets = [0, 384], sizes = [8, 128], strides = [1, 1]} : vector<8x512xf32> to vector<8x128xf32>
    %614 = arith.negf %613 : vector<8x128xf32>
    %615 = math.exp %614 : vector<8x128xf32>
    %cst_162 = arith.constant 1.000000e+00 : f32
    %616 = vector.broadcast %cst_162 : f32 to vector<8x128xf32>
    %617 = arith.addf %616, %615 : vector<8x128xf32>
    %618 = arith.divf %616, %617 : vector<8x128xf32>
    %619 = arith.mulf %610, %541 : vector<8x128xf32>
    %620 = arith.mulf %604, %612 : vector<8x128xf32>
    %621 = arith.addf %619, %620 : vector<8x128xf32>
    %622 = math.tanh %621 : vector<8x128xf32>
    %623 = arith.mulf %618, %622 : vector<8x128xf32>
    %c1_i32_163 = arith.constant 1 : i32
    %624 = vector.broadcast %c1_i32_163 : i32 to vector<8x1xi32>
    %625 = arith.cmpi sgt, %0, %624 : vector<8x1xi32>
    %626 = vector.shape_cast %625 : vector<8x1xi1> to vector<8x1xi1>
    %627 = vector.broadcast %626 : vector<8x1xi1> to vector<8x128xi1>
    %628 = arith.select %627, %623, %538 : vector<8x128xi1>, vector<8x128xf32>
    %629 = vector.shape_cast %625 : vector<8x1xi1> to vector<8x1xi1>
    %630 = vector.broadcast %629 : vector<8x1xi1> to vector<8x128xi1>
    %631 = arith.select %630, %621, %541 : vector<8x128xi1>, vector<8x128xf32>
    %cst_164 = arith.constant 0.000000e+00 : f32
    %632 = vector.shape_cast %625 : vector<8x1xi1> to vector<8x1xi1>
    %633 = vector.broadcast %632 : vector<8x1xi1> to vector<8x128xi1>
    %634 = vector.broadcast %cst_164 : f32 to vector<8x128xf32>
    %635 = arith.select %633, %623, %634 : vector<8x128xi1>, vector<8x128xf32>
    %c1_165 = arith.constant 1 : index
    %c0_166 = arith.constant 0 : index
    %c128_167 = arith.constant 128 : index
    %636 = vector.load %arg7[%c1_165, %c0_166, %c128_167] : memref<8x8x256xf32, #tpu.memory_space<vmem>>, vector<1x8x128xf32>
    %637 = vector.shape_cast %636 : vector<1x8x128xf32> to vector<8x128xf32>
    %638 = vector.shape_cast %635 : vector<8x128xf32> to vector<1x8x128xf32>
    tpu.vector_store %arg7[%c1_165, %c0_166, %c128_167], %638 {strides = array<i32>} : memref<8x8x256xf32, #tpu.memory_space<vmem>>, vector<1x8x128xf32>,
    %c56_168 = arith.constant 56 : index
    %c0_169 = arith.constant 0 : index
    %639 = vector.load %arg9[%c56_168, %c0_169] : memref<64x1024xf32, #tpu.memory_space<vmem>>, vector<8x512xf32>
    %640 = arith.truncf %583 : vector<8x128xf32> to vector<8x128xbf16>
    %c0_170 = arith.constant 0 : index
    %c0_171 = arith.constant 0 : index
    %641 = vector.load %arg4[%c0_170, %c0_171] : memref<128x512xbf16, #tpu.memory_space<vmem>>, vector<128x512xbf16>
    %cst_172 = arith.constant dense<0.000000e+00> : vector<8x512xf32>
    %642 = tpu.matmul %640, %641, %cst_172 {dimension_numbers = #tpu.dot_dimension_numbers<[1], [0], [0], [1], [0, 0, 1, 1], [], []>} : vector<8x128xbf16>, vector<128x512xbf16>, vector<8x512xf32> -> vector<8x512xf32>
    %643 = arith.addf %639, %642 : vector<8x512xf32>
    %644 = vector.extract_strided_slice %643 {offsets = [0, 0], sizes = [8, 128], strides = [1, 1]} : vector<8x512xf32> to vector<8x128xf32>
    %645 = arith.negf %644 : vector<8x128xf32>
    %646 = math.exp %645 : vector<8x128xf32>
    %cst_173 = arith.constant 1.000000e+00 : f32
    %647 = vector.broadcast %cst_173 : f32 to vector<8x128xf32>
    %648 = arith.addf %647, %646 : vector<8x128xf32>
    %649 = arith.divf %647, %648 : vector<8x128xf32>
    %650 = vector.extract_strided_slice %643 {offsets = [0, 128], sizes = [8, 128], strides = [1, 1]} : vector<8x512xf32> to vector<8x128xf32>
    %651 = arith.negf %650 : vector<8x128xf32>
    %652 = math.exp %651 : vector<8x128xf32>
    %cst_174 = arith.constant 1.000000e+00 : f32
    %653 = vector.broadcast %cst_174 : f32 to vector<8x128xf32>
    %654 = arith.addf %653, %652 : vector<8x128xf32>
    %655 = arith.divf %653, %654 : vector<8x128xf32>
    %656 = vector.extract_strided_slice %643 {offsets = [0, 256], sizes = [8, 128], strides = [1, 1]} : vector<8x512xf32> to vector<8x128xf32>
    %657 = math.tanh %656 : vector<8x128xf32>
    %658 = vector.extract_strided_slice %643 {offsets = [0, 384], sizes = [8, 128], strides = [1, 1]} : vector<8x512xf32> to vector<8x128xf32>
    %659 = arith.negf %658 : vector<8x128xf32>
    %660 = math.exp %659 : vector<8x128xf32>
    %cst_175 = arith.constant 1.000000e+00 : f32
    %661 = vector.broadcast %cst_175 : f32 to vector<8x128xf32>
    %662 = arith.addf %661, %660 : vector<8x128xf32>
    %663 = arith.divf %661, %662 : vector<8x128xf32>
    %664 = arith.mulf %655, %586 : vector<8x128xf32>
    %665 = arith.mulf %649, %657 : vector<8x128xf32>
    %666 = arith.addf %664, %665 : vector<8x128xf32>
    %667 = math.tanh %666 : vector<8x128xf32>
    %668 = arith.mulf %663, %667 : vector<8x128xf32>
    %c7_i32_176 = arith.constant 7 : i32
    %669 = vector.broadcast %c7_i32_176 : i32 to vector<8x1xi32>
    %670 = arith.cmpi sgt, %0, %669 : vector<8x1xi32>
    %671 = vector.shape_cast %670 : vector<8x1xi1> to vector<8x1xi1>
    %672 = vector.broadcast %671 : vector<8x1xi1> to vector<8x128xi1>
    %673 = arith.select %672, %668, %583 : vector<8x128xi1>, vector<8x128xf32>
    %674 = vector.shape_cast %670 : vector<8x1xi1> to vector<8x1xi1>
    %675 = vector.broadcast %674 : vector<8x1xi1> to vector<8x128xi1>
    %676 = arith.select %675, %666, %586 : vector<8x128xi1>, vector<8x128xf32>
    %cst_177 = arith.constant 0.000000e+00 : f32
    %677 = vector.shape_cast %670 : vector<8x1xi1> to vector<8x1xi1>
    %678 = vector.broadcast %677 : vector<8x1xi1> to vector<8x128xi1>
    %679 = vector.broadcast %cst_177 : f32 to vector<8x128xf32>
    %680 = arith.select %678, %668, %679 : vector<8x128xi1>, vector<8x128xf32>
    %c7_178 = arith.constant 7 : index
    %c0_179 = arith.constant 0 : index
    %c0_180 = arith.constant 0 : index
    %681 = vector.load %arg7[%c7_178, %c0_179, %c0_180] : memref<8x8x256xf32, #tpu.memory_space<vmem>>, vector<1x8x128xf32>
    %682 = vector.shape_cast %681 : vector<1x8x128xf32> to vector<8x128xf32>
    %683 = vector.shape_cast %680 : vector<8x128xf32> to vector<1x8x128xf32>
    tpu.vector_store %arg7[%c7_178, %c0_179, %c0_180], %683 {strides = array<i32>} : memref<8x8x256xf32, #tpu.memory_space<vmem>>, vector<1x8x128xf32>,
    %c0_181 = arith.constant 0 : index
    %c512_182 = arith.constant 512 : index
    %684 = vector.load %arg9[%c0_181, %c512_182] : memref<64x1024xf32, #tpu.memory_space<vmem>>, vector<8x512xf32>
    %685 = arith.truncf %628 : vector<8x128xf32> to vector<8x128xbf16>
    %c0_183 = arith.constant 0 : index
    %c0_184 = arith.constant 0 : index
    %686 = vector.load %arg5[%c0_183, %c0_184] : memref<128x512xbf16, #tpu.memory_space<vmem>>, vector<128x512xbf16>
    %cst_185 = arith.constant dense<0.000000e+00> : vector<8x512xf32>
    %687 = tpu.matmul %685, %686, %cst_185 {dimension_numbers = #tpu.dot_dimension_numbers<[1], [0], [0], [1], [0, 0, 1, 1], [], []>} : vector<8x128xbf16>, vector<128x512xbf16>, vector<8x512xf32> -> vector<8x512xf32>
    %688 = arith.addf %684, %687 : vector<8x512xf32>
    %689 = vector.extract_strided_slice %688 {offsets = [0, 0], sizes = [8, 128], strides = [1, 1]} : vector<8x512xf32> to vector<8x128xf32>
    %690 = arith.negf %689 : vector<8x128xf32>
    %691 = math.exp %690 : vector<8x128xf32>
    %cst_186 = arith.constant 1.000000e+00 : f32
    %692 = vector.broadcast %cst_186 : f32 to vector<8x128xf32>
    %693 = arith.addf %692, %691 : vector<8x128xf32>
    %694 = arith.divf %692, %693 : vector<8x128xf32>
    %695 = vector.extract_strided_slice %688 {offsets = [0, 128], sizes = [8, 128], strides = [1, 1]} : vector<8x512xf32> to vector<8x128xf32>
    %696 = arith.negf %695 : vector<8x128xf32>
    %697 = math.exp %696 : vector<8x128xf32>
    %cst_187 = arith.constant 1.000000e+00 : f32
    %698 = vector.broadcast %cst_187 : f32 to vector<8x128xf32>
    %699 = arith.addf %698, %697 : vector<8x128xf32>
    %700 = arith.divf %698, %699 : vector<8x128xf32>
    %701 = vector.extract_strided_slice %688 {offsets = [0, 256], sizes = [8, 128], strides = [1, 1]} : vector<8x512xf32> to vector<8x128xf32>
    %702 = math.tanh %701 : vector<8x128xf32>
    %703 = vector.extract_strided_slice %688 {offsets = [0, 384], sizes = [8, 128], strides = [1, 1]} : vector<8x512xf32> to vector<8x128xf32>
    %704 = arith.negf %703 : vector<8x128xf32>
    %705 = math.exp %704 : vector<8x128xf32>
    %cst_188 = arith.constant 1.000000e+00 : f32
    %706 = vector.broadcast %cst_188 : f32 to vector<8x128xf32>
    %707 = arith.addf %706, %705 : vector<8x128xf32>
    %708 = arith.divf %706, %707 : vector<8x128xf32>
    %709 = arith.mulf %700, %631 : vector<8x128xf32>
    %710 = arith.mulf %694, %702 : vector<8x128xf32>
    %711 = arith.addf %709, %710 : vector<8x128xf32>
    %712 = math.tanh %711 : vector<8x128xf32>
    %713 = arith.mulf %708, %712 : vector<8x128xf32>
    %c0_i32_189 = arith.constant 0 : i32
    %714 = vector.broadcast %c0_i32_189 : i32 to vector<8x1xi32>
    %715 = arith.cmpi sgt, %0, %714 : vector<8x1xi32>
    %716 = vector.shape_cast %715 : vector<8x1xi1> to vector<8x1xi1>
    %717 = vector.broadcast %716 : vector<8x1xi1> to vector<8x128xi1>
    %718 = arith.select %717, %713, %628 : vector<8x128xi1>, vector<8x128xf32>
    %719 = vector.shape_cast %715 : vector<8x1xi1> to vector<8x1xi1>
    %720 = vector.broadcast %719 : vector<8x1xi1> to vector<8x128xi1>
    %721 = arith.select %720, %711, %631 : vector<8x128xi1>, vector<8x128xf32>
    %cst_190 = arith.constant 0.000000e+00 : f32
    %722 = vector.shape_cast %715 : vector<8x1xi1> to vector<8x1xi1>
    %723 = vector.broadcast %722 : vector<8x1xi1> to vector<8x128xi1>
    %724 = vector.broadcast %cst_190 : f32 to vector<8x128xf32>
    %725 = arith.select %723, %713, %724 : vector<8x128xi1>, vector<8x128xf32>
    %c0_191 = arith.constant 0 : index
    %c0_192 = arith.constant 0 : index
    %c128_193 = arith.constant 128 : index
    %726 = vector.load %arg7[%c0_191, %c0_192, %c128_193] : memref<8x8x256xf32, #tpu.memory_space<vmem>>, vector<1x8x128xf32>
    %727 = vector.shape_cast %726 : vector<1x8x128xf32> to vector<8x128xf32>
    %728 = vector.shape_cast %725 : vector<8x128xf32> to vector<1x8x128xf32>
    tpu.vector_store %arg7[%c0_191, %c0_192, %c128_193], %728 {strides = array<i32>} : memref<8x8x256xf32, #tpu.memory_space<vmem>>, vector<1x8x128xf32>,
    %729 = tpu.concatenate %673, %718, %676, %721 in 1 : vector<8x128xf32>, vector<8x128xf32>, vector<8x128xf32>, vector<8x128xf32> -> vector<8x512xf32>
    %730 = arith.truncf %729 : vector<8x512xf32> to vector<8x512xbf16>
    %c0_194 = arith.constant 0 : index
    %c0_195 = arith.constant 0 : index
    %731 = vector.load %arg6[%c0_194, %c0_195] : memref<512x256xbf16, #tpu.memory_space<vmem>>, vector<512x256xbf16>
    %cst_196 = arith.constant dense<0.000000e+00> : vector<8x256xf32>
    %732 = tpu.matmul %730, %731, %cst_196 {dimension_numbers = #tpu.dot_dimension_numbers<[1], [0], [0], [1], [0, 0, 1, 1], [], []>} : vector<8x512xbf16>, vector<512x256xbf16>, vector<8x256xf32> -> vector<8x256xf32>
    %c0_197 = arith.constant 0 : index
    %c0_198 = arith.constant 0 : index
    %733 = vector.load %arg8[%c0_197, %c0_198] : memref<8x256xf32, #tpu.memory_space<vmem>>, vector<8x256xf32>
    tpu.vector_store %arg8[%c0_197, %c0_198], %732 {strides = array<i32>} : memref<8x256xf32, #tpu.memory_space<vmem>>, vector<8x256xf32>,
    return
  }
}

</mosaic_0001>

<llo_original>
// kernel: encoder_forward.1
$region0: #{encoder_forward.1}
  #allocation0 [shape = 'u32[]', space=smem, size = 0x4, offset = 0x4, fixed_abs, tag = 'smem constant byte address 0x4 - core index']
  #allocation1 [shape = 'u32[144,128]{1,0:T(1,128)}', space=vmem, size = 0x12000, scoped, tag = 'internal scratch']
  #allocation2 [shape = 'f32[64,1024]{1,0:T(8,128)}', space=vmem, size = 0x40000, scoped, tag = 'scratch operand']
  %s0 = inlined_call_operand.vmem [shape: s32[8,1], index: 0, kind: input, shape index: {}]
  %s1 = inlined_call_operand.vmem [shape: bf16[64,16], index: 1, kind: input, shape index: {}]
  %s2 = inlined_call_operand.vmem [shape: bf16[16,1024], index: 2, kind: input, shape index: {}]
  %s3 = inlined_call_operand.vmem [shape: f32[1,1024], index: 3, kind: input, shape index: {}]
  %s4 = inlined_call_operand.vmem [shape: bf16[128,512], index: 4, kind: input, shape index: {}]
  %s5 = inlined_call_operand.vmem [shape: bf16[128,512], index: 5, kind: input, shape index: {}]
  %s6 = inlined_call_operand.vmem [shape: bf16[512,256], index: 6, kind: input, shape index: {}]
  %s7 = inlined_call_operand.vmem [shape: f32[8,8,256], index: 7, kind: output, shape index: {0}]
  %s8 = inlined_call_operand.vmem [shape: f32[8,256], index: 8, kind: output, shape index: {1}]
  %9 = xla_tuple %s7, %s8
  %s10 = sld [smem:[#allocation0]]
  $region46: #{encoder_forward.1} parent=0
    _
  %s12 = ssub.s32 1, %s10
  %s13 = scalar_select 0, %s12, %s10
  // Predicated region
  $region2: #{encoder_forward.1} parent=0 // pred_check
    _
  $region3: #{encoder_forward.1} parent=0 // pred_check_branch
    %15 = sbr.rel (0) target = $region5
  $region4: #{encoder_forward.1} parent=0 // pred_region
    _
  $region5: #{encoder_forward.1} parent=0 // pred_fallthru
    _
  // Predicated region
  $region6: #{encoder_forward.1} parent=0 // pred_check
    _
  $region7: #{encoder_forward.1} parent=0 // pred_check_branch
    %17 = sbr.rel (0) target = $region9
  $region8: #{encoder_forward.1} parent=0 // pred_region
    _
  $region9: #{encoder_forward.1} parent=0 // pred_fallthru
    _
  // Predicated region
  $region10: #{encoder_forward.1} parent=0 // pred_check
    _
  $region11: #{encoder_forward.1} parent=0 // pred_check_branch
    %19 = sbr.rel (0) target = $region13
  $region12: #{encoder_forward.1} parent=0 // pred_region
    _
  $region13: #{encoder_forward.1} parent=0 // pred_fallthru
    _
  // Predicated region
  $region14: #{encoder_forward.1} parent=0 // pred_check
    _
  $region15: #{encoder_forward.1} parent=0 // pred_check_branch
    %21 = sbr.rel (0) target = $region17
  $region16: #{encoder_forward.1} parent=0 // pred_region
    _
  $region17: #{encoder_forward.1} parent=0 // pred_fallthru
    _
  // Predicated region
  $region18: #{encoder_forward.1} parent=0 // pred_check
    _
  $region19: #{encoder_forward.1} parent=0 // pred_check_branch
    %23 = sbr.rel (0) target = $region21
  $region20: #{encoder_forward.1} parent=0 // pred_region
    _
  $region21: #{encoder_forward.1} parent=0 // pred_fallthru
    _
  // Predicated region
  $region22: #{encoder_forward.1} parent=0 // pred_check
    _
  $region23: #{encoder_forward.1} parent=0 // pred_check_branch
    %25 = sbr.rel (0) target = $region25
  $region24: #{encoder_forward.1} parent=0 // pred_region
    _
  $region25: #{encoder_forward.1} parent=0 // pred_fallthru
    _
  // Predicated region
  $region26: #{encoder_forward.1} parent=0 // pred_check
    _
  $region27: #{encoder_forward.1} parent=0 // pred_check_branch
    %27 = sbr.rel (0) target = $region29
  $region28: #{encoder_forward.1} parent=0 // pred_region
    _
  $region29: #{encoder_forward.1} parent=0 // pred_fallthru
    _
  %v29 = vld [vmem:[%s0] sm:$0xff]
  %v30 = vld [vmem:[%s1] sm:$0xf]
  %v31 = vld [vmem:[%s1 + $0x4] sm:$0xf]
  %v32 = vld [vmem:[%s1 + $0x8] sm:$0xf]
  %v33 = vld [vmem:[%s1 + $0xc] sm:$0xf]
  %v34 = vld [vmem:[%s1 + $0x10] sm:$0xf]
  %v35 = vld [vmem:[%s1 + $0x14] sm:$0xf]
  %v36 = vld [vmem:[%s1 + $0x18] sm:$0xf]
  %v37 = vld [vmem:[%s1 + $0x1c] sm:$0xf]
  %v38 = vld [vmem:[%s2] sm:$0xff]
  %v39 = vld [vmem:[%s2 + $0x8] sm:$0xff]
  %v40 = vld [vmem:[%s2 + $0x10] sm:$0xff]
  %v41 = vld [vmem:[%s2 + $0x18] sm:$0xff]
  %v42 = vld [vmem:[%s2 + $0x20] sm:$0xff]
  %v43 = vld [vmem:[%s2 + $0x28] sm:$0xff]
  %v44 = vld [vmem:[%s2 + $0x30] sm:$0xff]
  %v45 = vld [vmem:[%s2 + $0x38] sm:$0xff]
  %v46 = vld [vmem:[%s3] sm:$0xff]
  %v48 = vlaneseq
  %v49 = vshrl.u32 %v48, 7
  %v50 = vsub.s32 0, %v49
  %v51 = vrot.slane %v46, %v50
  %v52 = vlaneseq
  %v53 = vshrl.u32 %v52, 7
  %v54 = vsub.s32 1, %v53
  %v55 = vrot.slane %v46, %v54
  %v56 = vlaneseq
  %v57 = vshrl.u32 %v56, 7
  %v58 = vsub.s32 2, %v57
  %v59 = vrot.slane %v46, %v58
  %v60 = vlaneseq
  %v61 = vshrl.u32 %v60, 7
  %v62 = vsub.s32 3, %v61
  %v63 = vrot.slane %v46, %v62
  %v64 = vlaneseq
  %v65 = vshrl.u32 %v64, 7
  %v66 = vsub.s32 4, %v65
  %v67 = vrot.slane %v46, %v66
  %v68 = vlaneseq
  %v69 = vshrl.u32 %v68, 7
  %v70 = vsub.s32 5, %v69
  %v71 = vrot.slane %v46, %v70
  %v72 = vlaneseq
  %v73 = vshrl.u32 %v72, 7
  %v74 = vsub.s32 6, %v73
  %v75 = vrot.slane %v46, %v74
  %v76 = vlaneseq
  %v77 = vshrl.u32 %v76, 7
  %v78 = vsub.s32 7, %v77
  %v79 = vrot.slane %v46, %v78
  %v96 = vunpack.c.l.b16 %v30
  %v97 = vunpack.c.l.b16 %v31
  %v98 = vunpack.c.l.b16 %v32
  %v99 = vunpack.c.l.b16 %v33
  %v100 = vunpack.c.l.b16 %v34
  %v101 = vunpack.c.l.b16 %v35
  %v102 = vunpack.c.l.b16 %v36
  %v103 = vunpack.c.l.b16 %v37
  %v104 = vpack.c.b16 %v97, %v96
  %v105 = vpack.c.b16 %v99, %v98
  %v106 = vpack.c.b16 %v101, %v100
  %v107 = vpack.c.b16 %v103, %v102
  %v116 = vunpack.c.l.b16 %v38
  %v117 = vunpack.c.h.b16 %v38
  %v118 = vunpack.c.l.b16 %v39
  %v119 = vunpack.c.h.b16 %v39
  %v120 = vunpack.c.l.b16 %v40
  %v121 = vunpack.c.h.b16 %v40
  %v122 = vunpack.c.l.b16 %v41
  %v123 = vunpack.c.h.b16 %v41
  %v124 = vunpack.c.l.b16 %v42
  %v125 = vunpack.c.h.b16 %v42
  %v126 = vunpack.c.l.b16 %v43
  %v127 = vunpack.c.h.b16 %v43
  %v128 = vunpack.c.l.b16 %v44
  %v129 = vunpack.c.h.b16 %v44
  %v130 = vunpack.c.l.b16 %v45
  %v131 = vunpack.c.h.b16 %v45
  %v132 = vpack.c.b16 %v124, %v116
  %v133 = vpack.c.b16 %v125, %v117
  %v134 = vpack.c.b16 %v126, %v118
  %v135 = vpack.c.b16 %v127, %v119
  %v136 = vpack.c.b16 %v128, %v120
  %v137 = vpack.c.b16 %v129, %v121
  %v138 = vpack.c.b16 %v130, %v122
  %v139 = vpack.c.b16 %v131, %v123
  %vm148 = vcmask 130048
  %v150 = vsel %vm148, %v104, 0
  %v153 = vsel %vm148, %v105, 0
  %v156 = vsel %vm148, %v106, 0
  %v159 = vsel %vm148, %v107, 0
  %161 = vmatprep.subr.bf16.mxu0 0
  %162 = vmatpush1.bf16.msra.mxu0 0
  %163 = vmatprep.subr.bf16.mxu0 0
  %164 = vmatpush1.bf16.msra.mxu0 0
  %165 = vmatprep.subr.bf16.mxu0 0
  %166 = vmatpush1.bf16.msra.mxu0 0
  %167 = vmatprep.subr.bf16.mxu0 0
  %168 = vmatpush1.bf16.msra.mxu0 0
  %169 = vmatprep.subr.bf16.mxu0 0
  %170 = vmatpush1.bf16.msra.mxu0 0
  %171 = vmatprep.subr.bf16.mxu0 0
  %172 = vmatpush1.bf16.msra.mxu0 0
  %173 = vmatprep.subr.bf16.mxu0 0
  %174 = vmatpush1.bf16.msra.mxu0 0
  %175 = vmatprep.subr.bf16.mxu0 %v133
  %176 = vmatpush1.bf16.msra.mxu0 %v132
  %177 = vmatprep.subr.bf16.mxu0 0
  %178 = vmatpush2.bf16.msra.mxu0 0
  %179 = vmatprep.subr.bf16.mxu0 0
  %180 = vmatpush2.bf16.msra.mxu0 0
  %181 = vmatprep.subr.bf16.mxu0 0
  %182 = vmatpush2.bf16.msra.mxu0 0
  %183 = vmatprep.subr.bf16.mxu0 0
  %184 = vmatpush2.bf16.msra.mxu0 0
  %185 = vmatprep.subr.bf16.mxu0 0
  %186 = vmatpush2.bf16.msra.mxu0 0
  %187 = vmatprep.subr.bf16.mxu0 0
  %188 = vmatpush2.bf16.msra.mxu0 0
  %189 = vmatprep.subr.bf16.mxu0 0
  %190 = vmatpush2.bf16.msra.mxu0 0
  %191 = vmatprep.subr.bf16.mxu0 0
  %192 = vmatpush2.bf16.msra.mxu0 0
  %193 = vmatprep.mubr.bf16.mxu0 0
  %194 = vmatmul.mubr.bf16.gmra.mxu0 %v150
  %v195 = vpop.f32.mrf.mxu0
  %v196 = vadd.f32 %v51, %v195
  %v197 = vpop.f32.mrf.mxu0
  %v198 = vadd.f32 %v55, %v197
  %v199 = vpop.f32.mrf.mxu0
  %v200 = vadd.f32 %v51, %v199
  %v201 = vpop.f32.mrf.mxu0
  %v202 = vadd.f32 %v55, %v201
  %203 = vmatprep.mubr.bf16.mxu0 0
  %204 = vmatmul.mubr.bf16.gmra.mxu0 %v153
  %v205 = vpop.f32.mrf.mxu0
  %v206 = vadd.f32 %v51, %v205
  %v207 = vpop.f32.mrf.mxu0
  %v208 = vadd.f32 %v55, %v207
  %v209 = vpop.f32.mrf.mxu0
  %v210 = vadd.f32 %v51, %v209
  %v211 = vpop.f32.mrf.mxu0
  %v212 = vadd.f32 %v55, %v211
  %213 = vmatprep.mubr.bf16.mxu0 0
  %214 = vmatmul.mubr.bf16.gmra.mxu0 %v156
  %v215 = vpop.f32.mrf.mxu0
  %v216 = vadd.f32 %v51, %v215
  %v217 = vpop.f32.mrf.mxu0
  %v218 = vadd.f32 %v55, %v217
  %v219 = vpop.f32.mrf.mxu0
  %v220 = vadd.f32 %v51, %v219
  %v221 = vpop.f32.mrf.mxu0
  %v222 = vadd.f32 %v55, %v221
  %223 = vmatprep.mubr.bf16.mxu0 0
  %224 = vmatmul.mubr.bf16.gmra.mxu0 %v159
  %v225 = vpop.f32.mrf.mxu0
  %v226 = vadd.f32 %v51, %v225
  %v227 = vpop.f32.mrf.mxu0
  %v228 = vadd.f32 %v55, %v227
  %v229 = vpop.f32.mrf.mxu0
  %v230 = vadd.f32 %v51, %v229
  %v231 = vpop.f32.mrf.mxu0
  %v232 = vadd.f32 %v55, %v231
  %233 = vdwg.mxu0
  %234 = vmatprep.subr.bf16.mxu0 0
  %235 = vmatpush1.bf16.msra.mxu0 0
  %236 = vmatprep.subr.bf16.mxu0 0
  %237 = vmatpush1.bf16.msra.mxu0 0
  %238 = vmatprep.subr.bf16.mxu0 0
  %239 = vmatpush1.bf16.msra.mxu0 0
  %240 = vmatprep.subr.bf16.mxu0 0
  %241 = vmatpush1.bf16.msra.mxu0 0
  %242 = vmatprep.subr.bf16.mxu0 0
  %243 = vmatpush1.bf16.msra.mxu0 0
  %244 = vmatprep.subr.bf16.mxu0 0
  %245 = vmatpush1.bf16.msra.mxu0 0
  %246 = vmatprep.subr.bf16.mxu0 0
  %247 = vmatpush1.bf16.msra.mxu0 0
  %248 = vmatprep.subr.bf16.mxu0 %v135
  %249 = vmatpush1.bf16.msra.mxu0 %v134
  %250 = vmatprep.subr.bf16.mxu0 0
  %251 = vmatpush2.bf16.msra.mxu0 0
  %252 = vmatprep.subr.bf16.mxu0 0
  %253 = vmatpush2.bf16.msra.mxu0 0
  %254 = vmatprep.subr.bf16.mxu0 0
  %255 = vmatpush2.bf16.msra.mxu0 0
  %256 = vmatprep.subr.bf16.mxu0 0
  %257 = vmatpush2.bf16.msra.mxu0 0
  %258 = vmatprep.subr.bf16.mxu0 0
  %259 = vmatpush2.bf16.msra.mxu0 0
  %260 = vmatprep.subr.bf16.mxu0 0
  %261 = vmatpush2.bf16.msra.mxu0 0
  %262 = vmatprep.subr.bf16.mxu0 0
  %263 = vmatpush2.bf16.msra.mxu0 0
  %264 = vmatprep.subr.bf16.mxu0 0
  %265 = vmatpush2.bf16.msra.mxu0 0
  %266 = vmatprep.mubr.bf16.mxu0 0
  %267 = vmatmul.mubr.bf16.gmra.mxu0 %v150
  %v268 = vpop.f32.mrf.mxu0
  %v269 = vadd.f32 %v59, %v268
  %v270 = vpop.f32.mrf.mxu0
  %v271 = vadd.f32 %v63, %v270
  %v272 = vpop.f32.mrf.mxu0
  %v273 = vadd.f32 %v59, %v272
  %v274 = vpop.f32.mrf.mxu0
  %v275 = vadd.f32 %v63, %v274
  %276 = vmatprep.mubr.bf16.mxu0 0
  %277 = vmatmul.mubr.bf16.gmra.mxu0 %v153
  %v278 = vpop.f32.mrf.mxu0
  %v279 = vadd.f32 %v59, %v278
  %v280 = vpop.f32.mrf.mxu0
  %v281 = vadd.f32 %v63, %v280
  %v282 = vpop.f32.mrf.mxu0
  %v283 = vadd.f32 %v59, %v282
  %v284 = vpop.f32.mrf.mxu0
  %v285 = vadd.f32 %v63, %v284
  %286 = vmatprep.mubr.bf16.mxu0 0
  %287 = vmatmul.mubr.bf16.gmra.mxu0 %v156
  %v288 = vpop.f32.mrf.mxu0
  %v289 = vadd.f32 %v59, %v288
  %v290 = vpop.f32.mrf.mxu0
  %v291 = vadd.f32 %v63, %v290
  %v292 = vpop.f32.mrf.mxu0
  %v293 = vadd.f32 %v59, %v292
  %v294 = vpop.f32.mrf.mxu0
  %v295 = vadd.f32 %v63, %v294
  %296 = vmatprep.mubr.bf16.mxu0 0
  %297 = vmatmul.mubr.bf16.gmra.mxu0 %v159
  %v298 = vpop.f32.mrf.mxu0
  %v299 = vadd.f32 %v59, %v298
  %v300 = vpop.f32.mrf.mxu0
  %v301 = vadd.f32 %v63, %v300
  %v302 = vpop.f32.mrf.mxu0
  %v303 = vadd.f32 %v59, %v302
  %v304 = vpop.f32.mrf.mxu0
  %v305 = vadd.f32 %v63, %v304
  %306 = vdwg.mxu0
  %307 = vmatprep.subr.bf16.mxu0 0
  %308 = vmatpush1.bf16.msra.mxu0 0
  %309 = vmatprep.subr.bf16.mxu0 0
  %310 = vmatpush1.bf16.msra.mxu0 0
  %311 = vmatprep.subr.bf16.mxu0 0
  %312 = vmatpush1.bf16.msra.mxu0 0
  %313 = vmatprep.subr.bf16.mxu0 0
  %314 = vmatpush1.bf16.msra.mxu0 0
  %315 = vmatprep.subr.bf16.mxu0 0
  %316 = vmatpush1.bf16.msra.mxu0 0
  %317 = vmatprep.subr.bf16.mxu0 0
  %318 = vmatpush1.bf16.msra.mxu0 0
  %319 = vmatprep.subr.bf16.mxu0 0
  %320 = vmatpush1.bf16.msra.mxu0 0
  %321 = vmatprep.subr.bf16.mxu0 %v137
  %322 = vmatpush1.bf16.msra.mxu0 %v136
  %323 = vmatprep.subr.bf16.mxu0 0
  %324 = vmatpush2.bf16.msra.mxu0 0
  %325 = vmatprep.subr.bf16.mxu0 0
  %326 = vmatpush2.bf16.msra.mxu0 0
  %327 = vmatprep.subr.bf16.mxu0 0
  %328 = vmatpush2.bf16.msra.mxu0 0
  %329 = vmatprep.subr.bf16.mxu0 0
  %330 = vmatpush2.bf16.msra.mxu0 0
  %331 = vmatprep.subr.bf16.mxu0 0
  %332 = vmatpush2.bf16.msra.mxu0 0
  %333 = vmatprep.subr.bf16.mxu0 0
  %334 = vmatpush2.bf16.msra.mxu0 0
  %335 = vmatprep.subr.bf16.mxu0 0
  %336 = vmatpush2.bf16.msra.mxu0 0
  %337 = vmatprep.subr.bf16.mxu0 0
  %338 = vmatpush2.bf16.msra.mxu0 0
  %339 = vmatprep.mubr.bf16.mxu0 0
  %340 = vmatmul.mubr.bf16.gmra.mxu0 %v150
  %v341 = vpop.f32.mrf.mxu0
  %v342 = vadd.f32 %v67, %v341
  %v343 = vpop.f32.mrf.mxu0
  %v344 = vadd.f32 %v71, %v343
  %v345 = vpop.f32.mrf.mxu0
  %v346 = vadd.f32 %v67, %v345
  %v347 = vpop.f32.mrf.mxu0
  %v348 = vadd.f32 %v71, %v347
  %349 = vmatprep.mubr.bf16.mxu0 0
  %350 = vmatmul.mubr.bf16.gmra.mxu0 %v153
  %v351 = vpop.f32.mrf.mxu0
  %v352 = vadd.f32 %v67, %v351
  %v353 = vpop.f32.mrf.mxu0
  %v354 = vadd.f32 %v71, %v353
  %v355 = vpop.f32.mrf.mxu0
  %v356 = vadd.f32 %v67, %v355
  %v357 = vpop.f32.mrf.mxu0
  %v358 = vadd.f32 %v71, %v357
  %359 = vmatprep.mubr.bf16.mxu0 0
  %360 = vmatmul.mubr.bf16.gmra.mxu0 %v156
  %v361 = vpop.f32.mrf.mxu0
  %v362 = vadd.f32 %v67, %v361
  %v363 = vpop.f32.mrf.mxu0
  %v364 = vadd.f32 %v71, %v363
  %v365 = vpop.f32.mrf.mxu0
  %v366 = vadd.f32 %v67, %v365
  %v367 = vpop.f32.mrf.mxu0
  %v368 = vadd.f32 %v71, %v367
  %369 = vmatprep.mubr.bf16.mxu0 0
  %370 = vmatmul.mubr.bf16.gmra.mxu0 %v159
  %v371 = vpop.f32.mrf.mxu0
  %v372 = vadd.f32 %v67, %v371
  %v373 = vpop.f32.mrf.mxu0
  %v374 = vadd.f32 %v71, %v373
  %v375 = vpop.f32.mrf.mxu0
  %v376 = vadd.f32 %v67, %v375
  %v377 = vpop.f32.mrf.mxu0
  %v378 = vadd.f32 %v71, %v377
  %379 = vdwg.mxu0
  %380 = vmatprep.subr.bf16.mxu0 0
  %381 = vmatpush1.bf16.msra.mxu0 0
  %382 = vmatprep.subr.bf16.mxu0 0
  %383 = vmatpush1.bf16.msra.mxu0 0
  %384 = vmatprep.subr.bf16.mxu0 0
  %385 = vmatpush1.bf16.msra.mxu0 0
  %386 = vmatprep.subr.bf16.mxu0 0
  %387 = vmatpush1.bf16.msra.mxu0 0
  %388 = vmatprep.subr.bf16.mxu0 0
  %389 = vmatpush1.bf16.msra.mxu0 0
  %390 = vmatprep.subr.bf16.mxu0 0
  %391 = vmatpush1.bf16.msra.mxu0 0
  %392 = vmatprep.subr.bf16.mxu0 0
  %393 = vmatpush1.bf16.msra.mxu0 0
  %394 = vmatprep.subr.bf16.mxu0 %v139
  %395 = vmatpush1.bf16.msra.mxu0 %v138
  %396 = vmatprep.subr.bf16.mxu0 0
  %397 = vmatpush2.bf16.msra.mxu0 0
  %398 = vmatprep.subr.bf16.mxu0 0
  %399 = vmatpush2.bf16.msra.mxu0 0
  %400 = vmatprep.subr.bf16.mxu0 0
  %401 = vmatpush2.bf16.msra.mxu0 0
  %402 = vmatprep.subr.bf16.mxu0 0
  %403 = vmatpush2.bf16.msra.mxu0 0
  %404 = vmatprep.subr.bf16.mxu0 0
  %405 = vmatpush2.bf16.msra.mxu0 0
  %406 = vmatprep.subr.bf16.mxu0 0
  %407 = vmatpush2.bf16.msra.mxu0 0
  %408 = vmatprep.subr.bf16.mxu0 0
  %409 = vmatpush2.bf16.msra.mxu0 0
  %410 = vmatprep.subr.bf16.mxu0 0
  %411 = vmatpush2.bf16.msra.mxu0 0
  %412 = vmatprep.mubr.bf16.mxu0 0
  %413 = vmatmul.mubr.bf16.gmra.mxu0 %v150
  %v414 = vpop.f32.mrf.mxu0
  %v415 = vadd.f32 %v75, %v414
  %v416 = vpop.f32.mrf.mxu0
  %v417 = vadd.f32 %v79, %v416
  %v418 = vpop.f32.mrf.mxu0
  %v419 = vadd.f32 %v75, %v418
  %v420 = vpop.f32.mrf.mxu0
  %v421 = vadd.f32 %v79, %v420
  %422 = vmatprep.mubr.bf16.mxu0 0
  %423 = vmatmul.mubr.bf16.gmra.mxu0 %v153
  %v424 = vpop.f32.mrf.mxu0
  %v425 = vadd.f32 %v75, %v424
  %v426 = vpop.f32.mrf.mxu0
  %v427 = vadd.f32 %v79, %v426
  %v428 = vpop.f32.mrf.mxu0
  %v429 = vadd.f32 %v75, %v428
  %v430 = vpop.f32.mrf.mxu0
  %v431 = vadd.f32 %v79, %v430
  %432 = vmatprep.mubr.bf16.mxu0 0
  %433 = vmatmul.mubr.bf16.gmra.mxu0 %v156
  %v434 = vpop.f32.mrf.mxu0
  %v435 = vadd.f32 %v75, %v434
  %v436 = vpop.f32.mrf.mxu0
  %v437 = vadd.f32 %v79, %v436
  %v438 = vpop.f32.mrf.mxu0
  %v439 = vadd.f32 %v75, %v438
  %v440 = vpop.f32.mrf.mxu0
  %v441 = vadd.f32 %v79, %v440
  %442 = vmatprep.mubr.bf16.mxu0 0
  %443 = vmatmul.mubr.bf16.gmra.mxu0 %v159
  %v444 = vpop.f32.mrf.mxu0
  %v445 = vadd.f32 %v75, %v444
  %v446 = vpop.f32.mrf.mxu0
  %v447 = vadd.f32 %v79, %v446
  %v448 = vpop.f32.mrf.mxu0
  %v449 = vadd.f32 %v75, %v448
  %v450 = vpop.f32.mrf.mxu0
  %v451 = vadd.f32 %v79, %v450
  %452 = vdwg.mxu0
  %453 = vst [vmem:[#allocation2] sm:$0xff] %v196
  %454 = vst [vmem:[#allocation2 + $0x8] sm:$0xff] %v198
  %455 = vst [vmem:[#allocation2 + $0x10] sm:$0xff] %v269
  %456 = vst [vmem:[#allocation2 + $0x18] sm:$0xff] %v271
  %457 = vst [vmem:[#allocation2 + $0x20] sm:$0xff] %v342
  %458 = vst [vmem:[#allocation2 + $0x28] sm:$0xff] %v344
  %459 = vst [vmem:[#allocation2 + $0x30] sm:$0xff] %v415
  %460 = vst [vmem:[#allocation2 + $0x38] sm:$0xff] %v417
  %461 = vst [vmem:[#allocation2 + $0x40] sm:$0xff] %v200
  %462 = vst [vmem:[#allocation2 + $0x48] sm:$0xff] %v202
  %463 = vst [vmem:[#allocation2 + $0x50] sm:$0xff] %v273
  %464 = vst [vmem:[#allocation2 + $0x58] sm:$0xff] %v275
  %465 = vst [vmem:[#allocation2 + $0x60] sm:$0xff] %v346
  %466 = vst [vmem:[#allocation2 + $0x68] sm:$0xff] %v348
  %467 = vst [vmem:[#allocation2 + $0x70] sm:$0xff] %v419
  %468 = vst [vmem:[#allocation2 + $0x78] sm:$0xff] %v421
  %469 = vst [vmem:[#allocation2 + $0x80] sm:$0xff] %v206
  %470 = vst [vmem:[#allocation2 + $0x88] sm:$0xff] %v208
  %471 = vst [vmem:[#allocation2 + $0x90] sm:$0xff] %v279
  %472 = vst [vmem:[#allocation2 + $0x98] sm:$0xff] %v281
  %473 = vst [vmem:[#allocation2 + $0xa0] sm:$0xff] %v352
  %474 = vst [vmem:[#allocation2 + $0xa8] sm:$0xff] %v354
  %475 = vst [vmem:[#allocation2 + $0xb0] sm:$0xff] %v425
  %476 = vst [vmem:[#allocation2 + $0xb8] sm:$0xff] %v427
  %477 = vst [vmem:[#allocation2 + $0xc0] sm:$0xff] %v210
  %478 = vst [vmem:[#allocation2 + $0xc8] sm:$0xff] %v212
  %479 = vst [vmem:[#allocation2 + $0xd0] sm:$0xff] %v283
  %480 = vst [vmem:[#allocation2 + $0xd8] sm:$0xff] %v285
  %481 = vst [vmem:[#allocation2 + $0xe0] sm:$0xff] %v356
  %482 = vst [vmem:[#allocation2 + $0xe8] sm:$0xff] %v358
  %483 = vst [vmem:[#allocation2 + $0xf0] sm:$0xff] %v429
  %484 = vst [vmem:[#allocation2 + $0xf8] sm:$0xff] %v431
  %485 = vst [vmem:[#allocation2 + $0x100] sm:$0xff] %v216
  %486 = vst [vmem:[#allocation2 + $0x108] sm:$0xff] %v218
  %487 = vst [vmem:[#allocation2 + $0x110] sm:$0xff] %v289
  %488 = vst [vmem:[#allocation2 + $0x118] sm:$0xff] %v291
  %489 = vst [vmem:[#allocation2 + $0x120] sm:$0xff] %v362
  %490 = vst [vmem:[#allocation2 + $0x128] sm:$0xff] %v364
  %491 = vst [vmem:[#allocation2 + $0x130] sm:$0xff] %v435
  %492 = vst [vmem:[#allocation2 + $0x138] sm:$0xff] %v437
  %493 = vst [vmem:[#allocation2 + $0x140] sm:$0xff] %v220
  %494 = vst [vmem:[#allocation2 + $0x148] sm:$0xff] %v222
  %495 = vst [vmem:[#allocation2 + $0x150] sm:$0xff] %v293
  %496 = vst [vmem:[#allocation2 + $0x158] sm:$0xff] %v295
  %497 = vst [vmem:[#allocation2 + $0x160] sm:$0xff] %v366
  %498 = vst [vmem:[#allocation2 + $0x168] sm:$0xff] %v368
  %499 = vst [vmem:[#allocation2 + $0x170] sm:$0xff] %v439
  %500 = vst [vmem:[#allocation2 + $0x178] sm:$0xff] %v441
  %501 = vst [vmem:[#allocation2 + $0x180] sm:$0xff] %v226
  %502 = vst [vmem:[#allocation2 + $0x188] sm:$0xff] %v228
  %503 = vst [vmem:[#allocation2 + $0x190] sm:$0xff] %v299
  %504 = vst [vmem:[#allocation2 + $0x198] sm:$0xff] %v301
  %505 = vst [vmem:[#allocation2 + $0x1a0] sm:$0xff] %v372
  %506 = vst [vmem:[#allocation2 + $0x1a8] sm:$0xff] %v374
  %507 = vst [vmem:[#allocation2 + $0x1b0] sm:$0xff] %v445
  %508 = vst [vmem:[#allocation2 + $0x1b8] sm:$0xff] %v447
  %509 = vst [vmem:[#allocation2 + $0x1c0] sm:$0xff] %v230
  %510 = vst [vmem:[#allocation2 + $0x1c8] sm:$0xff] %v232
  %511 = vst [vmem:[#allocation2 + $0x1d0] sm:$0xff] %v303
  %512 = vst [vmem:[#allocation2 + $0x1d8] sm:$0xff] %v305
  %513 = vst [vmem:[#allocation2 + $0x1e0] sm:$0xff] %v376
  %514 = vst [vmem:[#allocation2 + $0x1e8] sm:$0xff] %v378
  %515 = vst [vmem:[#allocation2 + $0x1f0] sm:$0xff] %v449
  %516 = vst [vmem:[#allocation2 + $0x1f8] sm:$0xff] %v451
  %v517 = vld [vmem:[#allocation2] sm:$0xff]
  %v518 = vld [vmem:[#allocation2 + $0x8] sm:$0xff]
  %v519 = vld [vmem:[#allocation2 + $0x10] sm:$0xff]
  %v520 = vld [vmem:[#allocation2 + $0x18] sm:$0xff]
  %v521 = vld [vmem:[%s4] sm:$0xff]
  %v522 = vld [vmem:[%s4 + $0x8] sm:$0xff]
  %v523 = vld [vmem:[%s4 + $0x10] sm:$0xff]
  %v524 = vld [vmem:[%s4 + $0x18] sm:$0xff]
  %v525 = vld [vmem:[%s4 + $0x20] sm:$0xff]
  %v526 = vld [vmem:[%s4 + $0x28] sm:$0xff]
  %v527 = vld [vmem:[%s4 + $0x30] sm:$0xff]
  %v528 = vld [vmem:[%s4 + $0x38] sm:$0xff]
  %v529 = vld [vmem:[%s4 + $0x40] sm:$0xff]
  %v530 = vld [vmem:[%s4 + $0x48] sm:$0xff]
  %v531 = vld [vmem:[%s4 + $0x50] sm:$0xff]
  %v532 = vld [vmem:[%s4 + $0x58] sm:$0xff]
  %v533 = vld [vmem:[%s4 + $0x60] sm:$0xff]
  %v534 = vld [vmem:[%s4 + $0x68] sm:$0xff]
  %v535 = vld [vmem:[%s4 + $0x70] sm:$0xff]
  %v536 = vld [vmem:[%s4 + $0x78] sm:$0xff]
  %v537 = vld [vmem:[%s4 + $0x80] sm:$0xff]
  %v538 = vld [vmem:[%s4 + $0x88] sm:$0xff]
  %v539 = vld [vmem:[%s4 + $0x90] sm:$0xff]
  %v540 = vld [vmem:[%s4 + $0x98] sm:$0xff]
  %v541 = vld [vmem:[%s4 + $0xa0] sm:$0xff]
  %v542 = vld [vmem:[%s4 + $0xa8] sm:$0xff]
  %v543 = vld [vmem:[%s4 + $0xb0] sm:$0xff]
  %v544 = vld [vmem:[%s4 + $0xb8] sm:$0xff]
  %v545 = vld [vmem:[%s4 + $0xc0] sm:$0xff]
  %v546 = vld [vmem:[%s4 + $0xc8] sm:$0xff]
  %v547 = vld [vmem:[%s4 + $0xd0] sm:$0xff]
  %v548 = vld [vmem:[%s4 + $0xd8] sm:$0xff]
  %v549 = vld [vmem:[%s4 + $0xe0] sm:$0xff]
  %v550 = vld [vmem:[%s4 + $0xe8] sm:$0xff]
  %v551 = vld [vmem:[%s4 + $0xf0] sm:$0xff]
  %v552 = vld [vmem:[%s4 + $0xf8] sm:$0xff]
  %v585 = vunpack.c.l.b16 %v521
  %v586 = vunpack.c.h.b16 %v521
  %v587 = vunpack.c.l.b16 %v522
  %v588 = vunpack.c.h.b16 %v522
  %v589 = vunpack.c.l.b16 %v523
  %v590 = vunpack.c.h.b16 %v523
  %v591 = vunpack.c.l.b16 %v524
  %v592 = vunpack.c.h.b16 %v524
  %v593 = vunpack.c.l.b16 %v525
  %v594 = vunpack.c.h.b16 %v525
  %v595 = vunpack.c.l.b16 %v526
  %v596 = vunpack.c.h.b16 %v526
  %v597 = vunpack.c.l.b16 %v527
  %v598 = vunpack.c.h.b16 %v527
  %v599 = vunpack.c.l.b16 %v528
  %v600 = vunpack.c.h.b16 %v528
  %v601 = vunpack.c.l.b16 %v529
  %v602 = vunpack.c.h.b16 %v529
  %v603 = vunpack.c.l.b16 %v530
  %v604 = vunpack.c.h.b16 %v530
  %v605 = vunpack.c.l.b16 %v531
  %v606 = vunpack.c.h.b16 %v531
  %v607 = vunpack.c.l.b16 %v532
  %v608 = vunpack.c.h.b16 %v532
  %v609 = vunpack.c.l.b16 %v533
  %v610 = vunpack.c.h.b16 %v533
  %v611 = vunpack.c.l.b16 %v534
  %v612 = vunpack.c.h.b16 %v534
  %v613 = vunpack.c.l.b16 %v535
  %v614 = vunpack.c.h.b16 %v535
  %v615 = vunpack.c.l.b16 %v536
  %v616 = vunpack.c.h.b16 %v536
  %v617 = vunpack.c.l.b16 %v537
  %v618 = vunpack.c.h.b16 %v537
  %v619 = vunpack.c.l.b16 %v538
  %v620 = vunpack.c.h.b16 %v538
  %v621 = vunpack.c.l.b16 %v539
  %v622 = vunpack.c.h.b16 %v539
  %v623 = vunpack.c.l.b16 %v540
  %v624 = vunpack.c.h.b16 %v540
  %v625 = vunpack.c.l.b16 %v541
  %v626 = vunpack.c.h.b16 %v541
  %v627 = vunpack.c.l.b16 %v542
  %v628 = vunpack.c.h.b16 %v542
  %v629 = vunpack.c.l.b16 %v543
  %v630 = vunpack.c.h.b16 %v543
  %v631 = vunpack.c.l.b16 %v544
  %v632 = vunpack.c.h.b16 %v544
  %v633 = vunpack.c.l.b16 %v545
  %v634 = vunpack.c.h.b16 %v545
  %v635 = vunpack.c.l.b16 %v546
  %v636 = vunpack.c.h.b16 %v546
  %v637 = vunpack.c.l.b16 %v547
  %v638 = vunpack.c.h.b16 %v547
  %v639 = vunpack.c.l.b16 %v548
  %v640 = vunpack.c.h.b16 %v548
  %v641 = vunpack.c.l.b16 %v549
  %v642 = vunpack.c.h.b16 %v549
  %v643 = vunpack.c.l.b16 %v550
  %v644 = vunpack.c.h.b16 %v550
  %v645 = vunpack.c.l.b16 %v551
  %v646 = vunpack.c.h.b16 %v551
  %v647 = vunpack.c.l.b16 %v552
  %v648 = vunpack.c.h.b16 %v552
  %v649 = vpack.c.b16 %v589, %v585
  %v650 = vpack.c.b16 %v590, %v586
  %v651 = vpack.c.b16 %v591, %v587
  %v652 = vpack.c.b16 %v592, %v588
  %v653 = vpack.c.b16 %v597, %v593
  %v654 = vpack.c.b16 %v598, %v594
  %v655 = vpack.c.b16 %v599, %v595
  %v656 = vpack.c.b16 %v600, %v596
  %v657 = vpack.c.b16 %v605, %v601
  %v658 = vpack.c.b16 %v606, %v602
  %v659 = vpack.c.b16 %v607, %v603
  %v660 = vpack.c.b16 %v608, %v604
  %v661 = vpack.c.b16 %v613, %v609
  %v662 = vpack.c.b16 %v614, %v610
  %v663 = vpack.c.b16 %v615, %v611
  %v664 = vpack.c.b16 %v616, %v612
  %v665 = vpack.c.b16 %v621, %v617
  %v666 = vpack.c.b16 %v622, %v618
  %v667 = vpack.c.b16 %v623, %v619
  %v668 = vpack.c.b16 %v624, %v620
  %v669 = vpack.c.b16 %v629, %v625
  %v670 = vpack.c.b16 %v630, %v626
  %v671 = vpack.c.b16 %v631, %v627
  %v672 = vpack.c.b16 %v632, %v628
  %v673 = vpack.c.b16 %v637, %v633
  %v674 = vpack.c.b16 %v638, %v634
  %v675 = vpack.c.b16 %v639, %v635
  %v676 = vpack.c.b16 %v640, %v636
  %v677 = vpack.c.b16 %v645, %v641
  %v678 = vpack.c.b16 %v646, %v642
  %v679 = vpack.c.b16 %v647, %v643
  %v680 = vpack.c.b16 %v648, %v644
  %713 = vmatprep.subr.bf16.mxu0 %v678
  %714 = vmatpush1.bf16.msra.mxu0 %v677
  %715 = vmatprep.subr.bf16.mxu0 %v674
  %716 = vmatpush1.bf16.msra.mxu0 %v673
  %717 = vmatprep.subr.bf16.mxu0 %v670
  %718 = vmatpush1.bf16.msra.mxu0 %v669
  %719 = vmatprep.subr.bf16.mxu0 %v666
  %720 = vmatpush1.bf16.msra.mxu0 %v665
  %721 = vmatprep.subr.bf16.mxu0 %v662
  %722 = vmatpush1.bf16.msra.mxu0 %v661
  %723 = vmatprep.subr.bf16.mxu0 %v658
  %724 = vmatpush1.bf16.msra.mxu0 %v657
  %725 = vmatprep.subr.bf16.mxu0 %v654
  %726 = vmatpush1.bf16.msra.mxu0 %v653
  %727 = vmatprep.subr.bf16.mxu0 %v650
  %728 = vmatpush1.bf16.msra.mxu0 %v649
  %729 = vmatprep.subr.bf16.mxu0 0
  %730 = vmatpush2.bf16.msra.mxu0 0
  %731 = vmatprep.subr.bf16.mxu0 0
  %732 = vmatpush2.bf16.msra.mxu0 0
  %733 = vmatprep.subr.bf16.mxu0 0
  %734 = vmatpush2.bf16.msra.mxu0 0
  %735 = vmatprep.subr.bf16.mxu0 0
  %736 = vmatpush2.bf16.msra.mxu0 0
  %737 = vmatprep.subr.bf16.mxu0 0
  %738 = vmatpush2.bf16.msra.mxu0 0
  %739 = vmatprep.subr.bf16.mxu0 0
  %740 = vmatpush2.bf16.msra.mxu0 0
  %741 = vmatprep.subr.bf16.mxu0 0
  %742 = vmatpush2.bf16.msra.mxu0 0
  %743 = vmatprep.subr.bf16.mxu0 0
  %744 = vmatpush2.bf16.msra.mxu0 0
  %745 = vmatprep.mubr.bf16.mxu0 0
  %746 = vmatmul.mubr.bf16.gmra.mxu0 0
  %v747 = vpop.f32.mrf.mxu0
  %v748 = vadd.f32 0.0, %v747
  %v749 = vpop.f32.mrf.mxu0
  %v750 = vadd.f32 0.0, %v749
  %v751 = vpop.f32.mrf.mxu0
  %v752 = vpop.f32.mrf.mxu0
  %753 = vdwg.mxu0
  %754 = vmatprep.subr.bf16.mxu0 %v680
  %755 = vmatpush1.bf16.msra.mxu0 %v679
  %756 = vmatprep.subr.bf16.mxu0 %v676
  %757 = vmatpush1.bf16.msra.mxu0 %v675
  %758 = vmatprep.subr.bf16.mxu0 %v672
  %759 = vmatpush1.bf16.msra.mxu0 %v671
  %760 = vmatprep.subr.bf16.mxu0 %v668
  %761 = vmatpush1.bf16.msra.mxu0 %v667
  %762 = vmatprep.subr.bf16.mxu0 %v664
  %763 = vmatpush1.bf16.msra.mxu0 %v663
  %764 = vmatprep.subr.bf16.mxu0 %v660
  %765 = vmatpush1.bf16.msra.mxu0 %v659
  %766 = vmatprep.subr.bf16.mxu0 %v656
  %767 = vmatpush1.bf16.msra.mxu0 %v655
  %768 = vmatprep.subr.bf16.mxu0 %v652
  %769 = vmatpush1.bf16.msra.mxu0 %v651
  %770 = vmatprep.subr.bf16.mxu0 0
  %771 = vmatpush2.bf16.msra.mxu0 0
  %772 = vmatprep.subr.bf16.mxu0 0
  %773 = vmatpush2.bf16.msra.mxu0 0
  %774 = vmatprep.subr.bf16.mxu0 0
  %775 = vmatpush2.bf16.msra.mxu0 0
  %776 = vmatprep.subr.bf16.mxu0 0
  %777 = vmatpush2.bf16.msra.mxu0 0
  %778 = vmatprep.subr.bf16.mxu0 0
  %779 = vmatpush2.bf16.msra.mxu0 0
  %780 = vmatprep.subr.bf16.mxu0 0
  %781 = vmatpush2.bf16.msra.mxu0 0
  %782 = vmatprep.subr.bf16.mxu0 0
  %783 = vmatpush2.bf16.msra.mxu0 0
  %784 = vmatprep.subr.bf16.mxu0 0
  %785 = vmatpush2.bf16.msra.mxu0 0
  %786 = vmatprep.mubr.bf16.mxu0 0
  %787 = vmatmul.mubr.bf16.gmra.mxu0 0
  %v788 = vpop.f32.mrf.mxu0
  %v789 = vadd.f32 0.0, %v788
  %v790 = vpop.f32.mrf.mxu0
  %v791 = vadd.f32 0.0, %v790
  %v792 = vpop.f32.mrf.mxu0
  %v793 = vpop.f32.mrf.mxu0
  %794 = vdwg.mxu0
  %v795 = vadd.f32 %v517, %v748
  %v796 = vadd.f32 %v518, %v750
  %v797 = vadd.f32 %v519, %v789
  %v798 = vadd.f32 %v520, %v791
  %v799 = vxor.u32 %v795, 2147483648
  %v800 = vmul.f32 %v799, 1.442695
  %v801 = vpow.pop %v800
  %v802 = vadd.f32 %v801, 1.0
  %v803 = vrcp.pop %v802
  %v804 = vmul.f32 1.0, %v803
  %v805 = vxor.u32 %v796, 2147483648
  %v806 = vmul.f32 %v805, 1.442695
  %v807 = vpow.pop %v806
  %v808 = vadd.f32 %v807, 1.0
  %v809 = vrcp.pop %v808
  %v810 = vmul.f32 1.0, %v809
  %v811 = vtanh.pop %v797
  %v812 = vxor.u32 %v798, 2147483648
  %v813 = vmul.f32 %v812, 1.442695
  %v814 = vpow.pop %v813
  %v815 = vadd.f32 %v814, 1.0
  %v816 = vrcp.pop %v815
  %v817 = vmul.f32 1.0, %v816
  %v818 = vmul.f32 %v810, 0.0
  %v819 = vmul.f32 %v804, %v811
  %v820 = vadd.f32 %v818, %v819
  %v821 = vtanh.pop %v820
  %v822 = vmul.f32 %v817, %v821
  %vm823 = vcmp.gt.s32.totalorder %v29, 0
  %v824 = vsel %vm823, 1, 0
  %825 = vset.pattern.permute.xlu0 0
  %826 = vperm.xlu0 %825, %v824
  %v827 = vpop.permute.xlu0 %826
  %vm828 = vcmp.eq.s32.totalorder %v827, 1
  %v829 = vsel %vm828, %v822, 0.0
  %v830 = vsel %vm828, %v820, 0.0
  %831 = vst [vmem:[%s7] sm:$0xff] %v829
  %v832 = vld [vmem:[#allocation2 + $0x1e0] sm:$0xff]
  %v833 = vld [vmem:[#allocation2 + $0x1e8] sm:$0xff]
  %v834 = vld [vmem:[#allocation2 + $0x1f0] sm:$0xff]
  %v835 = vld [vmem:[#allocation2 + $0x1f8] sm:$0xff]
  %v836 = vld [vmem:[%s5] sm:$0xff]
  %v837 = vld [vmem:[%s5 + $0x8] sm:$0xff]
  %v838 = vld [vmem:[%s5 + $0x10] sm:$0xff]
  %v839 = vld [vmem:[%s5 + $0x18] sm:$0xff]
  %v840 = vld [vmem:[%s5 + $0x20] sm:$0xff]
  %v841 = vld [vmem:[%s5 + $0x28] sm:$0xff]
  %v842 = vld [vmem:[%s5 + $0x30] sm:$0xff]
  %v843 = vld [vmem:[%s5 + $0x38] sm:$0xff]
  %v844 = vld [vmem:[%s5 + $0x40] sm:$0xff]
  %v845 = vld [vmem:[%s5 + $0x48] sm:$0xff]
  %v846 = vld [vmem:[%s5 + $0x50] sm:$0xff]
  %v847 = vld [vmem:[%s5 + $0x58] sm:$0xff]
  %v848 = vld [vmem:[%s5 + $0x60] sm:$0xff]
  %v849 = vld [vmem:[%s5 + $0x68] sm:$0xff]
  %v850 = vld [vmem:[%s5 + $0x70] sm:$0xff]
  %v851 = vld [vmem:[%s5 + $0x78] sm:$0xff]
  %v852 = vld [vmem:[%s5 + $0x80] sm:$0xff]
  %v853 = vld [vmem:[%s5 + $0x88] sm:$0xff]
  %v854 = vld [vmem:[%s5 + $0x90] sm:$0xff]
  %v855 = vld [vmem:[%s5 + $0x98] sm:$0xff]
  %v856 = vld [vmem:[%s5 + $0xa0] sm:$0xff]
  %v857 = vld [vmem:[%s5 + $0xa8] sm:$0xff]
  %v858 = vld [vmem:[%s5 + $0xb0] sm:$0xff]
  %v859 = vld [vmem:[%s5 + $0xb8] sm:$0xff]
  %v860 = vld [vmem:[%s5 + $0xc0] sm:$0xff]
  %v861 = vld [vmem:[%s5 + $0xc8] sm:$0xff]
  %v862 = vld [vmem:[%s5 + $0xd0] sm:$0xff]
  %v863 = vld [vmem:[%s5 + $0xd8] sm:$0xff]
  %v864 = vld [vmem:[%s5 + $0xe0] sm:$0xff]
  %v865 = vld [vmem:[%s5 + $0xe8] sm:$0xff]
  %v866 = vld [vmem:[%s5 + $0xf0] sm:$0xff]
  %v867 = vld [vmem:[%s5 + $0xf8] sm:$0xff]
  %v900 = vunpack.c.l.b16 %v836
  %v901 = vunpack.c.h.b16 %v836
  %v902 = vunpack.c.l.b16 %v837
  %v903 = vunpack.c.h.b16 %v837
  %v904 = vunpack.c.l.b16 %v838
  %v905 = vunpack.c.h.b16 %v838
  %v906 = vunpack.c.l.b16 %v839
  %v907 = vunpack.c.h.b16 %v839
  %v908 = vunpack.c.l.b16 %v840
  %v909 = vunpack.c.h.b16 %v840
  %v910 = vunpack.c.l.b16 %v841
  %v911 = vunpack.c.h.b16 %v841
  %v912 = vunpack.c.l.b16 %v842
  %v913 = vunpack.c.h.b16 %v842
  %v914 = vunpack.c.l.b16 %v843
  %v915 = vunpack.c.h.b16 %v843
  %v916 = vunpack.c.l.b16 %v844
  %v917 = vunpack.c.h.b16 %v844
  %v918 = vunpack.c.l.b16 %v845
  %v919 = vunpack.c.h.b16 %v845
  %v920 = vunpack.c.l.b16 %v846
  %v921 = vunpack.c.h.b16 %v846
  %v922 = vunpack.c.l.b16 %v847
  %v923 = vunpack.c.h.b16 %v847
  %v924 = vunpack.c.l.b16 %v848
  %v925 = vunpack.c.h.b16 %v848
  %v926 = vunpack.c.l.b16 %v849
  %v927 = vunpack.c.h.b16 %v849
  %v928 = vunpack.c.l.b16 %v850
  %v929 = vunpack.c.h.b16 %v850
  %v930 = vunpack.c.l.b16 %v851
  %v931 = vunpack.c.h.b16 %v851
  %v932 = vunpack.c.l.b16 %v852
  %v933 = vunpack.c.h.b16 %v852
  %v934 = vunpack.c.l.b16 %v853
  %v935 = vunpack.c.h.b16 %v853
  %v936 = vunpack.c.l.b16 %v854
  %v937 = vunpack.c.h.b16 %v854
  %v938 = vunpack.c.l.b16 %v855
  %v939 = vunpack.c.h.b16 %v855
  %v940 = vunpack.c.l.b16 %v856
  %v941 = vunpack.c.h.b16 %v856
  %v942 = vunpack.c.l.b16 %v857
  %v943 = vunpack.c.h.b16 %v857
  %v944 = vunpack.c.l.b16 %v858
  %v945 = vunpack.c.h.b16 %v858
  %v946 = vunpack.c.l.b16 %v859
  %v947 = vunpack.c.h.b16 %v859
  %v948 = vunpack.c.l.b16 %v860
  %v949 = vunpack.c.h.b16 %v860
  %v950 = vunpack.c.l.b16 %v861
  %v951 = vunpack.c.h.b16 %v861
  %v952 = vunpack.c.l.b16 %v862
  %v953 = vunpack.c.h.b16 %v862
  %v954 = vunpack.c.l.b16 %v863
  %v955 = vunpack.c.h.b16 %v863
  %v956 = vunpack.c.l.b16 %v864
  %v957 = vunpack.c.h.b16 %v864
  %v958 = vunpack.c.l.b16 %v865
  %v959 = vunpack.c.h.b16 %v865
  %v960 = vunpack.c.l.b16 %v866
  %v961 = vunpack.c.h.b16 %v866
  %v962 = vunpack.c.l.b16 %v867
  %v963 = vunpack.c.h.b16 %v867
  %v964 = vpack.c.b16 %v904, %v900
  %v965 = vpack.c.b16 %v905, %v901
  %v966 = vpack.c.b16 %v906, %v902
  %v967 = vpack.c.b16 %v907, %v903
  %v968 = vpack.c.b16 %v912, %v908
  %v969 = vpack.c.b16 %v913, %v909
  %v970 = vpack.c.b16 %v914, %v910
  %v971 = vpack.c.b16 %v915, %v911
  %v972 = vpack.c.b16 %v920, %v916
  %v973 = vpack.c.b16 %v921, %v917
  %v974 = vpack.c.b16 %v922, %v918
  %v975 = vpack.c.b16 %v923, %v919
  %v976 = vpack.c.b16 %v928, %v924
  %v977 = vpack.c.b16 %v929, %v925
  %v978 = vpack.c.b16 %v930, %v926
  %v979 = vpack.c.b16 %v931, %v927
  %v980 = vpack.c.b16 %v936, %v932
  %v981 = vpack.c.b16 %v937, %v933
  %v982 = vpack.c.b16 %v938, %v934
  %v983 = vpack.c.b16 %v939, %v935
  %v984 = vpack.c.b16 %v944, %v940
  %v985 = vpack.c.b16 %v945, %v941
  %v986 = vpack.c.b16 %v946, %v942
  %v987 = vpack.c.b16 %v947, %v943
  %v988 = vpack.c.b16 %v952, %v948
  %v989 = vpack.c.b16 %v953, %v949
  %v990 = vpack.c.b16 %v954, %v950
  %v991 = vpack.c.b16 %v955, %v951
  %v992 = vpack.c.b16 %v960, %v956
  %v993 = vpack.c.b16 %v961, %v957
  %v994 = vpack.c.b16 %v962, %v958
  %v995 = vpack.c.b16 %v963, %v959
  %1028 = vmatprep.subr.bf16.mxu0 %v993
  %1029 = vmatpush1.bf16.msra.mxu0 %v992
  %1030 = vmatprep.subr.bf16.mxu0 %v989
  %1031 = vmatpush1.bf16.msra.mxu0 %v988
  %1032 = vmatprep.subr.bf16.mxu0 %v985
  %1033 = vmatpush1.bf16.msra.mxu0 %v984
  %1034 = vmatprep.subr.bf16.mxu0 %v981
  %1035 = vmatpush1.bf16.msra.mxu0 %v980
  %1036 = vmatprep.subr.bf16.mxu0 %v977
  %1037 = vmatpush1.bf16.msra.mxu0 %v976
  %1038 = vmatprep.subr.bf16.mxu0 %v973
  %1039 = vmatpush1.bf16.msra.mxu0 %v972
  %1040 = vmatprep.subr.bf16.mxu0 %v969
  %1041 = vmatpush1.bf16.msra.mxu0 %v968
  %1042 = vmatprep.subr.bf16.mxu0 %v965
  %1043 = vmatpush1.bf16.msra.mxu0 %v964
  %1044 = vmatprep.subr.bf16.mxu0 0
  %1045 = vmatpush2.bf16.msra.mxu0 0
  %1046 = vmatprep.subr.bf16.mxu0 0
  %1047 = vmatpush2.bf16.msra.mxu0 0
  %1048 = vmatprep.subr.bf16.mxu0 0
  %1049 = vmatpush2.bf16.msra.mxu0 0
  %1050 = vmatprep.subr.bf16.mxu0 0
  %1051 = vmatpush2.bf16.msra.mxu0 0
  %1052 = vmatprep.subr.bf16.mxu0 0
  %1053 = vmatpush2.bf16.msra.mxu0 0
  %1054 = vmatprep.subr.bf16.mxu0 0
  %1055 = vmatpush2.bf16.msra.mxu0 0
  %1056 = vmatprep.subr.bf16.mxu0 0
  %1057 = vmatpush2.bf16.msra.mxu0 0
  %1058 = vmatprep.subr.bf16.mxu0 0
  %1059 = vmatpush2.bf16.msra.mxu0 0
  %1060 = vmatprep.mubr.bf16.mxu0 0
  %1061 = vmatmul.mubr.bf16.gmra.mxu0 0
  %v1062 = vpop.f32.mrf.mxu0
  %v1063 = vadd.f32 0.0, %v1062
  %v1064 = vpop.f32.mrf.mxu0
  %v1065 = vadd.f32 0.0, %v1064
  %v1066 = vpop.f32.mrf.mxu0
  %v1067 = vpop.f32.mrf.mxu0
  %1068 = vdwg.mxu0
  %1069 = vmatprep.subr.bf16.mxu0 %v995
  %1070 = vmatpush1.bf16.msra.mxu0 %v994
  %1071 = vmatprep.subr.bf16.mxu0 %v991
  %1072 = vmatpush1.bf16.msra.mxu0 %v990
  %1073 = vmatprep.subr.bf16.mxu0 %v987
  %1074 = vmatpush1.bf16.msra.mxu0 %v986
  %1075 = vmatprep.subr.bf16.mxu0 %v983
  %1076 = vmatpush1.bf16.msra.mxu0 %v982
  %1077 = vmatprep.subr.bf16.mxu0 %v979
  %1078 = vmatpush1.bf16.msra.mxu0 %v978
  %1079 = vmatprep.subr.bf16.mxu0 %v975
  %1080 = vmatpush1.bf16.msra.mxu0 %v974
  %1081 = vmatprep.subr.bf16.mxu0 %v971
  %1082 = vmatpush1.bf16.msra.mxu0 %v970
  %1083 = vmatprep.subr.bf16.mxu0 %v967
  %1084 = vmatpush1.bf16.msra.mxu0 %v966
  %1085 = vmatprep.subr.bf16.mxu0 0
  %1086 = vmatpush2.bf16.msra.mxu0 0
  %1087 = vmatprep.subr.bf16.mxu0 0
  %1088 = vmatpush2.bf16.msra.mxu0 0
  %1089 = vmatprep.subr.bf16.mxu0 0
  %1090 = vmatpush2.bf16.msra.mxu0 0
  %1091 = vmatprep.subr.bf16.mxu0 0
  %1092 = vmatpush2.bf16.msra.mxu0 0
  %1093 = vmatprep.subr.bf16.mxu0 0
  %1094 = vmatpush2.bf16.msra.mxu0 0
  %1095 = vmatprep.subr.bf16.mxu0 0
  %1096 = vmatpush2.bf16.msra.mxu0 0
  %1097 = vmatprep.subr.bf16.mxu0 0
  %1098 = vmatpush2.bf16.msra.mxu0 0
  %1099 = vmatprep.subr.bf16.mxu0 0
  %1100 = vmatpush2.bf16.msra.mxu0 0
  %1101 = vmatprep.mubr.bf16.mxu0 0
  %1102 = vmatmul.mubr.bf16.gmra.mxu0 0
  %v1103 = vpop.f32.mrf.mxu0
  %v1104 = vadd.f32 0.0, %v1103
  %v1105 = vpop.f32.mrf.mxu0
  %v1106 = vadd.f32 0.0, %v1105
  %v1107 = vpop.f32.mrf.mxu0
  %v1108 = vpop.f32.mrf.mxu0
  %1109 = vdwg.mxu0
  %v1110 = vadd.f32 %v832, %v1063
  %v1111 = vadd.f32 %v833, %v1065
  %v1112 = vadd.f32 %v834, %v1104
  %v1113 = vadd.f32 %v835, %v1106
  %v1114 = vxor.u32 %v1110, 2147483648
  %v1115 = vmul.f32 %v1114, 1.442695
  %v1116 = vpow.pop %v1115
  %v1117 = vadd.f32 %v1116, 1.0
  %v1118 = vrcp.pop %v1117
  %v1119 = vmul.f32 1.0, %v1118
  %v1120 = vxor.u32 %v1111, 2147483648
  %v1121 = vmul.f32 %v1120, 1.442695
  %v1122 = vpow.pop %v1121
  %v1123 = vadd.f32 %v1122, 1.0
  %v1124 = vrcp.pop %v1123
  %v1125 = vmul.f32 1.0, %v1124
  %v1126 = vtanh.pop %v1112
  %v1127 = vxor.u32 %v1113, 2147483648
  %v1128 = vmul.f32 %v1127, 1.442695
  %v1129 = vpow.pop %v1128
  %v1130 = vadd.f32 %v1129, 1.0
  %v1131 = vrcp.pop %v1130
  %v1132 = vmul.f32 1.0, %v1131
  %v1133 = vmul.f32 %v1125, 0.0
  %v1134 = vmul.f32 %v1119, %v1126
  %v1135 = vadd.f32 %v1133, %v1134
  %v1136 = vtanh.pop %v1135
  %v1137 = vmul.f32 %v1132, %v1136
  %vm1138 = vcmp.gt.s32.totalorder %v29, 7
  %v1139 = vsel %vm1138, 1, 0
  %1140 = vset.pattern.permute.xlu0 0
  %1141 = vperm.xlu0 %1140, %v1139
  %v1142 = vpop.permute.xlu0 %1141
  %vm1143 = vcmp.eq.s32.totalorder %v1142, 1
  %v1144 = vsel %vm1143, %v1137, 0.0
  %v1145 = vsel %vm1143, %v1135, 0.0
  %s1146 = scalar_lea.vmem %s7, 112
  %1147 = vst [vmem:[%s1146 + $0x8] sm:$0xff] %v1144
  %v1148 = vld [vmem:[#allocation2 + $0x40] sm:$0xff]
  %v1149 = vld [vmem:[#allocation2 + $0x48] sm:$0xff]
  %v1150 = vld [vmem:[#allocation2 + $0x50] sm:$0xff]
  %v1151 = vld [vmem:[#allocation2 + $0x58] sm:$0xff]
  %v1152 = vpack.c.bf16 %v829, %v829
  %v1153 = vld [vmem:[%s4] sm:$0xff]
  %v1154 = vld [vmem:[%s4 + $0x8] sm:$0xff]
  %v1155 = vld [vmem:[%s4 + $0x10] sm:$0xff]
  %v1156 = vld [vmem:[%s4 + $0x18] sm:$0xff]
  %v1157 = vld [vmem:[%s4 + $0x20] sm:$0xff]
  %v1158 = vld [vmem:[%s4 + $0x28] sm:$0xff]
  %v1159 = vld [vmem:[%s4 + $0x30] sm:$0xff]
  %v1160 = vld [vmem:[%s4 + $0x38] sm:$0xff]
  %v1161 = vld [vmem:[%s4 + $0x40] sm:$0xff]
  %v1162 = vld [vmem:[%s4 + $0x48] sm:$0xff]
  %v1163 = vld [vmem:[%s4 + $0x50] sm:$0xff]
  %v1164 = vld [vmem:[%s4 + $0x58] sm:$0xff]
  %v1165 = vld [vmem:[%s4 + $0x60] sm:$0xff]
  %v1166 = vld [vmem:[%s4 + $0x68] sm:$0xff]
  %v1167 = vld [vmem:[%s4 + $0x70] sm:$0xff]
  %v1168 = vld [vmem:[%s4 + $0x78] sm:$0xff]
  %v1169 = vld [vmem:[%s4 + $0x80] sm:$0xff]
  %v1170 = vld [vmem:[%s4 + $0x88] sm:$0xff]
  %v1171 = vld [vmem:[%s4 + $0x90] sm:$0xff]
  %v1172 = vld [vmem:[%s4 + $0x98] sm:$0xff]
  %v1173 = vld [vmem:[%s4 + $0xa0] sm:$0xff]
  %v1174 = vld [vmem:[%s4 + $0xa8] sm:$0xff]
  %v1175 = vld [vmem:[%s4 + $0xb0] sm:$0xff]
  %v1176 = vld [vmem:[%s4 + $0xb8] sm:$0xff]
  %v1177 = vld [vmem:[%s4 + $0xc0] sm:$0xff]
  %v1178 = vld [vmem:[%s4 + $0xc8] sm:$0xff]
  %v1179 = vld [vmem:[%s4 + $0xd0] sm:$0xff]
  %v1180 = vld [vmem:[%s4 + $0xd8] sm:$0xff]
  %v1181 = vld [vmem:[%s4 + $0xe0] sm:$0xff]
  %v1182 = vld [vmem:[%s4 + $0xe8] sm:$0xff]
  %v1183 = vld [vmem:[%s4 + $0xf0] sm:$0xff]
  %v1184 = vld [vmem:[%s4 + $0xf8] sm:$0xff]
  %v1217 = vunpack.c.l.b16 %v1153
  %v1218 = vunpack.c.h.b16 %v1153
  %v1219 = vunpack.c.l.b16 %v1154
  %v1220 = vunpack.c.h.b16 %v1154
  %v1221 = vunpack.c.l.b16 %v1155
  %v1222 = vunpack.c.h.b16 %v1155
  %v1223 = vunpack.c.l.b16 %v1156
  %v1224 = vunpack.c.h.b16 %v1156
  %v1225 = vunpack.c.l.b16 %v1157
  %v1226 = vunpack.c.h.b16 %v1157
  %v1227 = vunpack.c.l.b16 %v1158
  %v1228 = vunpack.c.h.b16 %v1158
  %v1229 = vunpack.c.l.b16 %v1159
  %v1230 = vunpack.c.h.b16 %v1159
  %v1231 = vunpack.c.l.b16 %v1160
  %v1232 = vunpack.c.h.b16 %v1160
  %v1233 = vunpack.c.l.b16 %v1161
  %v1234 = vunpack.c.h.b16 %v1161
  %v1235 = vunpack.c.l.b16 %v1162
  %v1236 = vunpack.c.h.b16 %v1162
  %v1237 = vunpack.c.l.b16 %v1163
  %v1238 = vunpack.c.h.b16 %v1163
  %v1239 = vunpack.c.l.b16 %v1164
  %v1240 = vunpack.c.h.b16 %v1164
  %v1241 = vunpack.c.l.b16 %v1165
  %v1242 = vunpack.c.h.b16 %v1165
  %v1243 = vunpack.c.l.b16 %v1166
  %v1244 = vunpack.c.h.b16 %v1166
  %v1245 = vunpack.c.l.b16 %v1167
  %v1246 = vunpack.c.h.b16 %v1167
  %v1247 = vunpack.c.l.b16 %v1168
  %v1248 = vunpack.c.h.b16 %v1168
  %v1249 = vunpack.c.l.b16 %v1169
  %v1250 = vunpack.c.h.b16 %v1169
  %v1251 = vunpack.c.l.b16 %v1170
  %v1252 = vunpack.c.h.b16 %v1170
  %v1253 = vunpack.c.l.b16 %v1171
  %v1254 = vunpack.c.h.b16 %v1171
  %v1255 = vunpack.c.l.b16 %v1172
  %v1256 = vunpack.c.h.b16 %v1172
  %v1257 = vunpack.c.l.b16 %v1173
  %v1258 = vunpack.c.h.b16 %v1173
  %v1259 = vunpack.c.l.b16 %v1174
  %v1260 = vunpack.c.h.b16 %v1174
  %v1261 = vunpack.c.l.b16 %v1175
  %v1262 = vunpack.c.h.b16 %v1175
  %v1263 = vunpack.c.l.b16 %v1176
  %v1264 = vunpack.c.h.b16 %v1176
  %v1265 = vunpack.c.l.b16 %v1177
  %v1266 = vunpack.c.h.b16 %v1177
  %v1267 = vunpack.c.l.b16 %v1178
  %v1268 = vunpack.c.h.b16 %v1178
  %v1269 = vunpack.c.l.b16 %v1179
  %v1270 = vunpack.c.h.b16 %v1179
  %v1271 = vunpack.c.l.b16 %v1180
  %v1272 = vunpack.c.h.b16 %v1180
  %v1273 = vunpack.c.l.b16 %v1181
  %v1274 = vunpack.c.h.b16 %v1181
  %v1275 = vunpack.c.l.b16 %v1182
  %v1276 = vunpack.c.h.b16 %v1182
  %v1277 = vunpack.c.l.b16 %v1183
  %v1278 = vunpack.c.h.b16 %v1183
  %v1279 = vunpack.c.l.b16 %v1184
  %v1280 = vunpack.c.h.b16 %v1184
  %v1281 = vpack.c.b16 %v1221, %v1217
  %v1282 = vpack.c.b16 %v1222, %v1218
  %v1283 = vpack.c.b16 %v1223, %v1219
  %v1284 = vpack.c.b16 %v1224, %v1220
  %v1285 = vpack.c.b16 %v1229, %v1225
  %v1286 = vpack.c.b16 %v1230, %v1226
  %v1287 = vpack.c.b16 %v1231, %v1227
  %v1288 = vpack.c.b16 %v1232, %v1228
  %v1289 = vpack.c.b16 %v1237, %v1233
  %v1290 = vpack.c.b16 %v1238, %v1234
  %v1291 = vpack.c.b16 %v1239, %v1235
  %v1292 = vpack.c.b16 %v1240, %v1236
  %v1293 = vpack.c.b16 %v1245, %v1241
  %v1294 = vpack.c.b16 %v1246, %v1242
  %v1295 = vpack.c.b16 %v1247, %v1243
  %v1296 = vpack.c.b16 %v1248, %v1244
  %v1297 = vpack.c.b16 %v1253, %v1249
  %v1298 = vpack.c.b16 %v1254, %v1250
  %v1299 = vpack.c.b16 %v1255, %v1251
  %v1300 = vpack.c.b16 %v1256, %v1252
  %v1301 = vpack.c.b16 %v1261, %v1257
  %v1302 = vpack.c.b16 %v1262, %v1258
  %v1303 = vpack.c.b16 %v1263, %v1259
  %v1304 = vpack.c.b16 %v1264, %v1260
  %v1305 = vpack.c.b16 %v1269, %v1265
  %v1306 = vpack.c.b16 %v1270, %v1266
  %v1307 = vpack.c.b16 %v1271, %v1267
  %v1308 = vpack.c.b16 %v1272, %v1268
  %v1309 = vpack.c.b16 %v1277, %v1273
  %v1310 = vpack.c.b16 %v1278, %v1274
  %v1311 = vpack.c.b16 %v1279, %v1275
  %v1312 = vpack.c.b16 %v1280, %v1276
  %1345 = vmatprep.subr.bf16.mxu0 %v1310
  %1346 = vmatpush1.bf16.msra.mxu0 %v1309
  %1347 = vmatprep.subr.bf16.mxu0 %v1306
  %1348 = vmatpush1.bf16.msra.mxu0 %v1305
  %1349 = vmatprep.subr.bf16.mxu0 %v1302
  %1350 = vmatpush1.bf16.msra.mxu0 %v1301
  %1351 = vmatprep.subr.bf16.mxu0 %v1298
  %1352 = vmatpush1.bf16.msra.mxu0 %v1297
  %1353 = vmatprep.subr.bf16.mxu0 %v1294
  %1354 = vmatpush1.bf16.msra.mxu0 %v1293
  %1355 = vmatprep.subr.bf16.mxu0 %v1290
  %1356 = vmatpush1.bf16.msra.mxu0 %v1289
  %1357 = vmatprep.subr.bf16.mxu0 %v1286
  %1358 = vmatpush1.bf16.msra.mxu0 %v1285
  %1359 = vmatprep.subr.bf16.mxu0 %v1282
  %1360 = vmatpush1.bf16.msra.mxu0 %v1281
  %1361 = vmatprep.subr.bf16.mxu0 0
  %1362 = vmatpush2.bf16.msra.mxu0 0
  %1363 = vmatprep.subr.bf16.mxu0 0
  %1364 = vmatpush2.bf16.msra.mxu0 0
  %1365 = vmatprep.subr.bf16.mxu0 0
  %1366 = vmatpush2.bf16.msra.mxu0 0
  %1367 = vmatprep.subr.bf16.mxu0 0
  %1368 = vmatpush2.bf16.msra.mxu0 0
  %1369 = vmatprep.subr.bf16.mxu0 0
  %1370 = vmatpush2.bf16.msra.mxu0 0
  %1371 = vmatprep.subr.bf16.mxu0 0
  %1372 = vmatpush2.bf16.msra.mxu0 0
  %1373 = vmatprep.subr.bf16.mxu0 0
  %1374 = vmatpush2.bf16.msra.mxu0 0
  %1375 = vmatprep.subr.bf16.mxu0 0
  %1376 = vmatpush2.bf16.msra.mxu0 0
  %1377 = vmatprep.mubr.bf16.mxu0 0
  %1378 = vmatmul.mubr.bf16.gmra.mxu0 %v1152
  %v1379 = vpop.f32.mrf.mxu0
  %v1380 = vadd.f32 0.0, %v1379
  %v1381 = vpop.f32.mrf.mxu0
  %v1382 = vadd.f32 0.0, %v1381
  %v1383 = vpop.f32.mrf.mxu0
  %v1384 = vpop.f32.mrf.mxu0
  %1385 = vdwg.mxu0
  %1386 = vmatprep.subr.bf16.mxu0 %v1312
  %1387 = vmatpush1.bf16.msra.mxu0 %v1311
  %1388 = vmatprep.subr.bf16.mxu0 %v1308
  %1389 = vmatpush1.bf16.msra.mxu0 %v1307
  %1390 = vmatprep.subr.bf16.mxu0 %v1304
  %1391 = vmatpush1.bf16.msra.mxu0 %v1303
  %1392 = vmatprep.subr.bf16.mxu0 %v1300
  %1393 = vmatpush1.bf16.msra.mxu0 %v1299
  %1394 = vmatprep.subr.bf16.mxu0 %v1296
  %1395 = vmatpush1.bf16.msra.mxu0 %v1295
  %1396 = vmatprep.subr.bf16.mxu0 %v1292
  %1397 = vmatpush1.bf16.msra.mxu0 %v1291
  %1398 = vmatprep.subr.bf16.mxu0 %v1288
  %1399 = vmatpush1.bf16.msra.mxu0 %v1287
  %1400 = vmatprep.subr.bf16.mxu0 %v1284
  %1401 = vmatpush1.bf16.msra.mxu0 %v1283
  %1402 = vmatprep.subr.bf16.mxu0 0
  %1403 = vmatpush2.bf16.msra.mxu0 0
  %1404 = vmatprep.subr.bf16.mxu0 0
  %1405 = vmatpush2.bf16.msra.mxu0 0
  %1406 = vmatprep.subr.bf16.mxu0 0
  %1407 = vmatpush2.bf16.msra.mxu0 0
  %1408 = vmatprep.subr.bf16.mxu0 0
  %1409 = vmatpush2.bf16.msra.mxu0 0
  %1410 = vmatprep.subr.bf16.mxu0 0
  %1411 = vmatpush2.bf16.msra.mxu0 0
  %1412 = vmatprep.subr.bf16.mxu0 0
  %1413 = vmatpush2.bf16.msra.mxu0 0
  %1414 = vmatprep.subr.bf16.mxu0 0
  %1415 = vmatpush2.bf16.msra.mxu0 0
  %1416 = vmatprep.subr.bf16.mxu0 0
  %1417 = vmatpush2.bf16.msra.mxu0 0
  %1418 = vmatprep.mubr.bf16.mxu0 0
  %1419 = vmatmul.mubr.bf16.gmra.mxu0 %v1152
  %v1420 = vpop.f32.mrf.mxu0
  %v1421 = vadd.f32 0.0, %v1420
  %v1422 = vpop.f32.mrf.mxu0
  %v1423 = vadd.f32 0.0, %v1422
  %v1424 = vpop.f32.mrf.mxu0
  %v1425 = vpop.f32.mrf.mxu0
  %1426 = vdwg.mxu0
  %v1427 = vadd.f32 %v1148, %v1380
  %v1428 = vadd.f32 %v1149, %v1382
  %v1429 = vadd.f32 %v1150, %v1421
  %v1430 = vadd.f32 %v1151, %v1423
  %v1431 = vxor.u32 %v1427, 2147483648
  %v1432 = vmul.f32 %v1431, 1.442695
  %v1433 = vpow.pop %v1432
  %v1434 = vadd.f32 %v1433, 1.0
  %v1435 = vrcp.pop %v1434
  %v1436 = vmul.f32 1.0, %v1435
  %v1437 = vxor.u32 %v1428, 2147483648
  %v1438 = vmul.f32 %v1437, 1.442695
  %v1439 = vpow.pop %v1438
  %v1440 = vadd.f32 %v1439, 1.0
  %v1441 = vrcp.pop %v1440
  %v1442 = vmul.f32 1.0, %v1441
  %v1443 = vtanh.pop %v1429
  %v1444 = vxor.u32 %v1430, 2147483648
  %v1445 = vmul.f32 %v1444, 1.442695
  %v1446 = vpow.pop %v1445
  %v1447 = vadd.f32 %v1446, 1.0
  %v1448 = vrcp.pop %v1447
  %v1449 = vmul.f32 1.0, %v1448
  %v1450 = vmul.f32 %v1442, %v830
  %v1451 = vmul.f32 %v1436, %v1443
  %v1452 = vadd.f32 %v1450, %v1451
  %v1453 = vtanh.pop %v1452
  %v1454 = vmul.f32 %v1449, %v1453
  %vm1455 = vcmp.gt.s32.totalorder %v29, 1
  %v1456 = vsel %vm1455, 1, 0
  %1457 = vset.pattern.permute.xlu0 0
  %1458 = vperm.xlu0 %1457, %v1456
  %v1459 = vpop.permute.xlu0 %1458
  %vm1460 = vcmp.eq.s32.totalorder %v1459, 1
  %v1461 = vsel %vm1460, %v1454, %v829
  %v1462 = vsel %vm1460, %v1452, %v830
  %v1463 = vsel %vm1460, %v1454, 0.0
  %s1464 = scalar_lea.vmem %s7, 16
  %1465 = vst [vmem:[%s1464] sm:$0xff] %v1463
  %v1466 = vld [vmem:[#allocation2 + $0x1a0] sm:$0xff]
  %v1467 = vld [vmem:[#allocation2 + $0x1a8] sm:$0xff]
  %v1468 = vld [vmem:[#allocation2 + $0x1b0] sm:$0xff]
  %v1469 = vld [vmem:[#allocation2 + $0x1b8] sm:$0xff]
  %v1470 = vpack.c.bf16 %v1144, %v1144
  %v1471 = vld [vmem:[%s5] sm:$0xff]
  %v1472 = vld [vmem:[%s5 + $0x8] sm:$0xff]
  %v1473 = vld [vmem:[%s5 + $0x10] sm:$0xff]
  %v1474 = vld [vmem:[%s5 + $0x18] sm:$0xff]
  %v1475 = vld [vmem:[%s5 + $0x20] sm:$0xff]
  %v1476 = vld [vmem:[%s5 + $0x28] sm:$0xff]
  %v1477 = vld [vmem:[%s5 + $0x30] sm:$0xff]
  %v1478 = vld [vmem:[%s5 + $0x38] sm:$0xff]
  %v1479 = vld [vmem:[%s5 + $0x40] sm:$0xff]
  %v1480 = vld [vmem:[%s5 + $0x48] sm:$0xff]
  %v1481 = vld [vmem:[%s5 + $0x50] sm:$0xff]
  %v1482 = vld [vmem:[%s5 + $0x58] sm:$0xff]
  %v1483 = vld [vmem:[%s5 + $0x60] sm:$0xff]
  %v1484 = vld [vmem:[%s5 + $0x68] sm:$0xff]
  %v1485 = vld [vmem:[%s5 + $0x70] sm:$0xff]
  %v1486 = vld [vmem:[%s5 + $0x78] sm:$0xff]
  %v1487 = vld [vmem:[%s5 + $0x80] sm:$0xff]
  %v1488 = vld [vmem:[%s5 + $0x88] sm:$0xff]
  %v1489 = vld [vmem:[%s5 + $0x90] sm:$0xff]
  %v1490 = vld [vmem:[%s5 + $0x98] sm:$0xff]
  %v1491 = vld [vmem:[%s5 + $0xa0] sm:$0xff]
  %v1492 = vld [vmem:[%s5 + $0xa8] sm:$0xff]
  %v1493 = vld [vmem:[%s5 + $0xb0] sm:$0xff]
  %v1494 = vld [vmem:[%s5 + $0xb8] sm:$0xff]
  %v1495 = vld [vmem:[%s5 + $0xc0] sm:$0xff]
  %v1496 = vld [vmem:[%s5 + $0xc8] sm:$0xff]
  %v1497 = vld [vmem:[%s5 + $0xd0] sm:$0xff]
  %v1498 = vld [vmem:[%s5 + $0xd8] sm:$0xff]
  %v1499 = vld [vmem:[%s5 + $0xe0] sm:$0xff]
  %v1500 = vld [vmem:[%s5 + $0xe8] sm:$0xff]
  %v1501 = vld [vmem:[%s5 + $0xf0] sm:$0xff]
  %v1502 = vld [vmem:[%s5 + $0xf8] sm:$0xff]
  %v1535 = vunpack.c.l.b16 %v1471
  %v1536 = vunpack.c.h.b16 %v1471
  %v1537 = vunpack.c.l.b16 %v1472
  %v1538 = vunpack.c.h.b16 %v1472
  %v1539 = vunpack.c.l.b16 %v1473
  %v1540 = vunpack.c.h.b16 %v1473
  %v1541 = vunpack.c.l.b16 %v1474
  %v1542 = vunpack.c.h.b16 %v1474
  %v1543 = vunpack.c.l.b16 %v1475
  %v1544 = vunpack.c.h.b16 %v1475
  %v1545 = vunpack.c.l.b16 %v1476
  %v1546 = vunpack.c.h.b16 %v1476
  %v1547 = vunpack.c.l.b16 %v1477
  %v1548 = vunpack.c.h.b16 %v1477
  %v1549 = vunpack.c.l.b16 %v1478
  %v1550 = vunpack.c.h.b16 %v1478
  %v1551 = vunpack.c.l.b16 %v1479
  %v1552 = vunpack.c.h.b16 %v1479
  %v1553 = vunpack.c.l.b16 %v1480
  %v1554 = vunpack.c.h.b16 %v1480
  %v1555 = vunpack.c.l.b16 %v1481
  %v1556 = vunpack.c.h.b16 %v1481
  %v1557 = vunpack.c.l.b16 %v1482
  %v1558 = vunpack.c.h.b16 %v1482
  %v1559 = vunpack.c.l.b16 %v1483
  %v1560 = vunpack.c.h.b16 %v1483
  %v1561 = vunpack.c.l.b16 %v1484
  %v1562 = vunpack.c.h.b16 %v1484
  %v1563 = vunpack.c.l.b16 %v1485
  %v1564 = vunpack.c.h.b16 %v1485
  %v1565 = vunpack.c.l.b16 %v1486
  %v1566 = vunpack.c.h.b16 %v1486
  %v1567 = vunpack.c.l.b16 %v1487
  %v1568 = vunpack.c.h.b16 %v1487
  %v1569 = vunpack.c.l.b16 %v1488
  %v1570 = vunpack.c.h.b16 %v1488
  %v1571 = vunpack.c.l.b16 %v1489
  %v1572 = vunpack.c.h.b16 %v1489
  %v1573 = vunpack.c.l.b16 %v1490
  %v1574 = vunpack.c.h.b16 %v1490
  %v1575 = vunpack.c.l.b16 %v1491
  %v1576 = vunpack.c.h.b16 %v1491
  %v1577 = vunpack.c.l.b16 %v1492
  %v1578 = vunpack.c.h.b16 %v1492
  %v1579 = vunpack.c.l.b16 %v1493
  %v1580 = vunpack.c.h.b16 %v1493
  %v1581 = vunpack.c.l.b16 %v1494
  %v1582 = vunpack.c.h.b16 %v1494
  %v1583 = vunpack.c.l.b16 %v1495
  %v1584 = vunpack.c.h.b16 %v1495
  %v1585 = vunpack.c.l.b16 %v1496
  %v1586 = vunpack.c.h.b16 %v1496
  %v1587 = vunpack.c.l.b16 %v1497
  %v1588 = vunpack.c.h.b16 %v1497
  %v1589 = vunpack.c.l.b16 %v1498
  %v1590 = vunpack.c.h.b16 %v1498
  %v1591 = vunpack.c.l.b16 %v1499
  %v1592 = vunpack.c.h.b16 %v1499
  %v1593 = vunpack.c.l.b16 %v1500
  %v1594 = vunpack.c.h.b16 %v1500
  %v1595 = vunpack.c.l.b16 %v1501
  %v1596 = vunpack.c.h.b16 %v1501
  %v1597 = vunpack.c.l.b16 %v1502
  %v1598 = vunpack.c.h.b16 %v1502
  %v1599 = vpack.c.b16 %v1539, %v1535
  %v1600 = vpack.c.b16 %v1540, %v1536
  %v1601 = vpack.c.b16 %v1541, %v1537
  %v1602 = vpack.c.b16 %v1542, %v1538
  %v1603 = vpack.c.b16 %v1547, %v1543
  %v1604 = vpack.c.b16 %v1548, %v1544
  %v1605 = vpack.c.b16 %v1549, %v1545
  %v1606 = vpack.c.b16 %v1550, %v1546
  %v1607 = vpack.c.b16 %v1555, %v1551
  %v1608 = vpack.c.b16 %v1556, %v1552
  %v1609 = vpack.c.b16 %v1557, %v1553
  %v1610 = vpack.c.b16 %v1558, %v1554
  %v1611 = vpack.c.b16 %v1563, %v1559
  %v1612 = vpack.c.b16 %v1564, %v1560
  %v1613 = vpack.c.b16 %v1565, %v1561
  %v1614 = vpack.c.b16 %v1566, %v1562
  %v1615 = vpack.c.b16 %v1571, %v1567
  %v1616 = vpack.c.b16 %v1572, %v1568
  %v1617 = vpack.c.b16 %v1573, %v1569
  %v1618 = vpack.c.b16 %v1574, %v1570
  %v1619 = vpack.c.b16 %v1579, %v1575
  %v1620 = vpack.c.b16 %v1580, %v1576
  %v1621 = vpack.c.b16 %v1581, %v1577
  %v1622 = vpack.c.b16 %v1582, %v1578
  %v1623 = vpack.c.b16 %v1587, %v1583
  %v1624 = vpack.c.b16 %v1588, %v1584
  %v1625 = vpack.c.b16 %v1589, %v1585
  %v1626 = vpack.c.b16 %v1590, %v1586
  %v1627 = vpack.c.b16 %v1595, %v1591
  %v1628 = vpack.c.b16 %v1596, %v1592
  %v1629 = vpack.c.b16 %v1597, %v1593
  %v1630 = vpack.c.b16 %v1598, %v1594
  %1663 = vmatprep.subr.bf16.mxu0 %v1628
  %1664 = vmatpush1.bf16.msra.mxu0 %v1627
  %1665 = vmatprep.subr.bf16.mxu0 %v1624
  %1666 = vmatpush1.bf16.msra.mxu0 %v1623
  %1667 = vmatprep.subr.bf16.mxu0 %v1620
  %1668 = vmatpush1.bf16.msra.mxu0 %v1619
  %1669 = vmatprep.subr.bf16.mxu0 %v1616
  %1670 = vmatpush1.bf16.msra.mxu0 %v1615
  %1671 = vmatprep.subr.bf16.mxu0 %v1612
  %1672 = vmatpush1.bf16.msra.mxu0 %v1611
  %1673 = vmatprep.subr.bf16.mxu0 %v1608
  %1674 = vmatpush1.bf16.msra.mxu0 %v1607
  %1675 = vmatprep.subr.bf16.mxu0 %v1604
  %1676 = vmatpush1.bf16.msra.mxu0 %v1603
  %1677 = vmatprep.subr.bf16.mxu0 %v1600
  %1678 = vmatpush1.bf16.msra.mxu0 %v1599
  %1679 = vmatprep.subr.bf16.mxu0 0
  %1680 = vmatpush2.bf16.msra.mxu0 0
  %1681 = vmatprep.subr.bf16.mxu0 0
  %1682 = vmatpush2.bf16.msra.mxu0 0
  %1683 = vmatprep.subr.bf16.mxu0 0
  %1684 = vmatpush2.bf16.msra.mxu0 0
  %1685 = vmatprep.subr.bf16.mxu0 0
  %1686 = vmatpush2.bf16.msra.mxu0 0
  %1687 = vmatprep.subr.bf16.mxu0 0
  %1688 = vmatpush2.bf16.msra.mxu0 0
  %1689 = vmatprep.subr.bf16.mxu0 0
  %1690 = vmatpush2.bf16.msra.mxu0 0
  %1691 = vmatprep.subr.bf16.mxu0 0
  %1692 = vmatpush2.bf16.msra.mxu0 0
  %1693 = vmatprep.subr.bf16.mxu0 0
  %1694 = vmatpush2.bf16.msra.mxu0 0
  %1695 = vmatprep.mubr.bf16.mxu0 0
  %1696 = vmatmul.mubr.bf16.gmra.mxu0 %v1470
  %v1697 = vpop.f32.mrf.mxu0
  %v1698 = vadd.f32 0.0, %v1697
  %v1699 = vpop.f32.mrf.mxu0
  %v1700 = vadd.f32 0.0, %v1699
  %v1701 = vpop.f32.mrf.mxu0
  %v1702 = vpop.f32.mrf.mxu0
  %1703 = vdwg.mxu0
  %1704 = vmatprep.subr.bf16.mxu0 %v1630
  %1705 = vmatpush1.bf16.msra.mxu0 %v1629
  %1706 = vmatprep.subr.bf16.mxu0 %v1626
  %1707 = vmatpush1.bf16.msra.mxu0 %v1625
  %1708 = vmatprep.subr.bf16.mxu0 %v1622
  %1709 = vmatpush1.bf16.msra.mxu0 %v1621
  %1710 = vmatprep.subr.bf16.mxu0 %v1618
  %1711 = vmatpush1.bf16.msra.mxu0 %v1617
  %1712 = vmatprep.subr.bf16.mxu0 %v1614
  %1713 = vmatpush1.bf16.msra.mxu0 %v1613
  %1714 = vmatprep.subr.bf16.mxu0 %v1610
  %1715 = vmatpush1.bf16.msra.mxu0 %v1609
  %1716 = vmatprep.subr.bf16.mxu0 %v1606
  %1717 = vmatpush1.bf16.msra.mxu0 %v1605
  %1718 = vmatprep.subr.bf16.mxu0 %v1602
  %1719 = vmatpush1.bf16.msra.mxu0 %v1601
  %1720 = vmatprep.subr.bf16.mxu0 0
  %1721 = vmatpush2.bf16.msra.mxu0 0
  %1722 = vmatprep.subr.bf16.mxu0 0
  %1723 = vmatpush2.bf16.msra.mxu0 0
  %1724 = vmatprep.subr.bf16.mxu0 0
  %1725 = vmatpush2.bf16.msra.mxu0 0
  %1726 = vmatprep.subr.bf16.mxu0 0
  %1727 = vmatpush2.bf16.msra.mxu0 0
  %1728 = vmatprep.subr.bf16.mxu0 0
  %1729 = vmatpush2.bf16.msra.mxu0 0
  %1730 = vmatprep.subr.bf16.mxu0 0
  %1731 = vmatpush2.bf16.msra.mxu0 0
  %1732 = vmatprep.subr.bf16.mxu0 0
  %1733 = vmatpush2.bf16.msra.mxu0 0
  %1734 = vmatprep.subr.bf16.mxu0 0
  %1735 = vmatpush2.bf16.msra.mxu0 0
  %1736 = vmatprep.mubr.bf16.mxu0 0
  %1737 = vmatmul.mubr.bf16.gmra.mxu0 %v1470
  %v1738 = vpop.f32.mrf.mxu0
  %v1739 = vadd.f32 0.0, %v1738
  %v1740 = vpop.f32.mrf.mxu0
  %v1741 = vadd.f32 0.0, %v1740
  %v1742 = vpop.f32.mrf.mxu0
  %v1743 = vpop.f32.mrf.mxu0
  %1744 = vdwg.mxu0
  %v1745 = vadd.f32 %v1466, %v1698
  %v1746 = vadd.f32 %v1467, %v1700
  %v1747 = vadd.f32 %v1468, %v1739
  %v1748 = vadd.f32 %v1469, %v1741
  %v1749 = vxor.u32 %v1745, 2147483648
  %v1750 = vmul.f32 %v1749, 1.442695
  %v1751 = vpow.pop %v1750
  %v1752 = vadd.f32 %v1751, 1.0
  %v1753 = vrcp.pop %v1752
  %v1754 = vmul.f32 1.0, %v1753
  %v1755 = vxor.u32 %v1746, 2147483648
  %v1756 = vmul.f32 %v1755, 1.442695
  %v1757 = vpow.pop %v1756
  %v1758 = vadd.f32 %v1757, 1.0
  %v1759 = vrcp.pop %v1758
  %v1760 = vmul.f32 1.0, %v1759
  %v1761 = vtanh.pop %v1747
  %v1762 = vxor.u32 %v1748, 2147483648
  %v1763 = vmul.f32 %v1762, 1.442695
  %v1764 = vpow.pop %v1763
  %v1765 = vadd.f32 %v1764, 1.0
  %v1766 = vrcp.pop %v1765
  %v1767 = vmul.f32 1.0, %v1766
  %v1768 = vmul.f32 %v1760, %v1145
  %v1769 = vmul.f32 %v1754, %v1761
  %v1770 = vadd.f32 %v1768, %v1769
  %v1771 = vtanh.pop %v1770
  %v1772 = vmul.f32 %v1767, %v1771
  %vm1773 = vcmp.gt.s32.totalorder %v29, 6
  %v1774 = vsel %vm1773, 1, 0
  %1775 = vset.pattern.permute.xlu0 0
  %1776 = vperm.xlu0 %1775, %v1774
  %v1777 = vpop.permute.xlu0 %1776
  %vm1778 = vcmp.eq.s32.totalorder %v1777, 1
  %v1779 = vsel %vm1778, %v1772, %v1144
  %v1780 = vsel %vm1778, %v1770, %v1145
  %v1781 = vsel %vm1778, %v1772, 0.0
  %s1782 = scalar_lea.vmem %s7, 96
  %1783 = vst [vmem:[%s1782 + $0x8] sm:$0xff] %v1781
  %v1784 = vld [vmem:[#allocation2 + $0x80] sm:$0xff]
  %v1785 = vld [vmem:[#allocation2 + $0x88] sm:$0xff]
  %v1786 = vld [vmem:[#allocation2 + $0x90] sm:$0xff]
  %v1787 = vld [vmem:[#allocation2 + $0x98] sm:$0xff]
  %v1788 = vpack.c.bf16 %v1461, %v1461
  %v1789 = vld [vmem:[%s4] sm:$0xff]
  %v1790 = vld [vmem:[%s4 + $0x8] sm:$0xff]
  %v1791 = vld [vmem:[%s4 + $0x10] sm:$0xff]
  %v1792 = vld [vmem:[%s4 + $0x18] sm:$0xff]
  %v1793 = vld [vmem:[%s4 + $0x20] sm:$0xff]
  %v1794 = vld [vmem:[%s4 + $0x28] sm:$0xff]
  %v1795 = vld [vmem:[%s4 + $0x30] sm:$0xff]
  %v1796 = vld [vmem:[%s4 + $0x38] sm:$0xff]
  %v1797 = vld [vmem:[%s4 + $0x40] sm:$0xff]
  %v1798 = vld [vmem:[%s4 + $0x48] sm:$0xff]
  %v1799 = vld [vmem:[%s4 + $0x50] sm:$0xff]
  %v1800 = vld [vmem:[%s4 + $0x58] sm:$0xff]
  %v1801 = vld [vmem:[%s4 + $0x60] sm:$0xff]
  %v1802 = vld [vmem:[%s4 + $0x68] sm:$0xff]
  %v1803 = vld [vmem:[%s4 + $0x70] sm:$0xff]
  %v1804 = vld [vmem:[%s4 + $0x78] sm:$0xff]
  %v1805 = vld [vmem:[%s4 + $0x80] sm:$0xff]
  %v1806 = vld [vmem:[%s4 + $0x88] sm:$0xff]
  %v1807 = vld [vmem:[%s4 + $0x90] sm:$0xff]
  %v1808 = vld [vmem:[%s4 + $0x98] sm:$0xff]
  %v1809 = vld [vmem:[%s4 + $0xa0] sm:$0xff]
  %v1810 = vld [vmem:[%s4 + $0xa8] sm:$0xff]
  %v1811 = vld [vmem:[%s4 + $0xb0] sm:$0xff]
  %v1812 = vld [vmem:[%s4 + $0xb8] sm:$0xff]
  %v1813 = vld [vmem:[%s4 + $0xc0] sm:$0xff]
  %v1814 = vld [vmem:[%s4 + $0xc8] sm:$0xff]
  %v1815 = vld [vmem:[%s4 + $0xd0] sm:$0xff]
  %v1816 = vld [vmem:[%s4 + $0xd8] sm:$0xff]
  %v1817 = vld [vmem:[%s4 + $0xe0] sm:$0xff]
  %v1818 = vld [vmem:[%s4 + $0xe8] sm:$0xff]
  %v1819 = vld [vmem:[%s4 + $0xf0] sm:$0xff]
  %v1820 = vld [vmem:[%s4 + $0xf8] sm:$0xff]
  %v1853 = vunpack.c.l.b16 %v1789
  %v1854 = vunpack.c.h.b16 %v1789
  %v1855 = vunpack.c.l.b16 %v1790
  %v1856 = vunpack.c.h.b16 %v1790
  %v1857 = vunpack.c.l.b16 %v1791
  %v1858 = vunpack.c.h.b16 %v1791
  %v1859 = vunpack.c.l.b16 %v1792
  %v1860 = vunpack.c.h.b16 %v1792
  %v1861 = vunpack.c.l.b16 %v1793
  %v1862 = vunpack.c.h.b16 %v1793
  %v1863 = vunpack.c.l.b16 %v1794
  %v1864 = vunpack.c.h.b16 %v1794
  %v1865 = vunpack.c.l.b16 %v1795
  %v1866 = vunpack.c.h.b16 %v1795
  %v1867 = vunpack.c.l.b16 %v1796
  %v1868 = vunpack.c.h.b16 %v1796
  %v1869 = vunpack.c.l.b16 %v1797
  %v1870 = vunpack.c.h.b16 %v1797
  %v1871 = vunpack.c.l.b16 %v1798
  %v1872 = vunpack.c.h.b16 %v1798
  %v1873 = vunpack.c.l.b16 %v1799
  %v1874 = vunpack.c.h.b16 %v1799
  %v1875 = vunpack.c.l.b16 %v1800
  %v1876 = vunpack.c.h.b16 %v1800
  %v1877 = vunpack.c.l.b16 %v1801
  %v1878 = vunpack.c.h.b16 %v1801
  %v1879 = vunpack.c.l.b16 %v1802
  %v1880 = vunpack.c.h.b16 %v1802
  %v1881 = vunpack.c.l.b16 %v1803
  %v1882 = vunpack.c.h.b16 %v1803
  %v1883 = vunpack.c.l.b16 %v1804
  %v1884 = vunpack.c.h.b16 %v1804
  %v1885 = vunpack.c.l.b16 %v1805
  %v1886 = vunpack.c.h.b16 %v1805
  %v1887 = vunpack.c.l.b16 %v1806
  %v1888 = vunpack.c.h.b16 %v1806
  %v1889 = vunpack.c.l.b16 %v1807
  %v1890 = vunpack.c.h.b16 %v1807
  %v1891 = vunpack.c.l.b16 %v1808
  %v1892 = vunpack.c.h.b16 %v1808
  %v1893 = vunpack.c.l.b16 %v1809
  %v1894 = vunpack.c.h.b16 %v1809
  %v1895 = vunpack.c.l.b16 %v1810
  %v1896 = vunpack.c.h.b16 %v1810
  %v1897 = vunpack.c.l.b16 %v1811
  %v1898 = vunpack.c.h.b16 %v1811
  %v1899 = vunpack.c.l.b16 %v1812
  %v1900 = vunpack.c.h.b16 %v1812
  %v1901 = vunpack.c.l.b16 %v1813
  %v1902 = vunpack.c.h.b16 %v1813
  %v1903 = vunpack.c.l.b16 %v1814
  %v1904 = vunpack.c.h.b16 %v1814
  %v1905 = vunpack.c.l.b16 %v1815
  %v1906 = vunpack.c.h.b16 %v1815
  %v1907 = vunpack.c.l.b16 %v1816
  %v1908 = vunpack.c.h.b16 %v1816
  %v1909 = vunpack.c.l.b16 %v1817
  %v1910 = vunpack.c.h.b16 %v1817
  %v1911 = vunpack.c.l.b16 %v1818
  %v1912 = vunpack.c.h.b16 %v1818
  %v1913 = vunpack.c.l.b16 %v1819
  %v1914 = vunpack.c.h.b16 %v1819
  %v1915 = vunpack.c.l.b16 %v1820
  %v1916 = vunpack.c.h.b16 %v1820
  %v1917 = vpack.c.b16 %v1857, %v1853
  %v1918 = vpack.c.b16 %v1858, %v1854
  %v1919 = vpack.c.b16 %v1859, %v1855
  %v1920 = vpack.c.b16 %v1860, %v1856
  %v1921 = vpack.c.b16 %v1865, %v1861
  %v1922 = vpack.c.b16 %v1866, %v1862
  %v1923 = vpack.c.b16 %v1867, %v1863
  %v1924 = vpack.c.b16 %v1868, %v1864
  %v1925 = vpack.c.b16 %v1873, %v1869
  %v1926 = vpack.c.b16 %v1874, %v1870
  %v1927 = vpack.c.b16 %v1875, %v1871
  %v1928 = vpack.c.b16 %v1876, %v1872
  %v1929 = vpack.c.b16 %v1881, %v1877
  %v1930 = vpack.c.b16 %v1882, %v1878
  %v1931 = vpack.c.b16 %v1883, %v1879
  %v1932 = vpack.c.b16 %v1884, %v1880
  %v1933 = vpack.c.b16 %v1889, %v1885
  %v1934 = vpack.c.b16 %v1890, %v1886
  %v1935 = vpack.c.b16 %v1891, %v1887
  %v1936 = vpack.c.b16 %v1892, %v1888
  %v1937 = vpack.c.b16 %v1897, %v1893
  %v1938 = vpack.c.b16 %v1898, %v1894
  %v1939 = vpack.c.b16 %v1899, %v1895
  %v1940 = vpack.c.b16 %v1900, %v1896
  %v1941 = vpack.c.b16 %v1905, %v1901
  %v1942 = vpack.c.b16 %v1906, %v1902
  %v1943 = vpack.c.b16 %v1907, %v1903
  %v1944 = vpack.c.b16 %v1908, %v1904
  %v1945 = vpack.c.b16 %v1913, %v1909
  %v1946 = vpack.c.b16 %v1914, %v1910
  %v1947 = vpack.c.b16 %v1915, %v1911
  %v1948 = vpack.c.b16 %v1916, %v1912
  %1981 = vmatprep.subr.bf16.mxu0 %v1946
  %1982 = vmatpush1.bf16.msra.mxu0 %v1945
  %1983 = vmatprep.subr.bf16.mxu0 %v1942
  %1984 = vmatpush1.bf16.msra.mxu0 %v1941
  %1985 = vmatprep.subr.bf16.mxu0 %v1938
  %1986 = vmatpush1.bf16.msra.mxu0 %v1937
  %1987 = vmatprep.subr.bf16.mxu0 %v1934
  %1988 = vmatpush1.bf16.msra.mxu0 %v1933
  %1989 = vmatprep.subr.bf16.mxu0 %v1930
  %1990 = vmatpush1.bf16.msra.mxu0 %v1929
  %1991 = vmatprep.subr.bf16.mxu0 %v1926
  %1992 = vmatpush1.bf16.msra.mxu0 %v1925
  %1993 = vmatprep.subr.bf16.mxu0 %v1922
  %1994 = vmatpush1.bf16.msra.mxu0 %v1921
  %1995 = vmatprep.subr.bf16.mxu0 %v1918
  %1996 = vmatpush1.bf16.msra.mxu0 %v1917
  %1997 = vmatprep.subr.bf16.mxu0 0
  %1998 = vmatpush2.bf16.msra.mxu0 0
  %1999 = vmatprep.subr.bf16.mxu0 0
  %2000 = vmatpush2.bf16.msra.mxu0 0
  %2001 = vmatprep.subr.bf16.mxu0 0
  %2002 = vmatpush2.bf16.msra.mxu0 0
  %2003 = vmatprep.subr.bf16.mxu0 0
  %2004 = vmatpush2.bf16.msra.mxu0 0
  %2005 = vmatprep.subr.bf16.mxu0 0
  %2006 = vmatpush2.bf16.msra.mxu0 0
  %2007 = vmatprep.subr.bf16.mxu0 0
  %2008 = vmatpush2.bf16.msra.mxu0 0
  %2009 = vmatprep.subr.bf16.mxu0 0
  %2010 = vmatpush2.bf16.msra.mxu0 0
  %2011 = vmatprep.subr.bf16.mxu0 0
  %2012 = vmatpush2.bf16.msra.mxu0 0
  %2013 = vmatprep.mubr.bf16.mxu0 0
  %2014 = vmatmul.mubr.bf16.gmra.mxu0 %v1788
  %v2015 = vpop.f32.mrf.mxu0
  %v2016 = vadd.f32 0.0, %v2015
  %v2017 = vpop.f32.mrf.mxu0
  %v2018 = vadd.f32 0.0, %v2017
  %v2019 = vpop.f32.mrf.mxu0
  %v2020 = vpop.f32.mrf.mxu0
  %2021 = vdwg.mxu0
  %2022 = vmatprep.subr.bf16.mxu0 %v1948
  %2023 = vmatpush1.bf16.msra.mxu0 %v1947
  %2024 = vmatprep.subr.bf16.mxu0 %v1944
  %2025 = vmatpush1.bf16.msra.mxu0 %v1943
  %2026 = vmatprep.subr.bf16.mxu0 %v1940
  %2027 = vmatpush1.bf16.msra.mxu0 %v1939
  %2028 = vmatprep.subr.bf16.mxu0 %v1936
  %2029 = vmatpush1.bf16.msra.mxu0 %v1935
  %2030 = vmatprep.subr.bf16.mxu0 %v1932
  %2031 = vmatpush1.bf16.msra.mxu0 %v1931
  %2032 = vmatprep.subr.bf16.mxu0 %v1928
  %2033 = vmatpush1.bf16.msra.mxu0 %v1927
  %2034 = vmatprep.subr.bf16.mxu0 %v1924
  %2035 = vmatpush1.bf16.msra.mxu0 %v1923
  %2036 = vmatprep.subr.bf16.mxu0 %v1920
  %2037 = vmatpush1.bf16.msra.mxu0 %v1919
  %2038 = vmatprep.subr.bf16.mxu0 0
  %2039 = vmatpush2.bf16.msra.mxu0 0
  %2040 = vmatprep.subr.bf16.mxu0 0
  %2041 = vmatpush2.bf16.msra.mxu0 0
  %2042 = vmatprep.subr.bf16.mxu0 0
  %2043 = vmatpush2.bf16.msra.mxu0 0
  %2044 = vmatprep.subr.bf16.mxu0 0
  %2045 = vmatpush2.bf16.msra.mxu0 0
  %2046 = vmatprep.subr.bf16.mxu0 0
  %2047 = vmatpush2.bf16.msra.mxu0 0
  %2048 = vmatprep.subr.bf16.mxu0 0
  %2049 = vmatpush2.bf16.msra.mxu0 0
  %2050 = vmatprep.subr.bf16.mxu0 0
  %2051 = vmatpush2.bf16.msra.mxu0 0
  %2052 = vmatprep.subr.bf16.mxu0 0
  %2053 = vmatpush2.bf16.msra.mxu0 0
  %2054 = vmatprep.mubr.bf16.mxu0 0
  %2055 = vmatmul.mubr.bf16.gmra.mxu0 %v1788
  %v2056 = vpop.f32.mrf.mxu0
  %v2057 = vadd.f32 0.0, %v2056
  %v2058 = vpop.f32.mrf.mxu0
  %v2059 = vadd.f32 0.0, %v2058
  %v2060 = vpop.f32.mrf.mxu0
  %v2061 = vpop.f32.mrf.mxu0
  %2062 = vdwg.mxu0
  %v2063 = vadd.f32 %v1784, %v2016
  %v2064 = vadd.f32 %v1785, %v2018
  %v2065 = vadd.f32 %v1786, %v2057
  %v2066 = vadd.f32 %v1787, %v2059
  %v2067 = vxor.u32 %v2063, 2147483648
  %v2068 = vmul.f32 %v2067, 1.442695
  %v2069 = vpow.pop %v2068
  %v2070 = vadd.f32 %v2069, 1.0
  %v2071 = vrcp.pop %v2070
  %v2072 = vmul.f32 1.0, %v2071
  %v2073 = vxor.u32 %v2064, 2147483648
  %v2074 = vmul.f32 %v2073, 1.442695
  %v2075 = vpow.pop %v2074
  %v2076 = vadd.f32 %v2075, 1.0
  %v2077 = vrcp.pop %v2076
  %v2078 = vmul.f32 1.0, %v2077
  %v2079 = vtanh.pop %v2065
  %v2080 = vxor.u32 %v2066, 2147483648
  %v2081 = vmul.f32 %v2080, 1.442695
  %v2082 = vpow.pop %v2081
  %v2083 = vadd.f32 %v2082, 1.0
  %v2084 = vrcp.pop %v2083
  %v2085 = vmul.f32 1.0, %v2084
  %v2086 = vmul.f32 %v2078, %v1462
  %v2087 = vmul.f32 %v2072, %v2079
  %v2088 = vadd.f32 %v2086, %v2087
  %v2089 = vtanh.pop %v2088
  %v2090 = vmul.f32 %v2085, %v2089
  %vm2091 = vcmp.gt.s32.totalorder %v29, 2
  %v2092 = vsel %vm2091, 1, 0
  %2093 = vset.pattern.permute.xlu0 0
  %2094 = vperm.xlu0 %2093, %v2092
  %v2095 = vpop.permute.xlu0 %2094
  %vm2096 = vcmp.eq.s32.totalorder %v2095, 1
  %v2097 = vsel %vm2096, %v2090, %v1461
  %v2098 = vsel %vm2096, %v2088, %v1462
  %v2099 = vsel %vm2096, %v2090, 0.0
  %s2100 = scalar_lea.vmem %s7, 32
  %2101 = vst [vmem:[%s2100] sm:$0xff] %v2099
  %v2102 = vld [vmem:[#allocation2 + $0x160] sm:$0xff]
  %v2103 = vld [vmem:[#allocation2 + $0x168] sm:$0xff]
  %v2104 = vld [vmem:[#allocation2 + $0x170] sm:$0xff]
  %v2105 = vld [vmem:[#allocation2 + $0x178] sm:$0xff]
  %v2106 = vpack.c.bf16 %v1779, %v1779
  %v2107 = vld [vmem:[%s5] sm:$0xff]
  %v2108 = vld [vmem:[%s5 + $0x8] sm:$0xff]
  %v2109 = vld [vmem:[%s5 + $0x10] sm:$0xff]
  %v2110 = vld [vmem:[%s5 + $0x18] sm:$0xff]
  %v2111 = vld [vmem:[%s5 + $0x20] sm:$0xff]
  %v2112 = vld [vmem:[%s5 + $0x28] sm:$0xff]
  %v2113 = vld [vmem:[%s5 + $0x30] sm:$0xff]
  %v2114 = vld [vmem:[%s5 + $0x38] sm:$0xff]
  %v2115 = vld [vmem:[%s5 + $0x40] sm:$0xff]
  %v2116 = vld [vmem:[%s5 + $0x48] sm:$0xff]
  %v2117 = vld [vmem:[%s5 + $0x50] sm:$0xff]
  %v2118 = vld [vmem:[%s5 + $0x58] sm:$0xff]
  %v2119 = vld [vmem:[%s5 + $0x60] sm:$0xff]
  %v2120 = vld [vmem:[%s5 + $0x68] sm:$0xff]
  %v2121 = vld [vmem:[%s5 + $0x70] sm:$0xff]
  %v2122 = vld [vmem:[%s5 + $0x78] sm:$0xff]
  %v2123 = vld [vmem:[%s5 + $0x80] sm:$0xff]
  %v2124 = vld [vmem:[%s5 + $0x88] sm:$0xff]
  %v2125 = vld [vmem:[%s5 + $0x90] sm:$0xff]
  %v2126 = vld [vmem:[%s5 + $0x98] sm:$0xff]
  %v2127 = vld [vmem:[%s5 + $0xa0] sm:$0xff]
  %v2128 = vld [vmem:[%s5 + $0xa8] sm:$0xff]
  %v2129 = vld [vmem:[%s5 + $0xb0] sm:$0xff]
  %v2130 = vld [vmem:[%s5 + $0xb8] sm:$0xff]
  %v2131 = vld [vmem:[%s5 + $0xc0] sm:$0xff]
  %v2132 = vld [vmem:[%s5 + $0xc8] sm:$0xff]
  %v2133 = vld [vmem:[%s5 + $0xd0] sm:$0xff]
  %v2134 = vld [vmem:[%s5 + $0xd8] sm:$0xff]
  %v2135 = vld [vmem:[%s5 + $0xe0] sm:$0xff]
  %v2136 = vld [vmem:[%s5 + $0xe8] sm:$0xff]
  %v2137 = vld [vmem:[%s5 + $0xf0] sm:$0xff]
  %v2138 = vld [vmem:[%s5 + $0xf8] sm:$0xff]
  %v2171 = vunpack.c.l.b16 %v2107
  %v2172 = vunpack.c.h.b16 %v2107
  %v2173 = vunpack.c.l.b16 %v2108
  %v2174 = vunpack.c.h.b16 %v2108
  %v2175 = vunpack.c.l.b16 %v2109
  %v2176 = vunpack.c.h.b16 %v2109
  %v2177 = vunpack.c.l.b16 %v2110
  %v2178 = vunpack.c.h.b16 %v2110
  %v2179 = vunpack.c.l.b16 %v2111
  %v2180 = vunpack.c.h.b16 %v2111
  %v2181 = vunpack.c.l.b16 %v2112
  %v2182 = vunpack.c.h.b16 %v2112
  %v2183 = vunpack.c.l.b16 %v2113
  %v2184 = vunpack.c.h.b16 %v2113
  %v2185 = vunpack.c.l.b16 %v2114
  %v2186 = vunpack.c.h.b16 %v2114
  %v2187 = vunpack.c.l.b16 %v2115
  %v2188 = vunpack.c.h.b16 %v2115
  %v2189 = vunpack.c.l.b16 %v2116
  %v2190 = vunpack.c.h.b16 %v2116
  %v2191 = vunpack.c.l.b16 %v2117
  %v2192 = vunpack.c.h.b16 %v2117
  %v2193 = vunpack.c.l.b16 %v2118
  %v2194 = vunpack.c.h.b16 %v2118
  %v2195 = vunpack.c.l.b16 %v2119
  %v2196 = vunpack.c.h.b16 %v2119
  %v2197 = vunpack.c.l.b16 %v2120
  %v2198 = vunpack.c.h.b16 %v2120
  %v2199 = vunpack.c.l.b16 %v2121
  %v2200 = vunpack.c.h.b16 %v2121
  %v2201 = vunpack.c.l.b16 %v2122
  %v2202 = vunpack.c.h.b16 %v2122
  %v2203 = vunpack.c.l.b16 %v2123
  %v2204 = vunpack.c.h.b16 %v2123
  %v2205 = vunpack.c.l.b16 %v2124
  %v2206 = vunpack.c.h.b16 %v2124
  %v2207 = vunpack.c.l.b16 %v2125
  %v2208 = vunpack.c.h.b16 %v2125
  %v2209 = vunpack.c.l.b16 %v2126
  %v2210 = vunpack.c.h.b16 %v2126
  %v2211 = vunpack.c.l.b16 %v2127
  %v2212 = vunpack.c.h.b16 %v2127
  %v2213 = vunpack.c.l.b16 %v2128
  %v2214 = vunpack.c.h.b16 %v2128
  %v2215 = vunpack.c.l.b16 %v2129
  %v2216 = vunpack.c.h.b16 %v2129
  %v2217 = vunpack.c.l.b16 %v2130
  %v2218 = vunpack.c.h.b16 %v2130
  %v2219 = vunpack.c.l.b16 %v2131
  %v2220 = vunpack.c.h.b16 %v2131
  %v2221 = vunpack.c.l.b16 %v2132
  %v2222 = vunpack.c.h.b16 %v2132
  %v2223 = vunpack.c.l.b16 %v2133
  %v2224 = vunpack.c.h.b16 %v2133
  %v2225 = vunpack.c.l.b16 %v2134
  %v2226 = vunpack.c.h.b16 %v2134
  %v2227 = vunpack.c.l.b16 %v2135
  %v2228 = vunpack.c.h.b16 %v2135
  %v2229 = vunpack.c.l.b16 %v2136
  %v2230 = vunpack.c.h.b16 %v2136
  %v2231 = vunpack.c.l.b16 %v2137
  %v2232 = vunpack.c.h.b16 %v2137
  %v2233 = vunpack.c.l.b16 %v2138
  %v2234 = vunpack.c.h.b16 %v2138
  %v2235 = vpack.c.b16 %v2175, %v2171
  %v2236 = vpack.c.b16 %v2176, %v2172
  %v2237 = vpack.c.b16 %v2177, %v2173
  %v2238 = vpack.c.b16 %v2178, %v2174
  %v2239 = vpack.c.b16 %v2183, %v2179
  %v2240 = vpack.c.b16 %v2184, %v2180
  %v2241 = vpack.c.b16 %v2185, %v2181
  %v2242 = vpack.c.b16 %v2186, %v2182
  %v2243 = vpack.c.b16 %v2191, %v2187
  %v2244 = vpack.c.b16 %v2192, %v2188
  %v2245 = vpack.c.b16 %v2193, %v2189
  %v2246 = vpack.c.b16 %v2194, %v2190
  %v2247 = vpack.c.b16 %v2199, %v2195
  %v2248 = vpack.c.b16 %v2200, %v2196
  %v2249 = vpack.c.b16 %v2201, %v2197
  %v2250 = vpack.c.b16 %v2202, %v2198
  %v2251 = vpack.c.b16 %v2207, %v2203
  %v2252 = vpack.c.b16 %v2208, %v2204
  %v2253 = vpack.c.b16 %v2209, %v2205
  %v2254 = vpack.c.b16 %v2210, %v2206
  %v2255 = vpack.c.b16 %v2215, %v2211
  %v2256 = vpack.c.b16 %v2216, %v2212
  %v2257 = vpack.c.b16 %v2217, %v2213
  %v2258 = vpack.c.b16 %v2218, %v2214
  %v2259 = vpack.c.b16 %v2223, %v2219
  %v2260 = vpack.c.b16 %v2224, %v2220
  %v2261 = vpack.c.b16 %v2225, %v2221
  %v2262 = vpack.c.b16 %v2226, %v2222
  %v2263 = vpack.c.b16 %v2231, %v2227
  %v2264 = vpack.c.b16 %v2232, %v2228
  %v2265 = vpack.c.b16 %v2233, %v2229
  %v2266 = vpack.c.b16 %v2234, %v2230
  %2299 = vmatprep.subr.bf16.mxu0 %v2264
  %2300 = vmatpush1.bf16.msra.mxu0 %v2263
  %2301 = vmatprep.subr.bf16.mxu0 %v2260
  %2302 = vmatpush1.bf16.msra.mxu0 %v2259
  %2303 = vmatprep.subr.bf16.mxu0 %v2256
  %2304 = vmatpush1.bf16.msra.mxu0 %v2255
  %2305 = vmatprep.subr.bf16.mxu0 %v2252
  %2306 = vmatpush1.bf16.msra.mxu0 %v2251
  %2307 = vmatprep.subr.bf16.mxu0 %v2248
  %2308 = vmatpush1.bf16.msra.mxu0 %v2247
  %2309 = vmatprep.subr.bf16.mxu0 %v2244
  %2310 = vmatpush1.bf16.msra.mxu0 %v2243
  %2311 = vmatprep.subr.bf16.mxu0 %v2240
  %2312 = vmatpush1.bf16.msra.mxu0 %v2239
  %2313 = vmatprep.subr.bf16.mxu0 %v2236
  %2314 = vmatpush1.bf16.msra.mxu0 %v2235
  %2315 = vmatprep.subr.bf16.mxu0 0
  %2316 = vmatpush2.bf16.msra.mxu0 0
  %2317 = vmatprep.subr.bf16.mxu0 0
  %2318 = vmatpush2.bf16.msra.mxu0 0
  %2319 = vmatprep.subr.bf16.mxu0 0
  %2320 = vmatpush2.bf16.msra.mxu0 0
  %2321 = vmatprep.subr.bf16.mxu0 0
  %2322 = vmatpush2.bf16.msra.mxu0 0
  %2323 = vmatprep.subr.bf16.mxu0 0
  %2324 = vmatpush2.bf16.msra.mxu0 0
  %2325 = vmatprep.subr.bf16.mxu0 0
  %2326 = vmatpush2.bf16.msra.mxu0 0
  %2327 = vmatprep.subr.bf16.mxu0 0
  %2328 = vmatpush2.bf16.msra.mxu0 0
  %2329 = vmatprep.subr.bf16.mxu0 0
  %2330 = vmatpush2.bf16.msra.mxu0 0
  %2331 = vmatprep.mubr.bf16.mxu0 0
  %2332 = vmatmul.mubr.bf16.gmra.mxu0 %v2106
  %v2333 = vpop.f32.mrf.mxu0
  %v2334 = vadd.f32 0.0, %v2333
  %v2335 = vpop.f32.mrf.mxu0
  %v2336 = vadd.f32 0.0, %v2335
  %v2337 = vpop.f32.mrf.mxu0
  %v2338 = vpop.f32.mrf.mxu0
  %2339 = vdwg.mxu0
  %2340 = vmatprep.subr.bf16.mxu0 %v2266
  %2341 = vmatpush1.bf16.msra.mxu0 %v2265
  %2342 = vmatprep.subr.bf16.mxu0 %v2262
  %2343 = vmatpush1.bf16.msra.mxu0 %v2261
  %2344 = vmatprep.subr.bf16.mxu0 %v2258
  %2345 = vmatpush1.bf16.msra.mxu0 %v2257
  %2346 = vmatprep.subr.bf16.mxu0 %v2254
  %2347 = vmatpush1.bf16.msra.mxu0 %v2253
  %2348 = vmatprep.subr.bf16.mxu0 %v2250
  %2349 = vmatpush1.bf16.msra.mxu0 %v2249
  %2350 = vmatprep.subr.bf16.mxu0 %v2246
  %2351 = vmatpush1.bf16.msra.mxu0 %v2245
  %2352 = vmatprep.subr.bf16.mxu0 %v2242
  %2353 = vmatpush1.bf16.msra.mxu0 %v2241
  %2354 = vmatprep.subr.bf16.mxu0 %v2238
  %2355 = vmatpush1.bf16.msra.mxu0 %v2237
  %2356 = vmatprep.subr.bf16.mxu0 0
  %2357 = vmatpush2.bf16.msra.mxu0 0
  %2358 = vmatprep.subr.bf16.mxu0 0
  %2359 = vmatpush2.bf16.msra.mxu0 0
  %2360 = vmatprep.subr.bf16.mxu0 0
  %2361 = vmatpush2.bf16.msra.mxu0 0
  %2362 = vmatprep.subr.bf16.mxu0 0
  %2363 = vmatpush2.bf16.msra.mxu0 0
  %2364 = vmatprep.subr.bf16.mxu0 0
  %2365 = vmatpush2.bf16.msra.mxu0 0
  %2366 = vmatprep.subr.bf16.mxu0 0
  %2367 = vmatpush2.bf16.msra.mxu0 0
  %2368 = vmatprep.subr.bf16.mxu0 0
  %2369 = vmatpush2.bf16.msra.mxu0 0
  %2370 = vmatprep.subr.bf16.mxu0 0
  %2371 = vmatpush2.bf16.msra.mxu0 0
  %2372 = vmatprep.mubr.bf16.mxu0 0
  %2373 = vmatmul.mubr.bf16.gmra.mxu0 %v2106
  %v2374 = vpop.f32.mrf.mxu0
  %v2375 = vadd.f32 0.0, %v2374
  %v2376 = vpop.f32.mrf.mxu0
  %v2377 = vadd.f32 0.0, %v2376
  %v2378 = vpop.f32.mrf.mxu0
  %v2379 = vpop.f32.mrf.mxu0
  %2380 = vdwg.mxu0
  %v2381 = vadd.f32 %v2102, %v2334
  %v2382 = vadd.f32 %v2103, %v2336
  %v2383 = vadd.f32 %v2104, %v2375
  %v2384 = vadd.f32 %v2105, %v2377
  %v2385 = vxor.u32 %v2381, 2147483648
  %v2386 = vmul.f32 %v2385, 1.442695
  %v2387 = vpow.pop %v2386
  %v2388 = vadd.f32 %v2387, 1.0
  %v2389 = vrcp.pop %v2388
  %v2390 = vmul.f32 1.0, %v2389
  %v2391 = vxor.u32 %v2382, 2147483648
  %v2392 = vmul.f32 %v2391, 1.442695
  %v2393 = vpow.pop %v2392
  %v2394 = vadd.f32 %v2393, 1.0
  %v2395 = vrcp.pop %v2394
  %v2396 = vmul.f32 1.0, %v2395
  %v2397 = vtanh.pop %v2383
  %v2398 = vxor.u32 %v2384, 2147483648
  %v2399 = vmul.f32 %v2398, 1.442695
  %v2400 = vpow.pop %v2399
  %v2401 = vadd.f32 %v2400, 1.0
  %v2402 = vrcp.pop %v2401
  %v2403 = vmul.f32 1.0, %v2402
  %v2404 = vmul.f32 %v2396, %v1780
  %v2405 = vmul.f32 %v2390, %v2397
  %v2406 = vadd.f32 %v2404, %v2405
  %v2407 = vtanh.pop %v2406
  %v2408 = vmul.f32 %v2403, %v2407
  %vm2409 = vcmp.gt.s32.totalorder %v29, 5
  %v2410 = vsel %vm2409, 1, 0
  %2411 = vset.pattern.permute.xlu0 0
  %2412 = vperm.xlu0 %2411, %v2410
  %v2413 = vpop.permute.xlu0 %2412
  %vm2414 = vcmp.eq.s32.totalorder %v2413, 1
  %v2415 = vsel %vm2414, %v2408, %v1779
  %v2416 = vsel %vm2414, %v2406, %v1780
  %v2417 = vsel %vm2414, %v2408, 0.0
  %s2418 = scalar_lea.vmem %s7, 80
  %2419 = vst [vmem:[%s2418 + $0x8] sm:$0xff] %v2417
  %v2420 = vld [vmem:[#allocation2 + $0xc0] sm:$0xff]
  %v2421 = vld [vmem:[#allocation2 + $0xc8] sm:$0xff]
  %v2422 = vld [vmem:[#allocation2 + $0xd0] sm:$0xff]
  %v2423 = vld [vmem:[#allocation2 + $0xd8] sm:$0xff]
  %v2424 = vpack.c.bf16 %v2097, %v2097
  %v2425 = vld [vmem:[%s4] sm:$0xff]
  %v2426 = vld [vmem:[%s4 + $0x8] sm:$0xff]
  %v2427 = vld [vmem:[%s4 + $0x10] sm:$0xff]
  %v2428 = vld [vmem:[%s4 + $0x18] sm:$0xff]
  %v2429 = vld [vmem:[%s4 + $0x20] sm:$0xff]
  %v2430 = vld [vmem:[%s4 + $0x28] sm:$0xff]
  %v2431 = vld [vmem:[%s4 + $0x30] sm:$0xff]
  %v2432 = vld [vmem:[%s4 + $0x38] sm:$0xff]
  %v2433 = vld [vmem:[%s4 + $0x40] sm:$0xff]
  %v2434 = vld [vmem:[%s4 + $0x48] sm:$0xff]
  %v2435 = vld [vmem:[%s4 + $0x50] sm:$0xff]
  %v2436 = vld [vmem:[%s4 + $0x58] sm:$0xff]
  %v2437 = vld [vmem:[%s4 + $0x60] sm:$0xff]
  %v2438 = vld [vmem:[%s4 + $0x68] sm:$0xff]
  %v2439 = vld [vmem:[%s4 + $0x70] sm:$0xff]
  %v2440 = vld [vmem:[%s4 + $0x78] sm:$0xff]
  %v2441 = vld [vmem:[%s4 + $0x80] sm:$0xff]
  %v2442 = vld [vmem:[%s4 + $0x88] sm:$0xff]
  %v2443 = vld [vmem:[%s4 + $0x90] sm:$0xff]
  %v2444 = vld [vmem:[%s4 + $0x98] sm:$0xff]
  %v2445 = vld [vmem:[%s4 + $0xa0] sm:$0xff]
  %v2446 = vld [vmem:[%s4 + $0xa8] sm:$0xff]
  %v2447 = vld [vmem:[%s4 + $0xb0] sm:$0xff]
  %v2448 = vld [vmem:[%s4 + $0xb8] sm:$0xff]
  %v2449 = vld [vmem:[%s4 + $0xc0] sm:$0xff]
  %v2450 = vld [vmem:[%s4 + $0xc8] sm:$0xff]
  %v2451 = vld [vmem:[%s4 + $0xd0] sm:$0xff]
  %v2452 = vld [vmem:[%s4 + $0xd8] sm:$0xff]
  %v2453 = vld [vmem:[%s4 + $0xe0] sm:$0xff]
  %v2454 = vld [vmem:[%s4 + $0xe8] sm:$0xff]
  %v2455 = vld [vmem:[%s4 + $0xf0] sm:$0xff]
  %v2456 = vld [vmem:[%s4 + $0xf8] sm:$0xff]
  %v2489 = vunpack.c.l.b16 %v2425
  %v2490 = vunpack.c.h.b16 %v2425
  %v2491 = vunpack.c.l.b16 %v2426
  %v2492 = vunpack.c.h.b16 %v2426
  %v2493 = vunpack.c.l.b16 %v2427
  %v2494 = vunpack.c.h.b16 %v2427
  %v2495 = vunpack.c.l.b16 %v2428
  %v2496 = vunpack.c.h.b16 %v2428
  %v2497 = vunpack.c.l.b16 %v2429
  %v2498 = vunpack.c.h.b16 %v2429
  %v2499 = vunpack.c.l.b16 %v2430
  %v2500 = vunpack.c.h.b16 %v2430
  %v2501 = vunpack.c.l.b16 %v2431
  %v2502 = vunpack.c.h.b16 %v2431
  %v2503 = vunpack.c.l.b16 %v2432
  %v2504 = vunpack.c.h.b16 %v2432
  %v2505 = vunpack.c.l.b16 %v2433
  %v2506 = vunpack.c.h.b16 %v2433
  %v2507 = vunpack.c.l.b16 %v2434
  %v2508 = vunpack.c.h.b16 %v2434
  %v2509 = vunpack.c.l.b16 %v2435
  %v2510 = vunpack.c.h.b16 %v2435
  %v2511 = vunpack.c.l.b16 %v2436
  %v2512 = vunpack.c.h.b16 %v2436
  %v2513 = vunpack.c.l.b16 %v2437
  %v2514 = vunpack.c.h.b16 %v2437
  %v2515 = vunpack.c.l.b16 %v2438
  %v2516 = vunpack.c.h.b16 %v2438
  %v2517 = vunpack.c.l.b16 %v2439
  %v2518 = vunpack.c.h.b16 %v2439
  %v2519 = vunpack.c.l.b16 %v2440
  %v2520 = vunpack.c.h.b16 %v2440
  %v2521 = vunpack.c.l.b16 %v2441
  %v2522 = vunpack.c.h.b16 %v2441
  %v2523 = vunpack.c.l.b16 %v2442
  %v2524 = vunpack.c.h.b16 %v2442
  %v2525 = vunpack.c.l.b16 %v2443
  %v2526 = vunpack.c.h.b16 %v2443
  %v2527 = vunpack.c.l.b16 %v2444
  %v2528 = vunpack.c.h.b16 %v2444
  %v2529 = vunpack.c.l.b16 %v2445
  %v2530 = vunpack.c.h.b16 %v2445
  %v2531 = vunpack.c.l.b16 %v2446
  %v2532 = vunpack.c.h.b16 %v2446
  %v2533 = vunpack.c.l.b16 %v2447
  %v2534 = vunpack.c.h.b16 %v2447
  %v2535 = vunpack.c.l.b16 %v2448
  %v2536 = vunpack.c.h.b16 %v2448
  %v2537 = vunpack.c.l.b16 %v2449
  %v2538 = vunpack.c.h.b16 %v2449
  %v2539 = vunpack.c.l.b16 %v2450
  %v2540 = vunpack.c.h.b16 %v2450
  %v2541 = vunpack.c.l.b16 %v2451
  %v2542 = vunpack.c.h.b16 %v2451
  %v2543 = vunpack.c.l.b16 %v2452
  %v2544 = vunpack.c.h.b16 %v2452
  %v2545 = vunpack.c.l.b16 %v2453
  %v2546 = vunpack.c.h.b16 %v2453
  %v2547 = vunpack.c.l.b16 %v2454
  %v2548 = vunpack.c.h.b16 %v2454
  %v2549 = vunpack.c.l.b16 %v2455
  %v2550 = vunpack.c.h.b16 %v2455
  %v2551 = vunpack.c.l.b16 %v2456
  %v2552 = vunpack.c.h.b16 %v2456
  %v2553 = vpack.c.b16 %v2493, %v2489
  %v2554 = vpack.c.b16 %v2494, %v2490
  %v2555 = vpack.c.b16 %v2495, %v2491
  %v2556 = vpack.c.b16 %v2496, %v2492
  %v2557 = vpack.c.b16 %v2501, %v2497
  %v2558 = vpack.c.b16 %v2502, %v2498
  %v2559 = vpack.c.b16 %v2503, %v2499
  %v2560 = vpack.c.b16 %v2504, %v2500
  %v2561 = vpack.c.b16 %v2509, %v2505
  %v2562 = vpack.c.b16 %v2510, %v2506
  %v2563 = vpack.c.b16 %v2511, %v2507
  %v2564 = vpack.c.b16 %v2512, %v2508
  %v2565 = vpack.c.b16 %v2517, %v2513
  %v2566 = vpack.c.b16 %v2518, %v2514
  %v2567 = vpack.c.b16 %v2519, %v2515
  %v2568 = vpack.c.b16 %v2520, %v2516
  %v2569 = vpack.c.b16 %v2525, %v2521
  %v2570 = vpack.c.b16 %v2526, %v2522
  %v2571 = vpack.c.b16 %v2527, %v2523
  %v2572 = vpack.c.b16 %v2528, %v2524
  %v2573 = vpack.c.b16 %v2533, %v2529
  %v2574 = vpack.c.b16 %v2534, %v2530
  %v2575 = vpack.c.b16 %v2535, %v2531
  %v2576 = vpack.c.b16 %v2536, %v2532
  %v2577 = vpack.c.b16 %v2541, %v2537
  %v2578 = vpack.c.b16 %v2542, %v2538
  %v2579 = vpack.c.b16 %v2543, %v2539
  %v2580 = vpack.c.b16 %v2544, %v2540
  %v2581 = vpack.c.b16 %v2549, %v2545
  %v2582 = vpack.c.b16 %v2550, %v2546
  %v2583 = vpack.c.b16 %v2551, %v2547
  %v2584 = vpack.c.b16 %v2552, %v2548
  %2617 = vmatprep.subr.bf16.mxu0 %v2582
  %2618 = vmatpush1.bf16.msra.mxu0 %v2581
  %2619 = vmatprep.subr.bf16.mxu0 %v2578
  %2620 = vmatpush1.bf16.msra.mxu0 %v2577
  %2621 = vmatprep.subr.bf16.mxu0 %v2574
  %2622 = vmatpush1.bf16.msra.mxu0 %v2573
  %2623 = vmatprep.subr.bf16.mxu0 %v2570
  %2624 = vmatpush1.bf16.msra.mxu0 %v2569
  %2625 = vmatprep.subr.bf16.mxu0 %v2566
  %2626 = vmatpush1.bf16.msra.mxu0 %v2565
  %2627 = vmatprep.subr.bf16.mxu0 %v2562
  %2628 = vmatpush1.bf16.msra.mxu0 %v2561
  %2629 = vmatprep.subr.bf16.mxu0 %v2558
  %2630 = vmatpush1.bf16.msra.mxu0 %v2557
  %2631 = vmatprep.subr.bf16.mxu0 %v2554
  %2632 = vmatpush1.bf16.msra.mxu0 %v2553
  %2633 = vmatprep.subr.bf16.mxu0 0
  %2634 = vmatpush2.bf16.msra.mxu0 0
  %2635 = vmatprep.subr.bf16.mxu0 0
  %2636 = vmatpush2.bf16.msra.mxu0 0
  %2637 = vmatprep.subr.bf16.mxu0 0
  %2638 = vmatpush2.bf16.msra.mxu0 0
  %2639 = vmatprep.subr.bf16.mxu0 0
  %2640 = vmatpush2.bf16.msra.mxu0 0
  %2641 = vmatprep.subr.bf16.mxu0 0
  %2642 = vmatpush2.bf16.msra.mxu0 0
  %2643 = vmatprep.subr.bf16.mxu0 0
  %2644 = vmatpush2.bf16.msra.mxu0 0
  %2645 = vmatprep.subr.bf16.mxu0 0
  %2646 = vmatpush2.bf16.msra.mxu0 0
  %2647 = vmatprep.subr.bf16.mxu0 0
  %2648 = vmatpush2.bf16.msra.mxu0 0
  %2649 = vmatprep.mubr.bf16.mxu0 0
  %2650 = vmatmul.mubr.bf16.gmra.mxu0 %v2424
  %v2651 = vpop.f32.mrf.mxu0
  %v2652 = vadd.f32 0.0, %v2651
  %v2653 = vpop.f32.mrf.mxu0
  %v2654 = vadd.f32 0.0, %v2653
  %v2655 = vpop.f32.mrf.mxu0
  %v2656 = vpop.f32.mrf.mxu0
  %2657 = vdwg.mxu0
  %2658 = vmatprep.subr.bf16.mxu0 %v2584
  %2659 = vmatpush1.bf16.msra.mxu0 %v2583
  %2660 = vmatprep.subr.bf16.mxu0 %v2580
  %2661 = vmatpush1.bf16.msra.mxu0 %v2579
  %2662 = vmatprep.subr.bf16.mxu0 %v2576
  %2663 = vmatpush1.bf16.msra.mxu0 %v2575
  %2664 = vmatprep.subr.bf16.mxu0 %v2572
  %2665 = vmatpush1.bf16.msra.mxu0 %v2571
  %2666 = vmatprep.subr.bf16.mxu0 %v2568
  %2667 = vmatpush1.bf16.msra.mxu0 %v2567
  %2668 = vmatprep.subr.bf16.mxu0 %v2564
  %2669 = vmatpush1.bf16.msra.mxu0 %v2563
  %2670 = vmatprep.subr.bf16.mxu0 %v2560
  %2671 = vmatpush1.bf16.msra.mxu0 %v2559
  %2672 = vmatprep.subr.bf16.mxu0 %v2556
  %2673 = vmatpush1.bf16.msra.mxu0 %v2555
  %2674 = vmatprep.subr.bf16.mxu0 0
  %2675 = vmatpush2.bf16.msra.mxu0 0
  %2676 = vmatprep.subr.bf16.mxu0 0
  %2677 = vmatpush2.bf16.msra.mxu0 0
  %2678 = vmatprep.subr.bf16.mxu0 0
  %2679 = vmatpush2.bf16.msra.mxu0 0
  %2680 = vmatprep.subr.bf16.mxu0 0
  %2681 = vmatpush2.bf16.msra.mxu0 0
  %2682 = vmatprep.subr.bf16.mxu0 0
  %2683 = vmatpush2.bf16.msra.mxu0 0
  %2684 = vmatprep.subr.bf16.mxu0 0
  %2685 = vmatpush2.bf16.msra.mxu0 0
  %2686 = vmatprep.subr.bf16.mxu0 0
  %2687 = vmatpush2.bf16.msra.mxu0 0
  %2688 = vmatprep.subr.bf16.mxu0 0
  %2689 = vmatpush2.bf16.msra.mxu0 0
  %2690 = vmatprep.mubr.bf16.mxu0 0
  %2691 = vmatmul.mubr.bf16.gmra.mxu0 %v2424
  %v2692 = vpop.f32.mrf.mxu0
  %v2693 = vadd.f32 0.0, %v2692
  %v2694 = vpop.f32.mrf.mxu0
  %v2695 = vadd.f32 0.0, %v2694
  %v2696 = vpop.f32.mrf.mxu0
  %v2697 = vpop.f32.mrf.mxu0
  %2698 = vdwg.mxu0
  %v2699 = vadd.f32 %v2420, %v2652
  %v2700 = vadd.f32 %v2421, %v2654
  %v2701 = vadd.f32 %v2422, %v2693
  %v2702 = vadd.f32 %v2423, %v2695
  %v2703 = vxor.u32 %v2699, 2147483648
  %v2704 = vmul.f32 %v2703, 1.442695
  %v2705 = vpow.pop %v2704
  %v2706 = vadd.f32 %v2705, 1.0
  %v2707 = vrcp.pop %v2706
  %v2708 = vmul.f32 1.0, %v2707
  %v2709 = vxor.u32 %v2700, 2147483648
  %v2710 = vmul.f32 %v2709, 1.442695
  %v2711 = vpow.pop %v2710
  %v2712 = vadd.f32 %v2711, 1.0
  %v2713 = vrcp.pop %v2712
  %v2714 = vmul.f32 1.0, %v2713
  %v2715 = vtanh.pop %v2701
  %v2716 = vxor.u32 %v2702, 2147483648
  %v2717 = vmul.f32 %v2716, 1.442695
  %v2718 = vpow.pop %v2717
  %v2719 = vadd.f32 %v2718, 1.0
  %v2720 = vrcp.pop %v2719
  %v2721 = vmul.f32 1.0, %v2720
  %v2722 = vmul.f32 %v2714, %v2098
  %v2723 = vmul.f32 %v2708, %v2715
  %v2724 = vadd.f32 %v2722, %v2723
  %v2725 = vtanh.pop %v2724
  %v2726 = vmul.f32 %v2721, %v2725
  %vm2727 = vcmp.gt.s32.totalorder %v29, 3
  %v2728 = vsel %vm2727, 1, 0
  %2729 = vset.pattern.permute.xlu0 0
  %2730 = vperm.xlu0 %2729, %v2728
  %v2731 = vpop.permute.xlu0 %2730
  %vm2732 = vcmp.eq.s32.totalorder %v2731, 1
  %v2733 = vsel %vm2732, %v2726, %v2097
  %v2734 = vsel %vm2732, %v2724, %v2098
  %v2735 = vsel %vm2732, %v2726, 0.0
  %s2736 = scalar_lea.vmem %s7, 48
  %2737 = vst [vmem:[%s2736] sm:$0xff] %v2735
  %v2738 = vld [vmem:[#allocation2 + $0x120] sm:$0xff]
  %v2739 = vld [vmem:[#allocation2 + $0x128] sm:$0xff]
  %v2740 = vld [vmem:[#allocation2 + $0x130] sm:$0xff]
  %v2741 = vld [vmem:[#allocation2 + $0x138] sm:$0xff]
  %v2742 = vpack.c.bf16 %v2415, %v2415
  %v2743 = vld [vmem:[%s5] sm:$0xff]
  %v2744 = vld [vmem:[%s5 + $0x8] sm:$0xff]
  %v2745 = vld [vmem:[%s5 + $0x10] sm:$0xff]
  %v2746 = vld [vmem:[%s5 + $0x18] sm:$0xff]
  %v2747 = vld [vmem:[%s5 + $0x20] sm:$0xff]
  %v2748 = vld [vmem:[%s5 + $0x28] sm:$0xff]
  %v2749 = vld [vmem:[%s5 + $0x30] sm:$0xff]
  %v2750 = vld [vmem:[%s5 + $0x38] sm:$0xff]
  %v2751 = vld [vmem:[%s5 + $0x40] sm:$0xff]
  %v2752 = vld [vmem:[%s5 + $0x48] sm:$0xff]
  %v2753 = vld [vmem:[%s5 + $0x50] sm:$0xff]
  %v2754 = vld [vmem:[%s5 + $0x58] sm:$0xff]
  %v2755 = vld [vmem:[%s5 + $0x60] sm:$0xff]
  %v2756 = vld [vmem:[%s5 + $0x68] sm:$0xff]
  %v2757 = vld [vmem:[%s5 + $0x70] sm:$0xff]
  %v2758 = vld [vmem:[%s5 + $0x78] sm:$0xff]
  %v2759 = vld [vmem:[%s5 + $0x80] sm:$0xff]
  %v2760 = vld [vmem:[%s5 + $0x88] sm:$0xff]
  %v2761 = vld [vmem:[%s5 + $0x90] sm:$0xff]
  %v2762 = vld [vmem:[%s5 + $0x98] sm:$0xff]
  %v2763 = vld [vmem:[%s5 + $0xa0] sm:$0xff]
  %v2764 = vld [vmem:[%s5 + $0xa8] sm:$0xff]
  %v2765 = vld [vmem:[%s5 + $0xb0] sm:$0xff]
  %v2766 = vld [vmem:[%s5 + $0xb8] sm:$0xff]
  %v2767 = vld [vmem:[%s5 + $0xc0] sm:$0xff]
  %v2768 = vld [vmem:[%s5 + $0xc8] sm:$0xff]
  %v2769 = vld [vmem:[%s5 + $0xd0] sm:$0xff]
  %v2770 = vld [vmem:[%s5 + $0xd8] sm:$0xff]
  %v2771 = vld [vmem:[%s5 + $0xe0] sm:$0xff]
  %v2772 = vld [vmem:[%s5 + $0xe8] sm:$0xff]
  %v2773 = vld [vmem:[%s5 + $0xf0] sm:$0xff]
  %v2774 = vld [vmem:[%s5 + $0xf8] sm:$0xff]
  %v2807 = vunpack.c.l.b16 %v2743
  %v2808 = vunpack.c.h.b16 %v2743
  %v2809 = vunpack.c.l.b16 %v2744
  %v2810 = vunpack.c.h.b16 %v2744
  %v2811 = vunpack.c.l.b16 %v2745
  %v2812 = vunpack.c.h.b16 %v2745
  %v2813 = vunpack.c.l.b16 %v2746
  %v2814 = vunpack.c.h.b16 %v2746
  %v2815 = vunpack.c.l.b16 %v2747
  %v2816 = vunpack.c.h.b16 %v2747
  %v2817 = vunpack.c.l.b16 %v2748
  %v2818 = vunpack.c.h.b16 %v2748
  %v2819 = vunpack.c.l.b16 %v2749
  %v2820 = vunpack.c.h.b16 %v2749
  %v2821 = vunpack.c.l.b16 %v2750
  %v2822 = vunpack.c.h.b16 %v2750
  %v2823 = vunpack.c.l.b16 %v2751
  %v2824 = vunpack.c.h.b16 %v2751
  %v2825 = vunpack.c.l.b16 %v2752
  %v2826 = vunpack.c.h.b16 %v2752
  %v2827 = vunpack.c.l.b16 %v2753
  %v2828 = vunpack.c.h.b16 %v2753
  %v2829 = vunpack.c.l.b16 %v2754
  %v2830 = vunpack.c.h.b16 %v2754
  %v2831 = vunpack.c.l.b16 %v2755
  %v2832 = vunpack.c.h.b16 %v2755
  %v2833 = vunpack.c.l.b16 %v2756
  %v2834 = vunpack.c.h.b16 %v2756
  %v2835 = vunpack.c.l.b16 %v2757
  %v2836 = vunpack.c.h.b16 %v2757
  %v2837 = vunpack.c.l.b16 %v2758
  %v2838 = vunpack.c.h.b16 %v2758
  %v2839 = vunpack.c.l.b16 %v2759
  %v2840 = vunpack.c.h.b16 %v2759
  %v2841 = vunpack.c.l.b16 %v2760
  %v2842 = vunpack.c.h.b16 %v2760
  %v2843 = vunpack.c.l.b16 %v2761
  %v2844 = vunpack.c.h.b16 %v2761
  %v2845 = vunpack.c.l.b16 %v2762
  %v2846 = vunpack.c.h.b16 %v2762
  %v2847 = vunpack.c.l.b16 %v2763
  %v2848 = vunpack.c.h.b16 %v2763
  %v2849 = vunpack.c.l.b16 %v2764
  %v2850 = vunpack.c.h.b16 %v2764
  %v2851 = vunpack.c.l.b16 %v2765
  %v2852 = vunpack.c.h.b16 %v2765
  %v2853 = vunpack.c.l.b16 %v2766
  %v2854 = vunpack.c.h.b16 %v2766
  %v2855 = vunpack.c.l.b16 %v2767
  %v2856 = vunpack.c.h.b16 %v2767
  %v2857 = vunpack.c.l.b16 %v2768
  %v2858 = vunpack.c.h.b16 %v2768
  %v2859 = vunpack.c.l.b16 %v2769
  %v2860 = vunpack.c.h.b16 %v2769
  %v2861 = vunpack.c.l.b16 %v2770
  %v2862 = vunpack.c.h.b16 %v2770
  %v2863 = vunpack.c.l.b16 %v2771
  %v2864 = vunpack.c.h.b16 %v2771
  %v2865 = vunpack.c.l.b16 %v2772
  %v2866 = vunpack.c.h.b16 %v2772
  %v2867 = vunpack.c.l.b16 %v2773
  %v2868 = vunpack.c.h.b16 %v2773
  %v2869 = vunpack.c.l.b16 %v2774
  %v2870 = vunpack.c.h.b16 %v2774
  %v2871 = vpack.c.b16 %v2811, %v2807
  %v2872 = vpack.c.b16 %v2812, %v2808
  %v2873 = vpack.c.b16 %v2813, %v2809
  %v2874 = vpack.c.b16 %v2814, %v2810
  %v2875 = vpack.c.b16 %v2819, %v2815
  %v2876 = vpack.c.b16 %v2820, %v2816
  %v2877 = vpack.c.b16 %v2821, %v2817
  %v2878 = vpack.c.b16 %v2822, %v2818
  %v2879 = vpack.c.b16 %v2827, %v2823
  %v2880 = vpack.c.b16 %v2828, %v2824
  %v2881 = vpack.c.b16 %v2829, %v2825
  %v2882 = vpack.c.b16 %v2830, %v2826
  %v2883 = vpack.c.b16 %v2835, %v2831
  %v2884 = vpack.c.b16 %v2836, %v2832
  %v2885 = vpack.c.b16 %v2837, %v2833
  %v2886 = vpack.c.b16 %v2838, %v2834
  %v2887 = vpack.c.b16 %v2843, %v2839
  %v2888 = vpack.c.b16 %v2844, %v2840
  %v2889 = vpack.c.b16 %v2845, %v2841
  %v2890 = vpack.c.b16 %v2846, %v2842
  %v2891 = vpack.c.b16 %v2851, %v2847
  %v2892 = vpack.c.b16 %v2852, %v2848
  %v2893 = vpack.c.b16 %v2853, %v2849
  %v2894 = vpack.c.b16 %v2854, %v2850
  %v2895 = vpack.c.b16 %v2859, %v2855
  %v2896 = vpack.c.b16 %v2860, %v2856
  %v2897 = vpack.c.b16 %v2861, %v2857
  %v2898 = vpack.c.b16 %v2862, %v2858
  %v2899 = vpack.c.b16 %v2867, %v2863
  %v2900 = vpack.c.b16 %v2868, %v2864
  %v2901 = vpack.c.b16 %v2869, %v2865
  %v2902 = vpack.c.b16 %v2870, %v2866
  %2935 = vmatprep.subr.bf16.mxu0 %v2900
  %2936 = vmatpush1.bf16.msra.mxu0 %v2899
  %2937 = vmatprep.subr.bf16.mxu0 %v2896
  %2938 = vmatpush1.bf16.msra.mxu0 %v2895
  %2939 = vmatprep.subr.bf16.mxu0 %v2892
  %2940 = vmatpush1.bf16.msra.mxu0 %v2891
  %2941 = vmatprep.subr.bf16.mxu0 %v2888
  %2942 = vmatpush1.bf16.msra.mxu0 %v2887
  %2943 = vmatprep.subr.bf16.mxu0 %v2884
  %2944 = vmatpush1.bf16.msra.mxu0 %v2883
  %2945 = vmatprep.subr.bf16.mxu0 %v2880
  %2946 = vmatpush1.bf16.msra.mxu0 %v2879
  %2947 = vmatprep.subr.bf16.mxu0 %v2876
  %2948 = vmatpush1.bf16.msra.mxu0 %v2875
  %2949 = vmatprep.subr.bf16.mxu0 %v2872
  %2950 = vmatpush1.bf16.msra.mxu0 %v2871
  %2951 = vmatprep.subr.bf16.mxu0 0
  %2952 = vmatpush2.bf16.msra.mxu0 0
  %2953 = vmatprep.subr.bf16.mxu0 0
  %2954 = vmatpush2.bf16.msra.mxu0 0
  %2955 = vmatprep.subr.bf16.mxu0 0
  %2956 = vmatpush2.bf16.msra.mxu0 0
  %2957 = vmatprep.subr.bf16.mxu0 0
  %2958 = vmatpush2.bf16.msra.mxu0 0
  %2959 = vmatprep.subr.bf16.mxu0 0
  %2960 = vmatpush2.bf16.msra.mxu0 0
  %2961 = vmatprep.subr.bf16.mxu0 0
  %2962 = vmatpush2.bf16.msra.mxu0 0
  %2963 = vmatprep.subr.bf16.mxu0 0
  %2964 = vmatpush2.bf16.msra.mxu0 0
  %2965 = vmatprep.subr.bf16.mxu0 0
  %2966 = vmatpush2.bf16.msra.mxu0 0
  %2967 = vmatprep.mubr.bf16.mxu0 0
  %2968 = vmatmul.mubr.bf16.gmra.mxu0 %v2742
  %v2969 = vpop.f32.mrf.mxu0
  %v2970 = vadd.f32 0.0, %v2969
  %v2971 = vpop.f32.mrf.mxu0
  %v2972 = vadd.f32 0.0, %v2971
  %v2973 = vpop.f32.mrf.mxu0
  %v2974 = vpop.f32.mrf.mxu0
  %2975 = vdwg.mxu0
  %2976 = vmatprep.subr.bf16.mxu0 %v2902
  %2977 = vmatpush1.bf16.msra.mxu0 %v2901
  %2978 = vmatprep.subr.bf16.mxu0 %v2898
  %2979 = vmatpush1.bf16.msra.mxu0 %v2897
  %2980 = vmatprep.subr.bf16.mxu0 %v2894
  %2981 = vmatpush1.bf16.msra.mxu0 %v2893
  %2982 = vmatprep.subr.bf16.mxu0 %v2890
  %2983 = vmatpush1.bf16.msra.mxu0 %v2889
  %2984 = vmatprep.subr.bf16.mxu0 %v2886
  %2985 = vmatpush1.bf16.msra.mxu0 %v2885
  %2986 = vmatprep.subr.bf16.mxu0 %v2882
  %2987 = vmatpush1.bf16.msra.mxu0 %v2881
  %2988 = vmatprep.subr.bf16.mxu0 %v2878
  %2989 = vmatpush1.bf16.msra.mxu0 %v2877
  %2990 = vmatprep.subr.bf16.mxu0 %v2874
  %2991 = vmatpush1.bf16.msra.mxu0 %v2873
  %2992 = vmatprep.subr.bf16.mxu0 0
  %2993 = vmatpush2.bf16.msra.mxu0 0
  %2994 = vmatprep.subr.bf16.mxu0 0
  %2995 = vmatpush2.bf16.msra.mxu0 0
  %2996 = vmatprep.subr.bf16.mxu0 0
  %2997 = vmatpush2.bf16.msra.mxu0 0
  %2998 = vmatprep.subr.bf16.mxu0 0
  %2999 = vmatpush2.bf16.msra.mxu0 0
  %3000 = vmatprep.subr.bf16.mxu0 0
  %3001 = vmatpush2.bf16.msra.mxu0 0
  %3002 = vmatprep.subr.bf16.mxu0 0
  %3003 = vmatpush2.bf16.msra.mxu0 0
  %3004 = vmatprep.subr.bf16.mxu0 0
  %3005 = vmatpush2.bf16.msra.mxu0 0
  %3006 = vmatprep.subr.bf16.mxu0 0
  %3007 = vmatpush2.bf16.msra.mxu0 0
  %3008 = vmatprep.mubr.bf16.mxu0 0
  %3009 = vmatmul.mubr.bf16.gmra.mxu0 %v2742
  %v3010 = vpop.f32.mrf.mxu0
  %v3011 = vadd.f32 0.0, %v3010
  %v3012 = vpop.f32.mrf.mxu0
  %v3013 = vadd.f32 0.0, %v3012
  %v3014 = vpop.f32.mrf.mxu0
  %v3015 = vpop.f32.mrf.mxu0
  %3016 = vdwg.mxu0
  %v3017 = vadd.f32 %v2738, %v2970
  %v3018 = vadd.f32 %v2739, %v2972
  %v3019 = vadd.f32 %v2740, %v3011
  %v3020 = vadd.f32 %v2741, %v3013
  %v3021 = vxor.u32 %v3017, 2147483648
  %v3022 = vmul.f32 %v3021, 1.442695
  %v3023 = vpow.pop %v3022
  %v3024 = vadd.f32 %v3023, 1.0
  %v3025 = vrcp.pop %v3024
  %v3026 = vmul.f32 1.0, %v3025
  %v3027 = vxor.u32 %v3018, 2147483648
  %v3028 = vmul.f32 %v3027, 1.442695
  %v3029 = vpow.pop %v3028
  %v3030 = vadd.f32 %v3029, 1.0
  %v3031 = vrcp.pop %v3030
  %v3032 = vmul.f32 1.0, %v3031
  %v3033 = vtanh.pop %v3019
  %v3034 = vxor.u32 %v3020, 2147483648
  %v3035 = vmul.f32 %v3034, 1.442695
  %v3036 = vpow.pop %v3035
  %v3037 = vadd.f32 %v3036, 1.0
  %v3038 = vrcp.pop %v3037
  %v3039 = vmul.f32 1.0, %v3038
  %v3040 = vmul.f32 %v3032, %v2416
  %v3041 = vmul.f32 %v3026, %v3033
  %v3042 = vadd.f32 %v3040, %v3041
  %v3043 = vtanh.pop %v3042
  %v3044 = vmul.f32 %v3039, %v3043
  %vm3045 = vcmp.gt.s32.totalorder %v29, 4
  %v3046 = vsel %vm3045, 1, 0
  %3047 = vset.pattern.permute.xlu0 0
  %3048 = vperm.xlu0 %3047, %v3046
  %v3049 = vpop.permute.xlu0 %3048
  %vm3050 = vcmp.eq.s32.totalorder %v3049, 1
  %v3051 = vsel %vm3050, %v3044, %v2415
  %v3052 = vsel %vm3050, %v3042, %v2416
  %v3053 = vsel %vm3050, %v3044, 0.0
  %s3054 = scalar_lea.vmem %s7, 64
  %3055 = vst [vmem:[%s3054 + $0x8] sm:$0xff] %v3053
  %v3056 = vld [vmem:[#allocation2 + $0x100] sm:$0xff]
  %v3057 = vld [vmem:[#allocation2 + $0x108] sm:$0xff]
  %v3058 = vld [vmem:[#allocation2 + $0x110] sm:$0xff]
  %v3059 = vld [vmem:[#allocation2 + $0x118] sm:$0xff]
  %v3060 = vpack.c.bf16 %v2733, %v2733
  %v3061 = vld [vmem:[%s4] sm:$0xff]
  %v3062 = vld [vmem:[%s4 + $0x8] sm:$0xff]
  %v3063 = vld [vmem:[%s4 + $0x10] sm:$0xff]
  %v3064 = vld [vmem:[%s4 + $0x18] sm:$0xff]
  %v3065 = vld [vmem:[%s4 + $0x20] sm:$0xff]
  %v3066 = vld [vmem:[%s4 + $0x28] sm:$0xff]
  %v3067 = vld [vmem:[%s4 + $0x30] sm:$0xff]
  %v3068 = vld [vmem:[%s4 + $0x38] sm:$0xff]
  %v3069 = vld [vmem:[%s4 + $0x40] sm:$0xff]
  %v3070 = vld [vmem:[%s4 + $0x48] sm:$0xff]
  %v3071 = vld [vmem:[%s4 + $0x50] sm:$0xff]
  %v3072 = vld [vmem:[%s4 + $0x58] sm:$0xff]
  %v3073 = vld [vmem:[%s4 + $0x60] sm:$0xff]
  %v3074 = vld [vmem:[%s4 + $0x68] sm:$0xff]
  %v3075 = vld [vmem:[%s4 + $0x70] sm:$0xff]
  %v3076 = vld [vmem:[%s4 + $0x78] sm:$0xff]
  %v3077 = vld [vmem:[%s4 + $0x80] sm:$0xff]
  %v3078 = vld [vmem:[%s4 + $0x88] sm:$0xff]
  %v3079 = vld [vmem:[%s4 + $0x90] sm:$0xff]
  %v3080 = vld [vmem:[%s4 + $0x98] sm:$0xff]
  %v3081 = vld [vmem:[%s4 + $0xa0] sm:$0xff]
  %v3082 = vld [vmem:[%s4 + $0xa8] sm:$0xff]
  %v3083 = vld [vmem:[%s4 + $0xb0] sm:$0xff]
  %v3084 = vld [vmem:[%s4 + $0xb8] sm:$0xff]
  %v3085 = vld [vmem:[%s4 + $0xc0] sm:$0xff]
  %v3086 = vld [vmem:[%s4 + $0xc8] sm:$0xff]
  %v3087 = vld [vmem:[%s4 + $0xd0] sm:$0xff]
  %v3088 = vld [vmem:[%s4 + $0xd8] sm:$0xff]
  %v3089 = vld [vmem:[%s4 + $0xe0] sm:$0xff]
  %v3090 = vld [vmem:[%s4 + $0xe8] sm:$0xff]
  %v3091 = vld [vmem:[%s4 + $0xf0] sm:$0xff]
  %v3092 = vld [vmem:[%s4 + $0xf8] sm:$0xff]
  %v3125 = vunpack.c.l.b16 %v3061
  %v3126 = vunpack.c.h.b16 %v3061
  %v3127 = vunpack.c.l.b16 %v3062
  %v3128 = vunpack.c.h.b16 %v3062
  %v3129 = vunpack.c.l.b16 %v3063
  %v3130 = vunpack.c.h.b16 %v3063
  %v3131 = vunpack.c.l.b16 %v3064
  %v3132 = vunpack.c.h.b16 %v3064
  %v3133 = vunpack.c.l.b16 %v3065
  %v3134 = vunpack.c.h.b16 %v3065
  %v3135 = vunpack.c.l.b16 %v3066
  %v3136 = vunpack.c.h.b16 %v3066
  %v3137 = vunpack.c.l.b16 %v3067
  %v3138 = vunpack.c.h.b16 %v3067
  %v3139 = vunpack.c.l.b16 %v3068
  %v3140 = vunpack.c.h.b16 %v3068
  %v3141 = vunpack.c.l.b16 %v3069
  %v3142 = vunpack.c.h.b16 %v3069
  %v3143 = vunpack.c.l.b16 %v3070
  %v3144 = vunpack.c.h.b16 %v3070
  %v3145 = vunpack.c.l.b16 %v3071
  %v3146 = vunpack.c.h.b16 %v3071
  %v3147 = vunpack.c.l.b16 %v3072
  %v3148 = vunpack.c.h.b16 %v3072
  %v3149 = vunpack.c.l.b16 %v3073
  %v3150 = vunpack.c.h.b16 %v3073
  %v3151 = vunpack.c.l.b16 %v3074
  %v3152 = vunpack.c.h.b16 %v3074
  %v3153 = vunpack.c.l.b16 %v3075
  %v3154 = vunpack.c.h.b16 %v3075
  %v3155 = vunpack.c.l.b16 %v3076
  %v3156 = vunpack.c.h.b16 %v3076
  %v3157 = vunpack.c.l.b16 %v3077
  %v3158 = vunpack.c.h.b16 %v3077
  %v3159 = vunpack.c.l.b16 %v3078
  %v3160 = vunpack.c.h.b16 %v3078
  %v3161 = vunpack.c.l.b16 %v3079
  %v3162 = vunpack.c.h.b16 %v3079
  %v3163 = vunpack.c.l.b16 %v3080
  %v3164 = vunpack.c.h.b16 %v3080
  %v3165 = vunpack.c.l.b16 %v3081
  %v3166 = vunpack.c.h.b16 %v3081
  %v3167 = vunpack.c.l.b16 %v3082
  %v3168 = vunpack.c.h.b16 %v3082
  %v3169 = vunpack.c.l.b16 %v3083
  %v3170 = vunpack.c.h.b16 %v3083
  %v3171 = vunpack.c.l.b16 %v3084
  %v3172 = vunpack.c.h.b16 %v3084
  %v3173 = vunpack.c.l.b16 %v3085
  %v3174 = vunpack.c.h.b16 %v3085
  %v3175 = vunpack.c.l.b16 %v3086
  %v3176 = vunpack.c.h.b16 %v3086
  %v3177 = vunpack.c.l.b16 %v3087
  %v3178 = vunpack.c.h.b16 %v3087
  %v3179 = vunpack.c.l.b16 %v3088
  %v3180 = vunpack.c.h.b16 %v3088
  %v3181 = vunpack.c.l.b16 %v3089
  %v3182 = vunpack.c.h.b16 %v3089
  %v3183 = vunpack.c.l.b16 %v3090
  %v3184 = vunpack.c.h.b16 %v3090
  %v3185 = vunpack.c.l.b16 %v3091
  %v3186 = vunpack.c.h.b16 %v3091
  %v3187 = vunpack.c.l.b16 %v3092
  %v3188 = vunpack.c.h.b16 %v3092
  %v3189 = vpack.c.b16 %v3129, %v3125
  %v3190 = vpack.c.b16 %v3130, %v3126
  %v3191 = vpack.c.b16 %v3131, %v3127
  %v3192 = vpack.c.b16 %v3132, %v3128
  %v3193 = vpack.c.b16 %v3137, %v3133
  %v3194 = vpack.c.b16 %v3138, %v3134
  %v3195 = vpack.c.b16 %v3139, %v3135
  %v3196 = vpack.c.b16 %v3140, %v3136
  %v3197 = vpack.c.b16 %v3145, %v3141
  %v3198 = vpack.c.b16 %v3146, %v3142
  %v3199 = vpack.c.b16 %v3147, %v3143
  %v3200 = vpack.c.b16 %v3148, %v3144
  %v3201 = vpack.c.b16 %v3153, %v3149
  %v3202 = vpack.c.b16 %v3154, %v3150
  %v3203 = vpack.c.b16 %v3155, %v3151
  %v3204 = vpack.c.b16 %v3156, %v3152
  %v3205 = vpack.c.b16 %v3161, %v3157
  %v3206 = vpack.c.b16 %v3162, %v3158
  %v3207 = vpack.c.b16 %v3163, %v3159
  %v3208 = vpack.c.b16 %v3164, %v3160
  %v3209 = vpack.c.b16 %v3169, %v3165
  %v3210 = vpack.c.b16 %v3170, %v3166
  %v3211 = vpack.c.b16 %v3171, %v3167
  %v3212 = vpack.c.b16 %v3172, %v3168
  %v3213 = vpack.c.b16 %v3177, %v3173
  %v3214 = vpack.c.b16 %v3178, %v3174
  %v3215 = vpack.c.b16 %v3179, %v3175
  %v3216 = vpack.c.b16 %v3180, %v3176
  %v3217 = vpack.c.b16 %v3185, %v3181
  %v3218 = vpack.c.b16 %v3186, %v3182
  %v3219 = vpack.c.b16 %v3187, %v3183
  %v3220 = vpack.c.b16 %v3188, %v3184
  %3253 = vmatprep.subr.bf16.mxu0 %v3218
  %3254 = vmatpush1.bf16.msra.mxu0 %v3217
  %3255 = vmatprep.subr.bf16.mxu0 %v3214
  %3256 = vmatpush1.bf16.msra.mxu0 %v3213
  %3257 = vmatprep.subr.bf16.mxu0 %v3210
  %3258 = vmatpush1.bf16.msra.mxu0 %v3209
  %3259 = vmatprep.subr.bf16.mxu0 %v3206
  %3260 = vmatpush1.bf16.msra.mxu0 %v3205
  %3261 = vmatprep.subr.bf16.mxu0 %v3202
  %3262 = vmatpush1.bf16.msra.mxu0 %v3201
  %3263 = vmatprep.subr.bf16.mxu0 %v3198
  %3264 = vmatpush1.bf16.msra.mxu0 %v3197
  %3265 = vmatprep.subr.bf16.mxu0 %v3194
  %3266 = vmatpush1.bf16.msra.mxu0 %v3193
  %3267 = vmatprep.subr.bf16.mxu0 %v3190
  %3268 = vmatpush1.bf16.msra.mxu0 %v3189
  %3269 = vmatprep.subr.bf16.mxu0 0
  %3270 = vmatpush2.bf16.msra.mxu0 0
  %3271 = vmatprep.subr.bf16.mxu0 0
  %3272 = vmatpush2.bf16.msra.mxu0 0
  %3273 = vmatprep.subr.bf16.mxu0 0
  %3274 = vmatpush2.bf16.msra.mxu0 0
  %3275 = vmatprep.subr.bf16.mxu0 0
  %3276 = vmatpush2.bf16.msra.mxu0 0
  %3277 = vmatprep.subr.bf16.mxu0 0
  %3278 = vmatpush2.bf16.msra.mxu0 0
  %3279 = vmatprep.subr.bf16.mxu0 0
  %3280 = vmatpush2.bf16.msra.mxu0 0
  %3281 = vmatprep.subr.bf16.mxu0 0
  %3282 = vmatpush2.bf16.msra.mxu0 0
  %3283 = vmatprep.subr.bf16.mxu0 0
  %3284 = vmatpush2.bf16.msra.mxu0 0
  %3285 = vmatprep.mubr.bf16.mxu0 0
  %3286 = vmatmul.mubr.bf16.gmra.mxu0 %v3060
  %v3287 = vpop.f32.mrf.mxu0
  %v3288 = vadd.f32 0.0, %v3287
  %v3289 = vpop.f32.mrf.mxu0
  %v3290 = vadd.f32 0.0, %v3289
  %v3291 = vpop.f32.mrf.mxu0
  %v3292 = vpop.f32.mrf.mxu0
  %3293 = vdwg.mxu0
  %3294 = vmatprep.subr.bf16.mxu0 %v3220
  %3295 = vmatpush1.bf16.msra.mxu0 %v3219
  %3296 = vmatprep.subr.bf16.mxu0 %v3216
  %3297 = vmatpush1.bf16.msra.mxu0 %v3215
  %3298 = vmatprep.subr.bf16.mxu0 %v3212
  %3299 = vmatpush1.bf16.msra.mxu0 %v3211
  %3300 = vmatprep.subr.bf16.mxu0 %v3208
  %3301 = vmatpush1.bf16.msra.mxu0 %v3207
  %3302 = vmatprep.subr.bf16.mxu0 %v3204
  %3303 = vmatpush1.bf16.msra.mxu0 %v3203
  %3304 = vmatprep.subr.bf16.mxu0 %v3200
  %3305 = vmatpush1.bf16.msra.mxu0 %v3199
  %3306 = vmatprep.subr.bf16.mxu0 %v3196
  %3307 = vmatpush1.bf16.msra.mxu0 %v3195
  %3308 = vmatprep.subr.bf16.mxu0 %v3192
  %3309 = vmatpush1.bf16.msra.mxu0 %v3191
  %3310 = vmatprep.subr.bf16.mxu0 0
  %3311 = vmatpush2.bf16.msra.mxu0 0
  %3312 = vmatprep.subr.bf16.mxu0 0
  %3313 = vmatpush2.bf16.msra.mxu0 0
  %3314 = vmatprep.subr.bf16.mxu0 0
  %3315 = vmatpush2.bf16.msra.mxu0 0
  %3316 = vmatprep.subr.bf16.mxu0 0
  %3317 = vmatpush2.bf16.msra.mxu0 0
  %3318 = vmatprep.subr.bf16.mxu0 0
  %3319 = vmatpush2.bf16.msra.mxu0 0
  %3320 = vmatprep.subr.bf16.mxu0 0
  %3321 = vmatpush2.bf16.msra.mxu0 0
  %3322 = vmatprep.subr.bf16.mxu0 0
  %3323 = vmatpush2.bf16.msra.mxu0 0
  %3324 = vmatprep.subr.bf16.mxu0 0
  %3325 = vmatpush2.bf16.msra.mxu0 0
  %3326 = vmatprep.mubr.bf16.mxu0 0
  %3327 = vmatmul.mubr.bf16.gmra.mxu0 %v3060
  %v3328 = vpop.f32.mrf.mxu0
  %v3329 = vadd.f32 0.0, %v3328
  %v3330 = vpop.f32.mrf.mxu0
  %v3331 = vadd.f32 0.0, %v3330
  %v3332 = vpop.f32.mrf.mxu0
  %v3333 = vpop.f32.mrf.mxu0
  %3334 = vdwg.mxu0
  %v3335 = vadd.f32 %v3056, %v3288
  %v3336 = vadd.f32 %v3057, %v3290
  %v3337 = vadd.f32 %v3058, %v3329
  %v3338 = vadd.f32 %v3059, %v3331
  %v3339 = vxor.u32 %v3335, 2147483648
  %v3340 = vmul.f32 %v3339, 1.442695
  %v3341 = vpow.pop %v3340
  %v3342 = vadd.f32 %v3341, 1.0
  %v3343 = vrcp.pop %v3342
  %v3344 = vmul.f32 1.0, %v3343
  %v3345 = vxor.u32 %v3336, 2147483648
  %v3346 = vmul.f32 %v3345, 1.442695
  %v3347 = vpow.pop %v3346
  %v3348 = vadd.f32 %v3347, 1.0
  %v3349 = vrcp.pop %v3348
  %v3350 = vmul.f32 1.0, %v3349
  %v3351 = vtanh.pop %v3337
  %v3352 = vxor.u32 %v3338, 2147483648
  %v3353 = vmul.f32 %v3352, 1.442695
  %v3354 = vpow.pop %v3353
  %v3355 = vadd.f32 %v3354, 1.0
  %v3356 = vrcp.pop %v3355
  %v3357 = vmul.f32 1.0, %v3356
  %v3358 = vmul.f32 %v3350, %v2734
  %v3359 = vmul.f32 %v3344, %v3351
  %v3360 = vadd.f32 %v3358, %v3359
  %v3361 = vtanh.pop %v3360
  %v3362 = vmul.f32 %v3357, %v3361
  %v3363 = vsel %vm3050, %v3362, %v2733
  %v3364 = vsel %vm3050, %v3360, %v2734
  %v3365 = vsel %vm3050, %v3362, 0.0
  %3366 = vst [vmem:[%s3054] sm:$0xff] %v3365
  %v3367 = vld [vmem:[#allocation2 + $0xe0] sm:$0xff]
  %v3368 = vld [vmem:[#allocation2 + $0xe8] sm:$0xff]
  %v3369 = vld [vmem:[#allocation2 + $0xf0] sm:$0xff]
  %v3370 = vld [vmem:[#allocation2 + $0xf8] sm:$0xff]
  %v3371 = vpack.c.bf16 %v3051, %v3051
  %v3372 = vld [vmem:[%s5] sm:$0xff]
  %v3373 = vld [vmem:[%s5 + $0x8] sm:$0xff]
  %v3374 = vld [vmem:[%s5 + $0x10] sm:$0xff]
  %v3375 = vld [vmem:[%s5 + $0x18] sm:$0xff]
  %v3376 = vld [vmem:[%s5 + $0x20] sm:$0xff]
  %v3377 = vld [vmem:[%s5 + $0x28] sm:$0xff]
  %v3378 = vld [vmem:[%s5 + $0x30] sm:$0xff]
  %v3379 = vld [vmem:[%s5 + $0x38] sm:$0xff]
  %v3380 = vld [vmem:[%s5 + $0x40] sm:$0xff]
  %v3381 = vld [vmem:[%s5 + $0x48] sm:$0xff]
  %v3382 = vld [vmem:[%s5 + $0x50] sm:$0xff]
  %v3383 = vld [vmem:[%s5 + $0x58] sm:$0xff]
  %v3384 = vld [vmem:[%s5 + $0x60] sm:$0xff]
  %v3385 = vld [vmem:[%s5 + $0x68] sm:$0xff]
  %v3386 = vld [vmem:[%s5 + $0x70] sm:$0xff]
  %v3387 = vld [vmem:[%s5 + $0x78] sm:$0xff]
  %v3388 = vld [vmem:[%s5 + $0x80] sm:$0xff]
  %v3389 = vld [vmem:[%s5 + $0x88] sm:$0xff]
  %v3390 = vld [vmem:[%s5 + $0x90] sm:$0xff]
  %v3391 = vld [vmem:[%s5 + $0x98] sm:$0xff]
  %v3392 = vld [vmem:[%s5 + $0xa0] sm:$0xff]
  %v3393 = vld [vmem:[%s5 + $0xa8] sm:$0xff]
  %v3394 = vld [vmem:[%s5 + $0xb0] sm:$0xff]
  %v3395 = vld [vmem:[%s5 + $0xb8] sm:$0xff]
  %v3396 = vld [vmem:[%s5 + $0xc0] sm:$0xff]
  %v3397 = vld [vmem:[%s5 + $0xc8] sm:$0xff]
  %v3398 = vld [vmem:[%s5 + $0xd0] sm:$0xff]
  %v3399 = vld [vmem:[%s5 + $0xd8] sm:$0xff]
  %v3400 = vld [vmem:[%s5 + $0xe0] sm:$0xff]
  %v3401 = vld [vmem:[%s5 + $0xe8] sm:$0xff]
  %v3402 = vld [vmem:[%s5 + $0xf0] sm:$0xff]
  %v3403 = vld [vmem:[%s5 + $0xf8] sm:$0xff]
  %v3436 = vunpack.c.l.b16 %v3372
  %v3437 = vunpack.c.h.b16 %v3372
  %v3438 = vunpack.c.l.b16 %v3373
  %v3439 = vunpack.c.h.b16 %v3373
  %v3440 = vunpack.c.l.b16 %v3374
  %v3441 = vunpack.c.h.b16 %v3374
  %v3442 = vunpack.c.l.b16 %v3375
  %v3443 = vunpack.c.h.b16 %v3375
  %v3444 = vunpack.c.l.b16 %v3376
  %v3445 = vunpack.c.h.b16 %v3376
  %v3446 = vunpack.c.l.b16 %v3377
  %v3447 = vunpack.c.h.b16 %v3377
  %v3448 = vunpack.c.l.b16 %v3378
  %v3449 = vunpack.c.h.b16 %v3378
  %v3450 = vunpack.c.l.b16 %v3379
  %v3451 = vunpack.c.h.b16 %v3379
  %v3452 = vunpack.c.l.b16 %v3380
  %v3453 = vunpack.c.h.b16 %v3380
  %v3454 = vunpack.c.l.b16 %v3381
  %v3455 = vunpack.c.h.b16 %v3381
  %v3456 = vunpack.c.l.b16 %v3382
  %v3457 = vunpack.c.h.b16 %v3382
  %v3458 = vunpack.c.l.b16 %v3383
  %v3459 = vunpack.c.h.b16 %v3383
  %v3460 = vunpack.c.l.b16 %v3384
  %v3461 = vunpack.c.h.b16 %v3384
  %v3462 = vunpack.c.l.b16 %v3385
  %v3463 = vunpack.c.h.b16 %v3385
  %v3464 = vunpack.c.l.b16 %v3386
  %v3465 = vunpack.c.h.b16 %v3386
  %v3466 = vunpack.c.l.b16 %v3387
  %v3467 = vunpack.c.h.b16 %v3387
  %v3468 = vunpack.c.l.b16 %v3388
  %v3469 = vunpack.c.h.b16 %v3388
  %v3470 = vunpack.c.l.b16 %v3389
  %v3471 = vunpack.c.h.b16 %v3389
  %v3472 = vunpack.c.l.b16 %v3390
  %v3473 = vunpack.c.h.b16 %v3390
  %v3474 = vunpack.c.l.b16 %v3391
  %v3475 = vunpack.c.h.b16 %v3391
  %v3476 = vunpack.c.l.b16 %v3392
  %v3477 = vunpack.c.h.b16 %v3392
  %v3478 = vunpack.c.l.b16 %v3393
  %v3479 = vunpack.c.h.b16 %v3393
  %v3480 = vunpack.c.l.b16 %v3394
  %v3481 = vunpack.c.h.b16 %v3394
  %v3482 = vunpack.c.l.b16 %v3395
  %v3483 = vunpack.c.h.b16 %v3395
  %v3484 = vunpack.c.l.b16 %v3396
  %v3485 = vunpack.c.h.b16 %v3396
  %v3486 = vunpack.c.l.b16 %v3397
  %v3487 = vunpack.c.h.b16 %v3397
  %v3488 = vunpack.c.l.b16 %v3398
  %v3489 = vunpack.c.h.b16 %v3398
  %v3490 = vunpack.c.l.b16 %v3399
  %v3491 = vunpack.c.h.b16 %v3399
  %v3492 = vunpack.c.l.b16 %v3400
  %v3493 = vunpack.c.h.b16 %v3400
  %v3494 = vunpack.c.l.b16 %v3401
  %v3495 = vunpack.c.h.b16 %v3401
  %v3496 = vunpack.c.l.b16 %v3402
  %v3497 = vunpack.c.h.b16 %v3402
  %v3498 = vunpack.c.l.b16 %v3403
  %v3499 = vunpack.c.h.b16 %v3403
  %v3500 = vpack.c.b16 %v3440, %v3436
  %v3501 = vpack.c.b16 %v3441, %v3437
  %v3502 = vpack.c.b16 %v3442, %v3438
  %v3503 = vpack.c.b16 %v3443, %v3439
  %v3504 = vpack.c.b16 %v3448, %v3444
  %v3505 = vpack.c.b16 %v3449, %v3445
  %v3506 = vpack.c.b16 %v3450, %v3446
  %v3507 = vpack.c.b16 %v3451, %v3447
  %v3508 = vpack.c.b16 %v3456, %v3452
  %v3509 = vpack.c.b16 %v3457, %v3453
  %v3510 = vpack.c.b16 %v3458, %v3454
  %v3511 = vpack.c.b16 %v3459, %v3455
  %v3512 = vpack.c.b16 %v3464, %v3460
  %v3513 = vpack.c.b16 %v3465, %v3461
  %v3514 = vpack.c.b16 %v3466, %v3462
  %v3515 = vpack.c.b16 %v3467, %v3463
  %v3516 = vpack.c.b16 %v3472, %v3468
  %v3517 = vpack.c.b16 %v3473, %v3469
  %v3518 = vpack.c.b16 %v3474, %v3470
  %v3519 = vpack.c.b16 %v3475, %v3471
  %v3520 = vpack.c.b16 %v3480, %v3476
  %v3521 = vpack.c.b16 %v3481, %v3477
  %v3522 = vpack.c.b16 %v3482, %v3478
  %v3523 = vpack.c.b16 %v3483, %v3479
  %v3524 = vpack.c.b16 %v3488, %v3484
  %v3525 = vpack.c.b16 %v3489, %v3485
  %v3526 = vpack.c.b16 %v3490, %v3486
  %v3527 = vpack.c.b16 %v3491, %v3487
  %v3528 = vpack.c.b16 %v3496, %v3492
  %v3529 = vpack.c.b16 %v3497, %v3493
  %v3530 = vpack.c.b16 %v3498, %v3494
  %v3531 = vpack.c.b16 %v3499, %v3495
  %3564 = vmatprep.subr.bf16.mxu0 %v3529
  %3565 = vmatpush1.bf16.msra.mxu0 %v3528
  %3566 = vmatprep.subr.bf16.mxu0 %v3525
  %3567 = vmatpush1.bf16.msra.mxu0 %v3524
  %3568 = vmatprep.subr.bf16.mxu0 %v3521
  %3569 = vmatpush1.bf16.msra.mxu0 %v3520
  %3570 = vmatprep.subr.bf16.mxu0 %v3517
  %3571 = vmatpush1.bf16.msra.mxu0 %v3516
  %3572 = vmatprep.subr.bf16.mxu0 %v3513
  %3573 = vmatpush1.bf16.msra.mxu0 %v3512
  %3574 = vmatprep.subr.bf16.mxu0 %v3509
  %3575 = vmatpush1.bf16.msra.mxu0 %v3508
  %3576 = vmatprep.subr.bf16.mxu0 %v3505
  %3577 = vmatpush1.bf16.msra.mxu0 %v3504
  %3578 = vmatprep.subr.bf16.mxu0 %v3501
  %3579 = vmatpush1.bf16.msra.mxu0 %v3500
  %3580 = vmatprep.subr.bf16.mxu0 0
  %3581 = vmatpush2.bf16.msra.mxu0 0
  %3582 = vmatprep.subr.bf16.mxu0 0
  %3583 = vmatpush2.bf16.msra.mxu0 0
  %3584 = vmatprep.subr.bf16.mxu0 0
  %3585 = vmatpush2.bf16.msra.mxu0 0
  %3586 = vmatprep.subr.bf16.mxu0 0
  %3587 = vmatpush2.bf16.msra.mxu0 0
  %3588 = vmatprep.subr.bf16.mxu0 0
  %3589 = vmatpush2.bf16.msra.mxu0 0
  %3590 = vmatprep.subr.bf16.mxu0 0
  %3591 = vmatpush2.bf16.msra.mxu0 0
  %3592 = vmatprep.subr.bf16.mxu0 0
  %3593 = vmatpush2.bf16.msra.mxu0 0
  %3594 = vmatprep.subr.bf16.mxu0 0
  %3595 = vmatpush2.bf16.msra.mxu0 0
  %3596 = vmatprep.mubr.bf16.mxu0 0
  %3597 = vmatmul.mubr.bf16.gmra.mxu0 %v3371
  %v3598 = vpop.f32.mrf.mxu0
  %v3599 = vadd.f32 0.0, %v3598
  %v3600 = vpop.f32.mrf.mxu0
  %v3601 = vadd.f32 0.0, %v3600
  %v3602 = vpop.f32.mrf.mxu0
  %v3603 = vpop.f32.mrf.mxu0
  %3604 = vdwg.mxu0
  %3605 = vmatprep.subr.bf16.mxu0 %v3531
  %3606 = vmatpush1.bf16.msra.mxu0 %v3530
  %3607 = vmatprep.subr.bf16.mxu0 %v3527
  %3608 = vmatpush1.bf16.msra.mxu0 %v3526
  %3609 = vmatprep.subr.bf16.mxu0 %v3523
  %3610 = vmatpush1.bf16.msra.mxu0 %v3522
  %3611 = vmatprep.subr.bf16.mxu0 %v3519
  %3612 = vmatpush1.bf16.msra.mxu0 %v3518
  %3613 = vmatprep.subr.bf16.mxu0 %v3515
  %3614 = vmatpush1.bf16.msra.mxu0 %v3514
  %3615 = vmatprep.subr.bf16.mxu0 %v3511
  %3616 = vmatpush1.bf16.msra.mxu0 %v3510
  %3617 = vmatprep.subr.bf16.mxu0 %v3507
  %3618 = vmatpush1.bf16.msra.mxu0 %v3506
  %3619 = vmatprep.subr.bf16.mxu0 %v3503
  %3620 = vmatpush1.bf16.msra.mxu0 %v3502
  %3621 = vmatprep.subr.bf16.mxu0 0
  %3622 = vmatpush2.bf16.msra.mxu0 0
  %3623 = vmatprep.subr.bf16.mxu0 0
  %3624 = vmatpush2.bf16.msra.mxu0 0
  %3625 = vmatprep.subr.bf16.mxu0 0
  %3626 = vmatpush2.bf16.msra.mxu0 0
  %3627 = vmatprep.subr.bf16.mxu0 0
  %3628 = vmatpush2.bf16.msra.mxu0 0
  %3629 = vmatprep.subr.bf16.mxu0 0
  %3630 = vmatpush2.bf16.msra.mxu0 0
  %3631 = vmatprep.subr.bf16.mxu0 0
  %3632 = vmatpush2.bf16.msra.mxu0 0
  %3633 = vmatprep.subr.bf16.mxu0 0
  %3634 = vmatpush2.bf16.msra.mxu0 0
  %3635 = vmatprep.subr.bf16.mxu0 0
  %3636 = vmatpush2.bf16.msra.mxu0 0
  %3637 = vmatprep.mubr.bf16.mxu0 0
  %3638 = vmatmul.mubr.bf16.gmra.mxu0 %v3371
  %v3639 = vpop.f32.mrf.mxu0
  %v3640 = vadd.f32 0.0, %v3639
  %v3641 = vpop.f32.mrf.mxu0
  %v3642 = vadd.f32 0.0, %v3641
  %v3643 = vpop.f32.mrf.mxu0
  %v3644 = vpop.f32.mrf.mxu0
  %3645 = vdwg.mxu0
  %v3646 = vadd.f32 %v3367, %v3599
  %v3647 = vadd.f32 %v3368, %v3601
  %v3648 = vadd.f32 %v3369, %v3640
  %v3649 = vadd.f32 %v3370, %v3642
  %v3650 = vxor.u32 %v3646, 2147483648
  %v3651 = vmul.f32 %v3650, 1.442695
  %v3652 = vpow.pop %v3651
  %v3653 = vadd.f32 %v3652, 1.0
  %v3654 = vrcp.pop %v3653
  %v3655 = vmul.f32 1.0, %v3654
  %v3656 = vxor.u32 %v3647, 2147483648
  %v3657 = vmul.f32 %v3656, 1.442695
  %v3658 = vpow.pop %v3657
  %v3659 = vadd.f32 %v3658, 1.0
  %v3660 = vrcp.pop %v3659
  %v3661 = vmul.f32 1.0, %v3660
  %v3662 = vtanh.pop %v3648
  %v3663 = vxor.u32 %v3649, 2147483648
  %v3664 = vmul.f32 %v3663, 1.442695
  %v3665 = vpow.pop %v3664
  %v3666 = vadd.f32 %v3665, 1.0
  %v3667 = vrcp.pop %v3666
  %v3668 = vmul.f32 1.0, %v3667
  %v3669 = vmul.f32 %v3661, %v3052
  %v3670 = vmul.f32 %v3655, %v3662
  %v3671 = vadd.f32 %v3669, %v3670
  %v3672 = vtanh.pop %v3671
  %v3673 = vmul.f32 %v3668, %v3672
  %v3674 = vsel %vm2732, %v3673, %v3051
  %v3675 = vsel %vm2732, %v3671, %v3052
  %v3676 = vsel %vm2732, %v3673, 0.0
  %3677 = vst [vmem:[%s2736 + $0x8] sm:$0xff] %v3676
  %v3678 = vld [vmem:[#allocation2 + $0x140] sm:$0xff]
  %v3679 = vld [vmem:[#allocation2 + $0x148] sm:$0xff]
  %v3680 = vld [vmem:[#allocation2 + $0x150] sm:$0xff]
  %v3681 = vld [vmem:[#allocation2 + $0x158] sm:$0xff]
  %v3682 = vpack.c.bf16 %v3363, %v3363
  %v3683 = vld [vmem:[%s4] sm:$0xff]
  %v3684 = vld [vmem:[%s4 + $0x8] sm:$0xff]
  %v3685 = vld [vmem:[%s4 + $0x10] sm:$0xff]
  %v3686 = vld [vmem:[%s4 + $0x18] sm:$0xff]
  %v3687 = vld [vmem:[%s4 + $0x20] sm:$0xff]
  %v3688 = vld [vmem:[%s4 + $0x28] sm:$0xff]
  %v3689 = vld [vmem:[%s4 + $0x30] sm:$0xff]
  %v3690 = vld [vmem:[%s4 + $0x38] sm:$0xff]
  %v3691 = vld [vmem:[%s4 + $0x40] sm:$0xff]
  %v3692 = vld [vmem:[%s4 + $0x48] sm:$0xff]
  %v3693 = vld [vmem:[%s4 + $0x50] sm:$0xff]
  %v3694 = vld [vmem:[%s4 + $0x58] sm:$0xff]
  %v3695 = vld [vmem:[%s4 + $0x60] sm:$0xff]
  %v3696 = vld [vmem:[%s4 + $0x68] sm:$0xff]
  %v3697 = vld [vmem:[%s4 + $0x70] sm:$0xff]
  %v3698 = vld [vmem:[%s4 + $0x78] sm:$0xff]
  %v3699 = vld [vmem:[%s4 + $0x80] sm:$0xff]
  %v3700 = vld [vmem:[%s4 + $0x88] sm:$0xff]
  %v3701 = vld [vmem:[%s4 + $0x90] sm:$0xff]
  %v3702 = vld [vmem:[%s4 + $0x98] sm:$0xff]
  %v3703 = vld [vmem:[%s4 + $0xa0] sm:$0xff]
  %v3704 = vld [vmem:[%s4 + $0xa8] sm:$0xff]
  %v3705 = vld [vmem:[%s4 + $0xb0] sm:$0xff]
  %v3706 = vld [vmem:[%s4 + $0xb8] sm:$0xff]
  %v3707 = vld [vmem:[%s4 + $0xc0] sm:$0xff]
  %v3708 = vld [vmem:[%s4 + $0xc8] sm:$0xff]
  %v3709 = vld [vmem:[%s4 + $0xd0] sm:$0xff]
  %v3710 = vld [vmem:[%s4 + $0xd8] sm:$0xff]
  %v3711 = vld [vmem:[%s4 + $0xe0] sm:$0xff]
  %v3712 = vld [vmem:[%s4 + $0xe8] sm:$0xff]
  %v3713 = vld [vmem:[%s4 + $0xf0] sm:$0xff]
  %v3714 = vld [vmem:[%s4 + $0xf8] sm:$0xff]
  %v3747 = vunpack.c.l.b16 %v3683
  %v3748 = vunpack.c.h.b16 %v3683
  %v3749 = vunpack.c.l.b16 %v3684
  %v3750 = vunpack.c.h.b16 %v3684
  %v3751 = vunpack.c.l.b16 %v3685
  %v3752 = vunpack.c.h.b16 %v3685
  %v3753 = vunpack.c.l.b16 %v3686
  %v3754 = vunpack.c.h.b16 %v3686
  %v3755 = vunpack.c.l.b16 %v3687
  %v3756 = vunpack.c.h.b16 %v3687
  %v3757 = vunpack.c.l.b16 %v3688
  %v3758 = vunpack.c.h.b16 %v3688
  %v3759 = vunpack.c.l.b16 %v3689
  %v3760 = vunpack.c.h.b16 %v3689
  %v3761 = vunpack.c.l.b16 %v3690
  %v3762 = vunpack.c.h.b16 %v3690
  %v3763 = vunpack.c.l.b16 %v3691
  %v3764 = vunpack.c.h.b16 %v3691
  %v3765 = vunpack.c.l.b16 %v3692
  %v3766 = vunpack.c.h.b16 %v3692
  %v3767 = vunpack.c.l.b16 %v3693
  %v3768 = vunpack.c.h.b16 %v3693
  %v3769 = vunpack.c.l.b16 %v3694
  %v3770 = vunpack.c.h.b16 %v3694
  %v3771 = vunpack.c.l.b16 %v3695
  %v3772 = vunpack.c.h.b16 %v3695
  %v3773 = vunpack.c.l.b16 %v3696
  %v3774 = vunpack.c.h.b16 %v3696
  %v3775 = vunpack.c.l.b16 %v3697
  %v3776 = vunpack.c.h.b16 %v3697
  %v3777 = vunpack.c.l.b16 %v3698
  %v3778 = vunpack.c.h.b16 %v3698
  %v3779 = vunpack.c.l.b16 %v3699
  %v3780 = vunpack.c.h.b16 %v3699
  %v3781 = vunpack.c.l.b16 %v3700
  %v3782 = vunpack.c.h.b16 %v3700
  %v3783 = vunpack.c.l.b16 %v3701
  %v3784 = vunpack.c.h.b16 %v3701
  %v3785 = vunpack.c.l.b16 %v3702
  %v3786 = vunpack.c.h.b16 %v3702
  %v3787 = vunpack.c.l.b16 %v3703
  %v3788 = vunpack.c.h.b16 %v3703
  %v3789 = vunpack.c.l.b16 %v3704
  %v3790 = vunpack.c.h.b16 %v3704
  %v3791 = vunpack.c.l.b16 %v3705
  %v3792 = vunpack.c.h.b16 %v3705
  %v3793 = vunpack.c.l.b16 %v3706
  %v3794 = vunpack.c.h.b16 %v3706
  %v3795 = vunpack.c.l.b16 %v3707
  %v3796 = vunpack.c.h.b16 %v3707
  %v3797 = vunpack.c.l.b16 %v3708
  %v3798 = vunpack.c.h.b16 %v3708
  %v3799 = vunpack.c.l.b16 %v3709
  %v3800 = vunpack.c.h.b16 %v3709
  %v3801 = vunpack.c.l.b16 %v3710
  %v3802 = vunpack.c.h.b16 %v3710
  %v3803 = vunpack.c.l.b16 %v3711
  %v3804 = vunpack.c.h.b16 %v3711
  %v3805 = vunpack.c.l.b16 %v3712
  %v3806 = vunpack.c.h.b16 %v3712
  %v3807 = vunpack.c.l.b16 %v3713
  %v3808 = vunpack.c.h.b16 %v3713
  %v3809 = vunpack.c.l.b16 %v3714
  %v3810 = vunpack.c.h.b16 %v3714
  %v3811 = vpack.c.b16 %v3751, %v3747
  %v3812 = vpack.c.b16 %v3752, %v3748
  %v3813 = vpack.c.b16 %v3753, %v3749
  %v3814 = vpack.c.b16 %v3754, %v3750
  %v3815 = vpack.c.b16 %v3759, %v3755
  %v3816 = vpack.c.b16 %v3760, %v3756
  %v3817 = vpack.c.b16 %v3761, %v3757
  %v3818 = vpack.c.b16 %v3762, %v3758
  %v3819 = vpack.c.b16 %v3767, %v3763
  %v3820 = vpack.c.b16 %v3768, %v3764
  %v3821 = vpack.c.b16 %v3769, %v3765
  %v3822 = vpack.c.b16 %v3770, %v3766
  %v3823 = vpack.c.b16 %v3775, %v3771
  %v3824 = vpack.c.b16 %v3776, %v3772
  %v3825 = vpack.c.b16 %v3777, %v3773
  %v3826 = vpack.c.b16 %v3778, %v3774
  %v3827 = vpack.c.b16 %v3783, %v3779
  %v3828 = vpack.c.b16 %v3784, %v3780
  %v3829 = vpack.c.b16 %v3785, %v3781
  %v3830 = vpack.c.b16 %v3786, %v3782
  %v3831 = vpack.c.b16 %v3791, %v3787
  %v3832 = vpack.c.b16 %v3792, %v3788
  %v3833 = vpack.c.b16 %v3793, %v3789
  %v3834 = vpack.c.b16 %v3794, %v3790
  %v3835 = vpack.c.b16 %v3799, %v3795
  %v3836 = vpack.c.b16 %v3800, %v3796
  %v3837 = vpack.c.b16 %v3801, %v3797
  %v3838 = vpack.c.b16 %v3802, %v3798
  %v3839 = vpack.c.b16 %v3807, %v3803
  %v3840 = vpack.c.b16 %v3808, %v3804
  %v3841 = vpack.c.b16 %v3809, %v3805
  %v3842 = vpack.c.b16 %v3810, %v3806
  %3875 = vmatprep.subr.bf16.mxu0 %v3840
  %3876 = vmatpush1.bf16.msra.mxu0 %v3839
  %3877 = vmatprep.subr.bf16.mxu0 %v3836
  %3878 = vmatpush1.bf16.msra.mxu0 %v3835
  %3879 = vmatprep.subr.bf16.mxu0 %v3832
  %3880 = vmatpush1.bf16.msra.mxu0 %v3831
  %3881 = vmatprep.subr.bf16.mxu0 %v3828
  %3882 = vmatpush1.bf16.msra.mxu0 %v3827
  %3883 = vmatprep.subr.bf16.mxu0 %v3824
  %3884 = vmatpush1.bf16.msra.mxu0 %v3823
  %3885 = vmatprep.subr.bf16.mxu0 %v3820
  %3886 = vmatpush1.bf16.msra.mxu0 %v3819
  %3887 = vmatprep.subr.bf16.mxu0 %v3816
  %3888 = vmatpush1.bf16.msra.mxu0 %v3815
  %3889 = vmatprep.subr.bf16.mxu0 %v3812
  %3890 = vmatpush1.bf16.msra.mxu0 %v3811
  %3891 = vmatprep.subr.bf16.mxu0 0
  %3892 = vmatpush2.bf16.msra.mxu0 0
  %3893 = vmatprep.subr.bf16.mxu0 0
  %3894 = vmatpush2.bf16.msra.mxu0 0
  %3895 = vmatprep.subr.bf16.mxu0 0
  %3896 = vmatpush2.bf16.msra.mxu0 0
  %3897 = vmatprep.subr.bf16.mxu0 0
  %3898 = vmatpush2.bf16.msra.mxu0 0
  %3899 = vmatprep.subr.bf16.mxu0 0
  %3900 = vmatpush2.bf16.msra.mxu0 0
  %3901 = vmatprep.subr.bf16.mxu0 0
  %3902 = vmatpush2.bf16.msra.mxu0 0
  %3903 = vmatprep.subr.bf16.mxu0 0
  %3904 = vmatpush2.bf16.msra.mxu0 0
  %3905 = vmatprep.subr.bf16.mxu0 0
  %3906 = vmatpush2.bf16.msra.mxu0 0
  %3907 = vmatprep.mubr.bf16.mxu0 0
  %3908 = vmatmul.mubr.bf16.gmra.mxu0 %v3682
  %v3909 = vpop.f32.mrf.mxu0
  %v3910 = vadd.f32 0.0, %v3909
  %v3911 = vpop.f32.mrf.mxu0
  %v3912 = vadd.f32 0.0, %v3911
  %v3913 = vpop.f32.mrf.mxu0
  %v3914 = vpop.f32.mrf.mxu0
  %3915 = vdwg.mxu0
  %3916 = vmatprep.subr.bf16.mxu0 %v3842
  %3917 = vmatpush1.bf16.msra.mxu0 %v3841
  %3918 = vmatprep.subr.bf16.mxu0 %v3838
  %3919 = vmatpush1.bf16.msra.mxu0 %v3837
  %3920 = vmatprep.subr.bf16.mxu0 %v3834
  %3921 = vmatpush1.bf16.msra.mxu0 %v3833
  %3922 = vmatprep.subr.bf16.mxu0 %v3830
  %3923 = vmatpush1.bf16.msra.mxu0 %v3829
  %3924 = vmatprep.subr.bf16.mxu0 %v3826
  %3925 = vmatpush1.bf16.msra.mxu0 %v3825
  %3926 = vmatprep.subr.bf16.mxu0 %v3822
  %3927 = vmatpush1.bf16.msra.mxu0 %v3821
  %3928 = vmatprep.subr.bf16.mxu0 %v3818
  %3929 = vmatpush1.bf16.msra.mxu0 %v3817
  %3930 = vmatprep.subr.bf16.mxu0 %v3814
  %3931 = vmatpush1.bf16.msra.mxu0 %v3813
  %3932 = vmatprep.subr.bf16.mxu0 0
  %3933 = vmatpush2.bf16.msra.mxu0 0
  %3934 = vmatprep.subr.bf16.mxu0 0
  %3935 = vmatpush2.bf16.msra.mxu0 0
  %3936 = vmatprep.subr.bf16.mxu0 0
  %3937 = vmatpush2.bf16.msra.mxu0 0
  %3938 = vmatprep.subr.bf16.mxu0 0
  %3939 = vmatpush2.bf16.msra.mxu0 0
  %3940 = vmatprep.subr.bf16.mxu0 0
  %3941 = vmatpush2.bf16.msra.mxu0 0
  %3942 = vmatprep.subr.bf16.mxu0 0
  %3943 = vmatpush2.bf16.msra.mxu0 0
  %3944 = vmatprep.subr.bf16.mxu0 0
  %3945 = vmatpush2.bf16.msra.mxu0 0
  %3946 = vmatprep.subr.bf16.mxu0 0
  %3947 = vmatpush2.bf16.msra.mxu0 0
  %3948 = vmatprep.mubr.bf16.mxu0 0
  %3949 = vmatmul.mubr.bf16.gmra.mxu0 %v3682
  %v3950 = vpop.f32.mrf.mxu0
  %v3951 = vadd.f32 0.0, %v3950
  %v3952 = vpop.f32.mrf.mxu0
  %v3953 = vadd.f32 0.0, %v3952
  %v3954 = vpop.f32.mrf.mxu0
  %v3955 = vpop.f32.mrf.mxu0
  %3956 = vdwg.mxu0
  %v3957 = vadd.f32 %v3678, %v3910
  %v3958 = vadd.f32 %v3679, %v3912
  %v3959 = vadd.f32 %v3680, %v3951
  %v3960 = vadd.f32 %v3681, %v3953
  %v3961 = vxor.u32 %v3957, 2147483648
  %v3962 = vmul.f32 %v3961, 1.442695
  %v3963 = vpow.pop %v3962
  %v3964 = vadd.f32 %v3963, 1.0
  %v3965 = vrcp.pop %v3964
  %v3966 = vmul.f32 1.0, %v3965
  %v3967 = vxor.u32 %v3958, 2147483648
  %v3968 = vmul.f32 %v3967, 1.442695
  %v3969 = vpow.pop %v3968
  %v3970 = vadd.f32 %v3969, 1.0
  %v3971 = vrcp.pop %v3970
  %v3972 = vmul.f32 1.0, %v3971
  %v3973 = vtanh.pop %v3959
  %v3974 = vxor.u32 %v3960, 2147483648
  %v3975 = vmul.f32 %v3974, 1.442695
  %v3976 = vpow.pop %v3975
  %v3977 = vadd.f32 %v3976, 1.0
  %v3978 = vrcp.pop %v3977
  %v3979 = vmul.f32 1.0, %v3978
  %v3980 = vmul.f32 %v3972, %v3364
  %v3981 = vmul.f32 %v3966, %v3973
  %v3982 = vadd.f32 %v3980, %v3981
  %v3983 = vtanh.pop %v3982
  %v3984 = vmul.f32 %v3979, %v3983
  %v3985 = vsel %vm2414, %v3984, %v3363
  %v3986 = vsel %vm2414, %v3982, %v3364
  %v3987 = vsel %vm2414, %v3984, 0.0
  %3988 = vst [vmem:[%s2418] sm:$0xff] %v3987
  %v3989 = vld [vmem:[#allocation2 + $0xa0] sm:$0xff]
  %v3990 = vld [vmem:[#allocation2 + $0xa8] sm:$0xff]
  %v3991 = vld [vmem:[#allocation2 + $0xb0] sm:$0xff]
  %v3992 = vld [vmem:[#allocation2 + $0xb8] sm:$0xff]
  %v3993 = vpack.c.bf16 %v3674, %v3674
  %v3994 = vld [vmem:[%s5] sm:$0xff]
  %v3995 = vld [vmem:[%s5 + $0x8] sm:$0xff]
  %v3996 = vld [vmem:[%s5 + $0x10] sm:$0xff]
  %v3997 = vld [vmem:[%s5 + $0x18] sm:$0xff]
  %v3998 = vld [vmem:[%s5 + $0x20] sm:$0xff]
  %v3999 = vld [vmem:[%s5 + $0x28] sm:$0xff]
  %v4000 = vld [vmem:[%s5 + $0x30] sm:$0xff]
  %v4001 = vld [vmem:[%s5 + $0x38] sm:$0xff]
  %v4002 = vld [vmem:[%s5 + $0x40] sm:$0xff]
  %v4003 = vld [vmem:[%s5 + $0x48] sm:$0xff]
  %v4004 = vld [vmem:[%s5 + $0x50] sm:$0xff]
  %v4005 = vld [vmem:[%s5 + $0x58] sm:$0xff]
  %v4006 = vld [vmem:[%s5 + $0x60] sm:$0xff]
  %v4007 = vld [vmem:[%s5 + $0x68] sm:$0xff]
  %v4008 = vld [vmem:[%s5 + $0x70] sm:$0xff]
  %v4009 = vld [vmem:[%s5 + $0x78] sm:$0xff]
  %v4010 = vld [vmem:[%s5 + $0x80] sm:$0xff]
  %v4011 = vld [vmem:[%s5 + $0x88] sm:$0xff]
  %v4012 = vld [vmem:[%s5 + $0x90] sm:$0xff]
  %v4013 = vld [vmem:[%s5 + $0x98] sm:$0xff]
  %v4014 = vld [vmem:[%s5 + $0xa0] sm:$0xff]
  %v4015 = vld [vmem:[%s5 + $0xa8] sm:$0xff]
  %v4016 = vld [vmem:[%s5 + $0xb0] sm:$0xff]
  %v4017 = vld [vmem:[%s5 + $0xb8] sm:$0xff]
  %v4018 = vld [vmem:[%s5 + $0xc0] sm:$0xff]
  %v4019 = vld [vmem:[%s5 + $0xc8] sm:$0xff]
  %v4020 = vld [vmem:[%s5 + $0xd0] sm:$0xff]
  %v4021 = vld [vmem:[%s5 + $0xd8] sm:$0xff]
  %v4022 = vld [vmem:[%s5 + $0xe0] sm:$0xff]
  %v4023 = vld [vmem:[%s5 + $0xe8] sm:$0xff]
  %v4024 = vld [vmem:[%s5 + $0xf0] sm:$0xff]
  %v4025 = vld [vmem:[%s5 + $0xf8] sm:$0xff]
  %v4058 = vunpack.c.l.b16 %v3994
  %v4059 = vunpack.c.h.b16 %v3994
  %v4060 = vunpack.c.l.b16 %v3995
  %v4061 = vunpack.c.h.b16 %v3995
  %v4062 = vunpack.c.l.b16 %v3996
  %v4063 = vunpack.c.h.b16 %v3996
  %v4064 = vunpack.c.l.b16 %v3997
  %v4065 = vunpack.c.h.b16 %v3997
  %v4066 = vunpack.c.l.b16 %v3998
  %v4067 = vunpack.c.h.b16 %v3998
  %v4068 = vunpack.c.l.b16 %v3999
  %v4069 = vunpack.c.h.b16 %v3999
  %v4070 = vunpack.c.l.b16 %v4000
  %v4071 = vunpack.c.h.b16 %v4000
  %v4072 = vunpack.c.l.b16 %v4001
  %v4073 = vunpack.c.h.b16 %v4001
  %v4074 = vunpack.c.l.b16 %v4002
  %v4075 = vunpack.c.h.b16 %v4002
  %v4076 = vunpack.c.l.b16 %v4003
  %v4077 = vunpack.c.h.b16 %v4003
  %v4078 = vunpack.c.l.b16 %v4004
  %v4079 = vunpack.c.h.b16 %v4004
  %v4080 = vunpack.c.l.b16 %v4005
  %v4081 = vunpack.c.h.b16 %v4005
  %v4082 = vunpack.c.l.b16 %v4006
  %v4083 = vunpack.c.h.b16 %v4006
  %v4084 = vunpack.c.l.b16 %v4007
  %v4085 = vunpack.c.h.b16 %v4007
  %v4086 = vunpack.c.l.b16 %v4008
  %v4087 = vunpack.c.h.b16 %v4008
  %v4088 = vunpack.c.l.b16 %v4009
  %v4089 = vunpack.c.h.b16 %v4009
  %v4090 = vunpack.c.l.b16 %v4010
  %v4091 = vunpack.c.h.b16 %v4010
  %v4092 = vunpack.c.l.b16 %v4011
  %v4093 = vunpack.c.h.b16 %v4011
  %v4094 = vunpack.c.l.b16 %v4012
  %v4095 = vunpack.c.h.b16 %v4012
  %v4096 = vunpack.c.l.b16 %v4013
  %v4097 = vunpack.c.h.b16 %v4013
  %v4098 = vunpack.c.l.b16 %v4014
  %v4099 = vunpack.c.h.b16 %v4014
  %v4100 = vunpack.c.l.b16 %v4015
  %v4101 = vunpack.c.h.b16 %v4015
  %v4102 = vunpack.c.l.b16 %v4016
  %v4103 = vunpack.c.h.b16 %v4016
  %v4104 = vunpack.c.l.b16 %v4017
  %v4105 = vunpack.c.h.b16 %v4017
  %v4106 = vunpack.c.l.b16 %v4018
  %v4107 = vunpack.c.h.b16 %v4018
  %v4108 = vunpack.c.l.b16 %v4019
  %v4109 = vunpack.c.h.b16 %v4019
  %v4110 = vunpack.c.l.b16 %v4020
  %v4111 = vunpack.c.h.b16 %v4020
  %v4112 = vunpack.c.l.b16 %v4021
  %v4113 = vunpack.c.h.b16 %v4021
  %v4114 = vunpack.c.l.b16 %v4022
  %v4115 = vunpack.c.h.b16 %v4022
  %v4116 = vunpack.c.l.b16 %v4023
  %v4117 = vunpack.c.h.b16 %v4023
  %v4118 = vunpack.c.l.b16 %v4024
  %v4119 = vunpack.c.h.b16 %v4024
  %v4120 = vunpack.c.l.b16 %v4025
  %v4121 = vunpack.c.h.b16 %v4025
  %v4122 = vpack.c.b16 %v4062, %v4058
  %v4123 = vpack.c.b16 %v4063, %v4059
  %v4124 = vpack.c.b16 %v4064, %v4060
  %v4125 = vpack.c.b16 %v4065, %v4061
  %v4126 = vpack.c.b16 %v4070, %v4066
  %v4127 = vpack.c.b16 %v4071, %v4067
  %v4128 = vpack.c.b16 %v4072, %v4068
  %v4129 = vpack.c.b16 %v4073, %v4069
  %v4130 = vpack.c.b16 %v4078, %v4074
  %v4131 = vpack.c.b16 %v4079, %v4075
  %v4132 = vpack.c.b16 %v4080, %v4076
  %v4133 = vpack.c.b16 %v4081, %v4077
  %v4134 = vpack.c.b16 %v4086, %v4082
  %v4135 = vpack.c.b16 %v4087, %v4083
  %v4136 = vpack.c.b16 %v4088, %v4084
  %v4137 = vpack.c.b16 %v4089, %v4085
  %v4138 = vpack.c.b16 %v4094, %v4090
  %v4139 = vpack.c.b16 %v4095, %v4091
  %v4140 = vpack.c.b16 %v4096, %v4092
  %v4141 = vpack.c.b16 %v4097, %v4093
  %v4142 = vpack.c.b16 %v4102, %v4098
  %v4143 = vpack.c.b16 %v4103, %v4099
  %v4144 = vpack.c.b16 %v4104, %v4100
  %v4145 = vpack.c.b16 %v4105, %v4101
  %v4146 = vpack.c.b16 %v4110, %v4106
  %v4147 = vpack.c.b16 %v4111, %v4107
  %v4148 = vpack.c.b16 %v4112, %v4108
  %v4149 = vpack.c.b16 %v4113, %v4109
  %v4150 = vpack.c.b16 %v4118, %v4114
  %v4151 = vpack.c.b16 %v4119, %v4115
  %v4152 = vpack.c.b16 %v4120, %v4116
  %v4153 = vpack.c.b16 %v4121, %v4117
  %4186 = vmatprep.subr.bf16.mxu0 %v4151
  %4187 = vmatpush1.bf16.msra.mxu0 %v4150
  %4188 = vmatprep.subr.bf16.mxu0 %v4147
  %4189 = vmatpush1.bf16.msra.mxu0 %v4146
  %4190 = vmatprep.subr.bf16.mxu0 %v4143
  %4191 = vmatpush1.bf16.msra.mxu0 %v4142
  %4192 = vmatprep.subr.bf16.mxu0 %v4139
  %4193 = vmatpush1.bf16.msra.mxu0 %v4138
  %4194 = vmatprep.subr.bf16.mxu0 %v4135
  %4195 = vmatpush1.bf16.msra.mxu0 %v4134
  %4196 = vmatprep.subr.bf16.mxu0 %v4131
  %4197 = vmatpush1.bf16.msra.mxu0 %v4130
  %4198 = vmatprep.subr.bf16.mxu0 %v4127
  %4199 = vmatpush1.bf16.msra.mxu0 %v4126
  %4200 = vmatprep.subr.bf16.mxu0 %v4123
  %4201 = vmatpush1.bf16.msra.mxu0 %v4122
  %4202 = vmatprep.subr.bf16.mxu0 0
  %4203 = vmatpush2.bf16.msra.mxu0 0
  %4204 = vmatprep.subr.bf16.mxu0 0
  %4205 = vmatpush2.bf16.msra.mxu0 0
  %4206 = vmatprep.subr.bf16.mxu0 0
  %4207 = vmatpush2.bf16.msra.mxu0 0
  %4208 = vmatprep.subr.bf16.mxu0 0
  %4209 = vmatpush2.bf16.msra.mxu0 0
  %4210 = vmatprep.subr.bf16.mxu0 0
  %4211 = vmatpush2.bf16.msra.mxu0 0
  %4212 = vmatprep.subr.bf16.mxu0 0
  %4213 = vmatpush2.bf16.msra.mxu0 0
  %4214 = vmatprep.subr.bf16.mxu0 0
  %4215 = vmatpush2.bf16.msra.mxu0 0
  %4216 = vmatprep.subr.bf16.mxu0 0
  %4217 = vmatpush2.bf16.msra.mxu0 0
  %4218 = vmatprep.mubr.bf16.mxu0 0
  %4219 = vmatmul.mubr.bf16.gmra.mxu0 %v3993
  %v4220 = vpop.f32.mrf.mxu0
  %v4221 = vadd.f32 0.0, %v4220
  %v4222 = vpop.f32.mrf.mxu0
  %v4223 = vadd.f32 0.0, %v4222
  %v4224 = vpop.f32.mrf.mxu0
  %v4225 = vpop.f32.mrf.mxu0
  %4226 = vdwg.mxu0
  %4227 = vmatprep.subr.bf16.mxu0 %v4153
  %4228 = vmatpush1.bf16.msra.mxu0 %v4152
  %4229 = vmatprep.subr.bf16.mxu0 %v4149
  %4230 = vmatpush1.bf16.msra.mxu0 %v4148
  %4231 = vmatprep.subr.bf16.mxu0 %v4145
  %4232 = vmatpush1.bf16.msra.mxu0 %v4144
  %4233 = vmatprep.subr.bf16.mxu0 %v4141
  %4234 = vmatpush1.bf16.msra.mxu0 %v4140
  %4235 = vmatprep.subr.bf16.mxu0 %v4137
  %4236 = vmatpush1.bf16.msra.mxu0 %v4136
  %4237 = vmatprep.subr.bf16.mxu0 %v4133
  %4238 = vmatpush1.bf16.msra.mxu0 %v4132
  %4239 = vmatprep.subr.bf16.mxu0 %v4129
  %4240 = vmatpush1.bf16.msra.mxu0 %v4128
  %4241 = vmatprep.subr.bf16.mxu0 %v4125
  %4242 = vmatpush1.bf16.msra.mxu0 %v4124
  %4243 = vmatprep.subr.bf16.mxu0 0
  %4244 = vmatpush2.bf16.msra.mxu0 0
  %4245 = vmatprep.subr.bf16.mxu0 0
  %4246 = vmatpush2.bf16.msra.mxu0 0
  %4247 = vmatprep.subr.bf16.mxu0 0
  %4248 = vmatpush2.bf16.msra.mxu0 0
  %4249 = vmatprep.subr.bf16.mxu0 0
  %4250 = vmatpush2.bf16.msra.mxu0 0
  %4251 = vmatprep.subr.bf16.mxu0 0
  %4252 = vmatpush2.bf16.msra.mxu0 0
  %4253 = vmatprep.subr.bf16.mxu0 0
  %4254 = vmatpush2.bf16.msra.mxu0 0
  %4255 = vmatprep.subr.bf16.mxu0 0
  %4256 = vmatpush2.bf16.msra.mxu0 0
  %4257 = vmatprep.subr.bf16.mxu0 0
  %4258 = vmatpush2.bf16.msra.mxu0 0
  %4259 = vmatprep.mubr.bf16.mxu0 0
  %4260 = vmatmul.mubr.bf16.gmra.mxu0 %v3993
  %v4261 = vpop.f32.mrf.mxu0
  %v4262 = vadd.f32 0.0, %v4261
  %v4263 = vpop.f32.mrf.mxu0
  %v4264 = vadd.f32 0.0, %v4263
  %v4265 = vpop.f32.mrf.mxu0
  %v4266 = vpop.f32.mrf.mxu0
  %4267 = vdwg.mxu0
  %v4268 = vadd.f32 %v3989, %v4221
  %v4269 = vadd.f32 %v3990, %v4223
  %v4270 = vadd.f32 %v3991, %v4262
  %v4271 = vadd.f32 %v3992, %v4264
  %v4272 = vxor.u32 %v4268, 2147483648
  %v4273 = vmul.f32 %v4272, 1.442695
  %v4274 = vpow.pop %v4273
  %v4275 = vadd.f32 %v4274, 1.0
  %v4276 = vrcp.pop %v4275
  %v4277 = vmul.f32 1.0, %v4276
  %v4278 = vxor.u32 %v4269, 2147483648
  %v4279 = vmul.f32 %v4278, 1.442695
  %v4280 = vpow.pop %v4279
  %v4281 = vadd.f32 %v4280, 1.0
  %v4282 = vrcp.pop %v4281
  %v4283 = vmul.f32 1.0, %v4282
  %v4284 = vtanh.pop %v4270
  %v4285 = vxor.u32 %v4271, 2147483648
  %v4286 = vmul.f32 %v4285, 1.442695
  %v4287 = vpow.pop %v4286
  %v4288 = vadd.f32 %v4287, 1.0
  %v4289 = vrcp.pop %v4288
  %v4290 = vmul.f32 1.0, %v4289
  %v4291 = vmul.f32 %v4283, %v3675
  %v4292 = vmul.f32 %v4277, %v4284
  %v4293 = vadd.f32 %v4291, %v4292
  %v4294 = vtanh.pop %v4293
  %v4295 = vmul.f32 %v4290, %v4294
  %v4296 = vsel %vm2096, %v4295, %v3674
  %v4297 = vsel %vm2096, %v4293, %v3675
  %v4298 = vsel %vm2096, %v4295, 0.0
  %4299 = vst [vmem:[%s2100 + $0x8] sm:$0xff] %v4298
  %v4300 = vld [vmem:[#allocation2 + $0x180] sm:$0xff]
  %v4301 = vld [vmem:[#allocation2 + $0x188] sm:$0xff]
  %v4302 = vld [vmem:[#allocation2 + $0x190] sm:$0xff]
  %v4303 = vld [vmem:[#allocation2 + $0x198] sm:$0xff]
  %v4304 = vpack.c.bf16 %v3985, %v3985
  %v4305 = vld [vmem:[%s4] sm:$0xff]
  %v4306 = vld [vmem:[%s4 + $0x8] sm:$0xff]
  %v4307 = vld [vmem:[%s4 + $0x10] sm:$0xff]
  %v4308 = vld [vmem:[%s4 + $0x18] sm:$0xff]
  %v4309 = vld [vmem:[%s4 + $0x20] sm:$0xff]
  %v4310 = vld [vmem:[%s4 + $0x28] sm:$0xff]
  %v4311 = vld [vmem:[%s4 + $0x30] sm:$0xff]
  %v4312 = vld [vmem:[%s4 + $0x38] sm:$0xff]
  %v4313 = vld [vmem:[%s4 + $0x40] sm:$0xff]
  %v4314 = vld [vmem:[%s4 + $0x48] sm:$0xff]
  %v4315 = vld [vmem:[%s4 + $0x50] sm:$0xff]
  %v4316 = vld [vmem:[%s4 + $0x58] sm:$0xff]
  %v4317 = vld [vmem:[%s4 + $0x60] sm:$0xff]
  %v4318 = vld [vmem:[%s4 + $0x68] sm:$0xff]
  %v4319 = vld [vmem:[%s4 + $0x70] sm:$0xff]
  %v4320 = vld [vmem:[%s4 + $0x78] sm:$0xff]
  %v4321 = vld [vmem:[%s4 + $0x80] sm:$0xff]
  %v4322 = vld [vmem:[%s4 + $0x88] sm:$0xff]
  %v4323 = vld [vmem:[%s4 + $0x90] sm:$0xff]
  %v4324 = vld [vmem:[%s4 + $0x98] sm:$0xff]
  %v4325 = vld [vmem:[%s4 + $0xa0] sm:$0xff]
  %v4326 = vld [vmem:[%s4 + $0xa8] sm:$0xff]
  %v4327 = vld [vmem:[%s4 + $0xb0] sm:$0xff]
  %v4328 = vld [vmem:[%s4 + $0xb8] sm:$0xff]
  %v4329 = vld [vmem:[%s4 + $0xc0] sm:$0xff]
  %v4330 = vld [vmem:[%s4 + $0xc8] sm:$0xff]
  %v4331 = vld [vmem:[%s4 + $0xd0] sm:$0xff]
  %v4332 = vld [vmem:[%s4 + $0xd8] sm:$0xff]
  %v4333 = vld [vmem:[%s4 + $0xe0] sm:$0xff]
  %v4334 = vld [vmem:[%s4 + $0xe8] sm:$0xff]
  %v4335 = vld [vmem:[%s4 + $0xf0] sm:$0xff]
  %v4336 = vld [vmem:[%s4 + $0xf8] sm:$0xff]
  %v4369 = vunpack.c.l.b16 %v4305
  %v4370 = vunpack.c.h.b16 %v4305
  %v4371 = vunpack.c.l.b16 %v4306
  %v4372 = vunpack.c.h.b16 %v4306
  %v4373 = vunpack.c.l.b16 %v4307
  %v4374 = vunpack.c.h.b16 %v4307
  %v4375 = vunpack.c.l.b16 %v4308
  %v4376 = vunpack.c.h.b16 %v4308
  %v4377 = vunpack.c.l.b16 %v4309
  %v4378 = vunpack.c.h.b16 %v4309
  %v4379 = vunpack.c.l.b16 %v4310
  %v4380 = vunpack.c.h.b16 %v4310
  %v4381 = vunpack.c.l.b16 %v4311
  %v4382 = vunpack.c.h.b16 %v4311
  %v4383 = vunpack.c.l.b16 %v4312
  %v4384 = vunpack.c.h.b16 %v4312
  %v4385 = vunpack.c.l.b16 %v4313
  %v4386 = vunpack.c.h.b16 %v4313
  %v4387 = vunpack.c.l.b16 %v4314
  %v4388 = vunpack.c.h.b16 %v4314
  %v4389 = vunpack.c.l.b16 %v4315
  %v4390 = vunpack.c.h.b16 %v4315
  %v4391 = vunpack.c.l.b16 %v4316
  %v4392 = vunpack.c.h.b16 %v4316
  %v4393 = vunpack.c.l.b16 %v4317
  %v4394 = vunpack.c.h.b16 %v4317
  %v4395 = vunpack.c.l.b16 %v4318
  %v4396 = vunpack.c.h.b16 %v4318
  %v4397 = vunpack.c.l.b16 %v4319
  %v4398 = vunpack.c.h.b16 %v4319
  %v4399 = vunpack.c.l.b16 %v4320
  %v4400 = vunpack.c.h.b16 %v4320
  %v4401 = vunpack.c.l.b16 %v4321
  %v4402 = vunpack.c.h.b16 %v4321
  %v4403 = vunpack.c.l.b16 %v4322
  %v4404 = vunpack.c.h.b16 %v4322
  %v4405 = vunpack.c.l.b16 %v4323
  %v4406 = vunpack.c.h.b16 %v4323
  %v4407 = vunpack.c.l.b16 %v4324
  %v4408 = vunpack.c.h.b16 %v4324
  %v4409 = vunpack.c.l.b16 %v4325
  %v4410 = vunpack.c.h.b16 %v4325
  %v4411 = vunpack.c.l.b16 %v4326
  %v4412 = vunpack.c.h.b16 %v4326
  %v4413 = vunpack.c.l.b16 %v4327
  %v4414 = vunpack.c.h.b16 %v4327
  %v4415 = vunpack.c.l.b16 %v4328
  %v4416 = vunpack.c.h.b16 %v4328
  %v4417 = vunpack.c.l.b16 %v4329
  %v4418 = vunpack.c.h.b16 %v4329
  %v4419 = vunpack.c.l.b16 %v4330
  %v4420 = vunpack.c.h.b16 %v4330
  %v4421 = vunpack.c.l.b16 %v4331
  %v4422 = vunpack.c.h.b16 %v4331
  %v4423 = vunpack.c.l.b16 %v4332
  %v4424 = vunpack.c.h.b16 %v4332
  %v4425 = vunpack.c.l.b16 %v4333
  %v4426 = vunpack.c.h.b16 %v4333
  %v4427 = vunpack.c.l.b16 %v4334
  %v4428 = vunpack.c.h.b16 %v4334
  %v4429 = vunpack.c.l.b16 %v4335
  %v4430 = vunpack.c.h.b16 %v4335
  %v4431 = vunpack.c.l.b16 %v4336
  %v4432 = vunpack.c.h.b16 %v4336
  %v4433 = vpack.c.b16 %v4373, %v4369
  %v4434 = vpack.c.b16 %v4374, %v4370
  %v4435 = vpack.c.b16 %v4375, %v4371
  %v4436 = vpack.c.b16 %v4376, %v4372
  %v4437 = vpack.c.b16 %v4381, %v4377
  %v4438 = vpack.c.b16 %v4382, %v4378
  %v4439 = vpack.c.b16 %v4383, %v4379
  %v4440 = vpack.c.b16 %v4384, %v4380
  %v4441 = vpack.c.b16 %v4389, %v4385
  %v4442 = vpack.c.b16 %v4390, %v4386
  %v4443 = vpack.c.b16 %v4391, %v4387
  %v4444 = vpack.c.b16 %v4392, %v4388
  %v4445 = vpack.c.b16 %v4397, %v4393
  %v4446 = vpack.c.b16 %v4398, %v4394
  %v4447 = vpack.c.b16 %v4399, %v4395
  %v4448 = vpack.c.b16 %v4400, %v4396
  %v4449 = vpack.c.b16 %v4405, %v4401
  %v4450 = vpack.c.b16 %v4406, %v4402
  %v4451 = vpack.c.b16 %v4407, %v4403
  %v4452 = vpack.c.b16 %v4408, %v4404
  %v4453 = vpack.c.b16 %v4413, %v4409
  %v4454 = vpack.c.b16 %v4414, %v4410
  %v4455 = vpack.c.b16 %v4415, %v4411
  %v4456 = vpack.c.b16 %v4416, %v4412
  %v4457 = vpack.c.b16 %v4421, %v4417
  %v4458 = vpack.c.b16 %v4422, %v4418
  %v4459 = vpack.c.b16 %v4423, %v4419
  %v4460 = vpack.c.b16 %v4424, %v4420
  %v4461 = vpack.c.b16 %v4429, %v4425
  %v4462 = vpack.c.b16 %v4430, %v4426
  %v4463 = vpack.c.b16 %v4431, %v4427
  %v4464 = vpack.c.b16 %v4432, %v4428
  %4497 = vmatprep.subr.bf16.mxu0 %v4462
  %4498 = vmatpush1.bf16.msra.mxu0 %v4461
  %4499 = vmatprep.subr.bf16.mxu0 %v4458
  %4500 = vmatpush1.bf16.msra.mxu0 %v4457
  %4501 = vmatprep.subr.bf16.mxu0 %v4454
  %4502 = vmatpush1.bf16.msra.mxu0 %v4453
  %4503 = vmatprep.subr.bf16.mxu0 %v4450
  %4504 = vmatpush1.bf16.msra.mxu0 %v4449
  %4505 = vmatprep.subr.bf16.mxu0 %v4446
  %4506 = vmatpush1.bf16.msra.mxu0 %v4445
  %4507 = vmatprep.subr.bf16.mxu0 %v4442
  %4508 = vmatpush1.bf16.msra.mxu0 %v4441
  %4509 = vmatprep.subr.bf16.mxu0 %v4438
  %4510 = vmatpush1.bf16.msra.mxu0 %v4437
  %4511 = vmatprep.subr.bf16.mxu0 %v4434
  %4512 = vmatpush1.bf16.msra.mxu0 %v4433
  %4513 = vmatprep.subr.bf16.mxu0 0
  %4514 = vmatpush2.bf16.msra.mxu0 0
  %4515 = vmatprep.subr.bf16.mxu0 0
  %4516 = vmatpush2.bf16.msra.mxu0 0
  %4517 = vmatprep.subr.bf16.mxu0 0
  %4518 = vmatpush2.bf16.msra.mxu0 0
  %4519 = vmatprep.subr.bf16.mxu0 0
  %4520 = vmatpush2.bf16.msra.mxu0 0
  %4521 = vmatprep.subr.bf16.mxu0 0
  %4522 = vmatpush2.bf16.msra.mxu0 0
  %4523 = vmatprep.subr.bf16.mxu0 0
  %4524 = vmatpush2.bf16.msra.mxu0 0
  %4525 = vmatprep.subr.bf16.mxu0 0
  %4526 = vmatpush2.bf16.msra.mxu0 0
  %4527 = vmatprep.subr.bf16.mxu0 0
  %4528 = vmatpush2.bf16.msra.mxu0 0
  %4529 = vmatprep.mubr.bf16.mxu0 0
  %4530 = vmatmul.mubr.bf16.gmra.mxu0 %v4304
  %v4531 = vpop.f32.mrf.mxu0
  %v4532 = vadd.f32 0.0, %v4531
  %v4533 = vpop.f32.mrf.mxu0
  %v4534 = vadd.f32 0.0, %v4533
  %v4535 = vpop.f32.mrf.mxu0
  %v4536 = vpop.f32.mrf.mxu0
  %4537 = vdwg.mxu0
  %4538 = vmatprep.subr.bf16.mxu0 %v4464
  %4539 = vmatpush1.bf16.msra.mxu0 %v4463
  %4540 = vmatprep.subr.bf16.mxu0 %v4460
  %4541 = vmatpush1.bf16.msra.mxu0 %v4459
  %4542 = vmatprep.subr.bf16.mxu0 %v4456
  %4543 = vmatpush1.bf16.msra.mxu0 %v4455
  %4544 = vmatprep.subr.bf16.mxu0 %v4452
  %4545 = vmatpush1.bf16.msra.mxu0 %v4451
  %4546 = vmatprep.subr.bf16.mxu0 %v4448
  %4547 = vmatpush1.bf16.msra.mxu0 %v4447
  %4548 = vmatprep.subr.bf16.mxu0 %v4444
  %4549 = vmatpush1.bf16.msra.mxu0 %v4443
  %4550 = vmatprep.subr.bf16.mxu0 %v4440
  %4551 = vmatpush1.bf16.msra.mxu0 %v4439
  %4552 = vmatprep.subr.bf16.mxu0 %v4436
  %4553 = vmatpush1.bf16.msra.mxu0 %v4435
  %4554 = vmatprep.subr.bf16.mxu0 0
  %4555 = vmatpush2.bf16.msra.mxu0 0
  %4556 = vmatprep.subr.bf16.mxu0 0
  %4557 = vmatpush2.bf16.msra.mxu0 0
  %4558 = vmatprep.subr.bf16.mxu0 0
  %4559 = vmatpush2.bf16.msra.mxu0 0
  %4560 = vmatprep.subr.bf16.mxu0 0
  %4561 = vmatpush2.bf16.msra.mxu0 0
  %4562 = vmatprep.subr.bf16.mxu0 0
  %4563 = vmatpush2.bf16.msra.mxu0 0
  %4564 = vmatprep.subr.bf16.mxu0 0
  %4565 = vmatpush2.bf16.msra.mxu0 0
  %4566 = vmatprep.subr.bf16.mxu0 0
  %4567 = vmatpush2.bf16.msra.mxu0 0
  %4568 = vmatprep.subr.bf16.mxu0 0
  %4569 = vmatpush2.bf16.msra.mxu0 0
  %4570 = vmatprep.mubr.bf16.mxu0 0
  %4571 = vmatmul.mubr.bf16.gmra.mxu0 %v4304
  %v4572 = vpop.f32.mrf.mxu0
  %v4573 = vadd.f32 0.0, %v4572
  %v4574 = vpop.f32.mrf.mxu0
  %v4575 = vadd.f32 0.0, %v4574
  %v4576 = vpop.f32.mrf.mxu0
  %v4577 = vpop.f32.mrf.mxu0
  %4578 = vdwg.mxu0
  %v4579 = vadd.f32 %v4300, %v4532
  %v4580 = vadd.f32 %v4301, %v4534
  %v4581 = vadd.f32 %v4302, %v4573
  %v4582 = vadd.f32 %v4303, %v4575
  %v4583 = vxor.u32 %v4579, 2147483648
  %v4584 = vmul.f32 %v4583, 1.442695
  %v4585 = vpow.pop %v4584
  %v4586 = vadd.f32 %v4585, 1.0
  %v4587 = vrcp.pop %v4586
  %v4588 = vmul.f32 1.0, %v4587
  %v4589 = vxor.u32 %v4580, 2147483648
  %v4590 = vmul.f32 %v4589, 1.442695
  %v4591 = vpow.pop %v4590
  %v4592 = vadd.f32 %v4591, 1.0
  %v4593 = vrcp.pop %v4592
  %v4594 = vmul.f32 1.0, %v4593
  %v4595 = vtanh.pop %v4581
  %v4596 = vxor.u32 %v4582, 2147483648
  %v4597 = vmul.f32 %v4596, 1.442695
  %v4598 = vpow.pop %v4597
  %v4599 = vadd.f32 %v4598, 1.0
  %v4600 = vrcp.pop %v4599
  %v4601 = vmul.f32 1.0, %v4600
  %v4602 = vmul.f32 %v4594, %v3986
  %v4603 = vmul.f32 %v4588, %v4595
  %v4604 = vadd.f32 %v4602, %v4603
  %v4605 = vtanh.pop %v4604
  %v4606 = vmul.f32 %v4601, %v4605
  %v4607 = vsel %vm1778, %v4606, %v3985
  %v4608 = vsel %vm1778, %v4604, %v3986
  %v4609 = vsel %vm1778, %v4606, 0.0
  %4610 = vst [vmem:[%s1782] sm:$0xff] %v4609
  %v4611 = vld [vmem:[#allocation2 + $0x60] sm:$0xff]
  %v4612 = vld [vmem:[#allocation2 + $0x68] sm:$0xff]
  %v4613 = vld [vmem:[#allocation2 + $0x70] sm:$0xff]
  %v4614 = vld [vmem:[#allocation2 + $0x78] sm:$0xff]
  %v4615 = vpack.c.bf16 %v4296, %v4296
  %v4616 = vld [vmem:[%s5] sm:$0xff]
  %v4617 = vld [vmem:[%s5 + $0x8] sm:$0xff]
  %v4618 = vld [vmem:[%s5 + $0x10] sm:$0xff]
  %v4619 = vld [vmem:[%s5 + $0x18] sm:$0xff]
  %v4620 = vld [vmem:[%s5 + $0x20] sm:$0xff]
  %v4621 = vld [vmem:[%s5 + $0x28] sm:$0xff]
  %v4622 = vld [vmem:[%s5 + $0x30] sm:$0xff]
  %v4623 = vld [vmem:[%s5 + $0x38] sm:$0xff]
  %v4624 = vld [vmem:[%s5 + $0x40] sm:$0xff]
  %v4625 = vld [vmem:[%s5 + $0x48] sm:$0xff]
  %v4626 = vld [vmem:[%s5 + $0x50] sm:$0xff]
  %v4627 = vld [vmem:[%s5 + $0x58] sm:$0xff]
  %v4628 = vld [vmem:[%s5 + $0x60] sm:$0xff]
  %v4629 = vld [vmem:[%s5 + $0x68] sm:$0xff]
  %v4630 = vld [vmem:[%s5 + $0x70] sm:$0xff]
  %v4631 = vld [vmem:[%s5 + $0x78] sm:$0xff]
  %v4632 = vld [vmem:[%s5 + $0x80] sm:$0xff]
  %v4633 = vld [vmem:[%s5 + $0x88] sm:$0xff]
  %v4634 = vld [vmem:[%s5 + $0x90] sm:$0xff]
  %v4635 = vld [vmem:[%s5 + $0x98] sm:$0xff]
  %v4636 = vld [vmem:[%s5 + $0xa0] sm:$0xff]
  %v4637 = vld [vmem:[%s5 + $0xa8] sm:$0xff]
  %v4638 = vld [vmem:[%s5 + $0xb0] sm:$0xff]
  %v4639 = vld [vmem:[%s5 + $0xb8] sm:$0xff]
  %v4640 = vld [vmem:[%s5 + $0xc0] sm:$0xff]
  %v4641 = vld [vmem:[%s5 + $0xc8] sm:$0xff]
  %v4642 = vld [vmem:[%s5 + $0xd0] sm:$0xff]
  %v4643 = vld [vmem:[%s5 + $0xd8] sm:$0xff]
  %v4644 = vld [vmem:[%s5 + $0xe0] sm:$0xff]
  %v4645 = vld [vmem:[%s5 + $0xe8] sm:$0xff]
  %v4646 = vld [vmem:[%s5 + $0xf0] sm:$0xff]
  %v4647 = vld [vmem:[%s5 + $0xf8] sm:$0xff]
  %v4680 = vunpack.c.l.b16 %v4616
  %v4681 = vunpack.c.h.b16 %v4616
  %v4682 = vunpack.c.l.b16 %v4617
  %v4683 = vunpack.c.h.b16 %v4617
  %v4684 = vunpack.c.l.b16 %v4618
  %v4685 = vunpack.c.h.b16 %v4618
  %v4686 = vunpack.c.l.b16 %v4619
  %v4687 = vunpack.c.h.b16 %v4619
  %v4688 = vunpack.c.l.b16 %v4620
  %v4689 = vunpack.c.h.b16 %v4620
  %v4690 = vunpack.c.l.b16 %v4621
  %v4691 = vunpack.c.h.b16 %v4621
  %v4692 = vunpack.c.l.b16 %v4622
  %v4693 = vunpack.c.h.b16 %v4622
  %v4694 = vunpack.c.l.b16 %v4623
  %v4695 = vunpack.c.h.b16 %v4623
  %v4696 = vunpack.c.l.b16 %v4624
  %v4697 = vunpack.c.h.b16 %v4624
  %v4698 = vunpack.c.l.b16 %v4625
  %v4699 = vunpack.c.h.b16 %v4625
  %v4700 = vunpack.c.l.b16 %v4626
  %v4701 = vunpack.c.h.b16 %v4626
  %v4702 = vunpack.c.l.b16 %v4627
  %v4703 = vunpack.c.h.b16 %v4627
  %v4704 = vunpack.c.l.b16 %v4628
  %v4705 = vunpack.c.h.b16 %v4628
  %v4706 = vunpack.c.l.b16 %v4629
  %v4707 = vunpack.c.h.b16 %v4629
  %v4708 = vunpack.c.l.b16 %v4630
  %v4709 = vunpack.c.h.b16 %v4630
  %v4710 = vunpack.c.l.b16 %v4631
  %v4711 = vunpack.c.h.b16 %v4631
  %v4712 = vunpack.c.l.b16 %v4632
  %v4713 = vunpack.c.h.b16 %v4632
  %v4714 = vunpack.c.l.b16 %v4633
  %v4715 = vunpack.c.h.b16 %v4633
  %v4716 = vunpack.c.l.b16 %v4634
  %v4717 = vunpack.c.h.b16 %v4634
  %v4718 = vunpack.c.l.b16 %v4635
  %v4719 = vunpack.c.h.b16 %v4635
  %v4720 = vunpack.c.l.b16 %v4636
  %v4721 = vunpack.c.h.b16 %v4636
  %v4722 = vunpack.c.l.b16 %v4637
  %v4723 = vunpack.c.h.b16 %v4637
  %v4724 = vunpack.c.l.b16 %v4638
  %v4725 = vunpack.c.h.b16 %v4638
  %v4726 = vunpack.c.l.b16 %v4639
  %v4727 = vunpack.c.h.b16 %v4639
  %v4728 = vunpack.c.l.b16 %v4640
  %v4729 = vunpack.c.h.b16 %v4640
  %v4730 = vunpack.c.l.b16 %v4641
  %v4731 = vunpack.c.h.b16 %v4641
  %v4732 = vunpack.c.l.b16 %v4642
  %v4733 = vunpack.c.h.b16 %v4642
  %v4734 = vunpack.c.l.b16 %v4643
  %v4735 = vunpack.c.h.b16 %v4643
  %v4736 = vunpack.c.l.b16 %v4644
  %v4737 = vunpack.c.h.b16 %v4644
  %v4738 = vunpack.c.l.b16 %v4645
  %v4739 = vunpack.c.h.b16 %v4645
  %v4740 = vunpack.c.l.b16 %v4646
  %v4741 = vunpack.c.h.b16 %v4646
  %v4742 = vunpack.c.l.b16 %v4647
  %v4743 = vunpack.c.h.b16 %v4647
  %v4744 = vpack.c.b16 %v4684, %v4680
  %v4745 = vpack.c.b16 %v4685, %v4681
  %v4746 = vpack.c.b16 %v4686, %v4682
  %v4747 = vpack.c.b16 %v4687, %v4683
  %v4748 = vpack.c.b16 %v4692, %v4688
  %v4749 = vpack.c.b16 %v4693, %v4689
  %v4750 = vpack.c.b16 %v4694, %v4690
  %v4751 = vpack.c.b16 %v4695, %v4691
  %v4752 = vpack.c.b16 %v4700, %v4696
  %v4753 = vpack.c.b16 %v4701, %v4697
  %v4754 = vpack.c.b16 %v4702, %v4698
  %v4755 = vpack.c.b16 %v4703, %v4699
  %v4756 = vpack.c.b16 %v4708, %v4704
  %v4757 = vpack.c.b16 %v4709, %v4705
  %v4758 = vpack.c.b16 %v4710, %v4706
  %v4759 = vpack.c.b16 %v4711, %v4707
  %v4760 = vpack.c.b16 %v4716, %v4712
  %v4761 = vpack.c.b16 %v4717, %v4713
  %v4762 = vpack.c.b16 %v4718, %v4714
  %v4763 = vpack.c.b16 %v4719, %v4715
  %v4764 = vpack.c.b16 %v4724, %v4720
  %v4765 = vpack.c.b16 %v4725, %v4721
  %v4766 = vpack.c.b16 %v4726, %v4722
  %v4767 = vpack.c.b16 %v4727, %v4723
  %v4768 = vpack.c.b16 %v4732, %v4728
  %v4769 = vpack.c.b16 %v4733, %v4729
  %v4770 = vpack.c.b16 %v4734, %v4730
  %v4771 = vpack.c.b16 %v4735, %v4731
  %v4772 = vpack.c.b16 %v4740, %v4736
  %v4773 = vpack.c.b16 %v4741, %v4737
  %v4774 = vpack.c.b16 %v4742, %v4738
  %v4775 = vpack.c.b16 %v4743, %v4739
  %4808 = vmatprep.subr.bf16.mxu0 %v4773
  %4809 = vmatpush1.bf16.msra.mxu0 %v4772
  %4810 = vmatprep.subr.bf16.mxu0 %v4769
  %4811 = vmatpush1.bf16.msra.mxu0 %v4768
  %4812 = vmatprep.subr.bf16.mxu0 %v4765
  %4813 = vmatpush1.bf16.msra.mxu0 %v4764
  %4814 = vmatprep.subr.bf16.mxu0 %v4761
  %4815 = vmatpush1.bf16.msra.mxu0 %v4760
  %4816 = vmatprep.subr.bf16.mxu0 %v4757
  %4817 = vmatpush1.bf16.msra.mxu0 %v4756
  %4818 = vmatprep.subr.bf16.mxu0 %v4753
  %4819 = vmatpush1.bf16.msra.mxu0 %v4752
  %4820 = vmatprep.subr.bf16.mxu0 %v4749
  %4821 = vmatpush1.bf16.msra.mxu0 %v4748
  %4822 = vmatprep.subr.bf16.mxu0 %v4745
  %4823 = vmatpush1.bf16.msra.mxu0 %v4744
  %4824 = vmatprep.subr.bf16.mxu0 0
  %4825 = vmatpush2.bf16.msra.mxu0 0
  %4826 = vmatprep.subr.bf16.mxu0 0
  %4827 = vmatpush2.bf16.msra.mxu0 0
  %4828 = vmatprep.subr.bf16.mxu0 0
  %4829 = vmatpush2.bf16.msra.mxu0 0
  %4830 = vmatprep.subr.bf16.mxu0 0
  %4831 = vmatpush2.bf16.msra.mxu0 0
  %4832 = vmatprep.subr.bf16.mxu0 0
  %4833 = vmatpush2.bf16.msra.mxu0 0
  %4834 = vmatprep.subr.bf16.mxu0 0
  %4835 = vmatpush2.bf16.msra.mxu0 0
  %4836 = vmatprep.subr.bf16.mxu0 0
  %4837 = vmatpush2.bf16.msra.mxu0 0
  %4838 = vmatprep.subr.bf16.mxu0 0
  %4839 = vmatpush2.bf16.msra.mxu0 0
  %4840 = vmatprep.mubr.bf16.mxu0 0
  %4841 = vmatmul.mubr.bf16.gmra.mxu0 %v4615
  %v4842 = vpop.f32.mrf.mxu0
  %v4843 = vadd.f32 0.0, %v4842
  %v4844 = vpop.f32.mrf.mxu0
  %v4845 = vadd.f32 0.0, %v4844
  %v4846 = vpop.f32.mrf.mxu0
  %v4847 = vpop.f32.mrf.mxu0
  %4848 = vdwg.mxu0
  %4849 = vmatprep.subr.bf16.mxu0 %v4775
  %4850 = vmatpush1.bf16.msra.mxu0 %v4774
  %4851 = vmatprep.subr.bf16.mxu0 %v4771
  %4852 = vmatpush1.bf16.msra.mxu0 %v4770
  %4853 = vmatprep.subr.bf16.mxu0 %v4767
  %4854 = vmatpush1.bf16.msra.mxu0 %v4766
  %4855 = vmatprep.subr.bf16.mxu0 %v4763
  %4856 = vmatpush1.bf16.msra.mxu0 %v4762
  %4857 = vmatprep.subr.bf16.mxu0 %v4759
  %4858 = vmatpush1.bf16.msra.mxu0 %v4758
  %4859 = vmatprep.subr.bf16.mxu0 %v4755
  %4860 = vmatpush1.bf16.msra.mxu0 %v4754
  %4861 = vmatprep.subr.bf16.mxu0 %v4751
  %4862 = vmatpush1.bf16.msra.mxu0 %v4750
  %4863 = vmatprep.subr.bf16.mxu0 %v4747
  %4864 = vmatpush1.bf16.msra.mxu0 %v4746
  %4865 = vmatprep.subr.bf16.mxu0 0
  %4866 = vmatpush2.bf16.msra.mxu0 0
  %4867 = vmatprep.subr.bf16.mxu0 0
  %4868 = vmatpush2.bf16.msra.mxu0 0
  %4869 = vmatprep.subr.bf16.mxu0 0
  %4870 = vmatpush2.bf16.msra.mxu0 0
  %4871 = vmatprep.subr.bf16.mxu0 0
  %4872 = vmatpush2.bf16.msra.mxu0 0
  %4873 = vmatprep.subr.bf16.mxu0 0
  %4874 = vmatpush2.bf16.msra.mxu0 0
  %4875 = vmatprep.subr.bf16.mxu0 0
  %4876 = vmatpush2.bf16.msra.mxu0 0
  %4877 = vmatprep.subr.bf16.mxu0 0
  %4878 = vmatpush2.bf16.msra.mxu0 0
  %4879 = vmatprep.subr.bf16.mxu0 0
  %4880 = vmatpush2.bf16.msra.mxu0 0
  %4881 = vmatprep.mubr.bf16.mxu0 0
  %4882 = vmatmul.mubr.bf16.gmra.mxu0 %v4615
  %v4883 = vpop.f32.mrf.mxu0
  %v4884 = vadd.f32 0.0, %v4883
  %v4885 = vpop.f32.mrf.mxu0
  %v4886 = vadd.f32 0.0, %v4885
  %v4887 = vpop.f32.mrf.mxu0
  %v4888 = vpop.f32.mrf.mxu0
  %4889 = vdwg.mxu0
  %v4890 = vadd.f32 %v4611, %v4843
  %v4891 = vadd.f32 %v4612, %v4845
  %v4892 = vadd.f32 %v4613, %v4884
  %v4893 = vadd.f32 %v4614, %v4886
  %v4894 = vxor.u32 %v4890, 2147483648
  %v4895 = vmul.f32 %v4894, 1.442695
  %v4896 = vpow.pop %v4895
  %v4897 = vadd.f32 %v4896, 1.0
  %v4898 = vrcp.pop %v4897
  %v4899 = vmul.f32 1.0, %v4898
  %v4900 = vxor.u32 %v4891, 2147483648
  %v4901 = vmul.f32 %v4900, 1.442695
  %v4902 = vpow.pop %v4901
  %v4903 = vadd.f32 %v4902, 1.0
  %v4904 = vrcp.pop %v4903
  %v4905 = vmul.f32 1.0, %v4904
  %v4906 = vtanh.pop %v4892
  %v4907 = vxor.u32 %v4893, 2147483648
  %v4908 = vmul.f32 %v4907, 1.442695
  %v4909 = vpow.pop %v4908
  %v4910 = vadd.f32 %v4909, 1.0
  %v4911 = vrcp.pop %v4910
  %v4912 = vmul.f32 1.0, %v4911
  %v4913 = vmul.f32 %v4905, %v4297
  %v4914 = vmul.f32 %v4899, %v4906
  %v4915 = vadd.f32 %v4913, %v4914
  %v4916 = vtanh.pop %v4915
  %v4917 = vmul.f32 %v4912, %v4916
  %v4918 = vsel %vm1460, %v4917, %v4296
  %v4919 = vsel %vm1460, %v4915, %v4297
  %v4920 = vsel %vm1460, %v4917, 0.0
  %4921 = vst [vmem:[%s1464 + $0x8] sm:$0xff] %v4920
  %v4922 = vld [vmem:[#allocation2 + $0x1c0] sm:$0xff]
  %v4923 = vld [vmem:[#allocation2 + $0x1c8] sm:$0xff]
  %v4924 = vld [vmem:[#allocation2 + $0x1d0] sm:$0xff]
  %v4925 = vld [vmem:[#allocation2 + $0x1d8] sm:$0xff]
  %v4926 = vpack.c.bf16 %v4607, %v4607
  %v4927 = vld [vmem:[%s4] sm:$0xff]
  %v4928 = vld [vmem:[%s4 + $0x8] sm:$0xff]
  %v4929 = vld [vmem:[%s4 + $0x10] sm:$0xff]
  %v4930 = vld [vmem:[%s4 + $0x18] sm:$0xff]
  %v4931 = vld [vmem:[%s4 + $0x20] sm:$0xff]
  %v4932 = vld [vmem:[%s4 + $0x28] sm:$0xff]
  %v4933 = vld [vmem:[%s4 + $0x30] sm:$0xff]
  %v4934 = vld [vmem:[%s4 + $0x38] sm:$0xff]
  %v4935 = vld [vmem:[%s4 + $0x40] sm:$0xff]
  %v4936 = vld [vmem:[%s4 + $0x48] sm:$0xff]
  %v4937 = vld [vmem:[%s4 + $0x50] sm:$0xff]
  %v4938 = vld [vmem:[%s4 + $0x58] sm:$0xff]
  %v4939 = vld [vmem:[%s4 + $0x60] sm:$0xff]
  %v4940 = vld [vmem:[%s4 + $0x68] sm:$0xff]
  %v4941 = vld [vmem:[%s4 + $0x70] sm:$0xff]
  %v4942 = vld [vmem:[%s4 + $0x78] sm:$0xff]
  %v4943 = vld [vmem:[%s4 + $0x80] sm:$0xff]
  %v4944 = vld [vmem:[%s4 + $0x88] sm:$0xff]
  %v4945 = vld [vmem:[%s4 + $0x90] sm:$0xff]
  %v4946 = vld [vmem:[%s4 + $0x98] sm:$0xff]
  %v4947 = vld [vmem:[%s4 + $0xa0] sm:$0xff]
  %v4948 = vld [vmem:[%s4 + $0xa8] sm:$0xff]
  %v4949 = vld [vmem:[%s4 + $0xb0] sm:$0xff]
  %v4950 = vld [vmem:[%s4 + $0xb8] sm:$0xff]
  %v4951 = vld [vmem:[%s4 + $0xc0] sm:$0xff]
  %v4952 = vld [vmem:[%s4 + $0xc8] sm:$0xff]
  %v4953 = vld [vmem:[%s4 + $0xd0] sm:$0xff]
  %v4954 = vld [vmem:[%s4 + $0xd8] sm:$0xff]
  %v4955 = vld [vmem:[%s4 + $0xe0] sm:$0xff]
  %v4956 = vld [vmem:[%s4 + $0xe8] sm:$0xff]
  %v4957 = vld [vmem:[%s4 + $0xf0] sm:$0xff]
  %v4958 = vld [vmem:[%s4 + $0xf8] sm:$0xff]
  %v4991 = vunpack.c.l.b16 %v4927
  %v4992 = vunpack.c.h.b16 %v4927
  %v4993 = vunpack.c.l.b16 %v4928
  %v4994 = vunpack.c.h.b16 %v4928
  %v4995 = vunpack.c.l.b16 %v4929
  %v4996 = vunpack.c.h.b16 %v4929
  %v4997 = vunpack.c.l.b16 %v4930
  %v4998 = vunpack.c.h.b16 %v4930
  %v4999 = vunpack.c.l.b16 %v4931
  %v5000 = vunpack.c.h.b16 %v4931
  %v5001 = vunpack.c.l.b16 %v4932
  %v5002 = vunpack.c.h.b16 %v4932
  %v5003 = vunpack.c.l.b16 %v4933
  %v5004 = vunpack.c.h.b16 %v4933
  %v5005 = vunpack.c.l.b16 %v4934
  %v5006 = vunpack.c.h.b16 %v4934
  %v5007 = vunpack.c.l.b16 %v4935
  %v5008 = vunpack.c.h.b16 %v4935
  %v5009 = vunpack.c.l.b16 %v4936
  %v5010 = vunpack.c.h.b16 %v4936
  %v5011 = vunpack.c.l.b16 %v4937
  %v5012 = vunpack.c.h.b16 %v4937
  %v5013 = vunpack.c.l.b16 %v4938
  %v5014 = vunpack.c.h.b16 %v4938
  %v5015 = vunpack.c.l.b16 %v4939
  %v5016 = vunpack.c.h.b16 %v4939
  %v5017 = vunpack.c.l.b16 %v4940
  %v5018 = vunpack.c.h.b16 %v4940
  %v5019 = vunpack.c.l.b16 %v4941
  %v5020 = vunpack.c.h.b16 %v4941
  %v5021 = vunpack.c.l.b16 %v4942
  %v5022 = vunpack.c.h.b16 %v4942
  %v5023 = vunpack.c.l.b16 %v4943
  %v5024 = vunpack.c.h.b16 %v4943
  %v5025 = vunpack.c.l.b16 %v4944
  %v5026 = vunpack.c.h.b16 %v4944
  %v5027 = vunpack.c.l.b16 %v4945
  %v5028 = vunpack.c.h.b16 %v4945
  %v5029 = vunpack.c.l.b16 %v4946
  %v5030 = vunpack.c.h.b16 %v4946
  %v5031 = vunpack.c.l.b16 %v4947
  %v5032 = vunpack.c.h.b16 %v4947
  %v5033 = vunpack.c.l.b16 %v4948
  %v5034 = vunpack.c.h.b16 %v4948
  %v5035 = vunpack.c.l.b16 %v4949
  %v5036 = vunpack.c.h.b16 %v4949
  %v5037 = vunpack.c.l.b16 %v4950
  %v5038 = vunpack.c.h.b16 %v4950
  %v5039 = vunpack.c.l.b16 %v4951
  %v5040 = vunpack.c.h.b16 %v4951
  %v5041 = vunpack.c.l.b16 %v4952
  %v5042 = vunpack.c.h.b16 %v4952
  %v5043 = vunpack.c.l.b16 %v4953
  %v5044 = vunpack.c.h.b16 %v4953
  %v5045 = vunpack.c.l.b16 %v4954
  %v5046 = vunpack.c.h.b16 %v4954
  %v5047 = vunpack.c.l.b16 %v4955
  %v5048 = vunpack.c.h.b16 %v4955
  %v5049 = vunpack.c.l.b16 %v4956
  %v5050 = vunpack.c.h.b16 %v4956
  %v5051 = vunpack.c.l.b16 %v4957
  %v5052 = vunpack.c.h.b16 %v4957
  %v5053 = vunpack.c.l.b16 %v4958
  %v5054 = vunpack.c.h.b16 %v4958
  %v5055 = vpack.c.b16 %v4995, %v4991
  %v5056 = vpack.c.b16 %v4996, %v4992
  %v5057 = vpack.c.b16 %v4997, %v4993
  %v5058 = vpack.c.b16 %v4998, %v4994
  %v5059 = vpack.c.b16 %v5003, %v4999
  %v5060 = vpack.c.b16 %v5004, %v5000
  %v5061 = vpack.c.b16 %v5005, %v5001
  %v5062 = vpack.c.b16 %v5006, %v5002
  %v5063 = vpack.c.b16 %v5011, %v5007
  %v5064 = vpack.c.b16 %v5012, %v5008
  %v5065 = vpack.c.b16 %v5013, %v5009
  %v5066 = vpack.c.b16 %v5014, %v5010
  %v5067 = vpack.c.b16 %v5019, %v5015
  %v5068 = vpack.c.b16 %v5020, %v5016
  %v5069 = vpack.c.b16 %v5021, %v5017
  %v5070 = vpack.c.b16 %v5022, %v5018
  %v5071 = vpack.c.b16 %v5027, %v5023
  %v5072 = vpack.c.b16 %v5028, %v5024
  %v5073 = vpack.c.b16 %v5029, %v5025
  %v5074 = vpack.c.b16 %v5030, %v5026
  %v5075 = vpack.c.b16 %v5035, %v5031
  %v5076 = vpack.c.b16 %v5036, %v5032
  %v5077 = vpack.c.b16 %v5037, %v5033
  %v5078 = vpack.c.b16 %v5038, %v5034
  %v5079 = vpack.c.b16 %v5043, %v5039
  %v5080 = vpack.c.b16 %v5044, %v5040
  %v5081 = vpack.c.b16 %v5045, %v5041
  %v5082 = vpack.c.b16 %v5046, %v5042
  %v5083 = vpack.c.b16 %v5051, %v5047
  %v5084 = vpack.c.b16 %v5052, %v5048
  %v5085 = vpack.c.b16 %v5053, %v5049
  %v5086 = vpack.c.b16 %v5054, %v5050
  %5119 = vmatprep.subr.bf16.mxu0 %v5084
  %5120 = vmatpush1.bf16.msra.mxu0 %v5083
  %5121 = vmatprep.subr.bf16.mxu0 %v5080
  %5122 = vmatpush1.bf16.msra.mxu0 %v5079
  %5123 = vmatprep.subr.bf16.mxu0 %v5076
  %5124 = vmatpush1.bf16.msra.mxu0 %v5075
  %5125 = vmatprep.subr.bf16.mxu0 %v5072
  %5126 = vmatpush1.bf16.msra.mxu0 %v5071
  %5127 = vmatprep.subr.bf16.mxu0 %v5068
  %5128 = vmatpush1.bf16.msra.mxu0 %v5067
  %5129 = vmatprep.subr.bf16.mxu0 %v5064
  %5130 = vmatpush1.bf16.msra.mxu0 %v5063
  %5131 = vmatprep.subr.bf16.mxu0 %v5060
  %5132 = vmatpush1.bf16.msra.mxu0 %v5059
  %5133 = vmatprep.subr.bf16.mxu0 %v5056
  %5134 = vmatpush1.bf16.msra.mxu0 %v5055
  %5135 = vmatprep.subr.bf16.mxu0 0
  %5136 = vmatpush2.bf16.msra.mxu0 0
  %5137 = vmatprep.subr.bf16.mxu0 0
  %5138 = vmatpush2.bf16.msra.mxu0 0
  %5139 = vmatprep.subr.bf16.mxu0 0
  %5140 = vmatpush2.bf16.msra.mxu0 0
  %5141 = vmatprep.subr.bf16.mxu0 0
  %5142 = vmatpush2.bf16.msra.mxu0 0
  %5143 = vmatprep.subr.bf16.mxu0 0
  %5144 = vmatpush2.bf16.msra.mxu0 0
  %5145 = vmatprep.subr.bf16.mxu0 0
  %5146 = vmatpush2.bf16.msra.mxu0 0
  %5147 = vmatprep.subr.bf16.mxu0 0
  %5148 = vmatpush2.bf16.msra.mxu0 0
  %5149 = vmatprep.subr.bf16.mxu0 0
  %5150 = vmatpush2.bf16.msra.mxu0 0
  %5151 = vmatprep.mubr.bf16.mxu0 0
  %5152 = vmatmul.mubr.bf16.gmra.mxu0 %v4926
  %v5153 = vpop.f32.mrf.mxu0
  %v5154 = vadd.f32 0.0, %v5153
  %v5155 = vpop.f32.mrf.mxu0
  %v5156 = vadd.f32 0.0, %v5155
  %v5157 = vpop.f32.mrf.mxu0
  %v5158 = vpop.f32.mrf.mxu0
  %5159 = vdwg.mxu0
  %5160 = vmatprep.subr.bf16.mxu0 %v5086
  %5161 = vmatpush1.bf16.msra.mxu0 %v5085
  %5162 = vmatprep.subr.bf16.mxu0 %v5082
  %5163 = vmatpush1.bf16.msra.mxu0 %v5081
  %5164 = vmatprep.subr.bf16.mxu0 %v5078
  %5165 = vmatpush1.bf16.msra.mxu0 %v5077
  %5166 = vmatprep.subr.bf16.mxu0 %v5074
  %5167 = vmatpush1.bf16.msra.mxu0 %v5073
  %5168 = vmatprep.subr.bf16.mxu0 %v5070
  %5169 = vmatpush1.bf16.msra.mxu0 %v5069
  %5170 = vmatprep.subr.bf16.mxu0 %v5066
  %5171 = vmatpush1.bf16.msra.mxu0 %v5065
  %5172 = vmatprep.subr.bf16.mxu0 %v5062
  %5173 = vmatpush1.bf16.msra.mxu0 %v5061
  %5174 = vmatprep.subr.bf16.mxu0 %v5058
  %5175 = vmatpush1.bf16.msra.mxu0 %v5057
  %5176 = vmatprep.subr.bf16.mxu0 0
  %5177 = vmatpush2.bf16.msra.mxu0 0
  %5178 = vmatprep.subr.bf16.mxu0 0
  %5179 = vmatpush2.bf16.msra.mxu0 0
  %5180 = vmatprep.subr.bf16.mxu0 0
  %5181 = vmatpush2.bf16.msra.mxu0 0
  %5182 = vmatprep.subr.bf16.mxu0 0
  %5183 = vmatpush2.bf16.msra.mxu0 0
  %5184 = vmatprep.subr.bf16.mxu0 0
  %5185 = vmatpush2.bf16.msra.mxu0 0
  %5186 = vmatprep.subr.bf16.mxu0 0
  %5187 = vmatpush2.bf16.msra.mxu0 0
  %5188 = vmatprep.subr.bf16.mxu0 0
  %5189 = vmatpush2.bf16.msra.mxu0 0
  %5190 = vmatprep.subr.bf16.mxu0 0
  %5191 = vmatpush2.bf16.msra.mxu0 0
  %5192 = vmatprep.mubr.bf16.mxu0 0
  %5193 = vmatmul.mubr.bf16.gmra.mxu0 %v4926
  %v5194 = vpop.f32.mrf.mxu0
  %v5195 = vadd.f32 0.0, %v5194
  %v5196 = vpop.f32.mrf.mxu0
  %v5197 = vadd.f32 0.0, %v5196
  %v5198 = vpop.f32.mrf.mxu0
  %v5199 = vpop.f32.mrf.mxu0
  %5200 = vdwg.mxu0
  %v5201 = vadd.f32 %v4922, %v5154
  %v5202 = vadd.f32 %v4923, %v5156
  %v5203 = vadd.f32 %v4924, %v5195
  %v5204 = vadd.f32 %v4925, %v5197
  %v5205 = vxor.u32 %v5201, 2147483648
  %v5206 = vmul.f32 %v5205, 1.442695
  %v5207 = vpow.pop %v5206
  %v5208 = vadd.f32 %v5207, 1.0
  %v5209 = vrcp.pop %v5208
  %v5210 = vmul.f32 1.0, %v5209
  %v5211 = vxor.u32 %v5202, 2147483648
  %v5212 = vmul.f32 %v5211, 1.442695
  %v5213 = vpow.pop %v5212
  %v5214 = vadd.f32 %v5213, 1.0
  %v5215 = vrcp.pop %v5214
  %v5216 = vmul.f32 1.0, %v5215
  %v5217 = vtanh.pop %v5203
  %v5218 = vxor.u32 %v5204, 2147483648
  %v5219 = vmul.f32 %v5218, 1.442695
  %v5220 = vpow.pop %v5219
  %v5221 = vadd.f32 %v5220, 1.0
  %v5222 = vrcp.pop %v5221
  %v5223 = vmul.f32 1.0, %v5222
  %v5224 = vmul.f32 %v5216, %v4608
  %v5225 = vmul.f32 %v5210, %v5217
  %v5226 = vadd.f32 %v5224, %v5225
  %v5227 = vtanh.pop %v5226
  %v5228 = vmul.f32 %v5223, %v5227
  %v5229 = vsel %vm1143, %v5228, %v4607
  %v5230 = vsel %vm1143, %v5226, %v4608
  %v5231 = vsel %vm1143, %v5228, 0.0
  %5232 = vst [vmem:[%s1146] sm:$0xff] %v5231
  %v5233 = vld [vmem:[#allocation2 + $0x20] sm:$0xff]
  %v5234 = vld [vmem:[#allocation2 + $0x28] sm:$0xff]
  %v5235 = vld [vmem:[#allocation2 + $0x30] sm:$0xff]
  %v5236 = vld [vmem:[#allocation2 + $0x38] sm:$0xff]
  %v5237 = vpack.c.bf16 %v4918, %v4918
  %v5238 = vld [vmem:[%s5] sm:$0xff]
  %v5239 = vld [vmem:[%s5 + $0x8] sm:$0xff]
  %v5240 = vld [vmem:[%s5 + $0x10] sm:$0xff]
  %v5241 = vld [vmem:[%s5 + $0x18] sm:$0xff]
  %v5242 = vld [vmem:[%s5 + $0x20] sm:$0xff]
  %v5243 = vld [vmem:[%s5 + $0x28] sm:$0xff]
  %v5244 = vld [vmem:[%s5 + $0x30] sm:$0xff]
  %v5245 = vld [vmem:[%s5 + $0x38] sm:$0xff]
  %v5246 = vld [vmem:[%s5 + $0x40] sm:$0xff]
  %v5247 = vld [vmem:[%s5 + $0x48] sm:$0xff]
  %v5248 = vld [vmem:[%s5 + $0x50] sm:$0xff]
  %v5249 = vld [vmem:[%s5 + $0x58] sm:$0xff]
  %v5250 = vld [vmem:[%s5 + $0x60] sm:$0xff]
  %v5251 = vld [vmem:[%s5 + $0x68] sm:$0xff]
  %v5252 = vld [vmem:[%s5 + $0x70] sm:$0xff]
  %v5253 = vld [vmem:[%s5 + $0x78] sm:$0xff]
  %v5254 = vld [vmem:[%s5 + $0x80] sm:$0xff]
  %v5255 = vld [vmem:[%s5 + $0x88] sm:$0xff]
  %v5256 = vld [vmem:[%s5 + $0x90] sm:$0xff]
  %v5257 = vld [vmem:[%s5 + $0x98] sm:$0xff]
  %v5258 = vld [vmem:[%s5 + $0xa0] sm:$0xff]
  %v5259 = vld [vmem:[%s5 + $0xa8] sm:$0xff]
  %v5260 = vld [vmem:[%s5 + $0xb0] sm:$0xff]
  %v5261 = vld [vmem:[%s5 + $0xb8] sm:$0xff]
  %v5262 = vld [vmem:[%s5 + $0xc0] sm:$0xff]
  %v5263 = vld [vmem:[%s5 + $0xc8] sm:$0xff]
  %v5264 = vld [vmem:[%s5 + $0xd0] sm:$0xff]
  %v5265 = vld [vmem:[%s5 + $0xd8] sm:$0xff]
  %v5266 = vld [vmem:[%s5 + $0xe0] sm:$0xff]
  %v5267 = vld [vmem:[%s5 + $0xe8] sm:$0xff]
  %v5268 = vld [vmem:[%s5 + $0xf0] sm:$0xff]
  %v5269 = vld [vmem:[%s5 + $0xf8] sm:$0xff]
  %v5302 = vunpack.c.l.b16 %v5238
  %v5303 = vunpack.c.h.b16 %v5238
  %v5304 = vunpack.c.l.b16 %v5239
  %v5305 = vunpack.c.h.b16 %v5239
  %v5306 = vunpack.c.l.b16 %v5240
  %v5307 = vunpack.c.h.b16 %v5240
  %v5308 = vunpack.c.l.b16 %v5241
  %v5309 = vunpack.c.h.b16 %v5241
  %v5310 = vunpack.c.l.b16 %v5242
  %v5311 = vunpack.c.h.b16 %v5242
  %v5312 = vunpack.c.l.b16 %v5243
  %v5313 = vunpack.c.h.b16 %v5243
  %v5314 = vunpack.c.l.b16 %v5244
  %v5315 = vunpack.c.h.b16 %v5244
  %v5316 = vunpack.c.l.b16 %v5245
  %v5317 = vunpack.c.h.b16 %v5245
  %v5318 = vunpack.c.l.b16 %v5246
  %v5319 = vunpack.c.h.b16 %v5246
  %v5320 = vunpack.c.l.b16 %v5247
  %v5321 = vunpack.c.h.b16 %v5247
  %v5322 = vunpack.c.l.b16 %v5248
  %v5323 = vunpack.c.h.b16 %v5248
  %v5324 = vunpack.c.l.b16 %v5249
  %v5325 = vunpack.c.h.b16 %v5249
  %v5326 = vunpack.c.l.b16 %v5250
  %v5327 = vunpack.c.h.b16 %v5250
  %v5328 = vunpack.c.l.b16 %v5251
  %v5329 = vunpack.c.h.b16 %v5251
  %v5330 = vunpack.c.l.b16 %v5252
  %v5331 = vunpack.c.h.b16 %v5252
  %v5332 = vunpack.c.l.b16 %v5253
  %v5333 = vunpack.c.h.b16 %v5253
  %v5334 = vunpack.c.l.b16 %v5254
  %v5335 = vunpack.c.h.b16 %v5254
  %v5336 = vunpack.c.l.b16 %v5255
  %v5337 = vunpack.c.h.b16 %v5255
  %v5338 = vunpack.c.l.b16 %v5256
  %v5339 = vunpack.c.h.b16 %v5256
  %v5340 = vunpack.c.l.b16 %v5257
  %v5341 = vunpack.c.h.b16 %v5257
  %v5342 = vunpack.c.l.b16 %v5258
  %v5343 = vunpack.c.h.b16 %v5258
  %v5344 = vunpack.c.l.b16 %v5259
  %v5345 = vunpack.c.h.b16 %v5259
  %v5346 = vunpack.c.l.b16 %v5260
  %v5347 = vunpack.c.h.b16 %v5260
  %v5348 = vunpack.c.l.b16 %v5261
  %v5349 = vunpack.c.h.b16 %v5261
  %v5350 = vunpack.c.l.b16 %v5262
  %v5351 = vunpack.c.h.b16 %v5262
  %v5352 = vunpack.c.l.b16 %v5263
  %v5353 = vunpack.c.h.b16 %v5263
  %v5354 = vunpack.c.l.b16 %v5264
  %v5355 = vunpack.c.h.b16 %v5264
  %v5356 = vunpack.c.l.b16 %v5265
  %v5357 = vunpack.c.h.b16 %v5265
  %v5358 = vunpack.c.l.b16 %v5266
  %v5359 = vunpack.c.h.b16 %v5266
  %v5360 = vunpack.c.l.b16 %v5267
  %v5361 = vunpack.c.h.b16 %v5267
  %v5362 = vunpack.c.l.b16 %v5268
  %v5363 = vunpack.c.h.b16 %v5268
  %v5364 = vunpack.c.l.b16 %v5269
  %v5365 = vunpack.c.h.b16 %v5269
  %v5366 = vpack.c.b16 %v5306, %v5302
  %v5367 = vpack.c.b16 %v5307, %v5303
  %v5368 = vpack.c.b16 %v5308, %v5304
  %v5369 = vpack.c.b16 %v5309, %v5305
  %v5370 = vpack.c.b16 %v5314, %v5310
  %v5371 = vpack.c.b16 %v5315, %v5311
  %v5372 = vpack.c.b16 %v5316, %v5312
  %v5373 = vpack.c.b16 %v5317, %v5313
  %v5374 = vpack.c.b16 %v5322, %v5318
  %v5375 = vpack.c.b16 %v5323, %v5319
  %v5376 = vpack.c.b16 %v5324, %v5320
  %v5377 = vpack.c.b16 %v5325, %v5321
  %v5378 = vpack.c.b16 %v5330, %v5326
  %v5379 = vpack.c.b16 %v5331, %v5327
  %v5380 = vpack.c.b16 %v5332, %v5328
  %v5381 = vpack.c.b16 %v5333, %v5329
  %v5382 = vpack.c.b16 %v5338, %v5334
  %v5383 = vpack.c.b16 %v5339, %v5335
  %v5384 = vpack.c.b16 %v5340, %v5336
  %v5385 = vpack.c.b16 %v5341, %v5337
  %v5386 = vpack.c.b16 %v5346, %v5342
  %v5387 = vpack.c.b16 %v5347, %v5343
  %v5388 = vpack.c.b16 %v5348, %v5344
  %v5389 = vpack.c.b16 %v5349, %v5345
  %v5390 = vpack.c.b16 %v5354, %v5350
  %v5391 = vpack.c.b16 %v5355, %v5351
  %v5392 = vpack.c.b16 %v5356, %v5352
  %v5393 = vpack.c.b16 %v5357, %v5353
  %v5394 = vpack.c.b16 %v5362, %v5358
  %v5395 = vpack.c.b16 %v5363, %v5359
  %v5396 = vpack.c.b16 %v5364, %v5360
  %v5397 = vpack.c.b16 %v5365, %v5361
  %5430 = vmatprep.subr.bf16.mxu0 %v5395
  %5431 = vmatpush1.bf16.msra.mxu0 %v5394
  %5432 = vmatprep.subr.bf16.mxu0 %v5391
  %5433 = vmatpush1.bf16.msra.mxu0 %v5390
  %5434 = vmatprep.subr.bf16.mxu0 %v5387
  %5435 = vmatpush1.bf16.msra.mxu0 %v5386
  %5436 = vmatprep.subr.bf16.mxu0 %v5383
  %5437 = vmatpush1.bf16.msra.mxu0 %v5382
  %5438 = vmatprep.subr.bf16.mxu0 %v5379
  %5439 = vmatpush1.bf16.msra.mxu0 %v5378
  %5440 = vmatprep.subr.bf16.mxu0 %v5375
  %5441 = vmatpush1.bf16.msra.mxu0 %v5374
  %5442 = vmatprep.subr.bf16.mxu0 %v5371
  %5443 = vmatpush1.bf16.msra.mxu0 %v5370
  %5444 = vmatprep.subr.bf16.mxu0 %v5367
  %5445 = vmatpush1.bf16.msra.mxu0 %v5366
  %5446 = vmatprep.subr.bf16.mxu0 0
  %5447 = vmatpush2.bf16.msra.mxu0 0
  %5448 = vmatprep.subr.bf16.mxu0 0
  %5449 = vmatpush2.bf16.msra.mxu0 0
  %5450 = vmatprep.subr.bf16.mxu0 0
  %5451 = vmatpush2.bf16.msra.mxu0 0
  %5452 = vmatprep.subr.bf16.mxu0 0
  %5453 = vmatpush2.bf16.msra.mxu0 0
  %5454 = vmatprep.subr.bf16.mxu0 0
  %5455 = vmatpush2.bf16.msra.mxu0 0
  %5456 = vmatprep.subr.bf16.mxu0 0
  %5457 = vmatpush2.bf16.msra.mxu0 0
  %5458 = vmatprep.subr.bf16.mxu0 0
  %5459 = vmatpush2.bf16.msra.mxu0 0
  %5460 = vmatprep.subr.bf16.mxu0 0
  %5461 = vmatpush2.bf16.msra.mxu0 0
  %5462 = vmatprep.mubr.bf16.mxu0 0
  %5463 = vmatmul.mubr.bf16.gmra.mxu0 %v5237
  %v5464 = vpop.f32.mrf.mxu0
  %v5465 = vadd.f32 0.0, %v5464
  %v5466 = vpop.f32.mrf.mxu0
  %v5467 = vadd.f32 0.0, %v5466
  %v5468 = vpop.f32.mrf.mxu0
  %v5469 = vpop.f32.mrf.mxu0
  %5470 = vdwg.mxu0
  %5471 = vmatprep.subr.bf16.mxu0 %v5397
  %5472 = vmatpush1.bf16.msra.mxu0 %v5396
  %5473 = vmatprep.subr.bf16.mxu0 %v5393
  %5474 = vmatpush1.bf16.msra.mxu0 %v5392
  %5475 = vmatprep.subr.bf16.mxu0 %v5389
  %5476 = vmatpush1.bf16.msra.mxu0 %v5388
  %5477 = vmatprep.subr.bf16.mxu0 %v5385
  %5478 = vmatpush1.bf16.msra.mxu0 %v5384
  %5479 = vmatprep.subr.bf16.mxu0 %v5381
  %5480 = vmatpush1.bf16.msra.mxu0 %v5380
  %5481 = vmatprep.subr.bf16.mxu0 %v5377
  %5482 = vmatpush1.bf16.msra.mxu0 %v5376
  %5483 = vmatprep.subr.bf16.mxu0 %v5373
  %5484 = vmatpush1.bf16.msra.mxu0 %v5372
  %5485 = vmatprep.subr.bf16.mxu0 %v5369
  %5486 = vmatpush1.bf16.msra.mxu0 %v5368
  %5487 = vmatprep.subr.bf16.mxu0 0
  %5488 = vmatpush2.bf16.msra.mxu0 0
  %5489 = vmatprep.subr.bf16.mxu0 0
  %5490 = vmatpush2.bf16.msra.mxu0 0
  %5491 = vmatprep.subr.bf16.mxu0 0
  %5492 = vmatpush2.bf16.msra.mxu0 0
  %5493 = vmatprep.subr.bf16.mxu0 0
  %5494 = vmatpush2.bf16.msra.mxu0 0
  %5495 = vmatprep.subr.bf16.mxu0 0
  %5496 = vmatpush2.bf16.msra.mxu0 0
  %5497 = vmatprep.subr.bf16.mxu0 0
  %5498 = vmatpush2.bf16.msra.mxu0 0
  %5499 = vmatprep.subr.bf16.mxu0 0
  %5500 = vmatpush2.bf16.msra.mxu0 0
  %5501 = vmatprep.subr.bf16.mxu0 0
  %5502 = vmatpush2.bf16.msra.mxu0 0
  %5503 = vmatprep.mubr.bf16.mxu0 0
  %5504 = vmatmul.mubr.bf16.gmra.mxu0 %v5237
  %v5505 = vpop.f32.mrf.mxu0
  %v5506 = vadd.f32 0.0, %v5505
  %v5507 = vpop.f32.mrf.mxu0
  %v5508 = vadd.f32 0.0, %v5507
  %v5509 = vpop.f32.mrf.mxu0
  %v5510 = vpop.f32.mrf.mxu0
  %5511 = vdwg.mxu0
  %v5512 = vadd.f32 %v5233, %v5465
  %v5513 = vadd.f32 %v5234, %v5467
  %v5514 = vadd.f32 %v5235, %v5506
  %v5515 = vadd.f32 %v5236, %v5508
  %v5516 = vxor.u32 %v5512, 2147483648
  %v5517 = vmul.f32 %v5516, 1.442695
  %v5518 = vpow.pop %v5517
  %v5519 = vadd.f32 %v5518, 1.0
  %v5520 = vrcp.pop %v5519
  %v5521 = vmul.f32 1.0, %v5520
  %v5522 = vxor.u32 %v5513, 2147483648
  %v5523 = vmul.f32 %v5522, 1.442695
  %v5524 = vpow.pop %v5523
  %v5525 = vadd.f32 %v5524, 1.0
  %v5526 = vrcp.pop %v5525
  %v5527 = vmul.f32 1.0, %v5526
  %v5528 = vtanh.pop %v5514
  %v5529 = vxor.u32 %v5515, 2147483648
  %v5530 = vmul.f32 %v5529, 1.442695
  %v5531 = vpow.pop %v5530
  %v5532 = vadd.f32 %v5531, 1.0
  %v5533 = vrcp.pop %v5532
  %v5534 = vmul.f32 1.0, %v5533
  %v5535 = vmul.f32 %v5527, %v4919
  %v5536 = vmul.f32 %v5521, %v5528
  %v5537 = vadd.f32 %v5535, %v5536
  %v5538 = vtanh.pop %v5537
  %v5539 = vmul.f32 %v5534, %v5538
  %v5540 = vsel %vm828, %v5539, %v4918
  %v5541 = vsel %vm828, %v5537, %v4919
  %v5542 = vsel %vm828, %v5539, 0.0
  %5543 = vst [vmem:[%s7 + $0x8] sm:$0xff] %v5542
  %v5544 = vpack.c.bf16 %v5229, %v5229
  %v5545 = vpack.c.bf16 %v5540, %v5540
  %v5546 = vpack.c.bf16 %v5230, %v5230
  %v5547 = vpack.c.bf16 %v5541, %v5541
  %v5548 = vld [vmem:[%s6] sm:$0xff]
  %v5549 = vld [vmem:[%s6 + $0x8] sm:$0xff]
  %v5550 = vld [vmem:[%s6 + $0x10] sm:$0xff]
  %v5551 = vld [vmem:[%s6 + $0x18] sm:$0xff]
  %v5552 = vld [vmem:[%s6 + $0x20] sm:$0xff]
  %v5553 = vld [vmem:[%s6 + $0x28] sm:$0xff]
  %v5554 = vld [vmem:[%s6 + $0x30] sm:$0xff]
  %v5555 = vld [vmem:[%s6 + $0x38] sm:$0xff]
  %v5556 = vld [vmem:[%s6 + $0x40] sm:$0xff]
  %v5557 = vld [vmem:[%s6 + $0x48] sm:$0xff]
  %v5558 = vld [vmem:[%s6 + $0x50] sm:$0xff]
  %v5559 = vld [vmem:[%s6 + $0x58] sm:$0xff]
  %v5560 = vld [vmem:[%s6 + $0x60] sm:$0xff]
  %v5561 = vld [vmem:[%s6 + $0x68] sm:$0xff]
  %v5562 = vld [vmem:[%s6 + $0x70] sm:$0xff]
  %v5563 = vld [vmem:[%s6 + $0x78] sm:$0xff]
  %v5564 = vld [vmem:[%s6 + $0x80] sm:$0xff]
  %v5565 = vld [vmem:[%s6 + $0x88] sm:$0xff]
  %v5566 = vld [vmem:[%s6 + $0x90] sm:$0xff]
  %v5567 = vld [vmem:[%s6 + $0x98] sm:$0xff]
  %v5568 = vld [vmem:[%s6 + $0xa0] sm:$0xff]
  %v5569 = vld [vmem:[%s6 + $0xa8] sm:$0xff]
  %v5570 = vld [vmem:[%s6 + $0xb0] sm:$0xff]
  %v5571 = vld [vmem:[%s6 + $0xb8] sm:$0xff]
  %v5572 = vld [vmem:[%s6 + $0xc0] sm:$0xff]
  %v5573 = vld [vmem:[%s6 + $0xc8] sm:$0xff]
  %v5574 = vld [vmem:[%s6 + $0xd0] sm:$0xff]
  %v5575 = vld [vmem:[%s6 + $0xd8] sm:$0xff]
  %v5576 = vld [vmem:[%s6 + $0xe0] sm:$0xff]
  %v5577 = vld [vmem:[%s6 + $0xe8] sm:$0xff]
  %v5578 = vld [vmem:[%s6 + $0xf0] sm:$0xff]
  %v5579 = vld [vmem:[%s6 + $0xf8] sm:$0xff]
  %v5580 = vld [vmem:[%s6 + $0x100] sm:$0xff]
  %v5581 = vld [vmem:[%s6 + $0x108] sm:$0xff]
  %v5582 = vld [vmem:[%s6 + $0x110] sm:$0xff]
  %v5583 = vld [vmem:[%s6 + $0x118] sm:$0xff]
  %v5584 = vld [vmem:[%s6 + $0x120] sm:$0xff]
  %v5585 = vld [vmem:[%s6 + $0x128] sm:$0xff]
  %v5586 = vld [vmem:[%s6 + $0x130] sm:$0xff]
  %v5587 = vld [vmem:[%s6 + $0x138] sm:$0xff]
  %v5588 = vld [vmem:[%s6 + $0x140] sm:$0xff]
  %v5589 = vld [vmem:[%s6 + $0x148] sm:$0xff]
  %v5590 = vld [vmem:[%s6 + $0x150] sm:$0xff]
  %v5591 = vld [vmem:[%s6 + $0x158] sm:$0xff]
  %v5592 = vld [vmem:[%s6 + $0x160] sm:$0xff]
  %v5593 = vld [vmem:[%s6 + $0x168] sm:$0xff]
  %v5594 = vld [vmem:[%s6 + $0x170] sm:$0xff]
  %v5595 = vld [vmem:[%s6 + $0x178] sm:$0xff]
  %v5596 = vld [vmem:[%s6 + $0x180] sm:$0xff]
  %v5597 = vld [vmem:[%s6 + $0x188] sm:$0xff]
  %v5598 = vld [vmem:[%s6 + $0x190] sm:$0xff]
  %v5599 = vld [vmem:[%s6 + $0x198] sm:$0xff]
  %v5600 = vld [vmem:[%s6 + $0x1a0] sm:$0xff]
  %v5601 = vld [vmem:[%s6 + $0x1a8] sm:$0xff]
  %v5602 = vld [vmem:[%s6 + $0x1b0] sm:$0xff]
  %v5603 = vld [vmem:[%s6 + $0x1b8] sm:$0xff]
  %v5604 = vld [vmem:[%s6 + $0x1c0] sm:$0xff]
  %v5605 = vld [vmem:[%s6 + $0x1c8] sm:$0xff]
  %v5606 = vld [vmem:[%s6 + $0x1d0] sm:$0xff]
  %v5607 = vld [vmem:[%s6 + $0x1d8] sm:$0xff]
  %v5608 = vld [vmem:[%s6 + $0x1e0] sm:$0xff]
  %v5609 = vld [vmem:[%s6 + $0x1e8] sm:$0xff]
  %v5610 = vld [vmem:[%s6 + $0x1f0] sm:$0xff]
  %v5611 = vld [vmem:[%s6 + $0x1f8] sm:$0xff]
  %v5676 = vunpack.c.l.b16 %v5548
  %v5677 = vunpack.c.h.b16 %v5548
  %v5678 = vunpack.c.l.b16 %v5549
  %v5679 = vunpack.c.h.b16 %v5549
  %v5680 = vunpack.c.l.b16 %v5550
  %v5681 = vunpack.c.h.b16 %v5550
  %v5682 = vunpack.c.l.b16 %v5551
  %v5683 = vunpack.c.h.b16 %v5551
  %v5684 = vunpack.c.l.b16 %v5552
  %v5685 = vunpack.c.h.b16 %v5552
  %v5686 = vunpack.c.l.b16 %v5553
  %v5687 = vunpack.c.h.b16 %v5553
  %v5688 = vunpack.c.l.b16 %v5554
  %v5689 = vunpack.c.h.b16 %v5554
  %v5690 = vunpack.c.l.b16 %v5555
  %v5691 = vunpack.c.h.b16 %v5555
  %v5692 = vunpack.c.l.b16 %v5556
  %v5693 = vunpack.c.h.b16 %v5556
  %v5694 = vunpack.c.l.b16 %v5557
  %v5695 = vunpack.c.h.b16 %v5557
  %v5696 = vunpack.c.l.b16 %v5558
  %v5697 = vunpack.c.h.b16 %v5558
  %v5698 = vunpack.c.l.b16 %v5559
  %v5699 = vunpack.c.h.b16 %v5559
  %v5700 = vunpack.c.l.b16 %v5560
  %v5701 = vunpack.c.h.b16 %v5560
  %v5702 = vunpack.c.l.b16 %v5561
  %v5703 = vunpack.c.h.b16 %v5561
  %v5704 = vunpack.c.l.b16 %v5562
  %v5705 = vunpack.c.h.b16 %v5562
  %v5706 = vunpack.c.l.b16 %v5563
  %v5707 = vunpack.c.h.b16 %v5563
  %v5708 = vunpack.c.l.b16 %v5564
  %v5709 = vunpack.c.h.b16 %v5564
  %v5710 = vunpack.c.l.b16 %v5565
  %v5711 = vunpack.c.h.b16 %v5565
  %v5712 = vunpack.c.l.b16 %v5566
  %v5713 = vunpack.c.h.b16 %v5566
  %v5714 = vunpack.c.l.b16 %v5567
  %v5715 = vunpack.c.h.b16 %v5567
  %v5716 = vunpack.c.l.b16 %v5568
  %v5717 = vunpack.c.h.b16 %v5568
  %v5718 = vunpack.c.l.b16 %v5569
  %v5719 = vunpack.c.h.b16 %v5569
  %v5720 = vunpack.c.l.b16 %v5570
  %v5721 = vunpack.c.h.b16 %v5570
  %v5722 = vunpack.c.l.b16 %v5571
  %v5723 = vunpack.c.h.b16 %v5571
  %v5724 = vunpack.c.l.b16 %v5572
  %v5725 = vunpack.c.h.b16 %v5572
  %v5726 = vunpack.c.l.b16 %v5573
  %v5727 = vunpack.c.h.b16 %v5573
  %v5728 = vunpack.c.l.b16 %v5574
  %v5729 = vunpack.c.h.b16 %v5574
  %v5730 = vunpack.c.l.b16 %v5575
  %v5731 = vunpack.c.h.b16 %v5575
  %v5732 = vunpack.c.l.b16 %v5576
  %v5733 = vunpack.c.h.b16 %v5576
  %v5734 = vunpack.c.l.b16 %v5577
  %v5735 = vunpack.c.h.b16 %v5577
  %v5736 = vunpack.c.l.b16 %v5578
  %v5737 = vunpack.c.h.b16 %v5578
  %v5738 = vunpack.c.l.b16 %v5579
  %v5739 = vunpack.c.h.b16 %v5579
  %v5740 = vunpack.c.l.b16 %v5580
  %v5741 = vunpack.c.h.b16 %v5580
  %v5742 = vunpack.c.l.b16 %v5581
  %v5743 = vunpack.c.h.b16 %v5581
  %v5744 = vunpack.c.l.b16 %v5582
  %v5745 = vunpack.c.h.b16 %v5582
  %v5746 = vunpack.c.l.b16 %v5583
  %v5747 = vunpack.c.h.b16 %v5583
  %v5748 = vunpack.c.l.b16 %v5584
  %v5749 = vunpack.c.h.b16 %v5584
  %v5750 = vunpack.c.l.b16 %v5585
  %v5751 = vunpack.c.h.b16 %v5585
  %v5752 = vunpack.c.l.b16 %v5586
  %v5753 = vunpack.c.h.b16 %v5586
  %v5754 = vunpack.c.l.b16 %v5587
  %v5755 = vunpack.c.h.b16 %v5587
  %v5756 = vunpack.c.l.b16 %v5588
  %v5757 = vunpack.c.h.b16 %v5588
  %v5758 = vunpack.c.l.b16 %v5589
  %v5759 = vunpack.c.h.b16 %v5589
  %v5760 = vunpack.c.l.b16 %v5590
  %v5761 = vunpack.c.h.b16 %v5590
  %v5762 = vunpack.c.l.b16 %v5591
  %v5763 = vunpack.c.h.b16 %v5591
  %v5764 = vunpack.c.l.b16 %v5592
  %v5765 = vunpack.c.h.b16 %v5592
  %v5766 = vunpack.c.l.b16 %v5593
  %v5767 = vunpack.c.h.b16 %v5593
  %v5768 = vunpack.c.l.b16 %v5594
  %v5769 = vunpack.c.h.b16 %v5594
  %v5770 = vunpack.c.l.b16 %v5595
  %v5771 = vunpack.c.h.b16 %v5595
  %v5772 = vunpack.c.l.b16 %v5596
  %v5773 = vunpack.c.h.b16 %v5596
  %v5774 = vunpack.c.l.b16 %v5597
  %v5775 = vunpack.c.h.b16 %v5597
  %v5776 = vunpack.c.l.b16 %v5598
  %v5777 = vunpack.c.h.b16 %v5598
  %v5778 = vunpack.c.l.b16 %v5599
  %v5779 = vunpack.c.h.b16 %v5599
  %v5780 = vunpack.c.l.b16 %v5600
  %v5781 = vunpack.c.h.b16 %v5600
  %v5782 = vunpack.c.l.b16 %v5601
  %v5783 = vunpack.c.h.b16 %v5601
  %v5784 = vunpack.c.l.b16 %v5602
  %v5785 = vunpack.c.h.b16 %v5602
  %v5786 = vunpack.c.l.b16 %v5603
  %v5787 = vunpack.c.h.b16 %v5603
  %v5788 = vunpack.c.l.b16 %v5604
  %v5789 = vunpack.c.h.b16 %v5604
  %v5790 = vunpack.c.l.b16 %v5605
  %v5791 = vunpack.c.h.b16 %v5605
  %v5792 = vunpack.c.l.b16 %v5606
  %v5793 = vunpack.c.h.b16 %v5606
  %v5794 = vunpack.c.l.b16 %v5607
  %v5795 = vunpack.c.h.b16 %v5607
  %v5796 = vunpack.c.l.b16 %v5608
  %v5797 = vunpack.c.h.b16 %v5608
  %v5798 = vunpack.c.l.b16 %v5609
  %v5799 = vunpack.c.h.b16 %v5609
  %v5800 = vunpack.c.l.b16 %v5610
  %v5801 = vunpack.c.h.b16 %v5610
  %v5802 = vunpack.c.l.b16 %v5611
  %v5803 = vunpack.c.h.b16 %v5611
  %v5804 = vpack.c.b16 %v5678, %v5676
  %v5805 = vpack.c.b16 %v5679, %v5677
  %v5806 = vpack.c.b16 %v5682, %v5680
  %v5807 = vpack.c.b16 %v5683, %v5681
  %v5808 = vpack.c.b16 %v5686, %v5684
  %v5809 = vpack.c.b16 %v5687, %v5685
  %v5810 = vpack.c.b16 %v5690, %v5688
  %v5811 = vpack.c.b16 %v5691, %v5689
  %v5812 = vpack.c.b16 %v5694, %v5692
  %v5813 = vpack.c.b16 %v5695, %v5693
  %v5814 = vpack.c.b16 %v5698, %v5696
  %v5815 = vpack.c.b16 %v5699, %v5697
  %v5816 = vpack.c.b16 %v5702, %v5700
  %v5817 = vpack.c.b16 %v5703, %v5701
  %v5818 = vpack.c.b16 %v5706, %v5704
  %v5819 = vpack.c.b16 %v5707, %v5705
  %v5820 = vpack.c.b16 %v5710, %v5708
  %v5821 = vpack.c.b16 %v5711, %v5709
  %v5822 = vpack.c.b16 %v5714, %v5712
  %v5823 = vpack.c.b16 %v5715, %v5713
  %v5824 = vpack.c.b16 %v5718, %v5716
  %v5825 = vpack.c.b16 %v5719, %v5717
  %v5826 = vpack.c.b16 %v5722, %v5720
  %v5827 = vpack.c.b16 %v5723, %v5721
  %v5828 = vpack.c.b16 %v5726, %v5724
  %v5829 = vpack.c.b16 %v5727, %v5725
  %v5830 = vpack.c.b16 %v5730, %v5728
  %v5831 = vpack.c.b16 %v5731, %v5729
  %v5832 = vpack.c.b16 %v5734, %v5732
  %v5833 = vpack.c.b16 %v5735, %v5733
  %v5834 = vpack.c.b16 %v5738, %v5736
  %v5835 = vpack.c.b16 %v5739, %v5737
  %v5836 = vpack.c.b16 %v5742, %v5740
  %v5837 = vpack.c.b16 %v5743, %v5741
  %v5838 = vpack.c.b16 %v5746, %v5744
  %v5839 = vpack.c.b16 %v5747, %v5745
  %v5840 = vpack.c.b16 %v5750, %v5748
  %v5841 = vpack.c.b16 %v5751, %v5749
  %v5842 = vpack.c.b16 %v5754, %v5752
  %v5843 = vpack.c.b16 %v5755, %v5753
  %v5844 = vpack.c.b16 %v5758, %v5756
  %v5845 = vpack.c.b16 %v5759, %v5757
  %v5846 = vpack.c.b16 %v5762, %v5760
  %v5847 = vpack.c.b16 %v5763, %v5761
  %v5848 = vpack.c.b16 %v5766, %v5764
  %v5849 = vpack.c.b16 %v5767, %v5765
  %v5850 = vpack.c.b16 %v5770, %v5768
  %v5851 = vpack.c.b16 %v5771, %v5769
  %v5852 = vpack.c.b16 %v5774, %v5772
  %v5853 = vpack.c.b16 %v5775, %v5773
  %v5854 = vpack.c.b16 %v5778, %v5776
  %v5855 = vpack.c.b16 %v5779, %v5777
  %v5856 = vpack.c.b16 %v5782, %v5780
  %v5857 = vpack.c.b16 %v5783, %v5781
  %v5858 = vpack.c.b16 %v5786, %v5784
  %v5859 = vpack.c.b16 %v5787, %v5785
  %v5860 = vpack.c.b16 %v5790, %v5788
  %v5861 = vpack.c.b16 %v5791, %v5789
  %v5862 = vpack.c.b16 %v5794, %v5792
  %v5863 = vpack.c.b16 %v5795, %v5793
  %v5864 = vpack.c.b16 %v5798, %v5796
  %v5865 = vpack.c.b16 %v5799, %v5797
  %v5866 = vpack.c.b16 %v5802, %v5800
  %v5867 = vpack.c.b16 %v5803, %v5801
  %5932 = vmatprep.subr.bf16.mxu0 %v5819
  %5933 = vmatpush1.bf16.msra.mxu0 %v5818
  %5934 = vmatprep.subr.bf16.mxu0 %v5817
  %5935 = vmatpush1.bf16.msra.mxu0 %v5816
  %5936 = vmatprep.subr.bf16.mxu0 %v5815
  %5937 = vmatpush1.bf16.msra.mxu0 %v5814
  %5938 = vmatprep.subr.bf16.mxu0 %v5813
  %5939 = vmatpush1.bf16.msra.mxu0 %v5812
  %5940 = vmatprep.subr.bf16.mxu0 %v5811
  %5941 = vmatpush1.bf16.msra.mxu0 %v5810
  %5942 = vmatprep.subr.bf16.mxu0 %v5809
  %5943 = vmatpush1.bf16.msra.mxu0 %v5808
  %5944 = vmatprep.subr.bf16.mxu0 %v5807
  %5945 = vmatpush1.bf16.msra.mxu0 %v5806
  %5946 = vmatprep.subr.bf16.mxu0 %v5805
  %5947 = vmatpush1.bf16.msra.mxu0 %v5804
  %5948 = vmatprep.subr.bf16.mxu0 %v5835
  %5949 = vmatpush2.bf16.msra.mxu0 %v5834
  %5950 = vmatprep.subr.bf16.mxu0 %v5833
  %5951 = vmatpush2.bf16.msra.mxu0 %v5832
  %5952 = vmatprep.subr.bf16.mxu0 %v5831
  %5953 = vmatpush2.bf16.msra.mxu0 %v5830
  %5954 = vmatprep.subr.bf16.mxu0 %v5829
  %5955 = vmatpush2.bf16.msra.mxu0 %v5828
  %5956 = vmatprep.subr.bf16.mxu0 %v5827
  %5957 = vmatpush2.bf16.msra.mxu0 %v5826
  %5958 = vmatprep.subr.bf16.mxu0 %v5825
  %5959 = vmatpush2.bf16.msra.mxu0 %v5824
  %5960 = vmatprep.subr.bf16.mxu0 %v5823
  %5961 = vmatpush2.bf16.msra.mxu0 %v5822
  %5962 = vmatprep.subr.bf16.mxu0 %v5821
  %5963 = vmatpush2.bf16.msra.mxu0 %v5820
  %5964 = vmatprep.mubr.bf16.mxu0 %v5545
  %5965 = vmatmul.mubr.bf16.gmra.mxu0 %v5544
  %v5966 = vpop.f32.mrf.mxu0
  %v5967 = vadd.f32 0.0, %v5966
  %v5968 = vpop.f32.mrf.mxu0
  %v5969 = vadd.f32 0.0, %v5968
  %v5970 = vpop.f32.mrf.mxu0
  %v5971 = vpop.f32.mrf.mxu0
  %5972 = vdwg.mxu0
  %5973 = vmatprep.subr.bf16.mxu0 %v5851
  %5974 = vmatpush1.bf16.msra.mxu0 %v5850
  %5975 = vmatprep.subr.bf16.mxu0 %v5849
  %5976 = vmatpush1.bf16.msra.mxu0 %v5848
  %5977 = vmatprep.subr.bf16.mxu0 %v5847
  %5978 = vmatpush1.bf16.msra.mxu0 %v5846
  %5979 = vmatprep.subr.bf16.mxu0 %v5845
  %5980 = vmatpush1.bf16.msra.mxu0 %v5844
  %5981 = vmatprep.subr.bf16.mxu0 %v5843
  %5982 = vmatpush1.bf16.msra.mxu0 %v5842
  %5983 = vmatprep.subr.bf16.mxu0 %v5841
  %5984 = vmatpush1.bf16.msra.mxu0 %v5840
  %5985 = vmatprep.subr.bf16.mxu0 %v5839
  %5986 = vmatpush1.bf16.msra.mxu0 %v5838
  %5987 = vmatprep.subr.bf16.mxu0 %v5837
  %5988 = vmatpush1.bf16.msra.mxu0 %v5836
  %5989 = vmatprep.subr.bf16.mxu0 %v5867
  %5990 = vmatpush2.bf16.msra.mxu0 %v5866
  %5991 = vmatprep.subr.bf16.mxu0 %v5865
  %5992 = vmatpush2.bf16.msra.mxu0 %v5864
  %5993 = vmatprep.subr.bf16.mxu0 %v5863
  %5994 = vmatpush2.bf16.msra.mxu0 %v5862
  %5995 = vmatprep.subr.bf16.mxu0 %v5861
  %5996 = vmatpush2.bf16.msra.mxu0 %v5860
  %5997 = vmatprep.subr.bf16.mxu0 %v5859
  %5998 = vmatpush2.bf16.msra.mxu0 %v5858
  %5999 = vmatprep.subr.bf16.mxu0 %v5857
  %6000 = vmatpush2.bf16.msra.mxu0 %v5856
  %6001 = vmatprep.subr.bf16.mxu0 %v5855
  %6002 = vmatpush2.bf16.msra.mxu0 %v5854
  %6003 = vmatprep.subr.bf16.mxu0 %v5853
  %6004 = vmatpush2.bf16.msra.mxu0 %v5852
  %6005 = vmatprep.mubr.bf16.mxu0 %v5547
  %6006 = vmatmul.mubr.bf16.gmra.mxu0 %v5546
  %v6007 = vpop.f32.mrf.mxu0
  %v6008 = vadd.f32 %v5967, %v6007
  %v6009 = vpop.f32.mrf.mxu0
  %v6010 = vadd.f32 %v5969, %v6009
  %v6011 = vpop.f32.mrf.mxu0
  %v6012 = vpop.f32.mrf.mxu0
  %6013 = vdwg.mxu0
  %6014 = vst [vmem:[%s8] sm:$0xff] %v6008
  %6015 = vst [vmem:[%s8 + $0x8] sm:$0xff] %v6010
  // Predicated region
  $region30: #{encoder_forward.1} parent=0 // pred_check
    _
  $region31: #{encoder_forward.1} parent=0 // pred_check_branch
    %6017 = sbr.rel (0) target = $region33
  $region32: #{encoder_forward.1} parent=0 // pred_region
    _
  $region33: #{encoder_forward.1} parent=0 // pred_fallthru
    _
  // Predicated region
  $region34: #{encoder_forward.1} parent=0 // pred_check
    _
  $region35: #{encoder_forward.1} parent=0 // pred_check_branch
    %6019 = sbr.rel (0) target = $region37
  $region36: #{encoder_forward.1} parent=0 // pred_region
    _
  $region37: #{encoder_forward.1} parent=0 // pred_fallthru
    _
  // Predicated region
  $region38: #{encoder_forward.1} parent=0 // pred_check
    _
  $region39: #{encoder_forward.1} parent=0 // pred_check_branch
    %6021 = sbr.rel (0) target = $region41
  $region40: #{encoder_forward.1} parent=0 // pred_region
    _
  $region41: #{encoder_forward.1} parent=0 // pred_fallthru
    _
  // Predicated region
  $region42: #{encoder_forward.1} parent=0 // pred_check
    _
  $region43: #{encoder_forward.1} parent=0 // pred_check_branch
    %6023 = sbr.rel (0) target = $region45
  $region44: #{encoder_forward.1} parent=0 // pred_region
    _
  $region45: #{encoder_forward.1} parent=0 // pred_fallthru
    _

</llo_original>
